<compile_context>
chip_gen: v5e
topology: v5e:2x2
jax: 0.10.0
libtpu: 0.0.40
codegen_flags: <defaults>
</compile_context>

<pallas_src>
import math

import jax
import jax.numpy as jnp
import numpy as np
from jax.experimental import pallas as pl
from jax.experimental.pallas import tpu as pltpu

NUM_LAYERS = 4
LANE = 128
SUBLANE = 8
BF16 = jnp.bfloat16
FC_TM = 256
FC_TN = 512
# PyTorch gate order is (i, f, g, o); kernel packs columns as (i, f, o, g) so
# the three sigmoids act on one contiguous (B, 3P) slice.
GATE_SLOT = (0, 1, 3, 2)


def _round_up(x, m):
    return ((x + m - 1) // m) * m


# --------------------------------------------------------------------------
# Fused multi-layer LSTM kernel (grid axis 0 = time chunks, sequential)
# --------------------------------------------------------------------------
def _make_lstm_stack_kernel(L, Tc, B, P, T_real, with_y):
    """x:(Tc,B,P) w_ih/w_hh:(L,P,4P) bf16  b:(L,1,4P)  h0/c0:(L,B,P)
    y (optional, batch-major block):(B,Tc,P)  hf/cf:(L,B,P)."""
    tail = T_real % Tc  # 0 when T divides the chunk size

    def kernel(x_ref, wih_ref, whh_ref, b_ref, h0_ref, c0_ref, *rest):
        if with_y:
            y_ref = rest[0]
            hf_ref, cf_ref, h_sc, c_sc, act_sc, xg_sc = rest[1:]
        else:
            y_ref = None
            hf_ref, cf_ref, h_sc, c_sc, act_sc, xg_sc = rest

        t_chunk = pl.program_id(0)
        n_chunks = pl.num_programs(0)

        @pl.when(t_chunk == 0)
        def _():
            h_sc[...] = h0_ref[...]
            c_sc[...] = c0_ref[...]

        for l in range(L):
            # (a) batched per-chunk input GEMM, M = Tc*B rows, bias folded in.
            src = x_ref if l == 0 else act_sc
            x_flat = src[...].reshape(Tc * B, P).astype(BF16)
            xg_sc[...] = (jnp.dot(x_flat, wih_ref[l],
                                  preferred_element_type=jnp.float32)
                          + b_ref[l])

            w_hh = whh_ref[l]                  # (P, 4P) bf16, reused over t
            h = h_sc[l]                        # (B, P) f32
            c = c_sc[l]
            last = (l == L - 1)
            for t in range(Tc):                # unrolled recurrent loop
                # (b) small per-step recurrent GEMM (latency-critical path).
                gates = xg_sc[t * B:(t + 1) * B, :] + jnp.dot(
                    h.astype(BF16), w_hh, preferred_element_type=jnp.float32)
                sig = jax.nn.sigmoid(gates[:, :3 * P])    # i, f, o fused
                i_g = sig[:, 0 * P:1 * P]
                f_g = sig[:, 1 * P:2 * P]
                o_g = sig[:, 2 * P:3 * P]
                g_g = jnp.tanh(gates[:, 3 * P:4 * P])
                c_new = f_g * c + i_g * g_g
                h_new = o_g * jnp.tanh(c_new)
                if tail and t >= tail:
                    # possible padded tail step: keep state unchanged there
                    valid = t_chunk * Tc + t < T_real
                    c = jnp.where(valid, c_new, c)
                    h = jnp.where(valid, h_new, h)
                else:
                    c, h = c_new, h_new
                if last:
                    if with_y:
                        y_ref[:, t, :] = h     # batch-major store, no copy
                else:
                    act_sc[t] = h              # feeds the next layer
            h_sc[l] = h
            c_sc[l] = c

        @pl.when(t_chunk == n_chunks - 1)
        def _():
            hf_ref[...] = h_sc[...]
            cf_ref[...] = c_sc[...]

    return kernel


def lstm_stack(x_tbp, w_ih, w_hh, b, h0, c0, *, return_outputs,
               max_time_chunk=8):
    """x_tbp:(T,B,P) f32  w_ih/w_hh:(L,P,4P) bf16  b:(L,1,4P)  h0/c0:(L,B,P)."""
    T, B, P = x_tbp.shape
    L = w_ih.shape[0]
    Tc = min(T, max_time_chunk)
    n_chunks = -(-T // Tc)
    Tp = n_chunks * Tc
    if Tp != T:
        x_tbp = jnp.pad(x_tbp, ((0, Tp - T), (0, 0), (0, 0)))

    kernel = _make_lstm_stack_kernel(L, Tc, B, P, T, return_outputs)

    inv = dict(pipeline_mode=pl.Buffered(1))   # grid-invariant blocks
    in_specs = [
        pl.BlockSpec((Tc, B, P), lambda t: (t, 0, 0)),               # x chunk
        pl.BlockSpec((L, P, 4 * P), lambda t: (0, 0, 0), **inv),     # W_ih
        pl.BlockSpec((L, P, 4 * P), lambda t: (0, 0, 0), **inv),     # W_hh
        pl.BlockSpec((L, 1, 4 * P), lambda t: (0, 0, 0), **inv),     # bias
        pl.BlockSpec((L, B, P), lambda t: (0, 0, 0), **inv),         # h0
        pl.BlockSpec((L, B, P), lambda t: (0, 0, 0), **inv),         # c0
    ]
    state_spec = pl.BlockSpec((L, B, P), lambda t: (0, 0, 0), **inv)
    state_shape = jax.ShapeDtypeStruct((L, B, P), jnp.float32)
    if return_outputs:
        out_specs = (pl.BlockSpec((B, Tc, P), lambda t: (0, t, 0)),  # y (B-major)
                     state_spec, state_spec)
        out_shape = (jax.ShapeDtypeStruct((B, Tp, P), jnp.float32),
                     state_shape, state_shape)
    else:
        out_specs = (state_spec, state_spec)
        out_shape = (state_shape, state_shape)

    scratch_shapes = [
        pltpu.VMEM((L, B, P), jnp.float32),        # carried h
        pltpu.VMEM((L, B, P), jnp.float32),        # carried c
        pltpu.VMEM((Tc, B, P), jnp.float32),       # inter-layer activations
        pltpu.VMEM((Tc * B, 4 * P), jnp.float32),  # per-chunk input-GEMM gates
    ]

    flops = int(4 * L * Tp * B * P * 4 * P)
    transcendentals = int(5 * L * Tp * B * P)
    bytes_accessed = int(4 * Tp * B * P * (2 if return_outputs else 1)
                         + 2 * int(w_ih.size) + 2 * int(w_hh.size)
                         + 4 * int(b.size) + 4 * 4 * L * B * P)

    grid_spec = pltpu.PrefetchScalarGridSpec(
        num_scalar_prefetch=0,
        grid=(n_chunks,),
        in_specs=in_specs,
        out_specs=out_specs,
        scratch_shapes=scratch_shapes,
    )
    outs = pl.pallas_call(
        kernel,
        out_shape=out_shape,
        grid_spec=grid_spec,
        compiler_params=pltpu.CompilerParams(
            dimension_semantics=("arbitrary",),          # time is sequential
            vmem_limit_bytes=64 * 1024 * 1024),
        cost_estimate=pl.CostEstimate(flops=flops,
                                      transcendentals=transcendentals,
                                      bytes_accessed=bytes_accessed),
    )(x_tbp, w_ih, w_hh, b, h0, c0)

    if return_outputs:
        y, hf, cf = outs
        return y[:, :T, :], hf, cf
    hf, cf = outs
    return hf, cf


# --------------------------------------------------------------------------
# Tiled FC kernel (big lane-dense tiles, vocab axis innermost, bf16 weights)
# --------------------------------------------------------------------------
def _fc_kernel(x_ref, w_ref, b_ref, o_ref):
    o_ref[...] = (jnp.dot(x_ref[...].astype(BF16), w_ref[...],
                          preferred_element_type=jnp.float32) + b_ref[...])


def linear(x2d, w, b, *, tm=FC_TM, tn=FC_TN):
    """x2d:(M,K) f32  w:(K,N) bf16  b:(1,N) f32; N pre-padded to tn multiple."""
    M, K = x2d.shape
    N = w.shape[1]
    assert N % tn == 0 and K % LANE == 0
    Mp = _round_up(M, tm)
    if Mp != M:
        x2d = jnp.pad(x2d, ((0, Mp - M), (0, 0)))
    out = pl.pallas_call(
        _fc_kernel,
        out_shape=jax.ShapeDtypeStruct((Mp, N), jnp.float32),
        grid=(Mp // tm, N // tn),     # vocab innermost -> x tile stays resident
        in_specs=[pl.BlockSpec((tm, K), lambda i, j: (i, 0)),
                  pl.BlockSpec((K, tn), lambda i, j: (0, j)),
                  pl.BlockSpec((1, tn), lambda i, j: (0, j))],
        out_specs=pl.BlockSpec((tm, tn), lambda i, j: (i, j)),
        compiler_params=pltpu.CompilerParams(
            dimension_semantics=("parallel", "parallel"),
            vmem_limit_bytes=64 * 1024 * 1024),
        cost_estimate=pl.CostEstimate(
            flops=int(2 * Mp * K * N), transcendentals=0,
            bytes_accessed=int(x2d.dtype.itemsize * Mp * K
                               + 2 * K * N * (Mp // tm) + 4 * Mp * N)),
    )(x2d, w, b)
    return out[:M]


# --------------------------------------------------------------------------
# Parameters: PyTorch-layout init + packing into kernel (padded, bf16) layout
# --------------------------------------------------------------------------
def init_params_torch(key, src_vocab, tgt_vocab, emb, hidden):
    keys = iter(jax.random.split(key, 128))

    def unif(shape, scale):
        return jax.random.uniform(next(keys), shape, jnp.float32, -scale, scale)

    scale = 1.0 / math.sqrt(hidden)

    def lstm_stack_params():
        layers = []
        for layer in range(NUM_LAYERS):
            in_dim = emb if layer == 0 else hidden
            layers.append(dict(
                w_ih=unif((4 * hidden, in_dim), scale),   # PyTorch (4H, in)
                w_hh=unif((4 * hidden, hidden), scale),   # (4H, H)
                b_ih=unif((4 * hidden,), scale),
                b_hh=unif((4 * hidden,), scale)))
        return layers

    return dict(
        src_emb=jax.random.normal(next(keys), (src_vocab, emb), jnp.float32),
        tgt_emb=jax.random.normal(next(keys), (tgt_vocab, emb), jnp.float32),
        encoder=lstm_stack_params(),
        decoder=lstm_stack_params(),
        fc_w=unif((tgt_vocab, hidden), scale),
        fc_b=unif((tgt_vocab,), scale),
    )


def _pack_lstm_stack(layers, emb, hidden, P):
    """Separate, transposed, gate-reordered, zero-padded, bf16 weights."""
    L = len(layers)
    H = hidden
    W_ih = np.zeros((L, P, 4 * P), np.float32)
    W_hh = np.zeros((L, P, 4 * P), np.float32)
    Bv = np.zeros((L, 1, 4 * P), np.float32)
    for l, lp in enumerate(layers):
        in_dim = emb if l == 0 else hidden
        w_ih = np.asarray(lp['w_ih'])
        w_hh = np.asarray(lp['w_hh'])
        bias = np.asarray(lp['b_ih']) + np.asarray(lp['b_hh'])
        for tg in range(4):                      # torch gate order i, f, g, o
            kg = GATE_SLOT[tg]
            W_ih[l, :in_dim, kg * P:kg * P + H] = w_ih[tg * H:(tg + 1) * H, :].T
            W_hh[l, :H, kg * P:kg * P + H] = w_hh[tg * H:(tg + 1) * H, :].T
            Bv[l, 0, kg * P:kg * P + H] = bias[tg * H:(tg + 1) * H]
    return (jnp.asarray(W_ih).astype(BF16),
            jnp.asarray(W_hh).astype(BF16),
            jnp.asarray(Bv))


def prepare_kernel_params(raw, emb, hidden, tgt_vocab, *, fc_tn=FC_TN):
    P = _round_up(max(emb, hidden), LANE)
    H = hidden

    enc_w_ih, enc_w_hh, enc_b = _pack_lstm_stack(raw['encoder'], emb, hidden, P)
    dec_w_ih, dec_w_hh, dec_b = _pack_lstm_stack(raw['decoder'], emb, hidden, P)

    def pad_emb(e):
        e = np.asarray(e)
        out = np.zeros((e.shape[0], P), np.float32)
        out[:, :e.shape[1]] = e
        return jnp.asarray(out)

    V = tgt_vocab
    Vp = _round_up(V, fc_tn)
    fc_w = np.zeros((P, Vp), np.float32)
    fc_w[:H, :V] = np.asarray(raw['fc_w']).T
    fc_b = np.zeros((1, Vp), np.float32)
    fc_b[0, :V] = np.asarray(raw['fc_b'])

    return dict(P=P, H=H, V=V,
                src_emb=pad_emb(raw['src_emb']),
                tgt_emb=pad_emb(raw['tgt_emb']),
                enc_w_ih=enc_w_ih, enc_w_hh=enc_w_hh, enc_b=enc_b,
                dec_w_ih=dec_w_ih, dec_w_hh=dec_w_hh, dec_b=dec_b,
                fc_w=jnp.asarray(fc_w).astype(BF16),
                fc_b=jnp.asarray(fc_b))


# --------------------------------------------------------------------------
# Model forward (train mode)
# --------------------------------------------------------------------------
def deep_nmt_forward(kp, source_data, target_data):
    """Equivalent of Deep_NMT.forward(source, target, mode='train')."""
    B, Ts = source_data.shape
    Tt = target_data.shape[1]
    P, V = kp['P'], kp['V']
    Bp = _round_up(B, SUBLANE)

    src_emb = jnp.take(kp['src_emb'], source_data, axis=0)    # (B, Ts, P)
    tgt_emb = jnp.take(kp['tgt_emb'], target_data, axis=0)    # (B, Tt, P)

    def to_tbp(e):                                            # batch->time major
        e = jnp.transpose(e, (1, 0, 2))
        if Bp != B:
            e = jnp.pad(e, ((0, 0), (0, Bp - B), (0, 0)))
        return e

    src = to_tbp(src_emb)                                     # (Ts, Bp, P)
    tgt = to_tbp(tgt_emb)                                     # (Tt, Bp, P)

    zeros = jnp.zeros((NUM_LAYERS, Bp, P), jnp.float32)
    enc_h, enc_c = lstm_stack(src, kp['enc_w_ih'], kp['enc_w_hh'], kp['enc_b'],
                              zeros, zeros, return_outputs=False)
    dec_y, _, _ = lstm_stack(tgt, kp['dec_w_ih'], kp['dec_w_hh'], kp['dec_b'],
                             enc_h, enc_c, return_outputs=True)

    # dec_y is already batch-major: (Bp, Tt, P) -> no transpose before the FC.
    logits = linear(dec_y.reshape(Bp * Tt, P), kp['fc_w'], kp['fc_b'])
    logits = logits.reshape(Bp, Tt, -1)
    return logits[:B, :, :V]


# --------------------------------------------------------------------------
# Pure-JAX references (PyTorch LSTM semantics, unpadded) for correctness
# --------------------------------------------------------------------------
def _mm_bf16(a, b):      # emulates the kernel's MXU math (bf16 in, f32 acc)
    return jnp.dot(a.astype(BF16), b.astype(BF16),
                   preferred_element_type=jnp.float32)


def _mm_f32(a, b):       # true f32 PyTorch semantics
    return jnp.dot(a, b, precision=jax.lax.Precision.HIGHEST)


def _lstm_ref(x_tbe, layers, h0, c0, mm):
    H = h0.shape[-1]

    def one_layer(x, lp, h_init, c_init):
        w_ih_t, w_hh_t = lp['w_ih'].T, lp['w_hh'].T
        bias = lp['b_ih'] + lp['b_hh']

        def step(carry, xt):
            h, c = carry
            gates = mm(xt, w_ih_t) + mm(h, w_hh_t) + bias
            i = jax.nn.sigmoid(gates[:, 0 * H:1 * H])
            f = jax.nn.sigmoid(gates[:, 1 * H:2 * H])
            g = jnp.tanh(gates[:, 2 * H:3 * H])
            o = jax.nn.sigmoid(gates[:, 3 * H:4 * H])
            c_new = f * c + i * g
            h_new = o * jnp.tanh(c_new)
            return (h_new, c_new), h_new

        (hf, cf), ys = jax.lax.scan(step, (h_init, c_init), x)
        return ys, hf, cf

    y = x_tbe
    hs, cs = [], []
    for l, lp in enumerate(layers):
        y, hf, cf = one_layer(y, lp, h0[l], c0[l])
        hs.append(hf)
        cs.append(cf)
    return y, jnp.stack(hs), jnp.stack(cs)


def deep_nmt_forward_ref(raw, source_data, target_data, hidden, mm):
    B = source_data.shape[0]
    src = jnp.transpose(jnp.take(raw['src_emb'], source_data, axis=0), (1, 0, 2))
    tgt = jnp.transpose(jnp.take(raw['tgt_emb'], target_data, axis=0), (1, 0, 2))
    zeros = jnp.zeros((NUM_LAYERS, B, hidden), jnp.float32)
    _, eh, ec = _lstm_ref(src, raw['encoder'], zeros, zeros, mm)
    y, _, _ = _lstm_ref(tgt, raw['decoder'], eh, ec, mm)
    return mm(jnp.transpose(y, (1, 0, 2)), raw['fc_w'].T) + raw['fc_b']


# --------------------------------------------------------------------------
if __name__ == "__main__":
    SRC_VOCAB, TGT_VOCAB = 50, 60
    EMB, HIDDEN = 32, 32
    B, T_SRC, T_TGT = 2, 16, 16

    key = jax.random.PRNGKey(0)
    pkey, skey, tkey = jax.random.split(key, 3)

    raw = init_params_torch(pkey, SRC_VOCAB, TGT_VOCAB, EMB, HIDDEN)
    kp = prepare_kernel_params(raw, EMB, HIDDEN, TGT_VOCAB)

    source_data = jax.random.randint(skey, (B, T_SRC), 0, SRC_VOCAB)
    target_data = jax.random.randint(tkey, (B, T_TGT), 0, TGT_VOCAB)

    out = deep_nmt_forward(kp, source_data, target_data)      # (B, T_TGT, V)
    out = jax.block_until_ready(out)

    # Tight check: reference using the same numerics as the kernel
    # (bf16 matmul operands, f32 accumulation, f32 elementwise gates).
    ref_bf16 = deep_nmt_forward_ref(raw, source_data, target_data, HIDDEN,
                                    _mm_bf16)
    np.testing.assert_allclose(np.asarray(out), np.asarray(ref_bf16),
                               rtol=5e-3, atol=5e-3)

    # Loose sanity check vs the full-f32 PyTorch-semantics reference
    # (bf16 weights make this an approximate comparison).
    ref_f32 = deep_nmt_forward_ref(raw, source_data, target_data, HIDDEN,
                                   _mm_f32)
    max_diff = float(jnp.max(jnp.abs(out - ref_f32)))
    assert max_diff < 0.25, f"f32-reference drift too large: {max_diff}"

    print("KERNEL_OK")
</pallas_src>

<mosaic_0001>
module attributes {stable_mosaic.version = 11 : i64} {
  func.func @kernel(%arg0: i32, %arg1: memref<8x8x128xf32, #tpu.memory_space<vmem>>, %arg2: memref<4x128x512xbf16, #tpu.memory_space<vmem>>, %arg3: memref<4x128x512xbf16, #tpu.memory_space<vmem>>, %arg4: memref<4x1x512xf32, #tpu.memory_space<vmem>>, %arg5: memref<4x8x128xf32, #tpu.memory_space<vmem>>, %arg6: memref<4x8x128xf32, #tpu.memory_space<vmem>>, %arg7: memref<4x8x128xf32, #tpu.memory_space<vmem>>, %arg8: memref<4x8x128xf32, #tpu.memory_space<vmem>>, %arg9: memref<4x8x128xf32, #tpu.memory_space<vmem>>, %arg10: memref<4x8x128xf32, #tpu.memory_space<vmem>>, %arg11: memref<8x8x128xf32, #tpu.memory_space<vmem>>, %arg12: memref<64x512xf32, #tpu.memory_space<vmem>>) attributes {dimension_semantics = [#tpu.dimension_semantics<arbitrary>], iteration_bounds = array<i64: 2>, scalar_prefetch = 0 : i64, scratch_operands = 4 : i64, tpu.core_type = #tpu.core_type<tc>, window_params = [{transform_indices = @transform_0, window_bounds = array<i64: 8, 8, 128>}, {pipeline_mode = #tpu.pipeline_mode<synchronous>, transform_indices = @transform_1, window_bounds = array<i64: 4, 128, 512>}, {pipeline_mode = #tpu.pipeline_mode<synchronous>, transform_indices = @transform_2, window_bounds = array<i64: 4, 128, 512>}, {pipeline_mode = #tpu.pipeline_mode<synchronous>, transform_indices = @transform_3, window_bounds = array<i64: 4, 1, 512>}, {pipeline_mode = #tpu.pipeline_mode<synchronous>, transform_indices = @transform_4, window_bounds = array<i64: 4, 8, 128>}, {pipeline_mode = #tpu.pipeline_mode<synchronous>, transform_indices = @transform_5, window_bounds = array<i64: 4, 8, 128>}, {pipeline_mode = #tpu.pipeline_mode<synchronous>, transform_indices = @transform_6, window_bounds = array<i64: 4, 8, 128>}, {pipeline_mode = #tpu.pipeline_mode<synchronous>, transform_indices = @transform_7, window_bounds = array<i64: 4, 8, 128>}]} {
    %c0_i32 = arith.constant 0 : i32
    %0 = arith.cmpi eq, %arg0, %c0_i32 : i32
    %1 = arith.extui %0 : i1 to i32
    %c0_i32_0 = arith.constant 0 : i32
    %2 = arith.cmpi ne, %1, %c0_i32_0 : i32
    scf.if %2 {
      %c0_294 = arith.constant 0 : index
      %c0_295 = arith.constant 0 : index
      %c0_296 = arith.constant 0 : index
      %810 = vector.load %arg5[%c0_294, %c0_295, %c0_296] : memref<4x8x128xf32, #tpu.memory_space<vmem>>, vector<4x8x128xf32>
      %c0_297 = arith.constant 0 : index
      %c0_298 = arith.constant 0 : index
      %c0_299 = arith.constant 0 : index
      %811 = vector.load %arg9[%c0_297, %c0_298, %c0_299] : memref<4x8x128xf32, #tpu.memory_space<vmem>>, vector<4x8x128xf32>
      tpu.vector_store %arg9[%c0_297, %c0_298, %c0_299], %810 {strides = array<i32>} : memref<4x8x128xf32, #tpu.memory_space<vmem>>, vector<4x8x128xf32>,
      %c0_300 = arith.constant 0 : index
      %c0_301 = arith.constant 0 : index
      %c0_302 = arith.constant 0 : index
      %812 = vector.load %arg6[%c0_300, %c0_301, %c0_302] : memref<4x8x128xf32, #tpu.memory_space<vmem>>, vector<4x8x128xf32>
      %c0_303 = arith.constant 0 : index
      %c0_304 = arith.constant 0 : index
      %c0_305 = arith.constant 0 : index
      %813 = vector.load %arg10[%c0_303, %c0_304, %c0_305] : memref<4x8x128xf32, #tpu.memory_space<vmem>>, vector<4x8x128xf32>
      tpu.vector_store %arg10[%c0_303, %c0_304, %c0_305], %812 {strides = array<i32>} : memref<4x8x128xf32, #tpu.memory_space<vmem>>, vector<4x8x128xf32>,
    } else {
    }
    %c0 = arith.constant 0 : index
    %c0_1 = arith.constant 0 : index
    %c0_2 = arith.constant 0 : index
    %3 = vector.load %arg1[%c0, %c0_1, %c0_2] : memref<8x8x128xf32, #tpu.memory_space<vmem>>, vector<8x8x128xf32>
    %4 = vector.shape_cast %3 : vector<8x8x128xf32> to vector<64x128xf32>
    %5 = arith.truncf %4 : vector<64x128xf32> to vector<64x128xbf16>
    %c0_3 = arith.constant 0 : index
    %c0_4 = arith.constant 0 : index
    %c0_5 = arith.constant 0 : index
    %6 = vector.load %arg2[%c0_3, %c0_4, %c0_5] : memref<4x128x512xbf16, #tpu.memory_space<vmem>>, vector<1x128x512xbf16>
    %7 = vector.shape_cast %6 : vector<1x128x512xbf16> to vector<128x512xbf16>
    %cst = arith.constant dense<0.000000e+00> : vector<64x512xf32>
    %8 = tpu.matmul %5, %7, %cst {dimension_numbers = #tpu.dot_dimension_numbers<[1], [0], [0], [1], [0, 0, 1, 1], [], []>} : vector<64x128xbf16>, vector<128x512xbf16>, vector<64x512xf32> -> vector<64x512xf32>
    %c0_6 = arith.constant 0 : index
    %c0_7 = arith.constant 0 : index
    %c0_8 = arith.constant 0 : index
    %9 = vector.load %arg4[%c0_6, %c0_7, %c0_8] : memref<4x1x512xf32, #tpu.memory_space<vmem>>, vector<1x1x512xf32>
    %10 = vector.shape_cast %9 : vector<1x1x512xf32> to vector<1x512xf32>
    %11 = vector.broadcast %10 : vector<1x512xf32> to vector<64x512xf32>
    %12 = arith.addf %8, %11 : vector<64x512xf32>
    %c0_9 = arith.constant 0 : index
    %c0_10 = arith.constant 0 : index
    %13 = vector.load %arg12[%c0_9, %c0_10] : memref<64x512xf32, #tpu.memory_space<vmem>>, vector<64x512xf32>
    tpu.vector_store %arg12[%c0_9, %c0_10], %12 {strides = array<i32>} : memref<64x512xf32, #tpu.memory_space<vmem>>, vector<64x512xf32>,
    %c0_11 = arith.constant 0 : index
    %c0_12 = arith.constant 0 : index
    %c0_13 = arith.constant 0 : index
    %14 = vector.load %arg3[%c0_11, %c0_12, %c0_13] : memref<4x128x512xbf16, #tpu.memory_space<vmem>>, vector<1x128x512xbf16>
    %15 = vector.shape_cast %14 : vector<1x128x512xbf16> to vector<128x512xbf16>
    %c0_14 = arith.constant 0 : index
    %c0_15 = arith.constant 0 : index
    %c0_16 = arith.constant 0 : index
    %16 = vector.load %arg9[%c0_14, %c0_15, %c0_16] : memref<4x8x128xf32, #tpu.memory_space<vmem>>, vector<1x8x128xf32>
    %17 = vector.shape_cast %16 : vector<1x8x128xf32> to vector<8x128xf32>
    %c0_17 = arith.constant 0 : index
    %c0_18 = arith.constant 0 : index
    %c0_19 = arith.constant 0 : index
    %18 = vector.load %arg10[%c0_17, %c0_18, %c0_19] : memref<4x8x128xf32, #tpu.memory_space<vmem>>, vector<1x8x128xf32>
    %19 = vector.shape_cast %18 : vector<1x8x128xf32> to vector<8x128xf32>
    %c0_20 = arith.constant 0 : index
    %c0_21 = arith.constant 0 : index
    %20 = vector.load %arg12[%c0_20, %c0_21] : memref<64x512xf32, #tpu.memory_space<vmem>>, vector<8x512xf32>
    %21 = arith.truncf %17 : vector<8x128xf32> to vector<8x128xbf16>
    %cst_22 = arith.constant dense<0.000000e+00> : vector<8x512xf32>
    %22 = tpu.matmul %21, %15, %cst_22 {dimension_numbers = #tpu.dot_dimension_numbers<[1], [0], [0], [1], [0, 0, 1, 1], [], []>} : vector<8x128xbf16>, vector<128x512xbf16>, vector<8x512xf32> -> vector<8x512xf32>
    %23 = arith.addf %20, %22 : vector<8x512xf32>
    %24 = vector.extract_strided_slice %23 {offsets = [0, 0], sizes = [8, 384], strides = [1, 1]} : vector<8x512xf32> to vector<8x384xf32>
    %25 = arith.negf %24 : vector<8x384xf32>
    %26 = math.exp %25 : vector<8x384xf32>
    %cst_23 = arith.constant 1.000000e+00 : f32
    %27 = vector.broadcast %cst_23 : f32 to vector<8x384xf32>
    %28 = arith.addf %27, %26 : vector<8x384xf32>
    %29 = arith.divf %27, %28 : vector<8x384xf32>
    %30 = vector.extract_strided_slice %29 {offsets = [0, 0], sizes = [8, 128], strides = [1, 1]} : vector<8x384xf32> to vector<8x128xf32>
    %31 = vector.extract_strided_slice %29 {offsets = [0, 128], sizes = [8, 128], strides = [1, 1]} : vector<8x384xf32> to vector<8x128xf32>
    %32 = vector.extract_strided_slice %29 {offsets = [0, 256], sizes = [8, 128], strides = [1, 1]} : vector<8x384xf32> to vector<8x128xf32>
    %33 = vector.extract_strided_slice %23 {offsets = [0, 384], sizes = [8, 128], strides = [1, 1]} : vector<8x512xf32> to vector<8x128xf32>
    %34 = math.tanh %33 : vector<8x128xf32>
    %35 = arith.mulf %31, %19 : vector<8x128xf32>
    %36 = arith.mulf %30, %34 : vector<8x128xf32>
    %37 = arith.addf %35, %36 : vector<8x128xf32>
    %38 = math.tanh %37 : vector<8x128xf32>
    %39 = arith.mulf %32, %38 : vector<8x128xf32>
    %c0_24 = arith.constant 0 : index
    %c0_25 = arith.constant 0 : index
    %c0_26 = arith.constant 0 : index
    %40 = vector.load %arg11[%c0_24, %c0_25, %c0_26] : memref<8x8x128xf32, #tpu.memory_space<vmem>>, vector<1x8x128xf32>
    %41 = vector.shape_cast %40 : vector<1x8x128xf32> to vector<8x128xf32>
    %42 = vector.shape_cast %39 : vector<8x128xf32> to vector<1x8x128xf32>
    tpu.vector_store %arg11[%c0_24, %c0_25, %c0_26], %42 {strides = array<i32>} : memref<8x8x128xf32, #tpu.memory_space<vmem>>, vector<1x8x128xf32>,
    %c8 = arith.constant 8 : index
    %c0_27 = arith.constant 0 : index
    %43 = vector.load %arg12[%c8, %c0_27] : memref<64x512xf32, #tpu.memory_space<vmem>>, vector<8x512xf32>
    %44 = arith.truncf %39 : vector<8x128xf32> to vector<8x128xbf16>
    %cst_28 = arith.constant dense<0.000000e+00> : vector<8x512xf32>
    %45 = tpu.matmul %44, %15, %cst_28 {dimension_numbers = #tpu.dot_dimension_numbers<[1], [0], [0], [1], [0, 0, 1, 1], [], []>} : vector<8x128xbf16>, vector<128x512xbf16>, vector<8x512xf32> -> vector<8x512xf32>
    %46 = arith.addf %43, %45 : vector<8x512xf32>
    %47 = vector.extract_strided_slice %46 {offsets = [0, 0], sizes = [8, 384], strides = [1, 1]} : vector<8x512xf32> to vector<8x384xf32>
    %48 = arith.negf %47 : vector<8x384xf32>
    %49 = math.exp %48 : vector<8x384xf32>
    %cst_29 = arith.constant 1.000000e+00 : f32
    %50 = vector.broadcast %cst_29 : f32 to vector<8x384xf32>
    %51 = arith.addf %50, %49 : vector<8x384xf32>
    %52 = arith.divf %50, %51 : vector<8x384xf32>
    %53 = vector.extract_strided_slice %52 {offsets = [0, 0], sizes = [8, 128], strides = [1, 1]} : vector<8x384xf32> to vector<8x128xf32>
    %54 = vector.extract_strided_slice %52 {offsets = [0, 128], sizes = [8, 128], strides = [1, 1]} : vector<8x384xf32> to vector<8x128xf32>
    %55 = vector.extract_strided_slice %52 {offsets = [0, 256], sizes = [8, 128], strides = [1, 1]} : vector<8x384xf32> to vector<8x128xf32>
    %56 = vector.extract_strided_slice %46 {offsets = [0, 384], sizes = [8, 128], strides = [1, 1]} : vector<8x512xf32> to vector<8x128xf32>
    %57 = math.tanh %56 : vector<8x128xf32>
    %58 = arith.mulf %54, %37 : vector<8x128xf32>
    %59 = arith.mulf %53, %57 : vector<8x128xf32>
    %60 = arith.addf %58, %59 : vector<8x128xf32>
    %61 = math.tanh %60 : vector<8x128xf32>
    %62 = arith.mulf %55, %61 : vector<8x128xf32>
    %c1 = arith.constant 1 : index
    %c0_30 = arith.constant 0 : index
    %c0_31 = arith.constant 0 : index
    %63 = vector.load %arg11[%c1, %c0_30, %c0_31] : memref<8x8x128xf32, #tpu.memory_space<vmem>>, vector<1x8x128xf32>
    %64 = vector.shape_cast %63 : vector<1x8x128xf32> to vector<8x128xf32>
    %65 = vector.shape_cast %62 : vector<8x128xf32> to vector<1x8x128xf32>
    tpu.vector_store %arg11[%c1, %c0_30, %c0_31], %65 {strides = array<i32>} : memref<8x8x128xf32, #tpu.memory_space<vmem>>, vector<1x8x128xf32>,
    %c16 = arith.constant 16 : index
    %c0_32 = arith.constant 0 : index
    %66 = vector.load %arg12[%c16, %c0_32] : memref<64x512xf32, #tpu.memory_space<vmem>>, vector<8x512xf32>
    %67 = arith.truncf %62 : vector<8x128xf32> to vector<8x128xbf16>
    %cst_33 = arith.constant dense<0.000000e+00> : vector<8x512xf32>
    %68 = tpu.matmul %67, %15, %cst_33 {dimension_numbers = #tpu.dot_dimension_numbers<[1], [0], [0], [1], [0, 0, 1, 1], [], []>} : vector<8x128xbf16>, vector<128x512xbf16>, vector<8x512xf32> -> vector<8x512xf32>
    %69 = arith.addf %66, %68 : vector<8x512xf32>
    %70 = vector.extract_strided_slice %69 {offsets = [0, 0], sizes = [8, 384], strides = [1, 1]} : vector<8x512xf32> to vector<8x384xf32>
    %71 = arith.negf %70 : vector<8x384xf32>
    %72 = math.exp %71 : vector<8x384xf32>
    %cst_34 = arith.constant 1.000000e+00 : f32
    %73 = vector.broadcast %cst_34 : f32 to vector<8x384xf32>
    %74 = arith.addf %73, %72 : vector<8x384xf32>
    %75 = arith.divf %73, %74 : vector<8x384xf32>
    %76 = vector.extract_strided_slice %75 {offsets = [0, 0], sizes = [8, 128], strides = [1, 1]} : vector<8x384xf32> to vector<8x128xf32>
    %77 = vector.extract_strided_slice %75 {offsets = [0, 128], sizes = [8, 128], strides = [1, 1]} : vector<8x384xf32> to vector<8x128xf32>
    %78 = vector.extract_strided_slice %75 {offsets = [0, 256], sizes = [8, 128], strides = [1, 1]} : vector<8x384xf32> to vector<8x128xf32>
    %79 = vector.extract_strided_slice %69 {offsets = [0, 384], sizes = [8, 128], strides = [1, 1]} : vector<8x512xf32> to vector<8x128xf32>
    %80 = math.tanh %79 : vector<8x128xf32>
    %81 = arith.mulf %77, %60 : vector<8x128xf32>
    %82 = arith.mulf %76, %80 : vector<8x128xf32>
    %83 = arith.addf %81, %82 : vector<8x128xf32>
    %84 = math.tanh %83 : vector<8x128xf32>
    %85 = arith.mulf %78, %84 : vector<8x128xf32>
    %c2 = arith.constant 2 : index
    %c0_35 = arith.constant 0 : index
    %c0_36 = arith.constant 0 : index
    %86 = vector.load %arg11[%c2, %c0_35, %c0_36] : memref<8x8x128xf32, #tpu.memory_space<vmem>>, vector<1x8x128xf32>
    %87 = vector.shape_cast %86 : vector<1x8x128xf32> to vector<8x128xf32>
    %88 = vector.shape_cast %85 : vector<8x128xf32> to vector<1x8x128xf32>
    tpu.vector_store %arg11[%c2, %c0_35, %c0_36], %88 {strides = array<i32>} : memref<8x8x128xf32, #tpu.memory_space<vmem>>, vector<1x8x128xf32>,
    %c24 = arith.constant 24 : index
    %c0_37 = arith.constant 0 : index
    %89 = vector.load %arg12[%c24, %c0_37] : memref<64x512xf32, #tpu.memory_space<vmem>>, vector<8x512xf32>
    %90 = arith.truncf %85 : vector<8x128xf32> to vector<8x128xbf16>
    %cst_38 = arith.constant dense<0.000000e+00> : vector<8x512xf32>
    %91 = tpu.matmul %90, %15, %cst_38 {dimension_numbers = #tpu.dot_dimension_numbers<[1], [0], [0], [1], [0, 0, 1, 1], [], []>} : vector<8x128xbf16>, vector<128x512xbf16>, vector<8x512xf32> -> vector<8x512xf32>
    %92 = arith.addf %89, %91 : vector<8x512xf32>
    %93 = vector.extract_strided_slice %92 {offsets = [0, 0], sizes = [8, 384], strides = [1, 1]} : vector<8x512xf32> to vector<8x384xf32>
    %94 = arith.negf %93 : vector<8x384xf32>
    %95 = math.exp %94 : vector<8x384xf32>
    %cst_39 = arith.constant 1.000000e+00 : f32
    %96 = vector.broadcast %cst_39 : f32 to vector<8x384xf32>
    %97 = arith.addf %96, %95 : vector<8x384xf32>
    %98 = arith.divf %96, %97 : vector<8x384xf32>
    %99 = vector.extract_strided_slice %98 {offsets = [0, 0], sizes = [8, 128], strides = [1, 1]} : vector<8x384xf32> to vector<8x128xf32>
    %100 = vector.extract_strided_slice %98 {offsets = [0, 128], sizes = [8, 128], strides = [1, 1]} : vector<8x384xf32> to vector<8x128xf32>
    %101 = vector.extract_strided_slice %98 {offsets = [0, 256], sizes = [8, 128], strides = [1, 1]} : vector<8x384xf32> to vector<8x128xf32>
    %102 = vector.extract_strided_slice %92 {offsets = [0, 384], sizes = [8, 128], strides = [1, 1]} : vector<8x512xf32> to vector<8x128xf32>
    %103 = math.tanh %102 : vector<8x128xf32>
    %104 = arith.mulf %100, %83 : vector<8x128xf32>
    %105 = arith.mulf %99, %103 : vector<8x128xf32>
    %106 = arith.addf %104, %105 : vector<8x128xf32>
    %107 = math.tanh %106 : vector<8x128xf32>
    %108 = arith.mulf %101, %107 : vector<8x128xf32>
    %c3 = arith.constant 3 : index
    %c0_40 = arith.constant 0 : index
    %c0_41 = arith.constant 0 : index
    %109 = vector.load %arg11[%c3, %c0_40, %c0_41] : memref<8x8x128xf32, #tpu.memory_space<vmem>>, vector<1x8x128xf32>
    %110 = vector.shape_cast %109 : vector<1x8x128xf32> to vector<8x128xf32>
    %111 = vector.shape_cast %108 : vector<8x128xf32> to vector<1x8x128xf32>
    tpu.vector_store %arg11[%c3, %c0_40, %c0_41], %111 {strides = array<i32>} : memref<8x8x128xf32, #tpu.memory_space<vmem>>, vector<1x8x128xf32>,
    %c32 = arith.constant 32 : index
    %c0_42 = arith.constant 0 : index
    %112 = vector.load %arg12[%c32, %c0_42] : memref<64x512xf32, #tpu.memory_space<vmem>>, vector<8x512xf32>
    %113 = arith.truncf %108 : vector<8x128xf32> to vector<8x128xbf16>
    %cst_43 = arith.constant dense<0.000000e+00> : vector<8x512xf32>
    %114 = tpu.matmul %113, %15, %cst_43 {dimension_numbers = #tpu.dot_dimension_numbers<[1], [0], [0], [1], [0, 0, 1, 1], [], []>} : vector<8x128xbf16>, vector<128x512xbf16>, vector<8x512xf32> -> vector<8x512xf32>
    %115 = arith.addf %112, %114 : vector<8x512xf32>
    %116 = vector.extract_strided_slice %115 {offsets = [0, 0], sizes = [8, 384], strides = [1, 1]} : vector<8x512xf32> to vector<8x384xf32>
    %117 = arith.negf %116 : vector<8x384xf32>
    %118 = math.exp %117 : vector<8x384xf32>
    %cst_44 = arith.constant 1.000000e+00 : f32
    %119 = vector.broadcast %cst_44 : f32 to vector<8x384xf32>
    %120 = arith.addf %119, %118 : vector<8x384xf32>
    %121 = arith.divf %119, %120 : vector<8x384xf32>
    %122 = vector.extract_strided_slice %121 {offsets = [0, 0], sizes = [8, 128], strides = [1, 1]} : vector<8x384xf32> to vector<8x128xf32>
    %123 = vector.extract_strided_slice %121 {offsets = [0, 128], sizes = [8, 128], strides = [1, 1]} : vector<8x384xf32> to vector<8x128xf32>
    %124 = vector.extract_strided_slice %121 {offsets = [0, 256], sizes = [8, 128], strides = [1, 1]} : vector<8x384xf32> to vector<8x128xf32>
    %125 = vector.extract_strided_slice %115 {offsets = [0, 384], sizes = [8, 128], strides = [1, 1]} : vector<8x512xf32> to vector<8x128xf32>
    %126 = math.tanh %125 : vector<8x128xf32>
    %127 = arith.mulf %123, %106 : vector<8x128xf32>
    %128 = arith.mulf %122, %126 : vector<8x128xf32>
    %129 = arith.addf %127, %128 : vector<8x128xf32>
    %130 = math.tanh %129 : vector<8x128xf32>
    %131 = arith.mulf %124, %130 : vector<8x128xf32>
    %c4 = arith.constant 4 : index
    %c0_45 = arith.constant 0 : index
    %c0_46 = arith.constant 0 : index
    %132 = vector.load %arg11[%c4, %c0_45, %c0_46] : memref<8x8x128xf32, #tpu.memory_space<vmem>>, vector<1x8x128xf32>
    %133 = vector.shape_cast %132 : vector<1x8x128xf32> to vector<8x128xf32>
    %134 = vector.shape_cast %131 : vector<8x128xf32> to vector<1x8x128xf32>
    tpu.vector_store %arg11[%c4, %c0_45, %c0_46], %134 {strides = array<i32>} : memref<8x8x128xf32, #tpu.memory_space<vmem>>, vector<1x8x128xf32>,
    %c40 = arith.constant 40 : index
    %c0_47 = arith.constant 0 : index
    %135 = vector.load %arg12[%c40, %c0_47] : memref<64x512xf32, #tpu.memory_space<vmem>>, vector<8x512xf32>
    %136 = arith.truncf %131 : vector<8x128xf32> to vector<8x128xbf16>
    %cst_48 = arith.constant dense<0.000000e+00> : vector<8x512xf32>
    %137 = tpu.matmul %136, %15, %cst_48 {dimension_numbers = #tpu.dot_dimension_numbers<[1], [0], [0], [1], [0, 0, 1, 1], [], []>} : vector<8x128xbf16>, vector<128x512xbf16>, vector<8x512xf32> -> vector<8x512xf32>
    %138 = arith.addf %135, %137 : vector<8x512xf32>
    %139 = vector.extract_strided_slice %138 {offsets = [0, 0], sizes = [8, 384], strides = [1, 1]} : vector<8x512xf32> to vector<8x384xf32>
    %140 = arith.negf %139 : vector<8x384xf32>
    %141 = math.exp %140 : vector<8x384xf32>
    %cst_49 = arith.constant 1.000000e+00 : f32
    %142 = vector.broadcast %cst_49 : f32 to vector<8x384xf32>
    %143 = arith.addf %142, %141 : vector<8x384xf32>
    %144 = arith.divf %142, %143 : vector<8x384xf32>
    %145 = vector.extract_strided_slice %144 {offsets = [0, 0], sizes = [8, 128], strides = [1, 1]} : vector<8x384xf32> to vector<8x128xf32>
    %146 = vector.extract_strided_slice %144 {offsets = [0, 128], sizes = [8, 128], strides = [1, 1]} : vector<8x384xf32> to vector<8x128xf32>
    %147 = vector.extract_strided_slice %144 {offsets = [0, 256], sizes = [8, 128], strides = [1, 1]} : vector<8x384xf32> to vector<8x128xf32>
    %148 = vector.extract_strided_slice %138 {offsets = [0, 384], sizes = [8, 128], strides = [1, 1]} : vector<8x512xf32> to vector<8x128xf32>
    %149 = math.tanh %148 : vector<8x128xf32>
    %150 = arith.mulf %146, %129 : vector<8x128xf32>
    %151 = arith.mulf %145, %149 : vector<8x128xf32>
    %152 = arith.addf %150, %151 : vector<8x128xf32>
    %153 = math.tanh %152 : vector<8x128xf32>
    %154 = arith.mulf %147, %153 : vector<8x128xf32>
    %c5 = arith.constant 5 : index
    %c0_50 = arith.constant 0 : index
    %c0_51 = arith.constant 0 : index
    %155 = vector.load %arg11[%c5, %c0_50, %c0_51] : memref<8x8x128xf32, #tpu.memory_space<vmem>>, vector<1x8x128xf32>
    %156 = vector.shape_cast %155 : vector<1x8x128xf32> to vector<8x128xf32>
    %157 = vector.shape_cast %154 : vector<8x128xf32> to vector<1x8x128xf32>
    tpu.vector_store %arg11[%c5, %c0_50, %c0_51], %157 {strides = array<i32>} : memref<8x8x128xf32, #tpu.memory_space<vmem>>, vector<1x8x128xf32>,
    %c48 = arith.constant 48 : index
    %c0_52 = arith.constant 0 : index
    %158 = vector.load %arg12[%c48, %c0_52] : memref<64x512xf32, #tpu.memory_space<vmem>>, vector<8x512xf32>
    %159 = arith.truncf %154 : vector<8x128xf32> to vector<8x128xbf16>
    %cst_53 = arith.constant dense<0.000000e+00> : vector<8x512xf32>
    %160 = tpu.matmul %159, %15, %cst_53 {dimension_numbers = #tpu.dot_dimension_numbers<[1], [0], [0], [1], [0, 0, 1, 1], [], []>} : vector<8x128xbf16>, vector<128x512xbf16>, vector<8x512xf32> -> vector<8x512xf32>
    %161 = arith.addf %158, %160 : vector<8x512xf32>
    %162 = vector.extract_strided_slice %161 {offsets = [0, 0], sizes = [8, 384], strides = [1, 1]} : vector<8x512xf32> to vector<8x384xf32>
    %163 = arith.negf %162 : vector<8x384xf32>
    %164 = math.exp %163 : vector<8x384xf32>
    %cst_54 = arith.constant 1.000000e+00 : f32
    %165 = vector.broadcast %cst_54 : f32 to vector<8x384xf32>
    %166 = arith.addf %165, %164 : vector<8x384xf32>
    %167 = arith.divf %165, %166 : vector<8x384xf32>
    %168 = vector.extract_strided_slice %167 {offsets = [0, 0], sizes = [8, 128], strides = [1, 1]} : vector<8x384xf32> to vector<8x128xf32>
    %169 = vector.extract_strided_slice %167 {offsets = [0, 128], sizes = [8, 128], strides = [1, 1]} : vector<8x384xf32> to vector<8x128xf32>
    %170 = vector.extract_strided_slice %167 {offsets = [0, 256], sizes = [8, 128], strides = [1, 1]} : vector<8x384xf32> to vector<8x128xf32>
    %171 = vector.extract_strided_slice %161 {offsets = [0, 384], sizes = [8, 128], strides = [1, 1]} : vector<8x512xf32> to vector<8x128xf32>
    %172 = math.tanh %171 : vector<8x128xf32>
    %173 = arith.mulf %169, %152 : vector<8x128xf32>
    %174 = arith.mulf %168, %172 : vector<8x128xf32>
    %175 = arith.addf %173, %174 : vector<8x128xf32>
    %176 = math.tanh %175 : vector<8x128xf32>
    %177 = arith.mulf %170, %176 : vector<8x128xf32>
    %c6 = arith.constant 6 : index
    %c0_55 = arith.constant 0 : index
    %c0_56 = arith.constant 0 : index
    %178 = vector.load %arg11[%c6, %c0_55, %c0_56] : memref<8x8x128xf32, #tpu.memory_space<vmem>>, vector<1x8x128xf32>
    %179 = vector.shape_cast %178 : vector<1x8x128xf32> to vector<8x128xf32>
    %180 = vector.shape_cast %177 : vector<8x128xf32> to vector<1x8x128xf32>
    tpu.vector_store %arg11[%c6, %c0_55, %c0_56], %180 {strides = array<i32>} : memref<8x8x128xf32, #tpu.memory_space<vmem>>, vector<1x8x128xf32>,
    %c56 = arith.constant 56 : index
    %c0_57 = arith.constant 0 : index
    %181 = vector.load %arg12[%c56, %c0_57] : memref<64x512xf32, #tpu.memory_space<vmem>>, vector<8x512xf32>
    %182 = arith.truncf %177 : vector<8x128xf32> to vector<8x128xbf16>
    %cst_58 = arith.constant dense<0.000000e+00> : vector<8x512xf32>
    %183 = tpu.matmul %182, %15, %cst_58 {dimension_numbers = #tpu.dot_dimension_numbers<[1], [0], [0], [1], [0, 0, 1, 1], [], []>} : vector<8x128xbf16>, vector<128x512xbf16>, vector<8x512xf32> -> vector<8x512xf32>
    %184 = arith.addf %181, %183 : vector<8x512xf32>
    %185 = vector.extract_strided_slice %184 {offsets = [0, 0], sizes = [8, 384], strides = [1, 1]} : vector<8x512xf32> to vector<8x384xf32>
    %186 = arith.negf %185 : vector<8x384xf32>
    %187 = math.exp %186 : vector<8x384xf32>
    %cst_59 = arith.constant 1.000000e+00 : f32
    %188 = vector.broadcast %cst_59 : f32 to vector<8x384xf32>
    %189 = arith.addf %188, %187 : vector<8x384xf32>
    %190 = arith.divf %188, %189 : vector<8x384xf32>
    %191 = vector.extract_strided_slice %190 {offsets = [0, 0], sizes = [8, 128], strides = [1, 1]} : vector<8x384xf32> to vector<8x128xf32>
    %192 = vector.extract_strided_slice %190 {offsets = [0, 128], sizes = [8, 128], strides = [1, 1]} : vector<8x384xf32> to vector<8x128xf32>
    %193 = vector.extract_strided_slice %190 {offsets = [0, 256], sizes = [8, 128], strides = [1, 1]} : vector<8x384xf32> to vector<8x128xf32>
    %194 = vector.extract_strided_slice %184 {offsets = [0, 384], sizes = [8, 128], strides = [1, 1]} : vector<8x512xf32> to vector<8x128xf32>
    %195 = math.tanh %194 : vector<8x128xf32>
    %196 = arith.mulf %192, %175 : vector<8x128xf32>
    %197 = arith.mulf %191, %195 : vector<8x128xf32>
    %198 = arith.addf %196, %197 : vector<8x128xf32>
    %199 = math.tanh %198 : vector<8x128xf32>
    %200 = arith.mulf %193, %199 : vector<8x128xf32>
    %c7 = arith.constant 7 : index
    %c0_60 = arith.constant 0 : index
    %c0_61 = arith.constant 0 : index
    %201 = vector.load %arg11[%c7, %c0_60, %c0_61] : memref<8x8x128xf32, #tpu.memory_space<vmem>>, vector<1x8x128xf32>
    %202 = vector.shape_cast %201 : vector<1x8x128xf32> to vector<8x128xf32>
    %203 = vector.shape_cast %200 : vector<8x128xf32> to vector<1x8x128xf32>
    tpu.vector_store %arg11[%c7, %c0_60, %c0_61], %203 {strides = array<i32>} : memref<8x8x128xf32, #tpu.memory_space<vmem>>, vector<1x8x128xf32>,
    %c0_62 = arith.constant 0 : index
    %c0_63 = arith.constant 0 : index
    %c0_64 = arith.constant 0 : index
    %204 = vector.load %arg9[%c0_62, %c0_63, %c0_64] : memref<4x8x128xf32, #tpu.memory_space<vmem>>, vector<1x8x128xf32>
    %205 = vector.shape_cast %204 : vector<1x8x128xf32> to vector<8x128xf32>
    %206 = vector.shape_cast %200 : vector<8x128xf32> to vector<1x8x128xf32>
    tpu.vector_store %arg9[%c0_62, %c0_63, %c0_64], %206 {strides = array<i32>} : memref<4x8x128xf32, #tpu.memory_space<vmem>>, vector<1x8x128xf32>,
    %c0_65 = arith.constant 0 : index
    %c0_66 = arith.constant 0 : index
    %c0_67 = arith.constant 0 : index
    %207 = vector.load %arg10[%c0_65, %c0_66, %c0_67] : memref<4x8x128xf32, #tpu.memory_space<vmem>>, vector<1x8x128xf32>
    %208 = vector.shape_cast %207 : vector<1x8x128xf32> to vector<8x128xf32>
    %209 = vector.shape_cast %198 : vector<8x128xf32> to vector<1x8x128xf32>
    tpu.vector_store %arg10[%c0_65, %c0_66, %c0_67], %209 {strides = array<i32>} : memref<4x8x128xf32, #tpu.memory_space<vmem>>, vector<1x8x128xf32>,
    %c0_68 = arith.constant 0 : index
    %c0_69 = arith.constant 0 : index
    %c0_70 = arith.constant 0 : index
    %210 = vector.load %arg11[%c0_68, %c0_69, %c0_70] : memref<8x8x128xf32, #tpu.memory_space<vmem>>, vector<8x8x128xf32>
    %211 = vector.shape_cast %210 : vector<8x8x128xf32> to vector<64x128xf32>
    %212 = arith.truncf %211 : vector<64x128xf32> to vector<64x128xbf16>
    %c1_71 = arith.constant 1 : index
    %c0_72 = arith.constant 0 : index
    %c0_73 = arith.constant 0 : index
    %213 = vector.load %arg2[%c1_71, %c0_72, %c0_73] : memref<4x128x512xbf16, #tpu.memory_space<vmem>>, vector<1x128x512xbf16>
    %214 = vector.shape_cast %213 : vector<1x128x512xbf16> to vector<128x512xbf16>
    %cst_74 = arith.constant dense<0.000000e+00> : vector<64x512xf32>
    %215 = tpu.matmul %212, %214, %cst_74 {dimension_numbers = #tpu.dot_dimension_numbers<[1], [0], [0], [1], [0, 0, 1, 1], [], []>} : vector<64x128xbf16>, vector<128x512xbf16>, vector<64x512xf32> -> vector<64x512xf32>
    %c1_75 = arith.constant 1 : index
    %c0_76 = arith.constant 0 : index
    %c0_77 = arith.constant 0 : index
    %216 = vector.load %arg4[%c1_75, %c0_76, %c0_77] : memref<4x1x512xf32, #tpu.memory_space<vmem>>, vector<1x1x512xf32>
    %217 = vector.shape_cast %216 : vector<1x1x512xf32> to vector<1x512xf32>
    %218 = vector.broadcast %217 : vector<1x512xf32> to vector<64x512xf32>
    %219 = arith.addf %215, %218 : vector<64x512xf32>
    %c0_78 = arith.constant 0 : index
    %c0_79 = arith.constant 0 : index
    %220 = vector.load %arg12[%c0_78, %c0_79] : memref<64x512xf32, #tpu.memory_space<vmem>>, vector<64x512xf32>
    tpu.vector_store %arg12[%c0_78, %c0_79], %219 {strides = array<i32>} : memref<64x512xf32, #tpu.memory_space<vmem>>, vector<64x512xf32>,
    %c1_80 = arith.constant 1 : index
    %c0_81 = arith.constant 0 : index
    %c0_82 = arith.constant 0 : index
    %221 = vector.load %arg3[%c1_80, %c0_81, %c0_82] : memref<4x128x512xbf16, #tpu.memory_space<vmem>>, vector<1x128x512xbf16>
    %222 = vector.shape_cast %221 : vector<1x128x512xbf16> to vector<128x512xbf16>
    %c1_83 = arith.constant 1 : index
    %c0_84 = arith.constant 0 : index
    %c0_85 = arith.constant 0 : index
    %223 = vector.load %arg9[%c1_83, %c0_84, %c0_85] : memref<4x8x128xf32, #tpu.memory_space<vmem>>, vector<1x8x128xf32>
    %224 = vector.shape_cast %223 : vector<1x8x128xf32> to vector<8x128xf32>
    %c1_86 = arith.constant 1 : index
    %c0_87 = arith.constant 0 : index
    %c0_88 = arith.constant 0 : index
    %225 = vector.load %arg10[%c1_86, %c0_87, %c0_88] : memref<4x8x128xf32, #tpu.memory_space<vmem>>, vector<1x8x128xf32>
    %226 = vector.shape_cast %225 : vector<1x8x128xf32> to vector<8x128xf32>
    %c0_89 = arith.constant 0 : index
    %c0_90 = arith.constant 0 : index
    %227 = vector.load %arg12[%c0_89, %c0_90] : memref<64x512xf32, #tpu.memory_space<vmem>>, vector<8x512xf32>
    %228 = arith.truncf %224 : vector<8x128xf32> to vector<8x128xbf16>
    %cst_91 = arith.constant dense<0.000000e+00> : vector<8x512xf32>
    %229 = tpu.matmul %228, %222, %cst_91 {dimension_numbers = #tpu.dot_dimension_numbers<[1], [0], [0], [1], [0, 0, 1, 1], [], []>} : vector<8x128xbf16>, vector<128x512xbf16>, vector<8x512xf32> -> vector<8x512xf32>
    %230 = arith.addf %227, %229 : vector<8x512xf32>
    %231 = vector.extract_strided_slice %230 {offsets = [0, 0], sizes = [8, 384], strides = [1, 1]} : vector<8x512xf32> to vector<8x384xf32>
    %232 = arith.negf %231 : vector<8x384xf32>
    %233 = math.exp %232 : vector<8x384xf32>
    %cst_92 = arith.constant 1.000000e+00 : f32
    %234 = vector.broadcast %cst_92 : f32 to vector<8x384xf32>
    %235 = arith.addf %234, %233 : vector<8x384xf32>
    %236 = arith.divf %234, %235 : vector<8x384xf32>
    %237 = vector.extract_strided_slice %236 {offsets = [0, 0], sizes = [8, 128], strides = [1, 1]} : vector<8x384xf32> to vector<8x128xf32>
    %238 = vector.extract_strided_slice %236 {offsets = [0, 128], sizes = [8, 128], strides = [1, 1]} : vector<8x384xf32> to vector<8x128xf32>
    %239 = vector.extract_strided_slice %236 {offsets = [0, 256], sizes = [8, 128], strides = [1, 1]} : vector<8x384xf32> to vector<8x128xf32>
    %240 = vector.extract_strided_slice %230 {offsets = [0, 384], sizes = [8, 128], strides = [1, 1]} : vector<8x512xf32> to vector<8x128xf32>
    %241 = math.tanh %240 : vector<8x128xf32>
    %242 = arith.mulf %238, %226 : vector<8x128xf32>
    %243 = arith.mulf %237, %241 : vector<8x128xf32>
    %244 = arith.addf %242, %243 : vector<8x128xf32>
    %245 = math.tanh %244 : vector<8x128xf32>
    %246 = arith.mulf %239, %245 : vector<8x128xf32>
    %c0_93 = arith.constant 0 : index
    %c0_94 = arith.constant 0 : index
    %c0_95 = arith.constant 0 : index
    %247 = vector.load %arg11[%c0_93, %c0_94, %c0_95] : memref<8x8x128xf32, #tpu.memory_space<vmem>>, vector<1x8x128xf32>
    %248 = vector.shape_cast %247 : vector<1x8x128xf32> to vector<8x128xf32>
    %249 = vector.shape_cast %246 : vector<8x128xf32> to vector<1x8x128xf32>
    tpu.vector_store %arg11[%c0_93, %c0_94, %c0_95], %249 {strides = array<i32>} : memref<8x8x128xf32, #tpu.memory_space<vmem>>, vector<1x8x128xf32>,
    %c8_96 = arith.constant 8 : index
    %c0_97 = arith.constant 0 : index
    %250 = vector.load %arg12[%c8_96, %c0_97] : memref<64x512xf32, #tpu.memory_space<vmem>>, vector<8x512xf32>
    %251 = arith.truncf %246 : vector<8x128xf32> to vector<8x128xbf16>
    %cst_98 = arith.constant dense<0.000000e+00> : vector<8x512xf32>
    %252 = tpu.matmul %251, %222, %cst_98 {dimension_numbers = #tpu.dot_dimension_numbers<[1], [0], [0], [1], [0, 0, 1, 1], [], []>} : vector<8x128xbf16>, vector<128x512xbf16>, vector<8x512xf32> -> vector<8x512xf32>
    %253 = arith.addf %250, %252 : vector<8x512xf32>
    %254 = vector.extract_strided_slice %253 {offsets = [0, 0], sizes = [8, 384], strides = [1, 1]} : vector<8x512xf32> to vector<8x384xf32>
    %255 = arith.negf %254 : vector<8x384xf32>
    %256 = math.exp %255 : vector<8x384xf32>
    %cst_99 = arith.constant 1.000000e+00 : f32
    %257 = vector.broadcast %cst_99 : f32 to vector<8x384xf32>
    %258 = arith.addf %257, %256 : vector<8x384xf32>
    %259 = arith.divf %257, %258 : vector<8x384xf32>
    %260 = vector.extract_strided_slice %259 {offsets = [0, 0], sizes = [8, 128], strides = [1, 1]} : vector<8x384xf32> to vector<8x128xf32>
    %261 = vector.extract_strided_slice %259 {offsets = [0, 128], sizes = [8, 128], strides = [1, 1]} : vector<8x384xf32> to vector<8x128xf32>
    %262 = vector.extract_strided_slice %259 {offsets = [0, 256], sizes = [8, 128], strides = [1, 1]} : vector<8x384xf32> to vector<8x128xf32>
    %263 = vector.extract_strided_slice %253 {offsets = [0, 384], sizes = [8, 128], strides = [1, 1]} : vector<8x512xf32> to vector<8x128xf32>
    %264 = math.tanh %263 : vector<8x128xf32>
    %265 = arith.mulf %261, %244 : vector<8x128xf32>
    %266 = arith.mulf %260, %264 : vector<8x128xf32>
    %267 = arith.addf %265, %266 : vector<8x128xf32>
    %268 = math.tanh %267 : vector<8x128xf32>
    %269 = arith.mulf %262, %268 : vector<8x128xf32>
    %c1_100 = arith.constant 1 : index
    %c0_101 = arith.constant 0 : index
    %c0_102 = arith.constant 0 : index
    %270 = vector.load %arg11[%c1_100, %c0_101, %c0_102] : memref<8x8x128xf32, #tpu.memory_space<vmem>>, vector<1x8x128xf32>
    %271 = vector.shape_cast %270 : vector<1x8x128xf32> to vector<8x128xf32>
    %272 = vector.shape_cast %269 : vector<8x128xf32> to vector<1x8x128xf32>
    tpu.vector_store %arg11[%c1_100, %c0_101, %c0_102], %272 {strides = array<i32>} : memref<8x8x128xf32, #tpu.memory_space<vmem>>, vector<1x8x128xf32>,
    %c16_103 = arith.constant 16 : index
    %c0_104 = arith.constant 0 : index
    %273 = vector.load %arg12[%c16_103, %c0_104] : memref<64x512xf32, #tpu.memory_space<vmem>>, vector<8x512xf32>
    %274 = arith.truncf %269 : vector<8x128xf32> to vector<8x128xbf16>
    %cst_105 = arith.constant dense<0.000000e+00> : vector<8x512xf32>
    %275 = tpu.matmul %274, %222, %cst_105 {dimension_numbers = #tpu.dot_dimension_numbers<[1], [0], [0], [1], [0, 0, 1, 1], [], []>} : vector<8x128xbf16>, vector<128x512xbf16>, vector<8x512xf32> -> vector<8x512xf32>
    %276 = arith.addf %273, %275 : vector<8x512xf32>
    %277 = vector.extract_strided_slice %276 {offsets = [0, 0], sizes = [8, 384], strides = [1, 1]} : vector<8x512xf32> to vector<8x384xf32>
    %278 = arith.negf %277 : vector<8x384xf32>
    %279 = math.exp %278 : vector<8x384xf32>
    %cst_106 = arith.constant 1.000000e+00 : f32
    %280 = vector.broadcast %cst_106 : f32 to vector<8x384xf32>
    %281 = arith.addf %280, %279 : vector<8x384xf32>
    %282 = arith.divf %280, %281 : vector<8x384xf32>
    %283 = vector.extract_strided_slice %282 {offsets = [0, 0], sizes = [8, 128], strides = [1, 1]} : vector<8x384xf32> to vector<8x128xf32>
    %284 = vector.extract_strided_slice %282 {offsets = [0, 128], sizes = [8, 128], strides = [1, 1]} : vector<8x384xf32> to vector<8x128xf32>
    %285 = vector.extract_strided_slice %282 {offsets = [0, 256], sizes = [8, 128], strides = [1, 1]} : vector<8x384xf32> to vector<8x128xf32>
    %286 = vector.extract_strided_slice %276 {offsets = [0, 384], sizes = [8, 128], strides = [1, 1]} : vector<8x512xf32> to vector<8x128xf32>
    %287 = math.tanh %286 : vector<8x128xf32>
    %288 = arith.mulf %284, %267 : vector<8x128xf32>
    %289 = arith.mulf %283, %287 : vector<8x128xf32>
    %290 = arith.addf %288, %289 : vector<8x128xf32>
    %291 = math.tanh %290 : vector<8x128xf32>
    %292 = arith.mulf %285, %291 : vector<8x128xf32>
    %c2_107 = arith.constant 2 : index
    %c0_108 = arith.constant 0 : index
    %c0_109 = arith.constant 0 : index
    %293 = vector.load %arg11[%c2_107, %c0_108, %c0_109] : memref<8x8x128xf32, #tpu.memory_space<vmem>>, vector<1x8x128xf32>
    %294 = vector.shape_cast %293 : vector<1x8x128xf32> to vector<8x128xf32>
    %295 = vector.shape_cast %292 : vector<8x128xf32> to vector<1x8x128xf32>
    tpu.vector_store %arg11[%c2_107, %c0_108, %c0_109], %295 {strides = array<i32>} : memref<8x8x128xf32, #tpu.memory_space<vmem>>, vector<1x8x128xf32>,
    %c24_110 = arith.constant 24 : index
    %c0_111 = arith.constant 0 : index
    %296 = vector.load %arg12[%c24_110, %c0_111] : memref<64x512xf32, #tpu.memory_space<vmem>>, vector<8x512xf32>
    %297 = arith.truncf %292 : vector<8x128xf32> to vector<8x128xbf16>
    %cst_112 = arith.constant dense<0.000000e+00> : vector<8x512xf32>
    %298 = tpu.matmul %297, %222, %cst_112 {dimension_numbers = #tpu.dot_dimension_numbers<[1], [0], [0], [1], [0, 0, 1, 1], [], []>} : vector<8x128xbf16>, vector<128x512xbf16>, vector<8x512xf32> -> vector<8x512xf32>
    %299 = arith.addf %296, %298 : vector<8x512xf32>
    %300 = vector.extract_strided_slice %299 {offsets = [0, 0], sizes = [8, 384], strides = [1, 1]} : vector<8x512xf32> to vector<8x384xf32>
    %301 = arith.negf %300 : vector<8x384xf32>
    %302 = math.exp %301 : vector<8x384xf32>
    %cst_113 = arith.constant 1.000000e+00 : f32
    %303 = vector.broadcast %cst_113 : f32 to vector<8x384xf32>
    %304 = arith.addf %303, %302 : vector<8x384xf32>
    %305 = arith.divf %303, %304 : vector<8x384xf32>
    %306 = vector.extract_strided_slice %305 {offsets = [0, 0], sizes = [8, 128], strides = [1, 1]} : vector<8x384xf32> to vector<8x128xf32>
    %307 = vector.extract_strided_slice %305 {offsets = [0, 128], sizes = [8, 128], strides = [1, 1]} : vector<8x384xf32> to vector<8x128xf32>
    %308 = vector.extract_strided_slice %305 {offsets = [0, 256], sizes = [8, 128], strides = [1, 1]} : vector<8x384xf32> to vector<8x128xf32>
    %309 = vector.extract_strided_slice %299 {offsets = [0, 384], sizes = [8, 128], strides = [1, 1]} : vector<8x512xf32> to vector<8x128xf32>
    %310 = math.tanh %309 : vector<8x128xf32>
    %311 = arith.mulf %307, %290 : vector<8x128xf32>
    %312 = arith.mulf %306, %310 : vector<8x128xf32>
    %313 = arith.addf %311, %312 : vector<8x128xf32>
    %314 = math.tanh %313 : vector<8x128xf32>
    %315 = arith.mulf %308, %314 : vector<8x128xf32>
    %c3_114 = arith.constant 3 : index
    %c0_115 = arith.constant 0 : index
    %c0_116 = arith.constant 0 : index
    %316 = vector.load %arg11[%c3_114, %c0_115, %c0_116] : memref<8x8x128xf32, #tpu.memory_space<vmem>>, vector<1x8x128xf32>
    %317 = vector.shape_cast %316 : vector<1x8x128xf32> to vector<8x128xf32>
    %318 = vector.shape_cast %315 : vector<8x128xf32> to vector<1x8x128xf32>
    tpu.vector_store %arg11[%c3_114, %c0_115, %c0_116], %318 {strides = array<i32>} : memref<8x8x128xf32, #tpu.memory_space<vmem>>, vector<1x8x128xf32>,
    %c32_117 = arith.constant 32 : index
    %c0_118 = arith.constant 0 : index
    %319 = vector.load %arg12[%c32_117, %c0_118] : memref<64x512xf32, #tpu.memory_space<vmem>>, vector<8x512xf32>
    %320 = arith.truncf %315 : vector<8x128xf32> to vector<8x128xbf16>
    %cst_119 = arith.constant dense<0.000000e+00> : vector<8x512xf32>
    %321 = tpu.matmul %320, %222, %cst_119 {dimension_numbers = #tpu.dot_dimension_numbers<[1], [0], [0], [1], [0, 0, 1, 1], [], []>} : vector<8x128xbf16>, vector<128x512xbf16>, vector<8x512xf32> -> vector<8x512xf32>
    %322 = arith.addf %319, %321 : vector<8x512xf32>
    %323 = vector.extract_strided_slice %322 {offsets = [0, 0], sizes = [8, 384], strides = [1, 1]} : vector<8x512xf32> to vector<8x384xf32>
    %324 = arith.negf %323 : vector<8x384xf32>
    %325 = math.exp %324 : vector<8x384xf32>
    %cst_120 = arith.constant 1.000000e+00 : f32
    %326 = vector.broadcast %cst_120 : f32 to vector<8x384xf32>
    %327 = arith.addf %326, %325 : vector<8x384xf32>
    %328 = arith.divf %326, %327 : vector<8x384xf32>
    %329 = vector.extract_strided_slice %328 {offsets = [0, 0], sizes = [8, 128], strides = [1, 1]} : vector<8x384xf32> to vector<8x128xf32>
    %330 = vector.extract_strided_slice %328 {offsets = [0, 128], sizes = [8, 128], strides = [1, 1]} : vector<8x384xf32> to vector<8x128xf32>
    %331 = vector.extract_strided_slice %328 {offsets = [0, 256], sizes = [8, 128], strides = [1, 1]} : vector<8x384xf32> to vector<8x128xf32>
    %332 = vector.extract_strided_slice %322 {offsets = [0, 384], sizes = [8, 128], strides = [1, 1]} : vector<8x512xf32> to vector<8x128xf32>
    %333 = math.tanh %332 : vector<8x128xf32>
    %334 = arith.mulf %330, %313 : vector<8x128xf32>
    %335 = arith.mulf %329, %333 : vector<8x128xf32>
    %336 = arith.addf %334, %335 : vector<8x128xf32>
    %337 = math.tanh %336 : vector<8x128xf32>
    %338 = arith.mulf %331, %337 : vector<8x128xf32>
    %c4_121 = arith.constant 4 : index
    %c0_122 = arith.constant 0 : index
    %c0_123 = arith.constant 0 : index
    %339 = vector.load %arg11[%c4_121, %c0_122, %c0_123] : memref<8x8x128xf32, #tpu.memory_space<vmem>>, vector<1x8x128xf32>
    %340 = vector.shape_cast %339 : vector<1x8x128xf32> to vector<8x128xf32>
    %341 = vector.shape_cast %338 : vector<8x128xf32> to vector<1x8x128xf32>
    tpu.vector_store %arg11[%c4_121, %c0_122, %c0_123], %341 {strides = array<i32>} : memref<8x8x128xf32, #tpu.memory_space<vmem>>, vector<1x8x128xf32>,
    %c40_124 = arith.constant 40 : index
    %c0_125 = arith.constant 0 : index
    %342 = vector.load %arg12[%c40_124, %c0_125] : memref<64x512xf32, #tpu.memory_space<vmem>>, vector<8x512xf32>
    %343 = arith.truncf %338 : vector<8x128xf32> to vector<8x128xbf16>
    %cst_126 = arith.constant dense<0.000000e+00> : vector<8x512xf32>
    %344 = tpu.matmul %343, %222, %cst_126 {dimension_numbers = #tpu.dot_dimension_numbers<[1], [0], [0], [1], [0, 0, 1, 1], [], []>} : vector<8x128xbf16>, vector<128x512xbf16>, vector<8x512xf32> -> vector<8x512xf32>
    %345 = arith.addf %342, %344 : vector<8x512xf32>
    %346 = vector.extract_strided_slice %345 {offsets = [0, 0], sizes = [8, 384], strides = [1, 1]} : vector<8x512xf32> to vector<8x384xf32>
    %347 = arith.negf %346 : vector<8x384xf32>
    %348 = math.exp %347 : vector<8x384xf32>
    %cst_127 = arith.constant 1.000000e+00 : f32
    %349 = vector.broadcast %cst_127 : f32 to vector<8x384xf32>
    %350 = arith.addf %349, %348 : vector<8x384xf32>
    %351 = arith.divf %349, %350 : vector<8x384xf32>
    %352 = vector.extract_strided_slice %351 {offsets = [0, 0], sizes = [8, 128], strides = [1, 1]} : vector<8x384xf32> to vector<8x128xf32>
    %353 = vector.extract_strided_slice %351 {offsets = [0, 128], sizes = [8, 128], strides = [1, 1]} : vector<8x384xf32> to vector<8x128xf32>
    %354 = vector.extract_strided_slice %351 {offsets = [0, 256], sizes = [8, 128], strides = [1, 1]} : vector<8x384xf32> to vector<8x128xf32>
    %355 = vector.extract_strided_slice %345 {offsets = [0, 384], sizes = [8, 128], strides = [1, 1]} : vector<8x512xf32> to vector<8x128xf32>
    %356 = math.tanh %355 : vector<8x128xf32>
    %357 = arith.mulf %353, %336 : vector<8x128xf32>
    %358 = arith.mulf %352, %356 : vector<8x128xf32>
    %359 = arith.addf %357, %358 : vector<8x128xf32>
    %360 = math.tanh %359 : vector<8x128xf32>
    %361 = arith.mulf %354, %360 : vector<8x128xf32>
    %c5_128 = arith.constant 5 : index
    %c0_129 = arith.constant 0 : index
    %c0_130 = arith.constant 0 : index
    %362 = vector.load %arg11[%c5_128, %c0_129, %c0_130] : memref<8x8x128xf32, #tpu.memory_space<vmem>>, vector<1x8x128xf32>
    %363 = vector.shape_cast %362 : vector<1x8x128xf32> to vector<8x128xf32>
    %364 = vector.shape_cast %361 : vector<8x128xf32> to vector<1x8x128xf32>
    tpu.vector_store %arg11[%c5_128, %c0_129, %c0_130], %364 {strides = array<i32>} : memref<8x8x128xf32, #tpu.memory_space<vmem>>, vector<1x8x128xf32>,
    %c48_131 = arith.constant 48 : index
    %c0_132 = arith.constant 0 : index
    %365 = vector.load %arg12[%c48_131, %c0_132] : memref<64x512xf32, #tpu.memory_space<vmem>>, vector<8x512xf32>
    %366 = arith.truncf %361 : vector<8x128xf32> to vector<8x128xbf16>
    %cst_133 = arith.constant dense<0.000000e+00> : vector<8x512xf32>
    %367 = tpu.matmul %366, %222, %cst_133 {dimension_numbers = #tpu.dot_dimension_numbers<[1], [0], [0], [1], [0, 0, 1, 1], [], []>} : vector<8x128xbf16>, vector<128x512xbf16>, vector<8x512xf32> -> vector<8x512xf32>
    %368 = arith.addf %365, %367 : vector<8x512xf32>
    %369 = vector.extract_strided_slice %368 {offsets = [0, 0], sizes = [8, 384], strides = [1, 1]} : vector<8x512xf32> to vector<8x384xf32>
    %370 = arith.negf %369 : vector<8x384xf32>
    %371 = math.exp %370 : vector<8x384xf32>
    %cst_134 = arith.constant 1.000000e+00 : f32
    %372 = vector.broadcast %cst_134 : f32 to vector<8x384xf32>
    %373 = arith.addf %372, %371 : vector<8x384xf32>
    %374 = arith.divf %372, %373 : vector<8x384xf32>
    %375 = vector.extract_strided_slice %374 {offsets = [0, 0], sizes = [8, 128], strides = [1, 1]} : vector<8x384xf32> to vector<8x128xf32>
    %376 = vector.extract_strided_slice %374 {offsets = [0, 128], sizes = [8, 128], strides = [1, 1]} : vector<8x384xf32> to vector<8x128xf32>
    %377 = vector.extract_strided_slice %374 {offsets = [0, 256], sizes = [8, 128], strides = [1, 1]} : vector<8x384xf32> to vector<8x128xf32>
    %378 = vector.extract_strided_slice %368 {offsets = [0, 384], sizes = [8, 128], strides = [1, 1]} : vector<8x512xf32> to vector<8x128xf32>
    %379 = math.tanh %378 : vector<8x128xf32>
    %380 = arith.mulf %376, %359 : vector<8x128xf32>
    %381 = arith.mulf %375, %379 : vector<8x128xf32>
    %382 = arith.addf %380, %381 : vector<8x128xf32>
    %383 = math.tanh %382 : vector<8x128xf32>
    %384 = arith.mulf %377, %383 : vector<8x128xf32>
    %c6_135 = arith.constant 6 : index
    %c0_136 = arith.constant 0 : index
    %c0_137 = arith.constant 0 : index
    %385 = vector.load %arg11[%c6_135, %c0_136, %c0_137] : memref<8x8x128xf32, #tpu.memory_space<vmem>>, vector<1x8x128xf32>
    %386 = vector.shape_cast %385 : vector<1x8x128xf32> to vector<8x128xf32>
    %387 = vector.shape_cast %384 : vector<8x128xf32> to vector<1x8x128xf32>
    tpu.vector_store %arg11[%c6_135, %c0_136, %c0_137], %387 {strides = array<i32>} : memref<8x8x128xf32, #tpu.memory_space<vmem>>, vector<1x8x128xf32>,
    %c56_138 = arith.constant 56 : index
    %c0_139 = arith.constant 0 : index
    %388 = vector.load %arg12[%c56_138, %c0_139] : memref<64x512xf32, #tpu.memory_space<vmem>>, vector<8x512xf32>
    %389 = arith.truncf %384 : vector<8x128xf32> to vector<8x128xbf16>
    %cst_140 = arith.constant dense<0.000000e+00> : vector<8x512xf32>
    %390 = tpu.matmul %389, %222, %cst_140 {dimension_numbers = #tpu.dot_dimension_numbers<[1], [0], [0], [1], [0, 0, 1, 1], [], []>} : vector<8x128xbf16>, vector<128x512xbf16>, vector<8x512xf32> -> vector<8x512xf32>
    %391 = arith.addf %388, %390 : vector<8x512xf32>
    %392 = vector.extract_strided_slice %391 {offsets = [0, 0], sizes = [8, 384], strides = [1, 1]} : vector<8x512xf32> to vector<8x384xf32>
    %393 = arith.negf %392 : vector<8x384xf32>
    %394 = math.exp %393 : vector<8x384xf32>
    %cst_141 = arith.constant 1.000000e+00 : f32
    %395 = vector.broadcast %cst_141 : f32 to vector<8x384xf32>
    %396 = arith.addf %395, %394 : vector<8x384xf32>
    %397 = arith.divf %395, %396 : vector<8x384xf32>
    %398 = vector.extract_strided_slice %397 {offsets = [0, 0], sizes = [8, 128], strides = [1, 1]} : vector<8x384xf32> to vector<8x128xf32>
    %399 = vector.extract_strided_slice %397 {offsets = [0, 128], sizes = [8, 128], strides = [1, 1]} : vector<8x384xf32> to vector<8x128xf32>
    %400 = vector.extract_strided_slice %397 {offsets = [0, 256], sizes = [8, 128], strides = [1, 1]} : vector<8x384xf32> to vector<8x128xf32>
    %401 = vector.extract_strided_slice %391 {offsets = [0, 384], sizes = [8, 128], strides = [1, 1]} : vector<8x512xf32> to vector<8x128xf32>
    %402 = math.tanh %401 : vector<8x128xf32>
    %403 = arith.mulf %399, %382 : vector<8x128xf32>
    %404 = arith.mulf %398, %402 : vector<8x128xf32>
    %405 = arith.addf %403, %404 : vector<8x128xf32>
    %406 = math.tanh %405 : vector<8x128xf32>
    %407 = arith.mulf %400, %406 : vector<8x128xf32>
    %c7_142 = arith.constant 7 : index
    %c0_143 = arith.constant 0 : index
    %c0_144 = arith.constant 0 : index
    %408 = vector.load %arg11[%c7_142, %c0_143, %c0_144] : memref<8x8x128xf32, #tpu.memory_space<vmem>>, vector<1x8x128xf32>
    %409 = vector.shape_cast %408 : vector<1x8x128xf32> to vector<8x128xf32>
    %410 = vector.shape_cast %407 : vector<8x128xf32> to vector<1x8x128xf32>
    tpu.vector_store %arg11[%c7_142, %c0_143, %c0_144], %410 {strides = array<i32>} : memref<8x8x128xf32, #tpu.memory_space<vmem>>, vector<1x8x128xf32>,
    %c1_145 = arith.constant 1 : index
    %c0_146 = arith.constant 0 : index
    %c0_147 = arith.constant 0 : index
    %411 = vector.load %arg9[%c1_145, %c0_146, %c0_147] : memref<4x8x128xf32, #tpu.memory_space<vmem>>, vector<1x8x128xf32>
    %412 = vector.shape_cast %411 : vector<1x8x128xf32> to vector<8x128xf32>
    %413 = vector.shape_cast %407 : vector<8x128xf32> to vector<1x8x128xf32>
    tpu.vector_store %arg9[%c1_145, %c0_146, %c0_147], %413 {strides = array<i32>} : memref<4x8x128xf32, #tpu.memory_space<vmem>>, vector<1x8x128xf32>,
    %c1_148 = arith.constant 1 : index
    %c0_149 = arith.constant 0 : index
    %c0_150 = arith.constant 0 : index
    %414 = vector.load %arg10[%c1_148, %c0_149, %c0_150] : memref<4x8x128xf32, #tpu.memory_space<vmem>>, vector<1x8x128xf32>
    %415 = vector.shape_cast %414 : vector<1x8x128xf32> to vector<8x128xf32>
    %416 = vector.shape_cast %405 : vector<8x128xf32> to vector<1x8x128xf32>
    tpu.vector_store %arg10[%c1_148, %c0_149, %c0_150], %416 {strides = array<i32>} : memref<4x8x128xf32, #tpu.memory_space<vmem>>, vector<1x8x128xf32>,
    %c0_151 = arith.constant 0 : index
    %c0_152 = arith.constant 0 : index
    %c0_153 = arith.constant 0 : index
    %417 = vector.load %arg11[%c0_151, %c0_152, %c0_153] : memref<8x8x128xf32, #tpu.memory_space<vmem>>, vector<8x8x128xf32>
    %418 = vector.shape_cast %417 : vector<8x8x128xf32> to vector<64x128xf32>
    %419 = arith.truncf %418 : vector<64x128xf32> to vector<64x128xbf16>
    %c2_154 = arith.constant 2 : index
    %c0_155 = arith.constant 0 : index
    %c0_156 = arith.constant 0 : index
    %420 = vector.load %arg2[%c2_154, %c0_155, %c0_156] : memref<4x128x512xbf16, #tpu.memory_space<vmem>>, vector<1x128x512xbf16>
    %421 = vector.shape_cast %420 : vector<1x128x512xbf16> to vector<128x512xbf16>
    %cst_157 = arith.constant dense<0.000000e+00> : vector<64x512xf32>
    %422 = tpu.matmul %419, %421, %cst_157 {dimension_numbers = #tpu.dot_dimension_numbers<[1], [0], [0], [1], [0, 0, 1, 1], [], []>} : vector<64x128xbf16>, vector<128x512xbf16>, vector<64x512xf32> -> vector<64x512xf32>
    %c2_158 = arith.constant 2 : index
    %c0_159 = arith.constant 0 : index
    %c0_160 = arith.constant 0 : index
    %423 = vector.load %arg4[%c2_158, %c0_159, %c0_160] : memref<4x1x512xf32, #tpu.memory_space<vmem>>, vector<1x1x512xf32>
    %424 = vector.shape_cast %423 : vector<1x1x512xf32> to vector<1x512xf32>
    %425 = vector.broadcast %424 : vector<1x512xf32> to vector<64x512xf32>
    %426 = arith.addf %422, %425 : vector<64x512xf32>
    %c0_161 = arith.constant 0 : index
    %c0_162 = arith.constant 0 : index
    %427 = vector.load %arg12[%c0_161, %c0_162] : memref<64x512xf32, #tpu.memory_space<vmem>>, vector<64x512xf32>
    tpu.vector_store %arg12[%c0_161, %c0_162], %426 {strides = array<i32>} : memref<64x512xf32, #tpu.memory_space<vmem>>, vector<64x512xf32>,
    %c2_163 = arith.constant 2 : index
    %c0_164 = arith.constant 0 : index
    %c0_165 = arith.constant 0 : index
    %428 = vector.load %arg3[%c2_163, %c0_164, %c0_165] : memref<4x128x512xbf16, #tpu.memory_space<vmem>>, vector<1x128x512xbf16>
    %429 = vector.shape_cast %428 : vector<1x128x512xbf16> to vector<128x512xbf16>
    %c2_166 = arith.constant 2 : index
    %c0_167 = arith.constant 0 : index
    %c0_168 = arith.constant 0 : index
    %430 = vector.load %arg9[%c2_166, %c0_167, %c0_168] : memref<4x8x128xf32, #tpu.memory_space<vmem>>, vector<1x8x128xf32>
    %431 = vector.shape_cast %430 : vector<1x8x128xf32> to vector<8x128xf32>
    %c2_169 = arith.constant 2 : index
    %c0_170 = arith.constant 0 : index
    %c0_171 = arith.constant 0 : index
    %432 = vector.load %arg10[%c2_169, %c0_170, %c0_171] : memref<4x8x128xf32, #tpu.memory_space<vmem>>, vector<1x8x128xf32>
    %433 = vector.shape_cast %432 : vector<1x8x128xf32> to vector<8x128xf32>
    %c0_172 = arith.constant 0 : index
    %c0_173 = arith.constant 0 : index
    %434 = vector.load %arg12[%c0_172, %c0_173] : memref<64x512xf32, #tpu.memory_space<vmem>>, vector<8x512xf32>
    %435 = arith.truncf %431 : vector<8x128xf32> to vector<8x128xbf16>
    %cst_174 = arith.constant dense<0.000000e+00> : vector<8x512xf32>
    %436 = tpu.matmul %435, %429, %cst_174 {dimension_numbers = #tpu.dot_dimension_numbers<[1], [0], [0], [1], [0, 0, 1, 1], [], []>} : vector<8x128xbf16>, vector<128x512xbf16>, vector<8x512xf32> -> vector<8x512xf32>
    %437 = arith.addf %434, %436 : vector<8x512xf32>
    %438 = vector.extract_strided_slice %437 {offsets = [0, 0], sizes = [8, 384], strides = [1, 1]} : vector<8x512xf32> to vector<8x384xf32>
    %439 = arith.negf %438 : vector<8x384xf32>
    %440 = math.exp %439 : vector<8x384xf32>
    %cst_175 = arith.constant 1.000000e+00 : f32
    %441 = vector.broadcast %cst_175 : f32 to vector<8x384xf32>
    %442 = arith.addf %441, %440 : vector<8x384xf32>
    %443 = arith.divf %441, %442 : vector<8x384xf32>
    %444 = vector.extract_strided_slice %443 {offsets = [0, 0], sizes = [8, 128], strides = [1, 1]} : vector<8x384xf32> to vector<8x128xf32>
    %445 = vector.extract_strided_slice %443 {offsets = [0, 128], sizes = [8, 128], strides = [1, 1]} : vector<8x384xf32> to vector<8x128xf32>
    %446 = vector.extract_strided_slice %443 {offsets = [0, 256], sizes = [8, 128], strides = [1, 1]} : vector<8x384xf32> to vector<8x128xf32>
    %447 = vector.extract_strided_slice %437 {offsets = [0, 384], sizes = [8, 128], strides = [1, 1]} : vector<8x512xf32> to vector<8x128xf32>
    %448 = math.tanh %447 : vector<8x128xf32>
    %449 = arith.mulf %445, %433 : vector<8x128xf32>
    %450 = arith.mulf %444, %448 : vector<8x128xf32>
    %451 = arith.addf %449, %450 : vector<8x128xf32>
    %452 = math.tanh %451 : vector<8x128xf32>
    %453 = arith.mulf %446, %452 : vector<8x128xf32>
    %c0_176 = arith.constant 0 : index
    %c0_177 = arith.constant 0 : index
    %c0_178 = arith.constant 0 : index
    %454 = vector.load %arg11[%c0_176, %c0_177, %c0_178] : memref<8x8x128xf32, #tpu.memory_space<vmem>>, vector<1x8x128xf32>
    %455 = vector.shape_cast %454 : vector<1x8x128xf32> to vector<8x128xf32>
    %456 = vector.shape_cast %453 : vector<8x128xf32> to vector<1x8x128xf32>
    tpu.vector_store %arg11[%c0_176, %c0_177, %c0_178], %456 {strides = array<i32>} : memref<8x8x128xf32, #tpu.memory_space<vmem>>, vector<1x8x128xf32>,
    %c8_179 = arith.constant 8 : index
    %c0_180 = arith.constant 0 : index
    %457 = vector.load %arg12[%c8_179, %c0_180] : memref<64x512xf32, #tpu.memory_space<vmem>>, vector<8x512xf32>
    %458 = arith.truncf %453 : vector<8x128xf32> to vector<8x128xbf16>
    %cst_181 = arith.constant dense<0.000000e+00> : vector<8x512xf32>
    %459 = tpu.matmul %458, %429, %cst_181 {dimension_numbers = #tpu.dot_dimension_numbers<[1], [0], [0], [1], [0, 0, 1, 1], [], []>} : vector<8x128xbf16>, vector<128x512xbf16>, vector<8x512xf32> -> vector<8x512xf32>
    %460 = arith.addf %457, %459 : vector<8x512xf32>
    %461 = vector.extract_strided_slice %460 {offsets = [0, 0], sizes = [8, 384], strides = [1, 1]} : vector<8x512xf32> to vector<8x384xf32>
    %462 = arith.negf %461 : vector<8x384xf32>
    %463 = math.exp %462 : vector<8x384xf32>
    %cst_182 = arith.constant 1.000000e+00 : f32
    %464 = vector.broadcast %cst_182 : f32 to vector<8x384xf32>
    %465 = arith.addf %464, %463 : vector<8x384xf32>
    %466 = arith.divf %464, %465 : vector<8x384xf32>
    %467 = vector.extract_strided_slice %466 {offsets = [0, 0], sizes = [8, 128], strides = [1, 1]} : vector<8x384xf32> to vector<8x128xf32>
    %468 = vector.extract_strided_slice %466 {offsets = [0, 128], sizes = [8, 128], strides = [1, 1]} : vector<8x384xf32> to vector<8x128xf32>
    %469 = vector.extract_strided_slice %466 {offsets = [0, 256], sizes = [8, 128], strides = [1, 1]} : vector<8x384xf32> to vector<8x128xf32>
    %470 = vector.extract_strided_slice %460 {offsets = [0, 384], sizes = [8, 128], strides = [1, 1]} : vector<8x512xf32> to vector<8x128xf32>
    %471 = math.tanh %470 : vector<8x128xf32>
    %472 = arith.mulf %468, %451 : vector<8x128xf32>
    %473 = arith.mulf %467, %471 : vector<8x128xf32>
    %474 = arith.addf %472, %473 : vector<8x128xf32>
    %475 = math.tanh %474 : vector<8x128xf32>
    %476 = arith.mulf %469, %475 : vector<8x128xf32>
    %c1_183 = arith.constant 1 : index
    %c0_184 = arith.constant 0 : index
    %c0_185 = arith.constant 0 : index
    %477 = vector.load %arg11[%c1_183, %c0_184, %c0_185] : memref<8x8x128xf32, #tpu.memory_space<vmem>>, vector<1x8x128xf32>
    %478 = vector.shape_cast %477 : vector<1x8x128xf32> to vector<8x128xf32>
    %479 = vector.shape_cast %476 : vector<8x128xf32> to vector<1x8x128xf32>
    tpu.vector_store %arg11[%c1_183, %c0_184, %c0_185], %479 {strides = array<i32>} : memref<8x8x128xf32, #tpu.memory_space<vmem>>, vector<1x8x128xf32>,
    %c16_186 = arith.constant 16 : index
    %c0_187 = arith.constant 0 : index
    %480 = vector.load %arg12[%c16_186, %c0_187] : memref<64x512xf32, #tpu.memory_space<vmem>>, vector<8x512xf32>
    %481 = arith.truncf %476 : vector<8x128xf32> to vector<8x128xbf16>
    %cst_188 = arith.constant dense<0.000000e+00> : vector<8x512xf32>
    %482 = tpu.matmul %481, %429, %cst_188 {dimension_numbers = #tpu.dot_dimension_numbers<[1], [0], [0], [1], [0, 0, 1, 1], [], []>} : vector<8x128xbf16>, vector<128x512xbf16>, vector<8x512xf32> -> vector<8x512xf32>
    %483 = arith.addf %480, %482 : vector<8x512xf32>
    %484 = vector.extract_strided_slice %483 {offsets = [0, 0], sizes = [8, 384], strides = [1, 1]} : vector<8x512xf32> to vector<8x384xf32>
    %485 = arith.negf %484 : vector<8x384xf32>
    %486 = math.exp %485 : vector<8x384xf32>
    %cst_189 = arith.constant 1.000000e+00 : f32
    %487 = vector.broadcast %cst_189 : f32 to vector<8x384xf32>
    %488 = arith.addf %487, %486 : vector<8x384xf32>
    %489 = arith.divf %487, %488 : vector<8x384xf32>
    %490 = vector.extract_strided_slice %489 {offsets = [0, 0], sizes = [8, 128], strides = [1, 1]} : vector<8x384xf32> to vector<8x128xf32>
    %491 = vector.extract_strided_slice %489 {offsets = [0, 128], sizes = [8, 128], strides = [1, 1]} : vector<8x384xf32> to vector<8x128xf32>
    %492 = vector.extract_strided_slice %489 {offsets = [0, 256], sizes = [8, 128], strides = [1, 1]} : vector<8x384xf32> to vector<8x128xf32>
    %493 = vector.extract_strided_slice %483 {offsets = [0, 384], sizes = [8, 128], strides = [1, 1]} : vector<8x512xf32> to vector<8x128xf32>
    %494 = math.tanh %493 : vector<8x128xf32>
    %495 = arith.mulf %491, %474 : vector<8x128xf32>
    %496 = arith.mulf %490, %494 : vector<8x128xf32>
    %497 = arith.addf %495, %496 : vector<8x128xf32>
    %498 = math.tanh %497 : vector<8x128xf32>
    %499 = arith.mulf %492, %498 : vector<8x128xf32>
    %c2_190 = arith.constant 2 : index
    %c0_191 = arith.constant 0 : index
    %c0_192 = arith.constant 0 : index
    %500 = vector.load %arg11[%c2_190, %c0_191, %c0_192] : memref<8x8x128xf32, #tpu.memory_space<vmem>>, vector<1x8x128xf32>
    %501 = vector.shape_cast %500 : vector<1x8x128xf32> to vector<8x128xf32>
    %502 = vector.shape_cast %499 : vector<8x128xf32> to vector<1x8x128xf32>
    tpu.vector_store %arg11[%c2_190, %c0_191, %c0_192], %502 {strides = array<i32>} : memref<8x8x128xf32, #tpu.memory_space<vmem>>, vector<1x8x128xf32>,
    %c24_193 = arith.constant 24 : index
    %c0_194 = arith.constant 0 : index
    %503 = vector.load %arg12[%c24_193, %c0_194] : memref<64x512xf32, #tpu.memory_space<vmem>>, vector<8x512xf32>
    %504 = arith.truncf %499 : vector<8x128xf32> to vector<8x128xbf16>
    %cst_195 = arith.constant dense<0.000000e+00> : vector<8x512xf32>
    %505 = tpu.matmul %504, %429, %cst_195 {dimension_numbers = #tpu.dot_dimension_numbers<[1], [0], [0], [1], [0, 0, 1, 1], [], []>} : vector<8x128xbf16>, vector<128x512xbf16>, vector<8x512xf32> -> vector<8x512xf32>
    %506 = arith.addf %503, %505 : vector<8x512xf32>
    %507 = vector.extract_strided_slice %506 {offsets = [0, 0], sizes = [8, 384], strides = [1, 1]} : vector<8x512xf32> to vector<8x384xf32>
    %508 = arith.negf %507 : vector<8x384xf32>
    %509 = math.exp %508 : vector<8x384xf32>
    %cst_196 = arith.constant 1.000000e+00 : f32
    %510 = vector.broadcast %cst_196 : f32 to vector<8x384xf32>
    %511 = arith.addf %510, %509 : vector<8x384xf32>
    %512 = arith.divf %510, %511 : vector<8x384xf32>
    %513 = vector.extract_strided_slice %512 {offsets = [0, 0], sizes = [8, 128], strides = [1, 1]} : vector<8x384xf32> to vector<8x128xf32>
    %514 = vector.extract_strided_slice %512 {offsets = [0, 128], sizes = [8, 128], strides = [1, 1]} : vector<8x384xf32> to vector<8x128xf32>
    %515 = vector.extract_strided_slice %512 {offsets = [0, 256], sizes = [8, 128], strides = [1, 1]} : vector<8x384xf32> to vector<8x128xf32>
    %516 = vector.extract_strided_slice %506 {offsets = [0, 384], sizes = [8, 128], strides = [1, 1]} : vector<8x512xf32> to vector<8x128xf32>
    %517 = math.tanh %516 : vector<8x128xf32>
    %518 = arith.mulf %514, %497 : vector<8x128xf32>
    %519 = arith.mulf %513, %517 : vector<8x128xf32>
    %520 = arith.addf %518, %519 : vector<8x128xf32>
    %521 = math.tanh %520 : vector<8x128xf32>
    %522 = arith.mulf %515, %521 : vector<8x128xf32>
    %c3_197 = arith.constant 3 : index
    %c0_198 = arith.constant 0 : index
    %c0_199 = arith.constant 0 : index
    %523 = vector.load %arg11[%c3_197, %c0_198, %c0_199] : memref<8x8x128xf32, #tpu.memory_space<vmem>>, vector<1x8x128xf32>
    %524 = vector.shape_cast %523 : vector<1x8x128xf32> to vector<8x128xf32>
    %525 = vector.shape_cast %522 : vector<8x128xf32> to vector<1x8x128xf32>
    tpu.vector_store %arg11[%c3_197, %c0_198, %c0_199], %525 {strides = array<i32>} : memref<8x8x128xf32, #tpu.memory_space<vmem>>, vector<1x8x128xf32>,
    %c32_200 = arith.constant 32 : index
    %c0_201 = arith.constant 0 : index
    %526 = vector.load %arg12[%c32_200, %c0_201] : memref<64x512xf32, #tpu.memory_space<vmem>>, vector<8x512xf32>
    %527 = arith.truncf %522 : vector<8x128xf32> to vector<8x128xbf16>
    %cst_202 = arith.constant dense<0.000000e+00> : vector<8x512xf32>
    %528 = tpu.matmul %527, %429, %cst_202 {dimension_numbers = #tpu.dot_dimension_numbers<[1], [0], [0], [1], [0, 0, 1, 1], [], []>} : vector<8x128xbf16>, vector<128x512xbf16>, vector<8x512xf32> -> vector<8x512xf32>
    %529 = arith.addf %526, %528 : vector<8x512xf32>
    %530 = vector.extract_strided_slice %529 {offsets = [0, 0], sizes = [8, 384], strides = [1, 1]} : vector<8x512xf32> to vector<8x384xf32>
    %531 = arith.negf %530 : vector<8x384xf32>
    %532 = math.exp %531 : vector<8x384xf32>
    %cst_203 = arith.constant 1.000000e+00 : f32
    %533 = vector.broadcast %cst_203 : f32 to vector<8x384xf32>
    %534 = arith.addf %533, %532 : vector<8x384xf32>
    %535 = arith.divf %533, %534 : vector<8x384xf32>
    %536 = vector.extract_strided_slice %535 {offsets = [0, 0], sizes = [8, 128], strides = [1, 1]} : vector<8x384xf32> to vector<8x128xf32>
    %537 = vector.extract_strided_slice %535 {offsets = [0, 128], sizes = [8, 128], strides = [1, 1]} : vector<8x384xf32> to vector<8x128xf32>
    %538 = vector.extract_strided_slice %535 {offsets = [0, 256], sizes = [8, 128], strides = [1, 1]} : vector<8x384xf32> to vector<8x128xf32>
    %539 = vector.extract_strided_slice %529 {offsets = [0, 384], sizes = [8, 128], strides = [1, 1]} : vector<8x512xf32> to vector<8x128xf32>
    %540 = math.tanh %539 : vector<8x128xf32>
    %541 = arith.mulf %537, %520 : vector<8x128xf32>
    %542 = arith.mulf %536, %540 : vector<8x128xf32>
    %543 = arith.addf %541, %542 : vector<8x128xf32>
    %544 = math.tanh %543 : vector<8x128xf32>
    %545 = arith.mulf %538, %544 : vector<8x128xf32>
    %c4_204 = arith.constant 4 : index
    %c0_205 = arith.constant 0 : index
    %c0_206 = arith.constant 0 : index
    %546 = vector.load %arg11[%c4_204, %c0_205, %c0_206] : memref<8x8x128xf32, #tpu.memory_space<vmem>>, vector<1x8x128xf32>
    %547 = vector.shape_cast %546 : vector<1x8x128xf32> to vector<8x128xf32>
    %548 = vector.shape_cast %545 : vector<8x128xf32> to vector<1x8x128xf32>
    tpu.vector_store %arg11[%c4_204, %c0_205, %c0_206], %548 {strides = array<i32>} : memref<8x8x128xf32, #tpu.memory_space<vmem>>, vector<1x8x128xf32>,
    %c40_207 = arith.constant 40 : index
    %c0_208 = arith.constant 0 : index
    %549 = vector.load %arg12[%c40_207, %c0_208] : memref<64x512xf32, #tpu.memory_space<vmem>>, vector<8x512xf32>
    %550 = arith.truncf %545 : vector<8x128xf32> to vector<8x128xbf16>
    %cst_209 = arith.constant dense<0.000000e+00> : vector<8x512xf32>
    %551 = tpu.matmul %550, %429, %cst_209 {dimension_numbers = #tpu.dot_dimension_numbers<[1], [0], [0], [1], [0, 0, 1, 1], [], []>} : vector<8x128xbf16>, vector<128x512xbf16>, vector<8x512xf32> -> vector<8x512xf32>
    %552 = arith.addf %549, %551 : vector<8x512xf32>
    %553 = vector.extract_strided_slice %552 {offsets = [0, 0], sizes = [8, 384], strides = [1, 1]} : vector<8x512xf32> to vector<8x384xf32>
    %554 = arith.negf %553 : vector<8x384xf32>
    %555 = math.exp %554 : vector<8x384xf32>
    %cst_210 = arith.constant 1.000000e+00 : f32
    %556 = vector.broadcast %cst_210 : f32 to vector<8x384xf32>
    %557 = arith.addf %556, %555 : vector<8x384xf32>
    %558 = arith.divf %556, %557 : vector<8x384xf32>
    %559 = vector.extract_strided_slice %558 {offsets = [0, 0], sizes = [8, 128], strides = [1, 1]} : vector<8x384xf32> to vector<8x128xf32>
    %560 = vector.extract_strided_slice %558 {offsets = [0, 128], sizes = [8, 128], strides = [1, 1]} : vector<8x384xf32> to vector<8x128xf32>
    %561 = vector.extract_strided_slice %558 {offsets = [0, 256], sizes = [8, 128], strides = [1, 1]} : vector<8x384xf32> to vector<8x128xf32>
    %562 = vector.extract_strided_slice %552 {offsets = [0, 384], sizes = [8, 128], strides = [1, 1]} : vector<8x512xf32> to vector<8x128xf32>
    %563 = math.tanh %562 : vector<8x128xf32>
    %564 = arith.mulf %560, %543 : vector<8x128xf32>
    %565 = arith.mulf %559, %563 : vector<8x128xf32>
    %566 = arith.addf %564, %565 : vector<8x128xf32>
    %567 = math.tanh %566 : vector<8x128xf32>
    %568 = arith.mulf %561, %567 : vector<8x128xf32>
    %c5_211 = arith.constant 5 : index
    %c0_212 = arith.constant 0 : index
    %c0_213 = arith.constant 0 : index
    %569 = vector.load %arg11[%c5_211, %c0_212, %c0_213] : memref<8x8x128xf32, #tpu.memory_space<vmem>>, vector<1x8x128xf32>
    %570 = vector.shape_cast %569 : vector<1x8x128xf32> to vector<8x128xf32>
    %571 = vector.shape_cast %568 : vector<8x128xf32> to vector<1x8x128xf32>
    tpu.vector_store %arg11[%c5_211, %c0_212, %c0_213], %571 {strides = array<i32>} : memref<8x8x128xf32, #tpu.memory_space<vmem>>, vector<1x8x128xf32>,
    %c48_214 = arith.constant 48 : index
    %c0_215 = arith.constant 0 : index
    %572 = vector.load %arg12[%c48_214, %c0_215] : memref<64x512xf32, #tpu.memory_space<vmem>>, vector<8x512xf32>
    %573 = arith.truncf %568 : vector<8x128xf32> to vector<8x128xbf16>
    %cst_216 = arith.constant dense<0.000000e+00> : vector<8x512xf32>
    %574 = tpu.matmul %573, %429, %cst_216 {dimension_numbers = #tpu.dot_dimension_numbers<[1], [0], [0], [1], [0, 0, 1, 1], [], []>} : vector<8x128xbf16>, vector<128x512xbf16>, vector<8x512xf32> -> vector<8x512xf32>
    %575 = arith.addf %572, %574 : vector<8x512xf32>
    %576 = vector.extract_strided_slice %575 {offsets = [0, 0], sizes = [8, 384], strides = [1, 1]} : vector<8x512xf32> to vector<8x384xf32>
    %577 = arith.negf %576 : vector<8x384xf32>
    %578 = math.exp %577 : vector<8x384xf32>
    %cst_217 = arith.constant 1.000000e+00 : f32
    %579 = vector.broadcast %cst_217 : f32 to vector<8x384xf32>
    %580 = arith.addf %579, %578 : vector<8x384xf32>
    %581 = arith.divf %579, %580 : vector<8x384xf32>
    %582 = vector.extract_strided_slice %581 {offsets = [0, 0], sizes = [8, 128], strides = [1, 1]} : vector<8x384xf32> to vector<8x128xf32>
    %583 = vector.extract_strided_slice %581 {offsets = [0, 128], sizes = [8, 128], strides = [1, 1]} : vector<8x384xf32> to vector<8x128xf32>
    %584 = vector.extract_strided_slice %581 {offsets = [0, 256], sizes = [8, 128], strides = [1, 1]} : vector<8x384xf32> to vector<8x128xf32>
    %585 = vector.extract_strided_slice %575 {offsets = [0, 384], sizes = [8, 128], strides = [1, 1]} : vector<8x512xf32> to vector<8x128xf32>
    %586 = math.tanh %585 : vector<8x128xf32>
    %587 = arith.mulf %583, %566 : vector<8x128xf32>
    %588 = arith.mulf %582, %586 : vector<8x128xf32>
    %589 = arith.addf %587, %588 : vector<8x128xf32>
    %590 = math.tanh %589 : vector<8x128xf32>
    %591 = arith.mulf %584, %590 : vector<8x128xf32>
    %c6_218 = arith.constant 6 : index
    %c0_219 = arith.constant 0 : index
    %c0_220 = arith.constant 0 : index
    %592 = vector.load %arg11[%c6_218, %c0_219, %c0_220] : memref<8x8x128xf32, #tpu.memory_space<vmem>>, vector<1x8x128xf32>
    %593 = vector.shape_cast %592 : vector<1x8x128xf32> to vector<8x128xf32>
    %594 = vector.shape_cast %591 : vector<8x128xf32> to vector<1x8x128xf32>
    tpu.vector_store %arg11[%c6_218, %c0_219, %c0_220], %594 {strides = array<i32>} : memref<8x8x128xf32, #tpu.memory_space<vmem>>, vector<1x8x128xf32>,
    %c56_221 = arith.constant 56 : index
    %c0_222 = arith.constant 0 : index
    %595 = vector.load %arg12[%c56_221, %c0_222] : memref<64x512xf32, #tpu.memory_space<vmem>>, vector<8x512xf32>
    %596 = arith.truncf %591 : vector<8x128xf32> to vector<8x128xbf16>
    %cst_223 = arith.constant dense<0.000000e+00> : vector<8x512xf32>
    %597 = tpu.matmul %596, %429, %cst_223 {dimension_numbers = #tpu.dot_dimension_numbers<[1], [0], [0], [1], [0, 0, 1, 1], [], []>} : vector<8x128xbf16>, vector<128x512xbf16>, vector<8x512xf32> -> vector<8x512xf32>
    %598 = arith.addf %595, %597 : vector<8x512xf32>
    %599 = vector.extract_strided_slice %598 {offsets = [0, 0], sizes = [8, 384], strides = [1, 1]} : vector<8x512xf32> to vector<8x384xf32>
    %600 = arith.negf %599 : vector<8x384xf32>
    %601 = math.exp %600 : vector<8x384xf32>
    %cst_224 = arith.constant 1.000000e+00 : f32
    %602 = vector.broadcast %cst_224 : f32 to vector<8x384xf32>
    %603 = arith.addf %602, %601 : vector<8x384xf32>
    %604 = arith.divf %602, %603 : vector<8x384xf32>
    %605 = vector.extract_strided_slice %604 {offsets = [0, 0], sizes = [8, 128], strides = [1, 1]} : vector<8x384xf32> to vector<8x128xf32>
    %606 = vector.extract_strided_slice %604 {offsets = [0, 128], sizes = [8, 128], strides = [1, 1]} : vector<8x384xf32> to vector<8x128xf32>
    %607 = vector.extract_strided_slice %604 {offsets = [0, 256], sizes = [8, 128], strides = [1, 1]} : vector<8x384xf32> to vector<8x128xf32>
    %608 = vector.extract_strided_slice %598 {offsets = [0, 384], sizes = [8, 128], strides = [1, 1]} : vector<8x512xf32> to vector<8x128xf32>
    %609 = math.tanh %608 : vector<8x128xf32>
    %610 = arith.mulf %606, %589 : vector<8x128xf32>
    %611 = arith.mulf %605, %609 : vector<8x128xf32>
    %612 = arith.addf %610, %611 : vector<8x128xf32>
    %613 = math.tanh %612 : vector<8x128xf32>
    %614 = arith.mulf %607, %613 : vector<8x128xf32>
    %c7_225 = arith.constant 7 : index
    %c0_226 = arith.constant 0 : index
    %c0_227 = arith.constant 0 : index
    %615 = vector.load %arg11[%c7_225, %c0_226, %c0_227] : memref<8x8x128xf32, #tpu.memory_space<vmem>>, vector<1x8x128xf32>
    %616 = vector.shape_cast %615 : vector<1x8x128xf32> to vector<8x128xf32>
    %617 = vector.shape_cast %614 : vector<8x128xf32> to vector<1x8x128xf32>
    tpu.vector_store %arg11[%c7_225, %c0_226, %c0_227], %617 {strides = array<i32>} : memref<8x8x128xf32, #tpu.memory_space<vmem>>, vector<1x8x128xf32>,
    %c2_228 = arith.constant 2 : index
    %c0_229 = arith.constant 0 : index
    %c0_230 = arith.constant 0 : index
    %618 = vector.load %arg9[%c2_228, %c0_229, %c0_230] : memref<4x8x128xf32, #tpu.memory_space<vmem>>, vector<1x8x128xf32>
    %619 = vector.shape_cast %618 : vector<1x8x128xf32> to vector<8x128xf32>
    %620 = vector.shape_cast %614 : vector<8x128xf32> to vector<1x8x128xf32>
    tpu.vector_store %arg9[%c2_228, %c0_229, %c0_230], %620 {strides = array<i32>} : memref<4x8x128xf32, #tpu.memory_space<vmem>>, vector<1x8x128xf32>,
    %c2_231 = arith.constant 2 : index
    %c0_232 = arith.constant 0 : index
    %c0_233 = arith.constant 0 : index
    %621 = vector.load %arg10[%c2_231, %c0_232, %c0_233] : memref<4x8x128xf32, #tpu.memory_space<vmem>>, vector<1x8x128xf32>
    %622 = vector.shape_cast %621 : vector<1x8x128xf32> to vector<8x128xf32>
    %623 = vector.shape_cast %612 : vector<8x128xf32> to vector<1x8x128xf32>
    tpu.vector_store %arg10[%c2_231, %c0_232, %c0_233], %623 {strides = array<i32>} : memref<4x8x128xf32, #tpu.memory_space<vmem>>, vector<1x8x128xf32>,
    %c0_234 = arith.constant 0 : index
    %c0_235 = arith.constant 0 : index
    %c0_236 = arith.constant 0 : index
    %624 = vector.load %arg11[%c0_234, %c0_235, %c0_236] : memref<8x8x128xf32, #tpu.memory_space<vmem>>, vector<8x8x128xf32>
    %625 = vector.shape_cast %624 : vector<8x8x128xf32> to vector<64x128xf32>
    %626 = arith.truncf %625 : vector<64x128xf32> to vector<64x128xbf16>
    %c3_237 = arith.constant 3 : index
    %c0_238 = arith.constant 0 : index
    %c0_239 = arith.constant 0 : index
    %627 = vector.load %arg2[%c3_237, %c0_238, %c0_239] : memref<4x128x512xbf16, #tpu.memory_space<vmem>>, vector<1x128x512xbf16>
    %628 = vector.shape_cast %627 : vector<1x128x512xbf16> to vector<128x512xbf16>
    %cst_240 = arith.constant dense<0.000000e+00> : vector<64x512xf32>
    %629 = tpu.matmul %626, %628, %cst_240 {dimension_numbers = #tpu.dot_dimension_numbers<[1], [0], [0], [1], [0, 0, 1, 1], [], []>} : vector<64x128xbf16>, vector<128x512xbf16>, vector<64x512xf32> -> vector<64x512xf32>
    %c3_241 = arith.constant 3 : index
    %c0_242 = arith.constant 0 : index
    %c0_243 = arith.constant 0 : index
    %630 = vector.load %arg4[%c3_241, %c0_242, %c0_243] : memref<4x1x512xf32, #tpu.memory_space<vmem>>, vector<1x1x512xf32>
    %631 = vector.shape_cast %630 : vector<1x1x512xf32> to vector<1x512xf32>
    %632 = vector.broadcast %631 : vector<1x512xf32> to vector<64x512xf32>
    %633 = arith.addf %629, %632 : vector<64x512xf32>
    %c0_244 = arith.constant 0 : index
    %c0_245 = arith.constant 0 : index
    %634 = vector.load %arg12[%c0_244, %c0_245] : memref<64x512xf32, #tpu.memory_space<vmem>>, vector<64x512xf32>
    tpu.vector_store %arg12[%c0_244, %c0_245], %633 {strides = array<i32>} : memref<64x512xf32, #tpu.memory_space<vmem>>, vector<64x512xf32>,
    %c3_246 = arith.constant 3 : index
    %c0_247 = arith.constant 0 : index
    %c0_248 = arith.constant 0 : index
    %635 = vector.load %arg3[%c3_246, %c0_247, %c0_248] : memref<4x128x512xbf16, #tpu.memory_space<vmem>>, vector<1x128x512xbf16>
    %636 = vector.shape_cast %635 : vector<1x128x512xbf16> to vector<128x512xbf16>
    %c3_249 = arith.constant 3 : index
    %c0_250 = arith.constant 0 : index
    %c0_251 = arith.constant 0 : index
    %637 = vector.load %arg9[%c3_249, %c0_250, %c0_251] : memref<4x8x128xf32, #tpu.memory_space<vmem>>, vector<1x8x128xf32>
    %638 = vector.shape_cast %637 : vector<1x8x128xf32> to vector<8x128xf32>
    %c3_252 = arith.constant 3 : index
    %c0_253 = arith.constant 0 : index
    %c0_254 = arith.constant 0 : index
    %639 = vector.load %arg10[%c3_252, %c0_253, %c0_254] : memref<4x8x128xf32, #tpu.memory_space<vmem>>, vector<1x8x128xf32>
    %640 = vector.shape_cast %639 : vector<1x8x128xf32> to vector<8x128xf32>
    %c0_255 = arith.constant 0 : index
    %c0_256 = arith.constant 0 : index
    %641 = vector.load %arg12[%c0_255, %c0_256] : memref<64x512xf32, #tpu.memory_space<vmem>>, vector<8x512xf32>
    %642 = arith.truncf %638 : vector<8x128xf32> to vector<8x128xbf16>
    %cst_257 = arith.constant dense<0.000000e+00> : vector<8x512xf32>
    %643 = tpu.matmul %642, %636, %cst_257 {dimension_numbers = #tpu.dot_dimension_numbers<[1], [0], [0], [1], [0, 0, 1, 1], [], []>} : vector<8x128xbf16>, vector<128x512xbf16>, vector<8x512xf32> -> vector<8x512xf32>
    %644 = arith.addf %641, %643 : vector<8x512xf32>
    %645 = vector.extract_strided_slice %644 {offsets = [0, 0], sizes = [8, 384], strides = [1, 1]} : vector<8x512xf32> to vector<8x384xf32>
    %646 = arith.negf %645 : vector<8x384xf32>
    %647 = math.exp %646 : vector<8x384xf32>
    %cst_258 = arith.constant 1.000000e+00 : f32
    %648 = vector.broadcast %cst_258 : f32 to vector<8x384xf32>
    %649 = arith.addf %648, %647 : vector<8x384xf32>
    %650 = arith.divf %648, %649 : vector<8x384xf32>
    %651 = vector.extract_strided_slice %650 {offsets = [0, 0], sizes = [8, 128], strides = [1, 1]} : vector<8x384xf32> to vector<8x128xf32>
    %652 = vector.extract_strided_slice %650 {offsets = [0, 128], sizes = [8, 128], strides = [1, 1]} : vector<8x384xf32> to vector<8x128xf32>
    %653 = vector.extract_strided_slice %650 {offsets = [0, 256], sizes = [8, 128], strides = [1, 1]} : vector<8x384xf32> to vector<8x128xf32>
    %654 = vector.extract_strided_slice %644 {offsets = [0, 384], sizes = [8, 128], strides = [1, 1]} : vector<8x512xf32> to vector<8x128xf32>
    %655 = math.tanh %654 : vector<8x128xf32>
    %656 = arith.mulf %652, %640 : vector<8x128xf32>
    %657 = arith.mulf %651, %655 : vector<8x128xf32>
    %658 = arith.addf %656, %657 : vector<8x128xf32>
    %659 = math.tanh %658 : vector<8x128xf32>
    %660 = arith.mulf %653, %659 : vector<8x128xf32>
    %c8_259 = arith.constant 8 : index
    %c0_260 = arith.constant 0 : index
    %661 = vector.load %arg12[%c8_259, %c0_260] : memref<64x512xf32, #tpu.memory_space<vmem>>, vector<8x512xf32>
    %662 = arith.truncf %660 : vector<8x128xf32> to vector<8x128xbf16>
    %cst_261 = arith.constant dense<0.000000e+00> : vector<8x512xf32>
    %663 = tpu.matmul %662, %636, %cst_261 {dimension_numbers = #tpu.dot_dimension_numbers<[1], [0], [0], [1], [0, 0, 1, 1], [], []>} : vector<8x128xbf16>, vector<128x512xbf16>, vector<8x512xf32> -> vector<8x512xf32>
    %664 = arith.addf %661, %663 : vector<8x512xf32>
    %665 = vector.extract_strided_slice %664 {offsets = [0, 0], sizes = [8, 384], strides = [1, 1]} : vector<8x512xf32> to vector<8x384xf32>
    %666 = arith.negf %665 : vector<8x384xf32>
    %667 = math.exp %666 : vector<8x384xf32>
    %cst_262 = arith.constant 1.000000e+00 : f32
    %668 = vector.broadcast %cst_262 : f32 to vector<8x384xf32>
    %669 = arith.addf %668, %667 : vector<8x384xf32>
    %670 = arith.divf %668, %669 : vector<8x384xf32>
    %671 = vector.extract_strided_slice %670 {offsets = [0, 0], sizes = [8, 128], strides = [1, 1]} : vector<8x384xf32> to vector<8x128xf32>
    %672 = vector.extract_strided_slice %670 {offsets = [0, 128], sizes = [8, 128], strides = [1, 1]} : vector<8x384xf32> to vector<8x128xf32>
    %673 = vector.extract_strided_slice %670 {offsets = [0, 256], sizes = [8, 128], strides = [1, 1]} : vector<8x384xf32> to vector<8x128xf32>
    %674 = vector.extract_strided_slice %664 {offsets = [0, 384], sizes = [8, 128], strides = [1, 1]} : vector<8x512xf32> to vector<8x128xf32>
    %675 = math.tanh %674 : vector<8x128xf32>
    %676 = arith.mulf %672, %658 : vector<8x128xf32>
    %677 = arith.mulf %671, %675 : vector<8x128xf32>
    %678 = arith.addf %676, %677 : vector<8x128xf32>
    %679 = math.tanh %678 : vector<8x128xf32>
    %680 = arith.mulf %673, %679 : vector<8x128xf32>
    %c16_263 = arith.constant 16 : index
    %c0_264 = arith.constant 0 : index
    %681 = vector.load %arg12[%c16_263, %c0_264] : memref<64x512xf32, #tpu.memory_space<vmem>>, vector<8x512xf32>
    %682 = arith.truncf %680 : vector<8x128xf32> to vector<8x128xbf16>
    %cst_265 = arith.constant dense<0.000000e+00> : vector<8x512xf32>
    %683 = tpu.matmul %682, %636, %cst_265 {dimension_numbers = #tpu.dot_dimension_numbers<[1], [0], [0], [1], [0, 0, 1, 1], [], []>} : vector<8x128xbf16>, vector<128x512xbf16>, vector<8x512xf32> -> vector<8x512xf32>
    %684 = arith.addf %681, %683 : vector<8x512xf32>
    %685 = vector.extract_strided_slice %684 {offsets = [0, 0], sizes = [8, 384], strides = [1, 1]} : vector<8x512xf32> to vector<8x384xf32>
    %686 = arith.negf %685 : vector<8x384xf32>
    %687 = math.exp %686 : vector<8x384xf32>
    %cst_266 = arith.constant 1.000000e+00 : f32
    %688 = vector.broadcast %cst_266 : f32 to vector<8x384xf32>
    %689 = arith.addf %688, %687 : vector<8x384xf32>
    %690 = arith.divf %688, %689 : vector<8x384xf32>
    %691 = vector.extract_strided_slice %690 {offsets = [0, 0], sizes = [8, 128], strides = [1, 1]} : vector<8x384xf32> to vector<8x128xf32>
    %692 = vector.extract_strided_slice %690 {offsets = [0, 128], sizes = [8, 128], strides = [1, 1]} : vector<8x384xf32> to vector<8x128xf32>
    %693 = vector.extract_strided_slice %690 {offsets = [0, 256], sizes = [8, 128], strides = [1, 1]} : vector<8x384xf32> to vector<8x128xf32>
    %694 = vector.extract_strided_slice %684 {offsets = [0, 384], sizes = [8, 128], strides = [1, 1]} : vector<8x512xf32> to vector<8x128xf32>
    %695 = math.tanh %694 : vector<8x128xf32>
    %696 = arith.mulf %692, %678 : vector<8x128xf32>
    %697 = arith.mulf %691, %695 : vector<8x128xf32>
    %698 = arith.addf %696, %697 : vector<8x128xf32>
    %699 = math.tanh %698 : vector<8x128xf32>
    %700 = arith.mulf %693, %699 : vector<8x128xf32>
    %c24_267 = arith.constant 24 : index
    %c0_268 = arith.constant 0 : index
    %701 = vector.load %arg12[%c24_267, %c0_268] : memref<64x512xf32, #tpu.memory_space<vmem>>, vector<8x512xf32>
    %702 = arith.truncf %700 : vector<8x128xf32> to vector<8x128xbf16>
    %cst_269 = arith.constant dense<0.000000e+00> : vector<8x512xf32>
    %703 = tpu.matmul %702, %636, %cst_269 {dimension_numbers = #tpu.dot_dimension_numbers<[1], [0], [0], [1], [0, 0, 1, 1], [], []>} : vector<8x128xbf16>, vector<128x512xbf16>, vector<8x512xf32> -> vector<8x512xf32>
    %704 = arith.addf %701, %703 : vector<8x512xf32>
    %705 = vector.extract_strided_slice %704 {offsets = [0, 0], sizes = [8, 384], strides = [1, 1]} : vector<8x512xf32> to vector<8x384xf32>
    %706 = arith.negf %705 : vector<8x384xf32>
    %707 = math.exp %706 : vector<8x384xf32>
    %cst_270 = arith.constant 1.000000e+00 : f32
    %708 = vector.broadcast %cst_270 : f32 to vector<8x384xf32>
    %709 = arith.addf %708, %707 : vector<8x384xf32>
    %710 = arith.divf %708, %709 : vector<8x384xf32>
    %711 = vector.extract_strided_slice %710 {offsets = [0, 0], sizes = [8, 128], strides = [1, 1]} : vector<8x384xf32> to vector<8x128xf32>
    %712 = vector.extract_strided_slice %710 {offsets = [0, 128], sizes = [8, 128], strides = [1, 1]} : vector<8x384xf32> to vector<8x128xf32>
    %713 = vector.extract_strided_slice %710 {offsets = [0, 256], sizes = [8, 128], strides = [1, 1]} : vector<8x384xf32> to vector<8x128xf32>
    %714 = vector.extract_strided_slice %704 {offsets = [0, 384], sizes = [8, 128], strides = [1, 1]} : vector<8x512xf32> to vector<8x128xf32>
    %715 = math.tanh %714 : vector<8x128xf32>
    %716 = arith.mulf %712, %698 : vector<8x128xf32>
    %717 = arith.mulf %711, %715 : vector<8x128xf32>
    %718 = arith.addf %716, %717 : vector<8x128xf32>
    %719 = math.tanh %718 : vector<8x128xf32>
    %720 = arith.mulf %713, %719 : vector<8x128xf32>
    %c32_271 = arith.constant 32 : index
    %c0_272 = arith.constant 0 : index
    %721 = vector.load %arg12[%c32_271, %c0_272] : memref<64x512xf32, #tpu.memory_space<vmem>>, vector<8x512xf32>
    %722 = arith.truncf %720 : vector<8x128xf32> to vector<8x128xbf16>
    %cst_273 = arith.constant dense<0.000000e+00> : vector<8x512xf32>
    %723 = tpu.matmul %722, %636, %cst_273 {dimension_numbers = #tpu.dot_dimension_numbers<[1], [0], [0], [1], [0, 0, 1, 1], [], []>} : vector<8x128xbf16>, vector<128x512xbf16>, vector<8x512xf32> -> vector<8x512xf32>
    %724 = arith.addf %721, %723 : vector<8x512xf32>
    %725 = vector.extract_strided_slice %724 {offsets = [0, 0], sizes = [8, 384], strides = [1, 1]} : vector<8x512xf32> to vector<8x384xf32>
    %726 = arith.negf %725 : vector<8x384xf32>
    %727 = math.exp %726 : vector<8x384xf32>
    %cst_274 = arith.constant 1.000000e+00 : f32
    %728 = vector.broadcast %cst_274 : f32 to vector<8x384xf32>
    %729 = arith.addf %728, %727 : vector<8x384xf32>
    %730 = arith.divf %728, %729 : vector<8x384xf32>
    %731 = vector.extract_strided_slice %730 {offsets = [0, 0], sizes = [8, 128], strides = [1, 1]} : vector<8x384xf32> to vector<8x128xf32>
    %732 = vector.extract_strided_slice %730 {offsets = [0, 128], sizes = [8, 128], strides = [1, 1]} : vector<8x384xf32> to vector<8x128xf32>
    %733 = vector.extract_strided_slice %730 {offsets = [0, 256], sizes = [8, 128], strides = [1, 1]} : vector<8x384xf32> to vector<8x128xf32>
    %734 = vector.extract_strided_slice %724 {offsets = [0, 384], sizes = [8, 128], strides = [1, 1]} : vector<8x512xf32> to vector<8x128xf32>
    %735 = math.tanh %734 : vector<8x128xf32>
    %736 = arith.mulf %732, %718 : vector<8x128xf32>
    %737 = arith.mulf %731, %735 : vector<8x128xf32>
    %738 = arith.addf %736, %737 : vector<8x128xf32>
    %739 = math.tanh %738 : vector<8x128xf32>
    %740 = arith.mulf %733, %739 : vector<8x128xf32>
    %c40_275 = arith.constant 40 : index
    %c0_276 = arith.constant 0 : index
    %741 = vector.load %arg12[%c40_275, %c0_276] : memref<64x512xf32, #tpu.memory_space<vmem>>, vector<8x512xf32>
    %742 = arith.truncf %740 : vector<8x128xf32> to vector<8x128xbf16>
    %cst_277 = arith.constant dense<0.000000e+00> : vector<8x512xf32>
    %743 = tpu.matmul %742, %636, %cst_277 {dimension_numbers = #tpu.dot_dimension_numbers<[1], [0], [0], [1], [0, 0, 1, 1], [], []>} : vector<8x128xbf16>, vector<128x512xbf16>, vector<8x512xf32> -> vector<8x512xf32>
    %744 = arith.addf %741, %743 : vector<8x512xf32>
    %745 = vector.extract_strided_slice %744 {offsets = [0, 0], sizes = [8, 384], strides = [1, 1]} : vector<8x512xf32> to vector<8x384xf32>
    %746 = arith.negf %745 : vector<8x384xf32>
    %747 = math.exp %746 : vector<8x384xf32>
    %cst_278 = arith.constant 1.000000e+00 : f32
    %748 = vector.broadcast %cst_278 : f32 to vector<8x384xf32>
    %749 = arith.addf %748, %747 : vector<8x384xf32>
    %750 = arith.divf %748, %749 : vector<8x384xf32>
    %751 = vector.extract_strided_slice %750 {offsets = [0, 0], sizes = [8, 128], strides = [1, 1]} : vector<8x384xf32> to vector<8x128xf32>
    %752 = vector.extract_strided_slice %750 {offsets = [0, 128], sizes = [8, 128], strides = [1, 1]} : vector<8x384xf32> to vector<8x128xf32>
    %753 = vector.extract_strided_slice %750 {offsets = [0, 256], sizes = [8, 128], strides = [1, 1]} : vector<8x384xf32> to vector<8x128xf32>
    %754 = vector.extract_strided_slice %744 {offsets = [0, 384], sizes = [8, 128], strides = [1, 1]} : vector<8x512xf32> to vector<8x128xf32>
    %755 = math.tanh %754 : vector<8x128xf32>
    %756 = arith.mulf %752, %738 : vector<8x128xf32>
    %757 = arith.mulf %751, %755 : vector<8x128xf32>
    %758 = arith.addf %756, %757 : vector<8x128xf32>
    %759 = math.tanh %758 : vector<8x128xf32>
    %760 = arith.mulf %753, %759 : vector<8x128xf32>
    %c48_279 = arith.constant 48 : index
    %c0_280 = arith.constant 0 : index
    %761 = vector.load %arg12[%c48_279, %c0_280] : memref<64x512xf32, #tpu.memory_space<vmem>>, vector<8x512xf32>
    %762 = arith.truncf %760 : vector<8x128xf32> to vector<8x128xbf16>
    %cst_281 = arith.constant dense<0.000000e+00> : vector<8x512xf32>
    %763 = tpu.matmul %762, %636, %cst_281 {dimension_numbers = #tpu.dot_dimension_numbers<[1], [0], [0], [1], [0, 0, 1, 1], [], []>} : vector<8x128xbf16>, vector<128x512xbf16>, vector<8x512xf32> -> vector<8x512xf32>
    %764 = arith.addf %761, %763 : vector<8x512xf32>
    %765 = vector.extract_strided_slice %764 {offsets = [0, 0], sizes = [8, 384], strides = [1, 1]} : vector<8x512xf32> to vector<8x384xf32>
    %766 = arith.negf %765 : vector<8x384xf32>
    %767 = math.exp %766 : vector<8x384xf32>
    %cst_282 = arith.constant 1.000000e+00 : f32
    %768 = vector.broadcast %cst_282 : f32 to vector<8x384xf32>
    %769 = arith.addf %768, %767 : vector<8x384xf32>
    %770 = arith.divf %768, %769 : vector<8x384xf32>
    %771 = vector.extract_strided_slice %770 {offsets = [0, 0], sizes = [8, 128], strides = [1, 1]} : vector<8x384xf32> to vector<8x128xf32>
    %772 = vector.extract_strided_slice %770 {offsets = [0, 128], sizes = [8, 128], strides = [1, 1]} : vector<8x384xf32> to vector<8x128xf32>
    %773 = vector.extract_strided_slice %770 {offsets = [0, 256], sizes = [8, 128], strides = [1, 1]} : vector<8x384xf32> to vector<8x128xf32>
    %774 = vector.extract_strided_slice %764 {offsets = [0, 384], sizes = [8, 128], strides = [1, 1]} : vector<8x512xf32> to vector<8x128xf32>
    %775 = math.tanh %774 : vector<8x128xf32>
    %776 = arith.mulf %772, %758 : vector<8x128xf32>
    %777 = arith.mulf %771, %775 : vector<8x128xf32>
    %778 = arith.addf %776, %777 : vector<8x128xf32>
    %779 = math.tanh %778 : vector<8x128xf32>
    %780 = arith.mulf %773, %779 : vector<8x128xf32>
    %c56_283 = arith.constant 56 : index
    %c0_284 = arith.constant 0 : index
    %781 = vector.load %arg12[%c56_283, %c0_284] : memref<64x512xf32, #tpu.memory_space<vmem>>, vector<8x512xf32>
    %782 = arith.truncf %780 : vector<8x128xf32> to vector<8x128xbf16>
    %cst_285 = arith.constant dense<0.000000e+00> : vector<8x512xf32>
    %783 = tpu.matmul %782, %636, %cst_285 {dimension_numbers = #tpu.dot_dimension_numbers<[1], [0], [0], [1], [0, 0, 1, 1], [], []>} : vector<8x128xbf16>, vector<128x512xbf16>, vector<8x512xf32> -> vector<8x512xf32>
    %784 = arith.addf %781, %783 : vector<8x512xf32>
    %785 = vector.extract_strided_slice %784 {offsets = [0, 0], sizes = [8, 384], strides = [1, 1]} : vector<8x512xf32> to vector<8x384xf32>
    %786 = arith.negf %785 : vector<8x384xf32>
    %787 = math.exp %786 : vector<8x384xf32>
    %cst_286 = arith.constant 1.000000e+00 : f32
    %788 = vector.broadcast %cst_286 : f32 to vector<8x384xf32>
    %789 = arith.addf %788, %787 : vector<8x384xf32>
    %790 = arith.divf %788, %789 : vector<8x384xf32>
    %791 = vector.extract_strided_slice %790 {offsets = [0, 0], sizes = [8, 128], strides = [1, 1]} : vector<8x384xf32> to vector<8x128xf32>
    %792 = vector.extract_strided_slice %790 {offsets = [0, 128], sizes = [8, 128], strides = [1, 1]} : vector<8x384xf32> to vector<8x128xf32>
    %793 = vector.extract_strided_slice %790 {offsets = [0, 256], sizes = [8, 128], strides = [1, 1]} : vector<8x384xf32> to vector<8x128xf32>
    %794 = vector.extract_strided_slice %784 {offsets = [0, 384], sizes = [8, 128], strides = [1, 1]} : vector<8x512xf32> to vector<8x128xf32>
    %795 = math.tanh %794 : vector<8x128xf32>
    %796 = arith.mulf %792, %778 : vector<8x128xf32>
    %797 = arith.mulf %791, %795 : vector<8x128xf32>
    %798 = arith.addf %796, %797 : vector<8x128xf32>
    %799 = math.tanh %798 : vector<8x128xf32>
    %800 = arith.mulf %793, %799 : vector<8x128xf32>
    %c3_287 = arith.constant 3 : index
    %c0_288 = arith.constant 0 : index
    %c0_289 = arith.constant 0 : index
    %801 = vector.load %arg9[%c3_287, %c0_288, %c0_289] : memref<4x8x128xf32, #tpu.memory_space<vmem>>, vector<1x8x128xf32>
    %802 = vector.shape_cast %801 : vector<1x8x128xf32> to vector<8x128xf32>
    %803 = vector.shape_cast %800 : vector<8x128xf32> to vector<1x8x128xf32>
    tpu.vector_store %arg9[%c3_287, %c0_288, %c0_289], %803 {strides = array<i32>} : memref<4x8x128xf32, #tpu.memory_space<vmem>>, vector<1x8x128xf32>,
    %c3_290 = arith.constant 3 : index
    %c0_291 = arith.constant 0 : index
    %c0_292 = arith.constant 0 : index
    %804 = vector.load %arg10[%c3_290, %c0_291, %c0_292] : memref<4x8x128xf32, #tpu.memory_space<vmem>>, vector<1x8x128xf32>
    %805 = vector.shape_cast %804 : vector<1x8x128xf32> to vector<8x128xf32>
    %806 = vector.shape_cast %798 : vector<8x128xf32> to vector<1x8x128xf32>
    tpu.vector_store %arg10[%c3_290, %c0_291, %c0_292], %806 {strides = array<i32>} : memref<4x8x128xf32, #tpu.memory_space<vmem>>, vector<1x8x128xf32>,
    %c1_i32 = arith.constant 1 : i32
    %807 = arith.cmpi eq, %arg0, %c1_i32 : i32
    %808 = arith.extui %807 : i1 to i32
    %c0_i32_293 = arith.constant 0 : i32
    %809 = arith.cmpi ne, %808, %c0_i32_293 : i32
    scf.if %809 {
      %c0_294 = arith.constant 0 : index
      %c0_295 = arith.constant 0 : index
      %c0_296 = arith.constant 0 : index
      %810 = vector.load %arg9[%c0_294, %c0_295, %c0_296] : memref<4x8x128xf32, #tpu.memory_space<vmem>>, vector<4x8x128xf32>
      %c0_297 = arith.constant 0 : index
      %c0_298 = arith.constant 0 : index
      %c0_299 = arith.constant 0 : index
      %811 = vector.load %arg7[%c0_297, %c0_298, %c0_299] : memref<4x8x128xf32, #tpu.memory_space<vmem>>, vector<4x8x128xf32>
      tpu.vector_store %arg7[%c0_297, %c0_298, %c0_299], %810 {strides = array<i32>} : memref<4x8x128xf32, #tpu.memory_space<vmem>>, vector<4x8x128xf32>,
      %c0_300 = arith.constant 0 : index
      %c0_301 = arith.constant 0 : index
      %c0_302 = arith.constant 0 : index
      %812 = vector.load %arg10[%c0_300, %c0_301, %c0_302] : memref<4x8x128xf32, #tpu.memory_space<vmem>>, vector<4x8x128xf32>
      %c0_303 = arith.constant 0 : index
      %c0_304 = arith.constant 0 : index
      %c0_305 = arith.constant 0 : index
      %813 = vector.load %arg8[%c0_303, %c0_304, %c0_305] : memref<4x8x128xf32, #tpu.memory_space<vmem>>, vector<4x8x128xf32>
      tpu.vector_store %arg8[%c0_303, %c0_304, %c0_305], %812 {strides = array<i32>} : memref<4x8x128xf32, #tpu.memory_space<vmem>>, vector<4x8x128xf32>,
    } else {
    }
    return
  }
  func.func @transform_0(%arg0: i32) -> (i32, i32, i32) {
    %c0_i32 = arith.constant 0 : i32
    %c0_i32_0 = arith.constant 0 : i32
    %c0_i32_1 = arith.constant 0 : i32
    return %arg0, %c0_i32, %c0_i32_0 : i32, i32, i32
  }
  func.func @transform_1(%arg0: i32) -> (i32, i32, i32) {
    %c0_i32 = arith.constant 0 : i32
    %c0_i32_0 = arith.constant 0 : i32
    %c0_i32_1 = arith.constant 0 : i32
    %c0_i32_2 = arith.constant 0 : i32
    return %c0_i32, %c0_i32_0, %c0_i32_1 : i32, i32, i32
  }
  func.func @transform_2(%arg0: i32) -> (i32, i32, i32) {
    %c0_i32 = arith.constant 0 : i32
    %c0_i32_0 = arith.constant 0 : i32
    %c0_i32_1 = arith.constant 0 : i32
    %c0_i32_2 = arith.constant 0 : i32
    return %c0_i32, %c0_i32_0, %c0_i32_1 : i32, i32, i32
  }
  func.func @transform_3(%arg0: i32) -> (i32, i32, i32) {
    %c0_i32 = arith.constant 0 : i32
    %c0_i32_0 = arith.constant 0 : i32
    %c0_i32_1 = arith.constant 0 : i32
    %c0_i32_2 = arith.constant 0 : i32
    return %c0_i32, %c0_i32_0, %c0_i32_1 : i32, i32, i32
  }
  func.func @transform_4(%arg0: i32) -> (i32, i32, i32) {
    %c0_i32 = arith.constant 0 : i32
    %c0_i32_0 = arith.constant 0 : i32
    %c0_i32_1 = arith.constant 0 : i32
    %c0_i32_2 = arith.constant 0 : i32
    return %c0_i32, %c0_i32_0, %c0_i32_1 : i32, i32, i32
  }
  func.func @transform_5(%arg0: i32) -> (i32, i32, i32) {
    %c0_i32 = arith.constant 0 : i32
    %c0_i32_0 = arith.constant 0 : i32
    %c0_i32_1 = arith.constant 0 : i32
    %c0_i32_2 = arith.constant 0 : i32
    return %c0_i32, %c0_i32_0, %c0_i32_1 : i32, i32, i32
  }
  func.func @transform_6(%arg0: i32) -> (i32, i32, i32) {
    %c0_i32 = arith.constant 0 : i32
    %c0_i32_0 = arith.constant 0 : i32
    %c0_i32_1 = arith.constant 0 : i32
    %c0_i32_2 = arith.constant 0 : i32
    return %c0_i32, %c0_i32_0, %c0_i32_1 : i32, i32, i32
  }
  func.func @transform_7(%arg0: i32) -> (i32, i32, i32) {
    %c0_i32 = arith.constant 0 : i32
    %c0_i32_0 = arith.constant 0 : i32
    %c0_i32_1 = arith.constant 0 : i32
    %c0_i32_2 = arith.constant 0 : i32
    return %c0_i32, %c0_i32_0, %c0_i32_1 : i32, i32, i32
  }
}

</mosaic_0001>

<llo_original>
// kernel: tpu_custom_call.1
$region0: #{tpu_custom_call.1}
  #allocation0 [shape = 'u32[]', space=smem, size = 0x4, offset = 0x4, fixed_abs, tag = 'smem constant byte address 0x4 - core index']
  #allocation1 [shape = 'u32[72,128]{1,0:T(1,128)}', space=vmem, size = 0x9000, scoped, tag = 'internal scratch']
  #allocation2 [shape = 'f32[4,8,128]{2,1,0:T(8,128)}', space=vmem, size = 0x4000, scoped, tag = 'scratch operand']
  #allocation3 [shape = 'f32[4,8,128]{2,1,0:T(8,128)}', space=vmem, size = 0x4000, scoped, tag = 'scratch operand']
  #allocation4 [shape = 'f32[8,8,128]{2,1,0:T(8,128)}', space=vmem, size = 0x8000, scoped, tag = 'scratch operand']
  #allocation5 [shape = 'f32[64,512]{1,0:T(8,128)}', space=vmem, size = 0x20000, scoped, tag = 'scratch operand']
  %s0 = inlined_call_operand.hbm [shape: f32[16,8,128], index: 0, kind: input, shape index: {}]
  %s1 = inlined_call_operand.hbm [shape: bf16[4,128,512], index: 1, kind: input, shape index: {}]
  %s2 = inlined_call_operand.hbm [shape: bf16[4,128,512], index: 2, kind: input, shape index: {}]
  %s3 = inlined_call_operand.hbm [shape: f32[4,1,512], index: 3, kind: input, shape index: {}]
  %s4 = inlined_call_operand.hbm [shape: f32[4,8,128], index: 4, kind: input, shape index: {}]
  %s5 = inlined_call_operand.hbm [shape: f32[4,8,128], index: 5, kind: input, shape index: {}]
  %s6 = inlined_call_operand.hbm [shape: f32[4,8,128], index: 6, kind: output, shape index: {0}]
  %s7 = inlined_call_operand.hbm [shape: f32[4,8,128], index: 7, kind: output, shape index: {1}]
  %8 = xla_tuple %s6, %s7
  %s9 = sld [smem:[#allocation0]]
  $region97: #{tpu_custom_call.1} parent=0
    _
  %s11 = ssub.s32 1, %s9
  %s12 = scalar_select 0, %s11, %s9
  $region1: #{tpu_custom_call.1} parent=0
    #allocation6 [shape = 'u8[65536]{0}', space=vmem, size = 0x10000, scoped, tag = 'input window, operand 0']
    #allocation7 [shape = 's32[2]{0}', space=sflag, size = 0x8, scoped, tag = 'scoped memory for tpu_custom_call.1']
    #allocation8 [shape = 's32[2]{0}', space=sflag, size = 0x8, scoped, tag = 'scoped memory for tpu_custom_call.1']
    #allocation9 [shape = 'u8[524288]{0}', space=vmem, size = 0x80000, scoped, tag = 'input window, operand 1, single buffered']
    #allocation10 [shape = 's32[1]{0}', space=sflag, size = 0x4, scoped, tag = 'scoped memory for tpu_custom_call.1']
    #allocation11 [shape = 'u8[524288]{0}', space=vmem, size = 0x80000, scoped, tag = 'input window, operand 2, single buffered']
    #allocation12 [shape = 'u8[8192]{0}', space=vmem, size = 0x2000, scoped, tag = 'input window, operand 3, single buffered']
    #allocation13 [shape = 's32[1]{0}', space=sflag, size = 0x4, scoped, tag = 'scoped memory for tpu_custom_call.1']
    #allocation14 [shape = 'u8[16384]{0}', space=vmem, size = 0x4000, scoped, tag = 'input window, operand 4, single buffered']
    #allocation15 [shape = 'u8[16384]{0}', space=vmem, size = 0x4000, scoped, tag = 'input window, operand 5, single buffered']
    #allocation16 [shape = 's32[1]{0}', space=sflag, size = 0x4, scoped, tag = 'scoped memory for tpu_custom_call.1']
    #allocation17 [shape = 'u8[16384]{0}', space=vmem, size = 0x4000, scoped, tag = 'output window, operand 0, single buffered']
    #allocation18 [shape = 'u8[16384]{0}', space=vmem, size = 0x4000, scoped, tag = 'output window, operand 1, single buffered']
    #allocation19 [shape = 's32[1]{0}', space=sflag, size = 0x4, scoped, tag = 'scoped memory for tpu_custom_call.1']
    %13 = vsyncpa [#allocation7], 0
    %s14 = scalar_lea.sflag [#allocation7], 1
    %15 = vsyncpa %s14, 0
    %16 = vsyncpa [#allocation10], 0
    %17 = vsyncpa [#allocation13], 0
    %18 = vsyncpa [#allocation16], 0
    %19 = vsyncpa [#allocation8], 0
    %20 = vsyncpa [#allocation19], 0
    loop: start=0, step=1, limit=4
    $region2: #{tpu_custom_call.1} parent=1 // loop_pre_header
      _
    $region3: #{tpu_custom_call.1} parent=1 // loop_header
      %s22 = sphi 0, %s26
      %p23 = scmp.ge.s32.totalorder %s22, 4
      %s32 = sphi 0, %s34
      %s35 = sphi 0, %s32
      %s36 = sphi 0, %s35
      %s52 = sphi 0, %s36
      %s56 = sphi 0, %s56
      %s58 = sphi 0, %s56
      %s59 = sphi 0, %s58
      %s73 = sphi 0, %s59
      %s77 = sphi 0, %s77
      %s79 = sphi 0, %s77
      %s80 = sphi 0, %s79
      %s94 = sphi 0, %s80
      %s98 = sphi 0, %s98
      %s100 = sphi 0, %s98
      %s101 = sphi 0, %s100
      %s115 = sphi 0, %s101
      %s119 = sphi 0, %s119
      %s121 = sphi 0, %s119
      %s122 = sphi 0, %s121
      %s136 = sphi 0, %s122
      %s140 = sphi 0, %s140
      %s142 = sphi 0, %s140
      %s143 = sphi 0, %s142
      %s157 = sphi 0, %s143
      %s161 = sphi 0, %s161
      %s163 = sphi 0, %s161
      %s164 = sphi 0, %s163
      %s178 = sphi 0, %s164
      %s182 = sphi 0, %s182
      %s184 = sphi 0, %s182
      %s185 = sphi 0, %s184
      %s199 = sphi 0, %s185
    $region4: #{tpu_custom_call.1} parent=1 // loop_header_branch
      %25 = sbr.rel (%p23) target = $region8
    $region5: #{tpu_custom_call.1} parent=1 // loop_body
      %s27 = ssub.s32 %s22, 1
      %s28 = ssub.s32 %s22, 2
      %s29 = sadd.s32 %s22, 1
      %s30 = ssub.s32 %s22, %s29
      %p31 = scmp.eq.s32.totalorder %s30, 0
      %s33 = sadd.s32 %s32, 1
      %s34 = scalar_select %p31, %s32, %s33
      %p37 = pneg %p31
      %p38 = scmp.eq.s32.totalorder %s22, 1
      %p39 = por %p37, %p38
      %p40 = scmp.ne.s32.totalorder %s32, %s35
      %p41 = scmp.eq.s32.totalorder %s22, 0
      %p42 = por %p40, %p41
      %p43 = scmp.ne.s32.totalorder %s32, %s35
      %p44 = scmp.eq.s32.totalorder %s27, 1
      %p45 = por %p43, %p44
      %p46 = scmp.ne.s32.totalorder %s35, %s36
      %p47 = scmp.eq.s32.totalorder %s27, 0
      %p48 = por %p46, %p47
      %p49 = scmp.ne.s32.totalorder %s35, %s36
      %p50 = scmp.eq.s32.totalorder %s28, 1
      %p51 = por %p49, %p50
      %p53 = scmp.ne.s32.totalorder %s36, %s52
      %p54 = scmp.eq.s32.totalorder %s28, 0
      %p55 = por %p53, %p54
      %s57 = sadd.s32 %s56, 1
      %p60 = scmp.eq.s32.totalorder %s22, 1
      %p61 = scmp.ne.s32.totalorder %s56, %s58
      %p62 = scmp.eq.s32.totalorder %s22, 0
      %p63 = por %p61, %p62
      %p64 = scmp.ne.s32.totalorder %s56, %s58
      %p65 = scmp.eq.s32.totalorder %s27, 1
      %p66 = por %p64, %p65
      %p67 = scmp.ne.s32.totalorder %s58, %s59
      %p68 = scmp.eq.s32.totalorder %s27, 0
      %p69 = por %p67, %p68
      %p70 = scmp.ne.s32.totalorder %s58, %s59
      %p71 = scmp.eq.s32.totalorder %s28, 1
      %p72 = por %p70, %p71
      %p74 = scmp.ne.s32.totalorder %s59, %s73
      %p75 = scmp.eq.s32.totalorder %s28, 0
      %p76 = por %p74, %p75
      %s78 = sadd.s32 %s77, 1
      %p81 = scmp.eq.s32.totalorder %s22, 1
      %p82 = scmp.ne.s32.totalorder %s77, %s79
      %p83 = scmp.eq.s32.totalorder %s22, 0
      %p84 = por %p82, %p83
      %p85 = scmp.ne.s32.totalorder %s77, %s79
      %p86 = scmp.eq.s32.totalorder %s27, 1
      %p87 = por %p85, %p86
      %p88 = scmp.ne.s32.totalorder %s79, %s80
      %p89 = scmp.eq.s32.totalorder %s27, 0
      %p90 = por %p88, %p89
      %p91 = scmp.ne.s32.totalorder %s79, %s80
      %p92 = scmp.eq.s32.totalorder %s28, 1
      %p93 = por %p91, %p92
      %p95 = scmp.ne.s32.totalorder %s80, %s94
      %p96 = scmp.eq.s32.totalorder %s28, 0
      %p97 = por %p95, %p96
      %s99 = sadd.s32 %s98, 1
      %p102 = scmp.eq.s32.totalorder %s22, 1
      %p103 = scmp.ne.s32.totalorder %s98, %s100
      %p104 = scmp.eq.s32.totalorder %s22, 0
      %p105 = por %p103, %p104
      %p106 = scmp.ne.s32.totalorder %s98, %s100
      %p107 = scmp.eq.s32.totalorder %s27, 1
      %p108 = por %p106, %p107
      %p109 = scmp.ne.s32.totalorder %s100, %s101
      %p110 = scmp.eq.s32.totalorder %s27, 0
      %p111 = por %p109, %p110
      %p112 = scmp.ne.s32.totalorder %s100, %s101
      %p113 = scmp.eq.s32.totalorder %s28, 1
      %p114 = por %p112, %p113
      %p116 = scmp.ne.s32.totalorder %s101, %s115
      %p117 = scmp.eq.s32.totalorder %s28, 0
      %p118 = por %p116, %p117
      %s120 = sadd.s32 %s119, 1
      %p123 = scmp.eq.s32.totalorder %s22, 1
      %p124 = scmp.ne.s32.totalorder %s119, %s121
      %p125 = scmp.eq.s32.totalorder %s22, 0
      %p126 = por %p124, %p125
      %p127 = scmp.ne.s32.totalorder %s119, %s121
      %p128 = scmp.eq.s32.totalorder %s27, 1
      %p129 = por %p127, %p128
      %p130 = scmp.ne.s32.totalorder %s121, %s122
      %p131 = scmp.eq.s32.totalorder %s27, 0
      %p132 = por %p130, %p131
      %p133 = scmp.ne.s32.totalorder %s121, %s122
      %p134 = scmp.eq.s32.totalorder %s28, 1
      %p135 = por %p133, %p134
      %p137 = scmp.ne.s32.totalorder %s122, %s136
      %p138 = scmp.eq.s32.totalorder %s28, 0
      %p139 = por %p137, %p138
      %s141 = sadd.s32 %s140, 1
      %p144 = scmp.eq.s32.totalorder %s22, 1
      %p145 = scmp.ne.s32.totalorder %s140, %s142
      %p146 = scmp.eq.s32.totalorder %s22, 0
      %p147 = por %p145, %p146
      %p148 = scmp.ne.s32.totalorder %s140, %s142
      %p149 = scmp.eq.s32.totalorder %s27, 1
      %p150 = por %p148, %p149
      %p151 = scmp.ne.s32.totalorder %s142, %s143
      %p152 = scmp.eq.s32.totalorder %s27, 0
      %p153 = por %p151, %p152
      %p154 = scmp.ne.s32.totalorder %s142, %s143
      %p155 = scmp.eq.s32.totalorder %s28, 1
      %p156 = por %p154, %p155
      %p158 = scmp.ne.s32.totalorder %s143, %s157
      %p159 = scmp.eq.s32.totalorder %s28, 0
      %p160 = por %p158, %p159
      %s162 = sadd.s32 %s161, 1
      %p165 = scmp.eq.s32.totalorder %s22, 1
      %p166 = scmp.ne.s32.totalorder %s161, %s163
      %p167 = scmp.eq.s32.totalorder %s22, 0
      %p168 = por %p166, %p167
      %p169 = scmp.ne.s32.totalorder %s161, %s163
      %p170 = scmp.eq.s32.totalorder %s27, 1
      %p171 = por %p169, %p170
      %p172 = scmp.ne.s32.totalorder %s163, %s164
      %p173 = scmp.eq.s32.totalorder %s27, 0
      %p174 = por %p172, %p173
      %p175 = scmp.ne.s32.totalorder %s163, %s164
      %p176 = scmp.eq.s32.totalorder %s28, 1
      %p177 = por %p175, %p176
      %p179 = scmp.ne.s32.totalorder %s164, %s178
      %p180 = scmp.eq.s32.totalorder %s28, 0
      %p181 = por %p179, %p180
      %s183 = sadd.s32 %s182, 1
      %p186 = scmp.eq.s32.totalorder %s22, 1
      %p187 = scmp.ne.s32.totalorder %s182, %s184
      %p188 = scmp.eq.s32.totalorder %s22, 0
      %p189 = por %p187, %p188
      %p190 = scmp.ne.s32.totalorder %s182, %s184
      %p191 = scmp.eq.s32.totalorder %s27, 1
      %p192 = por %p190, %p191
      %p193 = scmp.ne.s32.totalorder %s184, %s185
      %p194 = scmp.eq.s32.totalorder %s27, 0
      %p195 = por %p193, %p194
      %p196 = scmp.ne.s32.totalorder %s184, %s185
      %p197 = scmp.eq.s32.totalorder %s28, 1
      %p198 = por %p196, %p197
      %p200 = scmp.ne.s32.totalorder %s185, %s199
      %p201 = scmp.eq.s32.totalorder %s28, 0
      %p202 = por %p200, %p201
      %p203 = scmp.le.s32.totalorder 1, %s22
      %p204 = scmp.lt.s32.totalorder %s22, 3
      %p205 = pnand %p203, %p204
      %p206 = pneg %p205
      // Predicated region
      $region9: #{tpu_custom_call.1} parent=5 // pred_check
        _
      $region10: #{tpu_custom_call.1} parent=5 // pred_check_branch
        %208 = sbr.rel (%p205) target = $region12
      $region11: #{tpu_custom_call.1} parent=5 // pred_region
        %s209 = ssub.s32 %s22, 1
        // Predicated region
        $region13: #{tpu_custom_call.1} parent=11 // pred_check
          %p210 = pneg %p69
        $region14: #{tpu_custom_call.1} parent=11 // pred_check_branch
          %212 = sbr.rel (%p210) target = $region16
        $region15: #{tpu_custom_call.1} parent=11 // pred_region
          %214 = vsyncadd [#allocation10], 0
          %s215 = sshll.u32 %s1, 4
          %s216 = int_to_ptr.hbm [resolvable:$true] %s215
          %s217 = sshll.u32 [#allocation9], 4
          %s218 = int_to_ptr.vmem [resolvable:$true] %s217
          %223 = dma.hbm_to_vmem [thread:$0]  %s216, 16384, %s218, [#allocation10], 256, 256, 16
        $region16: #{tpu_custom_call.1} parent=11 // pred_fallthru
          _
        // Predicated region
        $region17: #{tpu_custom_call.1} parent=11 // pred_check
          %p224 = pneg %p90
        $region18: #{tpu_custom_call.1} parent=11 // pred_check_branch
          %226 = sbr.rel (%p224) target = $region20
        $region19: #{tpu_custom_call.1} parent=11 // pred_region
          %228 = vsyncadd [#allocation10], 0
          %s229 = sshll.u32 %s2, 4
          %s230 = int_to_ptr.hbm [resolvable:$true] %s229
          %s231 = sshll.u32 [#allocation11], 4
          %s232 = int_to_ptr.vmem [resolvable:$true] %s231
          %237 = dma.hbm_to_vmem [thread:$0]  %s230, 16384, %s232, [#allocation10], 256, 256, 16
        $region20: #{tpu_custom_call.1} parent=11 // pred_fallthru
          _
        // Predicated region
        $region21: #{tpu_custom_call.1} parent=11 // pred_check
          %p238 = pneg %p111
        $region22: #{tpu_custom_call.1} parent=11 // pred_check_branch
          %240 = sbr.rel (%p238) target = $region24
        $region23: #{tpu_custom_call.1} parent=11 // pred_region
          %242 = vsyncadd [#allocation13], 0
          %s243 = sshll.u32 %s3, 4
          %s244 = int_to_ptr.hbm [resolvable:$true] %s243
          %s245 = sshll.u32 [#allocation12], 4
          %s246 = int_to_ptr.vmem [resolvable:$true] %s245
          %251 = dma.hbm_to_vmem [thread:$0]  %s244, 256, %s246, [#allocation13], 64, 64, 4
        $region24: #{tpu_custom_call.1} parent=11 // pred_fallthru
          _
        // Predicated region
        $region25: #{tpu_custom_call.1} parent=11 // pred_check
          %p252 = pneg %p132
        $region26: #{tpu_custom_call.1} parent=11 // pred_check_branch
          %254 = sbr.rel (%p252) target = $region28
        $region27: #{tpu_custom_call.1} parent=11 // pred_region
          %256 = vsyncadd [#allocation13], 0
          %s257 = sshll.u32 %s4, 4
          %s258 = int_to_ptr.hbm [resolvable:$true] %s257
          %s259 = sshll.u32 [#allocation14], 4
          %s260 = int_to_ptr.vmem [resolvable:$true] %s259
          %265 = dma.hbm_to_vmem [thread:$0]  %s258, 512, %s260, [#allocation13], 128, 128, 8
        $region28: #{tpu_custom_call.1} parent=11 // pred_fallthru
          _
        // Predicated region
        $region29: #{tpu_custom_call.1} parent=11 // pred_check
          %p266 = pneg %p153
        $region30: #{tpu_custom_call.1} parent=11 // pred_check_branch
          %268 = sbr.rel (%p266) target = $region32
        $region31: #{tpu_custom_call.1} parent=11 // pred_region
          %270 = vsyncadd [#allocation16], 0
          %s271 = sshll.u32 %s5, 4
          %s272 = int_to_ptr.hbm [resolvable:$true] %s271
          %s273 = sshll.u32 [#allocation15], 4
          %s274 = int_to_ptr.vmem [resolvable:$true] %s273
          %279 = dma.hbm_to_vmem [thread:$0]  %s272, 512, %s274, [#allocation16], 128, 128, 8
        $region32: #{tpu_custom_call.1} parent=11 // pred_fallthru
          _
      $region12: #{tpu_custom_call.1} parent=5 // pred_fallthru
        _
      %p280 = scmp.lt.s32.totalorder %s22, 2
      // Predicated region
      $region33: #{tpu_custom_call.1} parent=5 // pred_check
        %p281 = pneg %p280
      $region34: #{tpu_custom_call.1} parent=5 // pred_check_branch
        %283 = sbr.rel (%p281) target = $region36
      $region35: #{tpu_custom_call.1} parent=5 // pred_region
        // Predicated region
        $region37: #{tpu_custom_call.1} parent=35 // pred_check
          %p284 = pneg %p42
        $region38: #{tpu_custom_call.1} parent=35 // pred_check_branch
          %286 = sbr.rel (%p284) target = $region40
        $region39: #{tpu_custom_call.1} parent=35 // pred_region
          %s287 = sand.u32 %s32, 1
          %s288 = scalar_lea.sflag [#allocation7], %s287
          %s289 = sand.u32 %s32, 1
          %s290 = smul.addr %s289, 64
          %s291 = scalar_lea.vmem [#allocation6], %s290
          %s292 = smul.u32 8, %s22
          %294 = vsyncadd %s288, 0
          %s295 = smul.addr %s292, 8
          %s296 = scalar_lea.hbm %s0, %s295
          %s297 = sshll.u32 %s296, 4
          %s298 = int_to_ptr.hbm [resolvable:$true] %s297
          %s299 = sshll.u32 %s291, 4
          %s300 = int_to_ptr.vmem [resolvable:$true] %s299
          %305 = dma.hbm_to_vmem [thread:$0]  %s298, 1024, %s300, %s288, 128, 128, 8
        $region40: #{tpu_custom_call.1} parent=35 // pred_fallthru
          _
      $region36: #{tpu_custom_call.1} parent=5 // pred_fallthru
        _
      %p306 = scmp.le.s32.totalorder 1, %s22
      %p307 = scmp.lt.s32.totalorder %s22, 3
      %p308 = pnand %p306, %p307
      %p309 = pneg %p308
      // Predicated region
      $region41: #{tpu_custom_call.1} parent=5 // pred_check
        _
      $region42: #{tpu_custom_call.1} parent=5 // pred_check_branch
        %311 = sbr.rel (%p308) target = $region44
      $region43: #{tpu_custom_call.1} parent=5 // pred_region
        %s312 = ssub.s32 %s22, 1
        %s313 = sand.u32 %s35, 1
        %s314 = scalar_lea.sflag [#allocation7], %s313
        %s315 = sand.u32 %s35, 1
        %s316 = smul.addr %s315, 64
        %s317 = scalar_lea.vmem [#allocation6], %s316
        // Predicated region
        $region45: #{tpu_custom_call.1} parent=43 // pred_check
          %p318 = pneg %p48
        $region46: #{tpu_custom_call.1} parent=43 // pred_check_branch
          %320 = sbr.rel (%p318) target = $region48
        $region47: #{tpu_custom_call.1} parent=43 // pred_region
          %322 = dma.done %s314, 1024
        $region48: #{tpu_custom_call.1} parent=43 // pred_fallthru
          _
        // Predicated region
        $region49: #{tpu_custom_call.1} parent=43 // pred_check
          %p323 = pneg %p69
        $region50: #{tpu_custom_call.1} parent=43 // pred_check_branch
          %325 = sbr.rel (%p323) target = $region52
        $region51: #{tpu_custom_call.1} parent=43 // pred_region
          %327 = dma.done [#allocation10], 16384
        $region52: #{tpu_custom_call.1} parent=43 // pred_fallthru
          _
        // Predicated region
        $region53: #{tpu_custom_call.1} parent=43 // pred_check
          %p328 = pneg %p90
        $region54: #{tpu_custom_call.1} parent=43 // pred_check_branch
          %330 = sbr.rel (%p328) target = $region56
        $region55: #{tpu_custom_call.1} parent=43 // pred_region
          %332 = dma.done [#allocation10], 16384
        $region56: #{tpu_custom_call.1} parent=43 // pred_fallthru
          _
        // Predicated region
        $region57: #{tpu_custom_call.1} parent=43 // pred_check
          %p333 = pneg %p111
        $region58: #{tpu_custom_call.1} parent=43 // pred_check_branch
          %335 = sbr.rel (%p333) target = $region60
        $region59: #{tpu_custom_call.1} parent=43 // pred_region
          %337 = dma.done [#allocation13], 256
        $region60: #{tpu_custom_call.1} parent=43 // pred_fallthru
          _
        // Predicated region
        $region61: #{tpu_custom_call.1} parent=43 // pred_check
          %p338 = pneg %p132
        $region62: #{tpu_custom_call.1} parent=43 // pred_check_branch
          %340 = sbr.rel (%p338) target = $region64
        $region63: #{tpu_custom_call.1} parent=43 // pred_region
          %342 = dma.done [#allocation13], 512
        $region64: #{tpu_custom_call.1} parent=43 // pred_fallthru
          _
        // Predicated region
        $region65: #{tpu_custom_call.1} parent=43 // pred_check
          %p343 = pneg %p153
        $region66: #{tpu_custom_call.1} parent=43 // pred_check_branch
          %345 = sbr.rel (%p343) target = $region68
        $region67: #{tpu_custom_call.1} parent=43 // pred_region
          %347 = dma.done [#allocation16], 512
        $region68: #{tpu_custom_call.1} parent=43 // pred_fallthru
          _
        %s348 = sand.u32 %s35, 1
        %s349 = scalar_lea.sflag [#allocation7], %s348
        %s350 = sand.u32 %s35, 1
        %s351 = smul.addr %s350, 64
        %s352 = scalar_lea.vmem [#allocation6], %s351
        %p353 = pneg %p48
        %p354 = pneg %p45
        %p355 = pneg %p69
        %p356 = pneg %p66
        %p357 = pneg %p90
        %p358 = pneg %p87
        %p359 = pneg %p111
        %p360 = pneg %p108
        %p361 = pneg %p132
        %p362 = pneg %p129
        %p363 = pneg %p153
        %p364 = pneg %p150
        %p365 = pneg %p174
        %p366 = pneg %p171
        %p367 = pneg %p195
        %p368 = pneg %p192
        %s369 = smul.u32 8, %s27
        %p370 = scmp.eq.s32.totalorder %s27, 0
        // Predicated region
        $region69: #{tpu_custom_call.1} parent=43 // pred_check
          %p371 = pneg %p370
        $region70: #{tpu_custom_call.1} parent=43 // pred_check_branch
          %373 = sbr.rel (%p371) target = $region72
        $region71: #{tpu_custom_call.1} parent=43 // pred_region
          %v374 = vld [vmem:[#allocation14] sm:$0xff]
          %v375 = vld [vmem:[#allocation14 + $0x8] sm:$0xff]
          %v376 = vld [vmem:[#allocation14 + $0x10] sm:$0xff]
          %v377 = vld [vmem:[#allocation14 + $0x18] sm:$0xff]
          %378 = vst [vmem:[#allocation2] sm:$0xff] %v374
          %379 = vst [vmem:[#allocation2 + $0x8] sm:$0xff] %v375
          %380 = vst [vmem:[#allocation2 + $0x10] sm:$0xff] %v376
          %381 = vst [vmem:[#allocation2 + $0x18] sm:$0xff] %v377
          %v382 = vld [vmem:[#allocation15] sm:$0xff]
          %v383 = vld [vmem:[#allocation15 + $0x8] sm:$0xff]
          %v384 = vld [vmem:[#allocation15 + $0x10] sm:$0xff]
          %v385 = vld [vmem:[#allocation15 + $0x18] sm:$0xff]
          %386 = vst [vmem:[#allocation3] sm:$0xff] %v382
          %387 = vst [vmem:[#allocation3 + $0x8] sm:$0xff] %v383
          %388 = vst [vmem:[#allocation3 + $0x10] sm:$0xff] %v384
          %389 = vst [vmem:[#allocation3 + $0x18] sm:$0xff] %v385
        $region72: #{tpu_custom_call.1} parent=43 // pred_fallthru
          _
        %v390 = vld [vmem:[%s317] sm:$0xff]
        %v391 = vld [vmem:[%s317 + $0x8] sm:$0xff]
        %v392 = vld [vmem:[%s317 + $0x10] sm:$0xff]
        %v393 = vld [vmem:[%s317 + $0x18] sm:$0xff]
        %v394 = vld [vmem:[%s317 + $0x20] sm:$0xff]
        %v395 = vld [vmem:[%s317 + $0x28] sm:$0xff]
        %v396 = vld [vmem:[%s317 + $0x30] sm:$0xff]
        %v397 = vld [vmem:[%s317 + $0x38] sm:$0xff]
        %v398 = vpack.c.bf16 %v391, %v390
        %v399 = vpack.c.bf16 %v393, %v392
        %v400 = vpack.c.bf16 %v395, %v394
        %v401 = vpack.c.bf16 %v397, %v396
        %v402 = vld [vmem:[#allocation9] sm:$0xff]
        %v403 = vld [vmem:[#allocation9 + $0x8] sm:$0xff]
        %v404 = vld [vmem:[#allocation9 + $0x10] sm:$0xff]
        %v405 = vld [vmem:[#allocation9 + $0x18] sm:$0xff]
        %v406 = vld [vmem:[#allocation9 + $0x20] sm:$0xff]
        %v407 = vld [vmem:[#allocation9 + $0x28] sm:$0xff]
        %v408 = vld [vmem:[#allocation9 + $0x30] sm:$0xff]
        %v409 = vld [vmem:[#allocation9 + $0x38] sm:$0xff]
        %v410 = vld [vmem:[#allocation9 + $0x40] sm:$0xff]
        %v411 = vld [vmem:[#allocation9 + $0x48] sm:$0xff]
        %v412 = vld [vmem:[#allocation9 + $0x50] sm:$0xff]
        %v413 = vld [vmem:[#allocation9 + $0x58] sm:$0xff]
        %v414 = vld [vmem:[#allocation9 + $0x60] sm:$0xff]
        %v415 = vld [vmem:[#allocation9 + $0x68] sm:$0xff]
        %v416 = vld [vmem:[#allocation9 + $0x70] sm:$0xff]
        %v417 = vld [vmem:[#allocation9 + $0x78] sm:$0xff]
        %v418 = vld [vmem:[#allocation9 + $0x80] sm:$0xff]
        %v419 = vld [vmem:[#allocation9 + $0x88] sm:$0xff]
        %v420 = vld [vmem:[#allocation9 + $0x90] sm:$0xff]
        %v421 = vld [vmem:[#allocation9 + $0x98] sm:$0xff]
        %v422 = vld [vmem:[#allocation9 + $0xa0] sm:$0xff]
        %v423 = vld [vmem:[#allocation9 + $0xa8] sm:$0xff]
        %v424 = vld [vmem:[#allocation9 + $0xb0] sm:$0xff]
        %v425 = vld [vmem:[#allocation9 + $0xb8] sm:$0xff]
        %v426 = vld [vmem:[#allocation9 + $0xc0] sm:$0xff]
        %v427 = vld [vmem:[#allocation9 + $0xc8] sm:$0xff]
        %v428 = vld [vmem:[#allocation9 + $0xd0] sm:$0xff]
        %v429 = vld [vmem:[#allocation9 + $0xd8] sm:$0xff]
        %v430 = vld [vmem:[#allocation9 + $0xe0] sm:$0xff]
        %v431 = vld [vmem:[#allocation9 + $0xe8] sm:$0xff]
        %v432 = vld [vmem:[#allocation9 + $0xf0] sm:$0xff]
        %v433 = vld [vmem:[#allocation9 + $0xf8] sm:$0xff]
        %v434 = vld [vmem:[#allocation12] sm:$0xf]
        %v436 = vperm.slane %v434, 0
        %v437 = vperm.slane %v434, 1
        %v438 = vperm.slane %v434, 2
        %v439 = vperm.slane %v434, 3
        %v476 = vunpack.c.l.b16 %v402
        %v477 = vunpack.c.h.b16 %v402
        %v478 = vunpack.c.l.b16 %v403
        %v479 = vunpack.c.h.b16 %v403
        %v480 = vunpack.c.l.b16 %v404
        %v481 = vunpack.c.h.b16 %v404
        %v482 = vunpack.c.l.b16 %v405
        %v483 = vunpack.c.h.b16 %v405
        %v484 = vunpack.c.l.b16 %v406
        %v485 = vunpack.c.h.b16 %v406
        %v486 = vunpack.c.l.b16 %v407
        %v487 = vunpack.c.h.b16 %v407
        %v488 = vunpack.c.l.b16 %v408
        %v489 = vunpack.c.h.b16 %v408
        %v490 = vunpack.c.l.b16 %v409
        %v491 = vunpack.c.h.b16 %v409
        %v492 = vunpack.c.l.b16 %v410
        %v493 = vunpack.c.h.b16 %v410
        %v494 = vunpack.c.l.b16 %v411
        %v495 = vunpack.c.h.b16 %v411
        %v496 = vunpack.c.l.b16 %v412
        %v497 = vunpack.c.h.b16 %v412
        %v498 = vunpack.c.l.b16 %v413
        %v499 = vunpack.c.h.b16 %v413
        %v500 = vunpack.c.l.b16 %v414
        %v501 = vunpack.c.h.b16 %v414
        %v502 = vunpack.c.l.b16 %v415
        %v503 = vunpack.c.h.b16 %v415
        %v504 = vunpack.c.l.b16 %v416
        %v505 = vunpack.c.h.b16 %v416
        %v506 = vunpack.c.l.b16 %v417
        %v507 = vunpack.c.h.b16 %v417
        %v508 = vunpack.c.l.b16 %v418
        %v509 = vunpack.c.h.b16 %v418
        %v510 = vunpack.c.l.b16 %v419
        %v511 = vunpack.c.h.b16 %v419
        %v512 = vunpack.c.l.b16 %v420
        %v513 = vunpack.c.h.b16 %v420
        %v514 = vunpack.c.l.b16 %v421
        %v515 = vunpack.c.h.b16 %v421
        %v516 = vunpack.c.l.b16 %v422
        %v517 = vunpack.c.h.b16 %v422
        %v518 = vunpack.c.l.b16 %v423
        %v519 = vunpack.c.h.b16 %v423
        %v520 = vunpack.c.l.b16 %v424
        %v521 = vunpack.c.h.b16 %v424
        %v522 = vunpack.c.l.b16 %v425
        %v523 = vunpack.c.h.b16 %v425
        %v524 = vunpack.c.l.b16 %v426
        %v525 = vunpack.c.h.b16 %v426
        %v526 = vunpack.c.l.b16 %v427
        %v527 = vunpack.c.h.b16 %v427
        %v528 = vunpack.c.l.b16 %v428
        %v529 = vunpack.c.h.b16 %v428
        %v530 = vunpack.c.l.b16 %v429
        %v531 = vunpack.c.h.b16 %v429
        %v532 = vunpack.c.l.b16 %v430
        %v533 = vunpack.c.h.b16 %v430
        %v534 = vunpack.c.l.b16 %v431
        %v535 = vunpack.c.h.b16 %v431
        %v536 = vunpack.c.l.b16 %v432
        %v537 = vunpack.c.h.b16 %v432
        %v538 = vunpack.c.l.b16 %v433
        %v539 = vunpack.c.h.b16 %v433
        %v540 = vpack.c.b16 %v480, %v476
        %v541 = vpack.c.b16 %v481, %v477
        %v542 = vpack.c.b16 %v482, %v478
        %v543 = vpack.c.b16 %v483, %v479
        %v544 = vpack.c.b16 %v488, %v484
        %v545 = vpack.c.b16 %v489, %v485
        %v546 = vpack.c.b16 %v490, %v486
        %v547 = vpack.c.b16 %v491, %v487
        %v548 = vpack.c.b16 %v496, %v492
        %v549 = vpack.c.b16 %v497, %v493
        %v550 = vpack.c.b16 %v498, %v494
        %v551 = vpack.c.b16 %v499, %v495
        %v552 = vpack.c.b16 %v504, %v500
        %v553 = vpack.c.b16 %v505, %v501
        %v554 = vpack.c.b16 %v506, %v502
        %v555 = vpack.c.b16 %v507, %v503
        %v556 = vpack.c.b16 %v512, %v508
        %v557 = vpack.c.b16 %v513, %v509
        %v558 = vpack.c.b16 %v514, %v510
        %v559 = vpack.c.b16 %v515, %v511
        %v560 = vpack.c.b16 %v520, %v516
        %v561 = vpack.c.b16 %v521, %v517
        %v562 = vpack.c.b16 %v522, %v518
        %v563 = vpack.c.b16 %v523, %v519
        %v564 = vpack.c.b16 %v528, %v524
        %v565 = vpack.c.b16 %v529, %v525
        %v566 = vpack.c.b16 %v530, %v526
        %v567 = vpack.c.b16 %v531, %v527
        %v568 = vpack.c.b16 %v536, %v532
        %v569 = vpack.c.b16 %v537, %v533
        %v570 = vpack.c.b16 %v538, %v534
        %v571 = vpack.c.b16 %v539, %v535
        %604 = vmatpush.bf16.msra.mxu0 %v568
        %605 = vmatpush.bf16.msra.mxu0 %v564
        %606 = vmatpush.bf16.msra.mxu0 %v560
        %607 = vmatpush.bf16.msra.mxu0 %v556
        %608 = vmatpush.bf16.msra.mxu0 %v552
        %609 = vmatpush.bf16.msra.mxu0 %v548
        %610 = vmatpush.bf16.msra.mxu0 %v544
        %611 = vmatpush.bf16.msra.mxu0 %v540
        %612 = vmatmul.bf16.gmra.mxu0 %v398
        %v613 = vpop.f32.mrf.mxu0
        %v614 = vadd.f32 %v436, %v613
        %v615 = vpop.f32.mrf.mxu0
        %v616 = vadd.f32 %v436, %v615
        %617 = vmatmul.bf16.gmra.mxu0 %v399
        %v618 = vpop.f32.mrf.mxu0
        %v619 = vadd.f32 %v436, %v618
        %v620 = vpop.f32.mrf.mxu0
        %v621 = vadd.f32 %v436, %v620
        %622 = vmatmul.bf16.gmra.mxu0 %v400
        %v623 = vpop.f32.mrf.mxu0
        %v624 = vadd.f32 %v436, %v623
        %v625 = vpop.f32.mrf.mxu0
        %v626 = vadd.f32 %v436, %v625
        %627 = vmatmul.bf16.gmra.mxu0 %v401
        %v628 = vpop.f32.mrf.mxu0
        %v629 = vadd.f32 %v436, %v628
        %v630 = vpop.f32.mrf.mxu0
        %v631 = vadd.f32 %v436, %v630
        %632 = vdwg.mxu0
        %633 = vmatpush.bf16.msra.mxu0 %v569
        %634 = vmatpush.bf16.msra.mxu0 %v565
        %635 = vmatpush.bf16.msra.mxu0 %v561
        %636 = vmatpush.bf16.msra.mxu0 %v557
        %637 = vmatpush.bf16.msra.mxu0 %v553
        %638 = vmatpush.bf16.msra.mxu0 %v549
        %639 = vmatpush.bf16.msra.mxu0 %v545
        %640 = vmatpush.bf16.msra.mxu0 %v541
        %641 = vmatmul.bf16.gmra.mxu0 %v398
        %v642 = vpop.f32.mrf.mxu0
        %v643 = vadd.f32 %v437, %v642
        %v644 = vpop.f32.mrf.mxu0
        %v645 = vadd.f32 %v437, %v644
        %646 = vmatmul.bf16.gmra.mxu0 %v399
        %v647 = vpop.f32.mrf.mxu0
        %v648 = vadd.f32 %v437, %v647
        %v649 = vpop.f32.mrf.mxu0
        %v650 = vadd.f32 %v437, %v649
        %651 = vmatmul.bf16.gmra.mxu0 %v400
        %v652 = vpop.f32.mrf.mxu0
        %v653 = vadd.f32 %v437, %v652
        %v654 = vpop.f32.mrf.mxu0
        %v655 = vadd.f32 %v437, %v654
        %656 = vmatmul.bf16.gmra.mxu0 %v401
        %v657 = vpop.f32.mrf.mxu0
        %v658 = vadd.f32 %v437, %v657
        %v659 = vpop.f32.mrf.mxu0
        %v660 = vadd.f32 %v437, %v659
        %661 = vdwg.mxu0
        %662 = vmatpush.bf16.msra.mxu0 %v570
        %663 = vmatpush.bf16.msra.mxu0 %v566
        %664 = vmatpush.bf16.msra.mxu0 %v562
        %665 = vmatpush.bf16.msra.mxu0 %v558
        %666 = vmatpush.bf16.msra.mxu0 %v554
        %667 = vmatpush.bf16.msra.mxu0 %v550
        %668 = vmatpush.bf16.msra.mxu0 %v546
        %669 = vmatpush.bf16.msra.mxu0 %v542
        %670 = vmatmul.bf16.gmra.mxu0 %v398
        %v671 = vpop.f32.mrf.mxu0
        %v672 = vadd.f32 %v438, %v671
        %v673 = vpop.f32.mrf.mxu0
        %v674 = vadd.f32 %v438, %v673
        %675 = vmatmul.bf16.gmra.mxu0 %v399
        %v676 = vpop.f32.mrf.mxu0
        %v677 = vadd.f32 %v438, %v676
        %v678 = vpop.f32.mrf.mxu0
        %v679 = vadd.f32 %v438, %v678
        %680 = vmatmul.bf16.gmra.mxu0 %v400
        %v681 = vpop.f32.mrf.mxu0
        %v682 = vadd.f32 %v438, %v681
        %v683 = vpop.f32.mrf.mxu0
        %v684 = vadd.f32 %v438, %v683
        %685 = vmatmul.bf16.gmra.mxu0 %v401
        %v686 = vpop.f32.mrf.mxu0
        %v687 = vadd.f32 %v438, %v686
        %v688 = vpop.f32.mrf.mxu0
        %v689 = vadd.f32 %v438, %v688
        %690 = vdwg.mxu0
        %691 = vmatpush.bf16.msra.mxu0 %v571
        %692 = vmatpush.bf16.msra.mxu0 %v567
        %693 = vmatpush.bf16.msra.mxu0 %v563
        %694 = vmatpush.bf16.msra.mxu0 %v559
        %695 = vmatpush.bf16.msra.mxu0 %v555
        %696 = vmatpush.bf16.msra.mxu0 %v551
        %697 = vmatpush.bf16.msra.mxu0 %v547
        %698 = vmatpush.bf16.msra.mxu0 %v543
        %699 = vmatmul.bf16.gmra.mxu0 %v398
        %v700 = vpop.f32.mrf.mxu0
        %v701 = vadd.f32 %v439, %v700
        %v702 = vpop.f32.mrf.mxu0
        %v703 = vadd.f32 %v439, %v702
        %704 = vmatmul.bf16.gmra.mxu0 %v399
        %v705 = vpop.f32.mrf.mxu0
        %v706 = vadd.f32 %v439, %v705
        %v707 = vpop.f32.mrf.mxu0
        %v708 = vadd.f32 %v439, %v707
        %709 = vmatmul.bf16.gmra.mxu0 %v400
        %v710 = vpop.f32.mrf.mxu0
        %v711 = vadd.f32 %v439, %v710
        %v712 = vpop.f32.mrf.mxu0
        %v713 = vadd.f32 %v439, %v712
        %714 = vmatmul.bf16.gmra.mxu0 %v401
        %v715 = vpop.f32.mrf.mxu0
        %v716 = vadd.f32 %v439, %v715
        %v717 = vpop.f32.mrf.mxu0
        %v718 = vadd.f32 %v439, %v717
        %719 = vdwg.mxu0
        %720 = vst [vmem:[#allocation5] sm:$0xff] %v614
        %721 = vst [vmem:[#allocation5 + $0x8] sm:$0xff] %v643
        %722 = vst [vmem:[#allocation5 + $0x10] sm:$0xff] %v672
        %723 = vst [vmem:[#allocation5 + $0x18] sm:$0xff] %v701
        %724 = vst [vmem:[#allocation5 + $0x20] sm:$0xff] %v616
        %725 = vst [vmem:[#allocation5 + $0x28] sm:$0xff] %v645
        %726 = vst [vmem:[#allocation5 + $0x30] sm:$0xff] %v674
        %727 = vst [vmem:[#allocation5 + $0x38] sm:$0xff] %v703
        %728 = vst [vmem:[#allocation5 + $0x40] sm:$0xff] %v619
        %729 = vst [vmem:[#allocation5 + $0x48] sm:$0xff] %v648
        %730 = vst [vmem:[#allocation5 + $0x50] sm:$0xff] %v677
        %731 = vst [vmem:[#allocation5 + $0x58] sm:$0xff] %v706
        %732 = vst [vmem:[#allocation5 + $0x60] sm:$0xff] %v621
        %733 = vst [vmem:[#allocation5 + $0x68] sm:$0xff] %v650
        %734 = vst [vmem:[#allocation5 + $0x70] sm:$0xff] %v679
        %735 = vst [vmem:[#allocation5 + $0x78] sm:$0xff] %v708
        %736 = vst [vmem:[#allocation5 + $0x80] sm:$0xff] %v624
        %737 = vst [vmem:[#allocation5 + $0x88] sm:$0xff] %v653
        %738 = vst [vmem:[#allocation5 + $0x90] sm:$0xff] %v682
        %739 = vst [vmem:[#allocation5 + $0x98] sm:$0xff] %v711
        %740 = vst [vmem:[#allocation5 + $0xa0] sm:$0xff] %v626
        %741 = vst [vmem:[#allocation5 + $0xa8] sm:$0xff] %v655
        %742 = vst [vmem:[#allocation5 + $0xb0] sm:$0xff] %v684
        %743 = vst [vmem:[#allocation5 + $0xb8] sm:$0xff] %v713
        %744 = vst [vmem:[#allocation5 + $0xc0] sm:$0xff] %v629
        %745 = vst [vmem:[#allocation5 + $0xc8] sm:$0xff] %v658
        %746 = vst [vmem:[#allocation5 + $0xd0] sm:$0xff] %v687
        %747 = vst [vmem:[#allocation5 + $0xd8] sm:$0xff] %v716
        %748 = vst [vmem:[#allocation5 + $0xe0] sm:$0xff] %v631
        %749 = vst [vmem:[#allocation5 + $0xe8] sm:$0xff] %v660
        %750 = vst [vmem:[#allocation5 + $0xf0] sm:$0xff] %v689
        %751 = vst [vmem:[#allocation5 + $0xf8] sm:$0xff] %v718
        %v752 = vld [vmem:[#allocation11] sm:$0xff]
        %v753 = vld [vmem:[#allocation11 + $0x8] sm:$0xff]
        %v754 = vld [vmem:[#allocation11 + $0x10] sm:$0xff]
        %v755 = vld [vmem:[#allocation11 + $0x18] sm:$0xff]
        %v756 = vld [vmem:[#allocation11 + $0x20] sm:$0xff]
        %v757 = vld [vmem:[#allocation11 + $0x28] sm:$0xff]
        %v758 = vld [vmem:[#allocation11 + $0x30] sm:$0xff]
        %v759 = vld [vmem:[#allocation11 + $0x38] sm:$0xff]
        %v760 = vld [vmem:[#allocation11 + $0x40] sm:$0xff]
        %v761 = vld [vmem:[#allocation11 + $0x48] sm:$0xff]
        %v762 = vld [vmem:[#allocation11 + $0x50] sm:$0xff]
        %v763 = vld [vmem:[#allocation11 + $0x58] sm:$0xff]
        %v764 = vld [vmem:[#allocation11 + $0x60] sm:$0xff]
        %v765 = vld [vmem:[#allocation11 + $0x68] sm:$0xff]
        %v766 = vld [vmem:[#allocation11 + $0x70] sm:$0xff]
        %v767 = vld [vmem:[#allocation11 + $0x78] sm:$0xff]
        %v768 = vld [vmem:[#allocation11 + $0x80] sm:$0xff]
        %v769 = vld [vmem:[#allocation11 + $0x88] sm:$0xff]
        %v770 = vld [vmem:[#allocation11 + $0x90] sm:$0xff]
        %v771 = vld [vmem:[#allocation11 + $0x98] sm:$0xff]
        %v772 = vld [vmem:[#allocation11 + $0xa0] sm:$0xff]
        %v773 = vld [vmem:[#allocation11 + $0xa8] sm:$0xff]
        %v774 = vld [vmem:[#allocation11 + $0xb0] sm:$0xff]
        %v775 = vld [vmem:[#allocation11 + $0xb8] sm:$0xff]
        %v776 = vld [vmem:[#allocation11 + $0xc0] sm:$0xff]
        %v777 = vld [vmem:[#allocation11 + $0xc8] sm:$0xff]
        %v778 = vld [vmem:[#allocation11 + $0xd0] sm:$0xff]
        %v779 = vld [vmem:[#allocation11 + $0xd8] sm:$0xff]
        %v780 = vld [vmem:[#allocation11 + $0xe0] sm:$0xff]
        %v781 = vld [vmem:[#allocation11 + $0xe8] sm:$0xff]
        %v782 = vld [vmem:[#allocation11 + $0xf0] sm:$0xff]
        %v783 = vld [vmem:[#allocation11 + $0xf8] sm:$0xff]
        %v784 = vld [vmem:[#allocation2] sm:$0xff]
        %v785 = vld [vmem:[#allocation3] sm:$0xff]
        %v786 = vld [vmem:[#allocation5] sm:$0xff]
        %v787 = vld [vmem:[#allocation5 + $0x8] sm:$0xff]
        %v788 = vld [vmem:[#allocation5 + $0x10] sm:$0xff]
        %v789 = vld [vmem:[#allocation5 + $0x18] sm:$0xff]
        %v790 = vpack.c.bf16 %v784, %v784
        %v823 = vunpack.c.l.b16 %v752
        %v824 = vunpack.c.h.b16 %v752
        %v825 = vunpack.c.l.b16 %v753
        %v826 = vunpack.c.h.b16 %v753
        %v827 = vunpack.c.l.b16 %v754
        %v828 = vunpack.c.h.b16 %v754
        %v829 = vunpack.c.l.b16 %v755
        %v830 = vunpack.c.h.b16 %v755
        %v831 = vunpack.c.l.b16 %v756
        %v832 = vunpack.c.h.b16 %v756
        %v833 = vunpack.c.l.b16 %v757
        %v834 = vunpack.c.h.b16 %v757
        %v835 = vunpack.c.l.b16 %v758
        %v836 = vunpack.c.h.b16 %v758
        %v837 = vunpack.c.l.b16 %v759
        %v838 = vunpack.c.h.b16 %v759
        %v839 = vunpack.c.l.b16 %v760
        %v840 = vunpack.c.h.b16 %v760
        %v841 = vunpack.c.l.b16 %v761
        %v842 = vunpack.c.h.b16 %v761
        %v843 = vunpack.c.l.b16 %v762
        %v844 = vunpack.c.h.b16 %v762
        %v845 = vunpack.c.l.b16 %v763
        %v846 = vunpack.c.h.b16 %v763
        %v847 = vunpack.c.l.b16 %v764
        %v848 = vunpack.c.h.b16 %v764
        %v849 = vunpack.c.l.b16 %v765
        %v850 = vunpack.c.h.b16 %v765
        %v851 = vunpack.c.l.b16 %v766
        %v852 = vunpack.c.h.b16 %v766
        %v853 = vunpack.c.l.b16 %v767
        %v854 = vunpack.c.h.b16 %v767
        %v855 = vunpack.c.l.b16 %v768
        %v856 = vunpack.c.h.b16 %v768
        %v857 = vunpack.c.l.b16 %v769
        %v858 = vunpack.c.h.b16 %v769
        %v859 = vunpack.c.l.b16 %v770
        %v860 = vunpack.c.h.b16 %v770
        %v861 = vunpack.c.l.b16 %v771
        %v862 = vunpack.c.h.b16 %v771
        %v863 = vunpack.c.l.b16 %v772
        %v864 = vunpack.c.h.b16 %v772
        %v865 = vunpack.c.l.b16 %v773
        %v866 = vunpack.c.h.b16 %v773
        %v867 = vunpack.c.l.b16 %v774
        %v868 = vunpack.c.h.b16 %v774
        %v869 = vunpack.c.l.b16 %v775
        %v870 = vunpack.c.h.b16 %v775
        %v871 = vunpack.c.l.b16 %v776
        %v872 = vunpack.c.h.b16 %v776
        %v873 = vunpack.c.l.b16 %v777
        %v874 = vunpack.c.h.b16 %v777
        %v875 = vunpack.c.l.b16 %v778
        %v876 = vunpack.c.h.b16 %v778
        %v877 = vunpack.c.l.b16 %v779
        %v878 = vunpack.c.h.b16 %v779
        %v879 = vunpack.c.l.b16 %v780
        %v880 = vunpack.c.h.b16 %v780
        %v881 = vunpack.c.l.b16 %v781
        %v882 = vunpack.c.h.b16 %v781
        %v883 = vunpack.c.l.b16 %v782
        %v884 = vunpack.c.h.b16 %v782
        %v885 = vunpack.c.l.b16 %v783
        %v886 = vunpack.c.h.b16 %v783
        %v887 = vpack.c.b16 %v827, %v823
        %v888 = vpack.c.b16 %v828, %v824
        %v889 = vpack.c.b16 %v829, %v825
        %v890 = vpack.c.b16 %v830, %v826
        %v891 = vpack.c.b16 %v835, %v831
        %v892 = vpack.c.b16 %v836, %v832
        %v893 = vpack.c.b16 %v837, %v833
        %v894 = vpack.c.b16 %v838, %v834
        %v895 = vpack.c.b16 %v843, %v839
        %v896 = vpack.c.b16 %v844, %v840
        %v897 = vpack.c.b16 %v845, %v841
        %v898 = vpack.c.b16 %v846, %v842
        %v899 = vpack.c.b16 %v851, %v847
        %v900 = vpack.c.b16 %v852, %v848
        %v901 = vpack.c.b16 %v853, %v849
        %v902 = vpack.c.b16 %v854, %v850
        %v903 = vpack.c.b16 %v859, %v855
        %v904 = vpack.c.b16 %v860, %v856
        %v905 = vpack.c.b16 %v861, %v857
        %v906 = vpack.c.b16 %v862, %v858
        %v907 = vpack.c.b16 %v867, %v863
        %v908 = vpack.c.b16 %v868, %v864
        %v909 = vpack.c.b16 %v869, %v865
        %v910 = vpack.c.b16 %v870, %v866
        %v911 = vpack.c.b16 %v875, %v871
        %v912 = vpack.c.b16 %v876, %v872
        %v913 = vpack.c.b16 %v877, %v873
        %v914 = vpack.c.b16 %v878, %v874
        %v915 = vpack.c.b16 %v883, %v879
        %v916 = vpack.c.b16 %v884, %v880
        %v917 = vpack.c.b16 %v885, %v881
        %v918 = vpack.c.b16 %v886, %v882
        %951 = vmatpush.bf16.msra.mxu0 %v915
        %952 = vmatpush.bf16.msra.mxu0 %v911
        %953 = vmatpush.bf16.msra.mxu0 %v907
        %954 = vmatpush.bf16.msra.mxu0 %v903
        %955 = vmatpush.bf16.msra.mxu0 %v899
        %956 = vmatpush.bf16.msra.mxu0 %v895
        %957 = vmatpush.bf16.msra.mxu0 %v891
        %958 = vmatpush.bf16.msra.mxu0 %v887
        %959 = vmatmul.bf16.gmra.mxu0 %v790
        %v960 = vpop.f32.mrf.mxu0
        %v961 = vadd.f32 0.0, %v960
        %v962 = vpop.f32.mrf.mxu0
        %963 = vdwg.mxu0
        %964 = vmatpush.bf16.msra.mxu0 %v916
        %965 = vmatpush.bf16.msra.mxu0 %v912
        %966 = vmatpush.bf16.msra.mxu0 %v908
        %967 = vmatpush.bf16.msra.mxu0 %v904
        %968 = vmatpush.bf16.msra.mxu0 %v900
        %969 = vmatpush.bf16.msra.mxu0 %v896
        %970 = vmatpush.bf16.msra.mxu0 %v892
        %971 = vmatpush.bf16.msra.mxu0 %v888
        %972 = vmatmul.bf16.gmra.mxu0 %v790
        %v973 = vpop.f32.mrf.mxu0
        %v974 = vadd.f32 0.0, %v973
        %v975 = vpop.f32.mrf.mxu0
        %976 = vdwg.mxu0
        %977 = vmatpush.bf16.msra.mxu0 %v917
        %978 = vmatpush.bf16.msra.mxu0 %v913
        %979 = vmatpush.bf16.msra.mxu0 %v909
        %980 = vmatpush.bf16.msra.mxu0 %v905
        %981 = vmatpush.bf16.msra.mxu0 %v901
        %982 = vmatpush.bf16.msra.mxu0 %v897
        %983 = vmatpush.bf16.msra.mxu0 %v893
        %984 = vmatpush.bf16.msra.mxu0 %v889
        %985 = vmatmul.bf16.gmra.mxu0 %v790
        %v986 = vpop.f32.mrf.mxu0
        %v987 = vadd.f32 0.0, %v986
        %v988 = vpop.f32.mrf.mxu0
        %989 = vdwg.mxu0
        %990 = vmatpush.bf16.msra.mxu0 %v918
        %991 = vmatpush.bf16.msra.mxu0 %v914
        %992 = vmatpush.bf16.msra.mxu0 %v910
        %993 = vmatpush.bf16.msra.mxu0 %v906
        %994 = vmatpush.bf16.msra.mxu0 %v902
        %995 = vmatpush.bf16.msra.mxu0 %v898
        %996 = vmatpush.bf16.msra.mxu0 %v894
        %997 = vmatpush.bf16.msra.mxu0 %v890
        %998 = vmatmul.bf16.gmra.mxu0 %v790
        %v999 = vpop.f32.mrf.mxu0
        %v1000 = vadd.f32 0.0, %v999
        %v1001 = vpop.f32.mrf.mxu0
        %1002 = vdwg.mxu0
        %v1003 = vadd.f32 %v786, %v961
        %v1004 = vadd.f32 %v787, %v974
        %v1005 = vadd.f32 %v788, %v987
        %v1006 = vadd.f32 %v789, %v1000
        %v1007 = vxor.u32 %v1003, 2147483648
        %v1008 = vxor.u32 %v1004, 2147483648
        %v1009 = vxor.u32 %v1005, 2147483648
        %v1010 = vmul.f32 %v1007, 1.442695
        %v1011 = vpow.pop %v1010
        %v1012 = vmul.f32 %v1008, 1.442695
        %v1013 = vpow.pop %v1012
        %v1014 = vmul.f32 %v1009, 1.442695
        %v1015 = vpow.pop %v1014
        %v1016 = vadd.f32 %v1011, 1.0
        %v1017 = vadd.f32 %v1013, 1.0
        %v1018 = vadd.f32 %v1015, 1.0
        %v1019 = vrcp.pop %v1016
        %v1020 = vmul.f32 %v1016, %v1019
        %v1021 = vsub.f32 1.0, %v1020
        %v1022 = vmul.f32 %v1019, %v1021
        %v1023 = vadd.f32 %v1019, %v1022
        %vm1024 = vweird.f32 %v1016
        %vm1025 = vweird.f32 %v1019
        %vm1026 = vmor %vm1024, %vm1025
        %v1027 = vsel %vm1026, %v1019, %v1023
        %v1028 = vand.u32 2147483647, %v1016
        %vm1029 = vcmp.eq.f32.partialorder %v1028, 8.507059e+37
        %v1030 = vand.u32 %v1016, 2147483648
        %v1031 = vor.u32 1.1754944e-38, %v1030
        %v1032 = vsel %vm1029, %v1031, %v1027
        %v1033 = vmul.f32 1.0, %v1032
        %v1034 = vrcp.pop %v1017
        %v1035 = vmul.f32 %v1017, %v1034
        %v1036 = vsub.f32 1.0, %v1035
        %v1037 = vmul.f32 %v1034, %v1036
        %v1038 = vadd.f32 %v1034, %v1037
        %vm1039 = vweird.f32 %v1017
        %vm1040 = vweird.f32 %v1034
        %vm1041 = vmor %vm1039, %vm1040
        %v1042 = vsel %vm1041, %v1034, %v1038
        %v1043 = vand.u32 2147483647, %v1017
        %vm1044 = vcmp.eq.f32.partialorder %v1043, 8.507059e+37
        %v1045 = vand.u32 %v1017, 2147483648
        %v1046 = vor.u32 1.1754944e-38, %v1045
        %v1047 = vsel %vm1044, %v1046, %v1042
        %v1048 = vmul.f32 1.0, %v1047
        %v1049 = vrcp.pop %v1018
        %v1050 = vmul.f32 %v1018, %v1049
        %v1051 = vsub.f32 1.0, %v1050
        %v1052 = vmul.f32 %v1049, %v1051
        %v1053 = vadd.f32 %v1049, %v1052
        %vm1054 = vweird.f32 %v1018
        %vm1055 = vweird.f32 %v1049
        %vm1056 = vmor %vm1054, %vm1055
        %v1057 = vsel %vm1056, %v1049, %v1053
        %v1058 = vand.u32 2147483647, %v1018
        %vm1059 = vcmp.eq.f32.partialorder %v1058, 8.507059e+37
        %v1060 = vand.u32 %v1018, 2147483648
        %v1061 = vor.u32 1.1754944e-38, %v1060
        %v1062 = vsel %vm1059, %v1061, %v1057
        %v1063 = vmul.f32 1.0, %v1062
        %v1064 = vtanh.pop %v1006
        %v1065 = vmul.f32 %v1048, %v785
        %v1066 = vmul.f32 %v1033, %v1064
        %v1067 = vadd.f32 %v1065, %v1066
        %v1068 = vtanh.pop %v1067
        %v1069 = vmul.f32 %v1063, %v1068
        %1070 = vst [vmem:[#allocation4] sm:$0xff] %v1069
        %v1071 = vld [vmem:[#allocation5 + $0x20] sm:$0xff]
        %v1072 = vld [vmem:[#allocation5 + $0x28] sm:$0xff]
        %v1073 = vld [vmem:[#allocation5 + $0x30] sm:$0xff]
        %v1074 = vld [vmem:[#allocation5 + $0x38] sm:$0xff]
        %v1075 = vpack.c.bf16 %v1069, %v1069
        %1076 = vmatpush.bf16.msra.mxu0 %v915
        %1077 = vmatpush.bf16.msra.mxu0 %v911
        %1078 = vmatpush.bf16.msra.mxu0 %v907
        %1079 = vmatpush.bf16.msra.mxu0 %v903
        %1080 = vmatpush.bf16.msra.mxu0 %v899
        %1081 = vmatpush.bf16.msra.mxu0 %v895
        %1082 = vmatpush.bf16.msra.mxu0 %v891
        %1083 = vmatpush.bf16.msra.mxu0 %v887
        %1084 = vmatmul.bf16.gmra.mxu0 %v1075
        %v1085 = vpop.f32.mrf.mxu0
        %v1086 = vadd.f32 0.0, %v1085
        %v1087 = vpop.f32.mrf.mxu0
        %1088 = vdwg.mxu0
        %1089 = vmatpush.bf16.msra.mxu0 %v916
        %1090 = vmatpush.bf16.msra.mxu0 %v912
        %1091 = vmatpush.bf16.msra.mxu0 %v908
        %1092 = vmatpush.bf16.msra.mxu0 %v904
        %1093 = vmatpush.bf16.msra.mxu0 %v900
        %1094 = vmatpush.bf16.msra.mxu0 %v896
        %1095 = vmatpush.bf16.msra.mxu0 %v892
        %1096 = vmatpush.bf16.msra.mxu0 %v888
        %1097 = vmatmul.bf16.gmra.mxu0 %v1075
        %v1098 = vpop.f32.mrf.mxu0
        %v1099 = vadd.f32 0.0, %v1098
        %v1100 = vpop.f32.mrf.mxu0
        %1101 = vdwg.mxu0
        %1102 = vmatpush.bf16.msra.mxu0 %v917
        %1103 = vmatpush.bf16.msra.mxu0 %v913
        %1104 = vmatpush.bf16.msra.mxu0 %v909
        %1105 = vmatpush.bf16.msra.mxu0 %v905
        %1106 = vmatpush.bf16.msra.mxu0 %v901
        %1107 = vmatpush.bf16.msra.mxu0 %v897
        %1108 = vmatpush.bf16.msra.mxu0 %v893
        %1109 = vmatpush.bf16.msra.mxu0 %v889
        %1110 = vmatmul.bf16.gmra.mxu0 %v1075
        %v1111 = vpop.f32.mrf.mxu0
        %v1112 = vadd.f32 0.0, %v1111
        %v1113 = vpop.f32.mrf.mxu0
        %1114 = vdwg.mxu0
        %1115 = vmatpush.bf16.msra.mxu0 %v918
        %1116 = vmatpush.bf16.msra.mxu0 %v914
        %1117 = vmatpush.bf16.msra.mxu0 %v910
        %1118 = vmatpush.bf16.msra.mxu0 %v906
        %1119 = vmatpush.bf16.msra.mxu0 %v902
        %1120 = vmatpush.bf16.msra.mxu0 %v898
        %1121 = vmatpush.bf16.msra.mxu0 %v894
        %1122 = vmatpush.bf16.msra.mxu0 %v890
        %1123 = vmatmul.bf16.gmra.mxu0 %v1075
        %v1124 = vpop.f32.mrf.mxu0
        %v1125 = vadd.f32 0.0, %v1124
        %v1126 = vpop.f32.mrf.mxu0
        %1127 = vdwg.mxu0
        %v1128 = vadd.f32 %v1071, %v1086
        %v1129 = vadd.f32 %v1072, %v1099
        %v1130 = vadd.f32 %v1073, %v1112
        %v1131 = vadd.f32 %v1074, %v1125
        %v1132 = vxor.u32 %v1128, 2147483648
        %v1133 = vxor.u32 %v1129, 2147483648
        %v1134 = vxor.u32 %v1130, 2147483648
        %v1135 = vmul.f32 %v1132, 1.442695
        %v1136 = vpow.pop %v1135
        %v1137 = vmul.f32 %v1133, 1.442695
        %v1138 = vpow.pop %v1137
        %v1139 = vmul.f32 %v1134, 1.442695
        %v1140 = vpow.pop %v1139
        %v1141 = vadd.f32 %v1136, 1.0
        %v1142 = vadd.f32 %v1138, 1.0
        %v1143 = vadd.f32 %v1140, 1.0
        %v1144 = vrcp.pop %v1141
        %v1145 = vmul.f32 %v1141, %v1144
        %v1146 = vsub.f32 1.0, %v1145
        %v1147 = vmul.f32 %v1144, %v1146
        %v1148 = vadd.f32 %v1144, %v1147
        %vm1149 = vweird.f32 %v1141
        %vm1150 = vweird.f32 %v1144
        %vm1151 = vmor %vm1149, %vm1150
        %v1152 = vsel %vm1151, %v1144, %v1148
        %v1153 = vand.u32 2147483647, %v1141
        %vm1154 = vcmp.eq.f32.partialorder %v1153, 8.507059e+37
        %v1155 = vand.u32 %v1141, 2147483648
        %v1156 = vor.u32 1.1754944e-38, %v1155
        %v1157 = vsel %vm1154, %v1156, %v1152
        %v1158 = vmul.f32 1.0, %v1157
        %v1159 = vrcp.pop %v1142
        %v1160 = vmul.f32 %v1142, %v1159
        %v1161 = vsub.f32 1.0, %v1160
        %v1162 = vmul.f32 %v1159, %v1161
        %v1163 = vadd.f32 %v1159, %v1162
        %vm1164 = vweird.f32 %v1142
        %vm1165 = vweird.f32 %v1159
        %vm1166 = vmor %vm1164, %vm1165
        %v1167 = vsel %vm1166, %v1159, %v1163
        %v1168 = vand.u32 2147483647, %v1142
        %vm1169 = vcmp.eq.f32.partialorder %v1168, 8.507059e+37
        %v1170 = vand.u32 %v1142, 2147483648
        %v1171 = vor.u32 1.1754944e-38, %v1170
        %v1172 = vsel %vm1169, %v1171, %v1167
        %v1173 = vmul.f32 1.0, %v1172
        %v1174 = vrcp.pop %v1143
        %v1175 = vmul.f32 %v1143, %v1174
        %v1176 = vsub.f32 1.0, %v1175
        %v1177 = vmul.f32 %v1174, %v1176
        %v1178 = vadd.f32 %v1174, %v1177
        %vm1179 = vweird.f32 %v1143
        %vm1180 = vweird.f32 %v1174
        %vm1181 = vmor %vm1179, %vm1180
        %v1182 = vsel %vm1181, %v1174, %v1178
        %v1183 = vand.u32 2147483647, %v1143
        %vm1184 = vcmp.eq.f32.partialorder %v1183, 8.507059e+37
        %v1185 = vand.u32 %v1143, 2147483648
        %v1186 = vor.u32 1.1754944e-38, %v1185
        %v1187 = vsel %vm1184, %v1186, %v1182
        %v1188 = vmul.f32 1.0, %v1187
        %v1189 = vtanh.pop %v1131
        %v1190 = vmul.f32 %v1173, %v1067
        %v1191 = vmul.f32 %v1158, %v1189
        %v1192 = vadd.f32 %v1190, %v1191
        %v1193 = vtanh.pop %v1192
        %v1194 = vmul.f32 %v1188, %v1193
        %s1195 = scalar_lea.vmem [#allocation4], 8
        %1196 = vst [vmem:[%s1195] sm:$0xff] %v1194
        %v1197 = vld [vmem:[#allocation5 + $0x40] sm:$0xff]
        %v1198 = vld [vmem:[#allocation5 + $0x48] sm:$0xff]
        %v1199 = vld [vmem:[#allocation5 + $0x50] sm:$0xff]
        %v1200 = vld [vmem:[#allocation5 + $0x58] sm:$0xff]
        %v1201 = vpack.c.bf16 %v1194, %v1194
        %1202 = vmatpush.bf16.msra.mxu0 %v915
        %1203 = vmatpush.bf16.msra.mxu0 %v911
        %1204 = vmatpush.bf16.msra.mxu0 %v907
        %1205 = vmatpush.bf16.msra.mxu0 %v903
        %1206 = vmatpush.bf16.msra.mxu0 %v899
        %1207 = vmatpush.bf16.msra.mxu0 %v895
        %1208 = vmatpush.bf16.msra.mxu0 %v891
        %1209 = vmatpush.bf16.msra.mxu0 %v887
        %1210 = vmatmul.bf16.gmra.mxu0 %v1201
        %v1211 = vpop.f32.mrf.mxu0
        %v1212 = vadd.f32 0.0, %v1211
        %v1213 = vpop.f32.mrf.mxu0
        %1214 = vdwg.mxu0
        %1215 = vmatpush.bf16.msra.mxu0 %v916
        %1216 = vmatpush.bf16.msra.mxu0 %v912
        %1217 = vmatpush.bf16.msra.mxu0 %v908
        %1218 = vmatpush.bf16.msra.mxu0 %v904
        %1219 = vmatpush.bf16.msra.mxu0 %v900
        %1220 = vmatpush.bf16.msra.mxu0 %v896
        %1221 = vmatpush.bf16.msra.mxu0 %v892
        %1222 = vmatpush.bf16.msra.mxu0 %v888
        %1223 = vmatmul.bf16.gmra.mxu0 %v1201
        %v1224 = vpop.f32.mrf.mxu0
        %v1225 = vadd.f32 0.0, %v1224
        %v1226 = vpop.f32.mrf.mxu0
        %1227 = vdwg.mxu0
        %1228 = vmatpush.bf16.msra.mxu0 %v917
        %1229 = vmatpush.bf16.msra.mxu0 %v913
        %1230 = vmatpush.bf16.msra.mxu0 %v909
        %1231 = vmatpush.bf16.msra.mxu0 %v905
        %1232 = vmatpush.bf16.msra.mxu0 %v901
        %1233 = vmatpush.bf16.msra.mxu0 %v897
        %1234 = vmatpush.bf16.msra.mxu0 %v893
        %1235 = vmatpush.bf16.msra.mxu0 %v889
        %1236 = vmatmul.bf16.gmra.mxu0 %v1201
        %v1237 = vpop.f32.mrf.mxu0
        %v1238 = vadd.f32 0.0, %v1237
        %v1239 = vpop.f32.mrf.mxu0
        %1240 = vdwg.mxu0
        %1241 = vmatpush.bf16.msra.mxu0 %v918
        %1242 = vmatpush.bf16.msra.mxu0 %v914
        %1243 = vmatpush.bf16.msra.mxu0 %v910
        %1244 = vmatpush.bf16.msra.mxu0 %v906
        %1245 = vmatpush.bf16.msra.mxu0 %v902
        %1246 = vmatpush.bf16.msra.mxu0 %v898
        %1247 = vmatpush.bf16.msra.mxu0 %v894
        %1248 = vmatpush.bf16.msra.mxu0 %v890
        %1249 = vmatmul.bf16.gmra.mxu0 %v1201
        %v1250 = vpop.f32.mrf.mxu0
        %v1251 = vadd.f32 0.0, %v1250
        %v1252 = vpop.f32.mrf.mxu0
        %1253 = vdwg.mxu0
        %v1254 = vadd.f32 %v1197, %v1212
        %v1255 = vadd.f32 %v1198, %v1225
        %v1256 = vadd.f32 %v1199, %v1238
        %v1257 = vadd.f32 %v1200, %v1251
        %v1258 = vxor.u32 %v1254, 2147483648
        %v1259 = vxor.u32 %v1255, 2147483648
        %v1260 = vxor.u32 %v1256, 2147483648
        %v1261 = vmul.f32 %v1258, 1.442695
        %v1262 = vpow.pop %v1261
        %v1263 = vmul.f32 %v1259, 1.442695
        %v1264 = vpow.pop %v1263
        %v1265 = vmul.f32 %v1260, 1.442695
        %v1266 = vpow.pop %v1265
        %v1267 = vadd.f32 %v1262, 1.0
        %v1268 = vadd.f32 %v1264, 1.0
        %v1269 = vadd.f32 %v1266, 1.0
        %v1270 = vrcp.pop %v1267
        %v1271 = vmul.f32 %v1267, %v1270
        %v1272 = vsub.f32 1.0, %v1271
        %v1273 = vmul.f32 %v1270, %v1272
        %v1274 = vadd.f32 %v1270, %v1273
        %vm1275 = vweird.f32 %v1267
        %vm1276 = vweird.f32 %v1270
        %vm1277 = vmor %vm1275, %vm1276
        %v1278 = vsel %vm1277, %v1270, %v1274
        %v1279 = vand.u32 2147483647, %v1267
        %vm1280 = vcmp.eq.f32.partialorder %v1279, 8.507059e+37
        %v1281 = vand.u32 %v1267, 2147483648
        %v1282 = vor.u32 1.1754944e-38, %v1281
        %v1283 = vsel %vm1280, %v1282, %v1278
        %v1284 = vmul.f32 1.0, %v1283
        %v1285 = vrcp.pop %v1268
        %v1286 = vmul.f32 %v1268, %v1285
        %v1287 = vsub.f32 1.0, %v1286
        %v1288 = vmul.f32 %v1285, %v1287
        %v1289 = vadd.f32 %v1285, %v1288
        %vm1290 = vweird.f32 %v1268
        %vm1291 = vweird.f32 %v1285
        %vm1292 = vmor %vm1290, %vm1291
        %v1293 = vsel %vm1292, %v1285, %v1289
        %v1294 = vand.u32 2147483647, %v1268
        %vm1295 = vcmp.eq.f32.partialorder %v1294, 8.507059e+37
        %v1296 = vand.u32 %v1268, 2147483648
        %v1297 = vor.u32 1.1754944e-38, %v1296
        %v1298 = vsel %vm1295, %v1297, %v1293
        %v1299 = vmul.f32 1.0, %v1298
        %v1300 = vrcp.pop %v1269
        %v1301 = vmul.f32 %v1269, %v1300
        %v1302 = vsub.f32 1.0, %v1301
        %v1303 = vmul.f32 %v1300, %v1302
        %v1304 = vadd.f32 %v1300, %v1303
        %vm1305 = vweird.f32 %v1269
        %vm1306 = vweird.f32 %v1300
        %vm1307 = vmor %vm1305, %vm1306
        %v1308 = vsel %vm1307, %v1300, %v1304
        %v1309 = vand.u32 2147483647, %v1269
        %vm1310 = vcmp.eq.f32.partialorder %v1309, 8.507059e+37
        %v1311 = vand.u32 %v1269, 2147483648
        %v1312 = vor.u32 1.1754944e-38, %v1311
        %v1313 = vsel %vm1310, %v1312, %v1308
        %v1314 = vmul.f32 1.0, %v1313
        %v1315 = vtanh.pop %v1257
        %v1316 = vmul.f32 %v1299, %v1192
        %v1317 = vmul.f32 %v1284, %v1315
        %v1318 = vadd.f32 %v1316, %v1317
        %v1319 = vtanh.pop %v1318
        %v1320 = vmul.f32 %v1314, %v1319
        %s1321 = scalar_lea.vmem [#allocation4], 16
        %1322 = vst [vmem:[%s1321] sm:$0xff] %v1320
        %v1323 = vld [vmem:[#allocation5 + $0x60] sm:$0xff]
        %v1324 = vld [vmem:[#allocation5 + $0x68] sm:$0xff]
        %v1325 = vld [vmem:[#allocation5 + $0x70] sm:$0xff]
        %v1326 = vld [vmem:[#allocation5 + $0x78] sm:$0xff]
        %v1327 = vpack.c.bf16 %v1320, %v1320
        %1328 = vmatpush.bf16.msra.mxu0 %v915
        %1329 = vmatpush.bf16.msra.mxu0 %v911
        %1330 = vmatpush.bf16.msra.mxu0 %v907
        %1331 = vmatpush.bf16.msra.mxu0 %v903
        %1332 = vmatpush.bf16.msra.mxu0 %v899
        %1333 = vmatpush.bf16.msra.mxu0 %v895
        %1334 = vmatpush.bf16.msra.mxu0 %v891
        %1335 = vmatpush.bf16.msra.mxu0 %v887
        %1336 = vmatmul.bf16.gmra.mxu0 %v1327
        %v1337 = vpop.f32.mrf.mxu0
        %v1338 = vadd.f32 0.0, %v1337
        %v1339 = vpop.f32.mrf.mxu0
        %1340 = vdwg.mxu0
        %1341 = vmatpush.bf16.msra.mxu0 %v916
        %1342 = vmatpush.bf16.msra.mxu0 %v912
        %1343 = vmatpush.bf16.msra.mxu0 %v908
        %1344 = vmatpush.bf16.msra.mxu0 %v904
        %1345 = vmatpush.bf16.msra.mxu0 %v900
        %1346 = vmatpush.bf16.msra.mxu0 %v896
        %1347 = vmatpush.bf16.msra.mxu0 %v892
        %1348 = vmatpush.bf16.msra.mxu0 %v888
        %1349 = vmatmul.bf16.gmra.mxu0 %v1327
        %v1350 = vpop.f32.mrf.mxu0
        %v1351 = vadd.f32 0.0, %v1350
        %v1352 = vpop.f32.mrf.mxu0
        %1353 = vdwg.mxu0
        %1354 = vmatpush.bf16.msra.mxu0 %v917
        %1355 = vmatpush.bf16.msra.mxu0 %v913
        %1356 = vmatpush.bf16.msra.mxu0 %v909
        %1357 = vmatpush.bf16.msra.mxu0 %v905
        %1358 = vmatpush.bf16.msra.mxu0 %v901
        %1359 = vmatpush.bf16.msra.mxu0 %v897
        %1360 = vmatpush.bf16.msra.mxu0 %v893
        %1361 = vmatpush.bf16.msra.mxu0 %v889
        %1362 = vmatmul.bf16.gmra.mxu0 %v1327
        %v1363 = vpop.f32.mrf.mxu0
        %v1364 = vadd.f32 0.0, %v1363
        %v1365 = vpop.f32.mrf.mxu0
        %1366 = vdwg.mxu0
        %1367 = vmatpush.bf16.msra.mxu0 %v918
        %1368 = vmatpush.bf16.msra.mxu0 %v914
        %1369 = vmatpush.bf16.msra.mxu0 %v910
        %1370 = vmatpush.bf16.msra.mxu0 %v906
        %1371 = vmatpush.bf16.msra.mxu0 %v902
        %1372 = vmatpush.bf16.msra.mxu0 %v898
        %1373 = vmatpush.bf16.msra.mxu0 %v894
        %1374 = vmatpush.bf16.msra.mxu0 %v890
        %1375 = vmatmul.bf16.gmra.mxu0 %v1327
        %v1376 = vpop.f32.mrf.mxu0
        %v1377 = vadd.f32 0.0, %v1376
        %v1378 = vpop.f32.mrf.mxu0
        %1379 = vdwg.mxu0
        %v1380 = vadd.f32 %v1323, %v1338
        %v1381 = vadd.f32 %v1324, %v1351
        %v1382 = vadd.f32 %v1325, %v1364
        %v1383 = vadd.f32 %v1326, %v1377
        %v1384 = vxor.u32 %v1380, 2147483648
        %v1385 = vxor.u32 %v1381, 2147483648
        %v1386 = vxor.u32 %v1382, 2147483648
        %v1387 = vmul.f32 %v1384, 1.442695
        %v1388 = vpow.pop %v1387
        %v1389 = vmul.f32 %v1385, 1.442695
        %v1390 = vpow.pop %v1389
        %v1391 = vmul.f32 %v1386, 1.442695
        %v1392 = vpow.pop %v1391
        %v1393 = vadd.f32 %v1388, 1.0
        %v1394 = vadd.f32 %v1390, 1.0
        %v1395 = vadd.f32 %v1392, 1.0
        %v1396 = vrcp.pop %v1393
        %v1397 = vmul.f32 %v1393, %v1396
        %v1398 = vsub.f32 1.0, %v1397
        %v1399 = vmul.f32 %v1396, %v1398
        %v1400 = vadd.f32 %v1396, %v1399
        %vm1401 = vweird.f32 %v1393
        %vm1402 = vweird.f32 %v1396
        %vm1403 = vmor %vm1401, %vm1402
        %v1404 = vsel %vm1403, %v1396, %v1400
        %v1405 = vand.u32 2147483647, %v1393
        %vm1406 = vcmp.eq.f32.partialorder %v1405, 8.507059e+37
        %v1407 = vand.u32 %v1393, 2147483648
        %v1408 = vor.u32 1.1754944e-38, %v1407
        %v1409 = vsel %vm1406, %v1408, %v1404
        %v1410 = vmul.f32 1.0, %v1409
        %v1411 = vrcp.pop %v1394
        %v1412 = vmul.f32 %v1394, %v1411
        %v1413 = vsub.f32 1.0, %v1412
        %v1414 = vmul.f32 %v1411, %v1413
        %v1415 = vadd.f32 %v1411, %v1414
        %vm1416 = vweird.f32 %v1394
        %vm1417 = vweird.f32 %v1411
        %vm1418 = vmor %vm1416, %vm1417
        %v1419 = vsel %vm1418, %v1411, %v1415
        %v1420 = vand.u32 2147483647, %v1394
        %vm1421 = vcmp.eq.f32.partialorder %v1420, 8.507059e+37
        %v1422 = vand.u32 %v1394, 2147483648
        %v1423 = vor.u32 1.1754944e-38, %v1422
        %v1424 = vsel %vm1421, %v1423, %v1419
        %v1425 = vmul.f32 1.0, %v1424
        %v1426 = vrcp.pop %v1395
        %v1427 = vmul.f32 %v1395, %v1426
        %v1428 = vsub.f32 1.0, %v1427
        %v1429 = vmul.f32 %v1426, %v1428
        %v1430 = vadd.f32 %v1426, %v1429
        %vm1431 = vweird.f32 %v1395
        %vm1432 = vweird.f32 %v1426
        %vm1433 = vmor %vm1431, %vm1432
        %v1434 = vsel %vm1433, %v1426, %v1430
        %v1435 = vand.u32 2147483647, %v1395
        %vm1436 = vcmp.eq.f32.partialorder %v1435, 8.507059e+37
        %v1437 = vand.u32 %v1395, 2147483648
        %v1438 = vor.u32 1.1754944e-38, %v1437
        %v1439 = vsel %vm1436, %v1438, %v1434
        %v1440 = vmul.f32 1.0, %v1439
        %v1441 = vtanh.pop %v1383
        %v1442 = vmul.f32 %v1425, %v1318
        %v1443 = vmul.f32 %v1410, %v1441
        %v1444 = vadd.f32 %v1442, %v1443
        %v1445 = vtanh.pop %v1444
        %v1446 = vmul.f32 %v1440, %v1445
        %s1447 = scalar_lea.vmem [#allocation4], 24
        %1448 = vst [vmem:[%s1447] sm:$0xff] %v1446
        %v1449 = vld [vmem:[#allocation5 + $0x80] sm:$0xff]
        %v1450 = vld [vmem:[#allocation5 + $0x88] sm:$0xff]
        %v1451 = vld [vmem:[#allocation5 + $0x90] sm:$0xff]
        %v1452 = vld [vmem:[#allocation5 + $0x98] sm:$0xff]
        %v1453 = vpack.c.bf16 %v1446, %v1446
        %1454 = vmatpush.bf16.msra.mxu0 %v915
        %1455 = vmatpush.bf16.msra.mxu0 %v911
        %1456 = vmatpush.bf16.msra.mxu0 %v907
        %1457 = vmatpush.bf16.msra.mxu0 %v903
        %1458 = vmatpush.bf16.msra.mxu0 %v899
        %1459 = vmatpush.bf16.msra.mxu0 %v895
        %1460 = vmatpush.bf16.msra.mxu0 %v891
        %1461 = vmatpush.bf16.msra.mxu0 %v887
        %1462 = vmatmul.bf16.gmra.mxu0 %v1453
        %v1463 = vpop.f32.mrf.mxu0
        %v1464 = vadd.f32 0.0, %v1463
        %v1465 = vpop.f32.mrf.mxu0
        %1466 = vdwg.mxu0
        %1467 = vmatpush.bf16.msra.mxu0 %v916
        %1468 = vmatpush.bf16.msra.mxu0 %v912
        %1469 = vmatpush.bf16.msra.mxu0 %v908
        %1470 = vmatpush.bf16.msra.mxu0 %v904
        %1471 = vmatpush.bf16.msra.mxu0 %v900
        %1472 = vmatpush.bf16.msra.mxu0 %v896
        %1473 = vmatpush.bf16.msra.mxu0 %v892
        %1474 = vmatpush.bf16.msra.mxu0 %v888
        %1475 = vmatmul.bf16.gmra.mxu0 %v1453
        %v1476 = vpop.f32.mrf.mxu0
        %v1477 = vadd.f32 0.0, %v1476
        %v1478 = vpop.f32.mrf.mxu0
        %1479 = vdwg.mxu0
        %1480 = vmatpush.bf16.msra.mxu0 %v917
        %1481 = vmatpush.bf16.msra.mxu0 %v913
        %1482 = vmatpush.bf16.msra.mxu0 %v909
        %1483 = vmatpush.bf16.msra.mxu0 %v905
        %1484 = vmatpush.bf16.msra.mxu0 %v901
        %1485 = vmatpush.bf16.msra.mxu0 %v897
        %1486 = vmatpush.bf16.msra.mxu0 %v893
        %1487 = vmatpush.bf16.msra.mxu0 %v889
        %1488 = vmatmul.bf16.gmra.mxu0 %v1453
        %v1489 = vpop.f32.mrf.mxu0
        %v1490 = vadd.f32 0.0, %v1489
        %v1491 = vpop.f32.mrf.mxu0
        %1492 = vdwg.mxu0
        %1493 = vmatpush.bf16.msra.mxu0 %v918
        %1494 = vmatpush.bf16.msra.mxu0 %v914
        %1495 = vmatpush.bf16.msra.mxu0 %v910
        %1496 = vmatpush.bf16.msra.mxu0 %v906
        %1497 = vmatpush.bf16.msra.mxu0 %v902
        %1498 = vmatpush.bf16.msra.mxu0 %v898
        %1499 = vmatpush.bf16.msra.mxu0 %v894
        %1500 = vmatpush.bf16.msra.mxu0 %v890
        %1501 = vmatmul.bf16.gmra.mxu0 %v1453
        %v1502 = vpop.f32.mrf.mxu0
        %v1503 = vadd.f32 0.0, %v1502
        %v1504 = vpop.f32.mrf.mxu0
        %1505 = vdwg.mxu0
        %v1506 = vadd.f32 %v1449, %v1464
        %v1507 = vadd.f32 %v1450, %v1477
        %v1508 = vadd.f32 %v1451, %v1490
        %v1509 = vadd.f32 %v1452, %v1503
        %v1510 = vxor.u32 %v1506, 2147483648
        %v1511 = vxor.u32 %v1507, 2147483648
        %v1512 = vxor.u32 %v1508, 2147483648
        %v1513 = vmul.f32 %v1510, 1.442695
        %v1514 = vpow.pop %v1513
        %v1515 = vmul.f32 %v1511, 1.442695
        %v1516 = vpow.pop %v1515
        %v1517 = vmul.f32 %v1512, 1.442695
        %v1518 = vpow.pop %v1517
        %v1519 = vadd.f32 %v1514, 1.0
        %v1520 = vadd.f32 %v1516, 1.0
        %v1521 = vadd.f32 %v1518, 1.0
        %v1522 = vrcp.pop %v1519
        %v1523 = vmul.f32 %v1519, %v1522
        %v1524 = vsub.f32 1.0, %v1523
        %v1525 = vmul.f32 %v1522, %v1524
        %v1526 = vadd.f32 %v1522, %v1525
        %vm1527 = vweird.f32 %v1519
        %vm1528 = vweird.f32 %v1522
        %vm1529 = vmor %vm1527, %vm1528
        %v1530 = vsel %vm1529, %v1522, %v1526
        %v1531 = vand.u32 2147483647, %v1519
        %vm1532 = vcmp.eq.f32.partialorder %v1531, 8.507059e+37
        %v1533 = vand.u32 %v1519, 2147483648
        %v1534 = vor.u32 1.1754944e-38, %v1533
        %v1535 = vsel %vm1532, %v1534, %v1530
        %v1536 = vmul.f32 1.0, %v1535
        %v1537 = vrcp.pop %v1520
        %v1538 = vmul.f32 %v1520, %v1537
        %v1539 = vsub.f32 1.0, %v1538
        %v1540 = vmul.f32 %v1537, %v1539
        %v1541 = vadd.f32 %v1537, %v1540
        %vm1542 = vweird.f32 %v1520
        %vm1543 = vweird.f32 %v1537
        %vm1544 = vmor %vm1542, %vm1543
        %v1545 = vsel %vm1544, %v1537, %v1541
        %v1546 = vand.u32 2147483647, %v1520
        %vm1547 = vcmp.eq.f32.partialorder %v1546, 8.507059e+37
        %v1548 = vand.u32 %v1520, 2147483648
        %v1549 = vor.u32 1.1754944e-38, %v1548
        %v1550 = vsel %vm1547, %v1549, %v1545
        %v1551 = vmul.f32 1.0, %v1550
        %v1552 = vrcp.pop %v1521
        %v1553 = vmul.f32 %v1521, %v1552
        %v1554 = vsub.f32 1.0, %v1553
        %v1555 = vmul.f32 %v1552, %v1554
        %v1556 = vadd.f32 %v1552, %v1555
        %vm1557 = vweird.f32 %v1521
        %vm1558 = vweird.f32 %v1552
        %vm1559 = vmor %vm1557, %vm1558
        %v1560 = vsel %vm1559, %v1552, %v1556
        %v1561 = vand.u32 2147483647, %v1521
        %vm1562 = vcmp.eq.f32.partialorder %v1561, 8.507059e+37
        %v1563 = vand.u32 %v1521, 2147483648
        %v1564 = vor.u32 1.1754944e-38, %v1563
        %v1565 = vsel %vm1562, %v1564, %v1560
        %v1566 = vmul.f32 1.0, %v1565
        %v1567 = vtanh.pop %v1509
        %v1568 = vmul.f32 %v1551, %v1444
        %v1569 = vmul.f32 %v1536, %v1567
        %v1570 = vadd.f32 %v1568, %v1569
        %v1571 = vtanh.pop %v1570
        %v1572 = vmul.f32 %v1566, %v1571
        %s1573 = scalar_lea.vmem [#allocation4], 32
        %1574 = vst [vmem:[%s1573] sm:$0xff] %v1572
        %v1575 = vld [vmem:[#allocation5 + $0xa0] sm:$0xff]
        %v1576 = vld [vmem:[#allocation5 + $0xa8] sm:$0xff]
        %v1577 = vld [vmem:[#allocation5 + $0xb0] sm:$0xff]
        %v1578 = vld [vmem:[#allocation5 + $0xb8] sm:$0xff]
        %v1579 = vpack.c.bf16 %v1572, %v1572
        %1580 = vmatpush.bf16.msra.mxu0 %v915
        %1581 = vmatpush.bf16.msra.mxu0 %v911
        %1582 = vmatpush.bf16.msra.mxu0 %v907
        %1583 = vmatpush.bf16.msra.mxu0 %v903
        %1584 = vmatpush.bf16.msra.mxu0 %v899
        %1585 = vmatpush.bf16.msra.mxu0 %v895
        %1586 = vmatpush.bf16.msra.mxu0 %v891
        %1587 = vmatpush.bf16.msra.mxu0 %v887
        %1588 = vmatmul.bf16.gmra.mxu0 %v1579
        %v1589 = vpop.f32.mrf.mxu0
        %v1590 = vadd.f32 0.0, %v1589
        %v1591 = vpop.f32.mrf.mxu0
        %1592 = vdwg.mxu0
        %1593 = vmatpush.bf16.msra.mxu0 %v916
        %1594 = vmatpush.bf16.msra.mxu0 %v912
        %1595 = vmatpush.bf16.msra.mxu0 %v908
        %1596 = vmatpush.bf16.msra.mxu0 %v904
        %1597 = vmatpush.bf16.msra.mxu0 %v900
        %1598 = vmatpush.bf16.msra.mxu0 %v896
        %1599 = vmatpush.bf16.msra.mxu0 %v892
        %1600 = vmatpush.bf16.msra.mxu0 %v888
        %1601 = vmatmul.bf16.gmra.mxu0 %v1579
        %v1602 = vpop.f32.mrf.mxu0
        %v1603 = vadd.f32 0.0, %v1602
        %v1604 = vpop.f32.mrf.mxu0
        %1605 = vdwg.mxu0
        %1606 = vmatpush.bf16.msra.mxu0 %v917
        %1607 = vmatpush.bf16.msra.mxu0 %v913
        %1608 = vmatpush.bf16.msra.mxu0 %v909
        %1609 = vmatpush.bf16.msra.mxu0 %v905
        %1610 = vmatpush.bf16.msra.mxu0 %v901
        %1611 = vmatpush.bf16.msra.mxu0 %v897
        %1612 = vmatpush.bf16.msra.mxu0 %v893
        %1613 = vmatpush.bf16.msra.mxu0 %v889
        %1614 = vmatmul.bf16.gmra.mxu0 %v1579
        %v1615 = vpop.f32.mrf.mxu0
        %v1616 = vadd.f32 0.0, %v1615
        %v1617 = vpop.f32.mrf.mxu0
        %1618 = vdwg.mxu0
        %1619 = vmatpush.bf16.msra.mxu0 %v918
        %1620 = vmatpush.bf16.msra.mxu0 %v914
        %1621 = vmatpush.bf16.msra.mxu0 %v910
        %1622 = vmatpush.bf16.msra.mxu0 %v906
        %1623 = vmatpush.bf16.msra.mxu0 %v902
        %1624 = vmatpush.bf16.msra.mxu0 %v898
        %1625 = vmatpush.bf16.msra.mxu0 %v894
        %1626 = vmatpush.bf16.msra.mxu0 %v890
        %1627 = vmatmul.bf16.gmra.mxu0 %v1579
        %v1628 = vpop.f32.mrf.mxu0
        %v1629 = vadd.f32 0.0, %v1628
        %v1630 = vpop.f32.mrf.mxu0
        %1631 = vdwg.mxu0
        %v1632 = vadd.f32 %v1575, %v1590
        %v1633 = vadd.f32 %v1576, %v1603
        %v1634 = vadd.f32 %v1577, %v1616
        %v1635 = vadd.f32 %v1578, %v1629
        %v1636 = vxor.u32 %v1632, 2147483648
        %v1637 = vxor.u32 %v1633, 2147483648
        %v1638 = vxor.u32 %v1634, 2147483648
        %v1639 = vmul.f32 %v1636, 1.442695
        %v1640 = vpow.pop %v1639
        %v1641 = vmul.f32 %v1637, 1.442695
        %v1642 = vpow.pop %v1641
        %v1643 = vmul.f32 %v1638, 1.442695
        %v1644 = vpow.pop %v1643
        %v1645 = vadd.f32 %v1640, 1.0
        %v1646 = vadd.f32 %v1642, 1.0
        %v1647 = vadd.f32 %v1644, 1.0
        %v1648 = vrcp.pop %v1645
        %v1649 = vmul.f32 %v1645, %v1648
        %v1650 = vsub.f32 1.0, %v1649
        %v1651 = vmul.f32 %v1648, %v1650
        %v1652 = vadd.f32 %v1648, %v1651
        %vm1653 = vweird.f32 %v1645
        %vm1654 = vweird.f32 %v1648
        %vm1655 = vmor %vm1653, %vm1654
        %v1656 = vsel %vm1655, %v1648, %v1652
        %v1657 = vand.u32 2147483647, %v1645
        %vm1658 = vcmp.eq.f32.partialorder %v1657, 8.507059e+37
        %v1659 = vand.u32 %v1645, 2147483648
        %v1660 = vor.u32 1.1754944e-38, %v1659
        %v1661 = vsel %vm1658, %v1660, %v1656
        %v1662 = vmul.f32 1.0, %v1661
        %v1663 = vrcp.pop %v1646
        %v1664 = vmul.f32 %v1646, %v1663
        %v1665 = vsub.f32 1.0, %v1664
        %v1666 = vmul.f32 %v1663, %v1665
        %v1667 = vadd.f32 %v1663, %v1666
        %vm1668 = vweird.f32 %v1646
        %vm1669 = vweird.f32 %v1663
        %vm1670 = vmor %vm1668, %vm1669
        %v1671 = vsel %vm1670, %v1663, %v1667
        %v1672 = vand.u32 2147483647, %v1646
        %vm1673 = vcmp.eq.f32.partialorder %v1672, 8.507059e+37
        %v1674 = vand.u32 %v1646, 2147483648
        %v1675 = vor.u32 1.1754944e-38, %v1674
        %v1676 = vsel %vm1673, %v1675, %v1671
        %v1677 = vmul.f32 1.0, %v1676
        %v1678 = vrcp.pop %v1647
        %v1679 = vmul.f32 %v1647, %v1678
        %v1680 = vsub.f32 1.0, %v1679
        %v1681 = vmul.f32 %v1678, %v1680
        %v1682 = vadd.f32 %v1678, %v1681
        %vm1683 = vweird.f32 %v1647
        %vm1684 = vweird.f32 %v1678
        %vm1685 = vmor %vm1683, %vm1684
        %v1686 = vsel %vm1685, %v1678, %v1682
        %v1687 = vand.u32 2147483647, %v1647
        %vm1688 = vcmp.eq.f32.partialorder %v1687, 8.507059e+37
        %v1689 = vand.u32 %v1647, 2147483648
        %v1690 = vor.u32 1.1754944e-38, %v1689
        %v1691 = vsel %vm1688, %v1690, %v1686
        %v1692 = vmul.f32 1.0, %v1691
        %v1693 = vtanh.pop %v1635
        %v1694 = vmul.f32 %v1677, %v1570
        %v1695 = vmul.f32 %v1662, %v1693
        %v1696 = vadd.f32 %v1694, %v1695
        %v1697 = vtanh.pop %v1696
        %v1698 = vmul.f32 %v1692, %v1697
        %s1699 = scalar_lea.vmem [#allocation4], 40
        %1700 = vst [vmem:[%s1699] sm:$0xff] %v1698
        %v1701 = vld [vmem:[#allocation5 + $0xc0] sm:$0xff]
        %v1702 = vld [vmem:[#allocation5 + $0xc8] sm:$0xff]
        %v1703 = vld [vmem:[#allocation5 + $0xd0] sm:$0xff]
        %v1704 = vld [vmem:[#allocation5 + $0xd8] sm:$0xff]
        %v1705 = vpack.c.bf16 %v1698, %v1698
        %1706 = vmatpush.bf16.msra.mxu0 %v915
        %1707 = vmatpush.bf16.msra.mxu0 %v911
        %1708 = vmatpush.bf16.msra.mxu0 %v907
        %1709 = vmatpush.bf16.msra.mxu0 %v903
        %1710 = vmatpush.bf16.msra.mxu0 %v899
        %1711 = vmatpush.bf16.msra.mxu0 %v895
        %1712 = vmatpush.bf16.msra.mxu0 %v891
        %1713 = vmatpush.bf16.msra.mxu0 %v887
        %1714 = vmatmul.bf16.gmra.mxu0 %v1705
        %v1715 = vpop.f32.mrf.mxu0
        %v1716 = vadd.f32 0.0, %v1715
        %v1717 = vpop.f32.mrf.mxu0
        %1718 = vdwg.mxu0
        %1719 = vmatpush.bf16.msra.mxu0 %v916
        %1720 = vmatpush.bf16.msra.mxu0 %v912
        %1721 = vmatpush.bf16.msra.mxu0 %v908
        %1722 = vmatpush.bf16.msra.mxu0 %v904
        %1723 = vmatpush.bf16.msra.mxu0 %v900
        %1724 = vmatpush.bf16.msra.mxu0 %v896
        %1725 = vmatpush.bf16.msra.mxu0 %v892
        %1726 = vmatpush.bf16.msra.mxu0 %v888
        %1727 = vmatmul.bf16.gmra.mxu0 %v1705
        %v1728 = vpop.f32.mrf.mxu0
        %v1729 = vadd.f32 0.0, %v1728
        %v1730 = vpop.f32.mrf.mxu0
        %1731 = vdwg.mxu0
        %1732 = vmatpush.bf16.msra.mxu0 %v917
        %1733 = vmatpush.bf16.msra.mxu0 %v913
        %1734 = vmatpush.bf16.msra.mxu0 %v909
        %1735 = vmatpush.bf16.msra.mxu0 %v905
        %1736 = vmatpush.bf16.msra.mxu0 %v901
        %1737 = vmatpush.bf16.msra.mxu0 %v897
        %1738 = vmatpush.bf16.msra.mxu0 %v893
        %1739 = vmatpush.bf16.msra.mxu0 %v889
        %1740 = vmatmul.bf16.gmra.mxu0 %v1705
        %v1741 = vpop.f32.mrf.mxu0
        %v1742 = vadd.f32 0.0, %v1741
        %v1743 = vpop.f32.mrf.mxu0
        %1744 = vdwg.mxu0
        %1745 = vmatpush.bf16.msra.mxu0 %v918
        %1746 = vmatpush.bf16.msra.mxu0 %v914
        %1747 = vmatpush.bf16.msra.mxu0 %v910
        %1748 = vmatpush.bf16.msra.mxu0 %v906
        %1749 = vmatpush.bf16.msra.mxu0 %v902
        %1750 = vmatpush.bf16.msra.mxu0 %v898
        %1751 = vmatpush.bf16.msra.mxu0 %v894
        %1752 = vmatpush.bf16.msra.mxu0 %v890
        %1753 = vmatmul.bf16.gmra.mxu0 %v1705
        %v1754 = vpop.f32.mrf.mxu0
        %v1755 = vadd.f32 0.0, %v1754
        %v1756 = vpop.f32.mrf.mxu0
        %1757 = vdwg.mxu0
        %v1758 = vadd.f32 %v1701, %v1716
        %v1759 = vadd.f32 %v1702, %v1729
        %v1760 = vadd.f32 %v1703, %v1742
        %v1761 = vadd.f32 %v1704, %v1755
        %v1762 = vxor.u32 %v1758, 2147483648
        %v1763 = vxor.u32 %v1759, 2147483648
        %v1764 = vxor.u32 %v1760, 2147483648
        %v1765 = vmul.f32 %v1762, 1.442695
        %v1766 = vpow.pop %v1765
        %v1767 = vmul.f32 %v1763, 1.442695
        %v1768 = vpow.pop %v1767
        %v1769 = vmul.f32 %v1764, 1.442695
        %v1770 = vpow.pop %v1769
        %v1771 = vadd.f32 %v1766, 1.0
        %v1772 = vadd.f32 %v1768, 1.0
        %v1773 = vadd.f32 %v1770, 1.0
        %v1774 = vrcp.pop %v1771
        %v1775 = vmul.f32 %v1771, %v1774
        %v1776 = vsub.f32 1.0, %v1775
        %v1777 = vmul.f32 %v1774, %v1776
        %v1778 = vadd.f32 %v1774, %v1777
        %vm1779 = vweird.f32 %v1771
        %vm1780 = vweird.f32 %v1774
        %vm1781 = vmor %vm1779, %vm1780
        %v1782 = vsel %vm1781, %v1774, %v1778
        %v1783 = vand.u32 2147483647, %v1771
        %vm1784 = vcmp.eq.f32.partialorder %v1783, 8.507059e+37
        %v1785 = vand.u32 %v1771, 2147483648
        %v1786 = vor.u32 1.1754944e-38, %v1785
        %v1787 = vsel %vm1784, %v1786, %v1782
        %v1788 = vmul.f32 1.0, %v1787
        %v1789 = vrcp.pop %v1772
        %v1790 = vmul.f32 %v1772, %v1789
        %v1791 = vsub.f32 1.0, %v1790
        %v1792 = vmul.f32 %v1789, %v1791
        %v1793 = vadd.f32 %v1789, %v1792
        %vm1794 = vweird.f32 %v1772
        %vm1795 = vweird.f32 %v1789
        %vm1796 = vmor %vm1794, %vm1795
        %v1797 = vsel %vm1796, %v1789, %v1793
        %v1798 = vand.u32 2147483647, %v1772
        %vm1799 = vcmp.eq.f32.partialorder %v1798, 8.507059e+37
        %v1800 = vand.u32 %v1772, 2147483648
        %v1801 = vor.u32 1.1754944e-38, %v1800
        %v1802 = vsel %vm1799, %v1801, %v1797
        %v1803 = vmul.f32 1.0, %v1802
        %v1804 = vrcp.pop %v1773
        %v1805 = vmul.f32 %v1773, %v1804
        %v1806 = vsub.f32 1.0, %v1805
        %v1807 = vmul.f32 %v1804, %v1806
        %v1808 = vadd.f32 %v1804, %v1807
        %vm1809 = vweird.f32 %v1773
        %vm1810 = vweird.f32 %v1804
        %vm1811 = vmor %vm1809, %vm1810
        %v1812 = vsel %vm1811, %v1804, %v1808
        %v1813 = vand.u32 2147483647, %v1773
        %vm1814 = vcmp.eq.f32.partialorder %v1813, 8.507059e+37
        %v1815 = vand.u32 %v1773, 2147483648
        %v1816 = vor.u32 1.1754944e-38, %v1815
        %v1817 = vsel %vm1814, %v1816, %v1812
        %v1818 = vmul.f32 1.0, %v1817
        %v1819 = vtanh.pop %v1761
        %v1820 = vmul.f32 %v1803, %v1696
        %v1821 = vmul.f32 %v1788, %v1819
        %v1822 = vadd.f32 %v1820, %v1821
        %v1823 = vtanh.pop %v1822
        %v1824 = vmul.f32 %v1818, %v1823
        %s1825 = scalar_lea.vmem [#allocation4], 48
        %1826 = vst [vmem:[%s1825] sm:$0xff] %v1824
        %v1827 = vld [vmem:[#allocation5 + $0xe0] sm:$0xff]
        %v1828 = vld [vmem:[#allocation5 + $0xe8] sm:$0xff]
        %v1829 = vld [vmem:[#allocation5 + $0xf0] sm:$0xff]
        %v1830 = vld [vmem:[#allocation5 + $0xf8] sm:$0xff]
        %v1831 = vpack.c.bf16 %v1824, %v1824
        %1832 = vmatpush.bf16.msra.mxu0 %v915
        %1833 = vmatpush.bf16.msra.mxu0 %v911
        %1834 = vmatpush.bf16.msra.mxu0 %v907
        %1835 = vmatpush.bf16.msra.mxu0 %v903
        %1836 = vmatpush.bf16.msra.mxu0 %v899
        %1837 = vmatpush.bf16.msra.mxu0 %v895
        %1838 = vmatpush.bf16.msra.mxu0 %v891
        %1839 = vmatpush.bf16.msra.mxu0 %v887
        %1840 = vmatmul.bf16.gmra.mxu0 %v1831
        %v1841 = vpop.f32.mrf.mxu0
        %v1842 = vadd.f32 0.0, %v1841
        %v1843 = vpop.f32.mrf.mxu0
        %1844 = vdwg.mxu0
        %1845 = vmatpush.bf16.msra.mxu0 %v916
        %1846 = vmatpush.bf16.msra.mxu0 %v912
        %1847 = vmatpush.bf16.msra.mxu0 %v908
        %1848 = vmatpush.bf16.msra.mxu0 %v904
        %1849 = vmatpush.bf16.msra.mxu0 %v900
        %1850 = vmatpush.bf16.msra.mxu0 %v896
        %1851 = vmatpush.bf16.msra.mxu0 %v892
        %1852 = vmatpush.bf16.msra.mxu0 %v888
        %1853 = vmatmul.bf16.gmra.mxu0 %v1831
        %v1854 = vpop.f32.mrf.mxu0
        %v1855 = vadd.f32 0.0, %v1854
        %v1856 = vpop.f32.mrf.mxu0
        %1857 = vdwg.mxu0
        %1858 = vmatpush.bf16.msra.mxu0 %v917
        %1859 = vmatpush.bf16.msra.mxu0 %v913
        %1860 = vmatpush.bf16.msra.mxu0 %v909
        %1861 = vmatpush.bf16.msra.mxu0 %v905
        %1862 = vmatpush.bf16.msra.mxu0 %v901
        %1863 = vmatpush.bf16.msra.mxu0 %v897
        %1864 = vmatpush.bf16.msra.mxu0 %v893
        %1865 = vmatpush.bf16.msra.mxu0 %v889
        %1866 = vmatmul.bf16.gmra.mxu0 %v1831
        %v1867 = vpop.f32.mrf.mxu0
        %v1868 = vadd.f32 0.0, %v1867
        %v1869 = vpop.f32.mrf.mxu0
        %1870 = vdwg.mxu0
        %1871 = vmatpush.bf16.msra.mxu0 %v918
        %1872 = vmatpush.bf16.msra.mxu0 %v914
        %1873 = vmatpush.bf16.msra.mxu0 %v910
        %1874 = vmatpush.bf16.msra.mxu0 %v906
        %1875 = vmatpush.bf16.msra.mxu0 %v902
        %1876 = vmatpush.bf16.msra.mxu0 %v898
        %1877 = vmatpush.bf16.msra.mxu0 %v894
        %1878 = vmatpush.bf16.msra.mxu0 %v890
        %1879 = vmatmul.bf16.gmra.mxu0 %v1831
        %v1880 = vpop.f32.mrf.mxu0
        %v1881 = vadd.f32 0.0, %v1880
        %v1882 = vpop.f32.mrf.mxu0
        %1883 = vdwg.mxu0
        %v1884 = vadd.f32 %v1827, %v1842
        %v1885 = vadd.f32 %v1828, %v1855
        %v1886 = vadd.f32 %v1829, %v1868
        %v1887 = vadd.f32 %v1830, %v1881
        %v1888 = vxor.u32 %v1884, 2147483648
        %v1889 = vxor.u32 %v1885, 2147483648
        %v1890 = vxor.u32 %v1886, 2147483648
        %v1891 = vmul.f32 %v1888, 1.442695
        %v1892 = vpow.pop %v1891
        %v1893 = vmul.f32 %v1889, 1.442695
        %v1894 = vpow.pop %v1893
        %v1895 = vmul.f32 %v1890, 1.442695
        %v1896 = vpow.pop %v1895
        %v1897 = vadd.f32 %v1892, 1.0
        %v1898 = vadd.f32 %v1894, 1.0
        %v1899 = vadd.f32 %v1896, 1.0
        %v1900 = vrcp.pop %v1897
        %v1901 = vmul.f32 %v1897, %v1900
        %v1902 = vsub.f32 1.0, %v1901
        %v1903 = vmul.f32 %v1900, %v1902
        %v1904 = vadd.f32 %v1900, %v1903
        %vm1905 = vweird.f32 %v1897
        %vm1906 = vweird.f32 %v1900
        %vm1907 = vmor %vm1905, %vm1906
        %v1908 = vsel %vm1907, %v1900, %v1904
        %v1909 = vand.u32 2147483647, %v1897
        %vm1910 = vcmp.eq.f32.partialorder %v1909, 8.507059e+37
        %v1911 = vand.u32 %v1897, 2147483648
        %v1912 = vor.u32 1.1754944e-38, %v1911
        %v1913 = vsel %vm1910, %v1912, %v1908
        %v1914 = vmul.f32 1.0, %v1913
        %v1915 = vrcp.pop %v1898
        %v1916 = vmul.f32 %v1898, %v1915
        %v1917 = vsub.f32 1.0, %v1916
        %v1918 = vmul.f32 %v1915, %v1917
        %v1919 = vadd.f32 %v1915, %v1918
        %vm1920 = vweird.f32 %v1898
        %vm1921 = vweird.f32 %v1915
        %vm1922 = vmor %vm1920, %vm1921
        %v1923 = vsel %vm1922, %v1915, %v1919
        %v1924 = vand.u32 2147483647, %v1898
        %vm1925 = vcmp.eq.f32.partialorder %v1924, 8.507059e+37
        %v1926 = vand.u32 %v1898, 2147483648
        %v1927 = vor.u32 1.1754944e-38, %v1926
        %v1928 = vsel %vm1925, %v1927, %v1923
        %v1929 = vmul.f32 1.0, %v1928
        %v1930 = vrcp.pop %v1899
        %v1931 = vmul.f32 %v1899, %v1930
        %v1932 = vsub.f32 1.0, %v1931
        %v1933 = vmul.f32 %v1930, %v1932
        %v1934 = vadd.f32 %v1930, %v1933
        %vm1935 = vweird.f32 %v1899
        %vm1936 = vweird.f32 %v1930
        %vm1937 = vmor %vm1935, %vm1936
        %v1938 = vsel %vm1937, %v1930, %v1934
        %v1939 = vand.u32 2147483647, %v1899
        %vm1940 = vcmp.eq.f32.partialorder %v1939, 8.507059e+37
        %v1941 = vand.u32 %v1899, 2147483648
        %v1942 = vor.u32 1.1754944e-38, %v1941
        %v1943 = vsel %vm1940, %v1942, %v1938
        %v1944 = vmul.f32 1.0, %v1943
        %v1945 = vtanh.pop %v1887
        %v1946 = vmul.f32 %v1929, %v1822
        %v1947 = vmul.f32 %v1914, %v1945
        %v1948 = vadd.f32 %v1946, %v1947
        %v1949 = vtanh.pop %v1948
        %v1950 = vmul.f32 %v1944, %v1949
        %s1951 = scalar_lea.vmem [#allocation4], 56
        %1952 = vst [vmem:[%s1951] sm:$0xff] %v1950
        %1953 = vst [vmem:[#allocation2] sm:$0xff] %v1950
        %1954 = vst [vmem:[#allocation3] sm:$0xff] %v1948
        %v1955 = vld [vmem:[#allocation4] sm:$0xff]
        %v1956 = vld [vmem:[#allocation4 + $0x8] sm:$0xff]
        %v1957 = vld [vmem:[#allocation4 + $0x10] sm:$0xff]
        %v1958 = vld [vmem:[#allocation4 + $0x18] sm:$0xff]
        %v1959 = vld [vmem:[#allocation4 + $0x20] sm:$0xff]
        %v1960 = vld [vmem:[#allocation4 + $0x28] sm:$0xff]
        %v1961 = vld [vmem:[#allocation4 + $0x30] sm:$0xff]
        %v1962 = vld [vmem:[#allocation4 + $0x38] sm:$0xff]
        %v1963 = vpack.c.bf16 %v1956, %v1955
        %v1964 = vpack.c.bf16 %v1958, %v1957
        %v1965 = vpack.c.bf16 %v1960, %v1959
        %v1966 = vpack.c.bf16 %v1962, %v1961
        %s1967 = scalar_lea.vmem [#allocation9], 256
        %v1968 = vld [vmem:[%s1967] sm:$0xff]
        %v1969 = vld [vmem:[%s1967 + $0x8] sm:$0xff]
        %v1970 = vld [vmem:[%s1967 + $0x10] sm:$0xff]
        %v1971 = vld [vmem:[%s1967 + $0x18] sm:$0xff]
        %v1972 = vld [vmem:[%s1967 + $0x20] sm:$0xff]
        %v1973 = vld [vmem:[%s1967 + $0x28] sm:$0xff]
        %v1974 = vld [vmem:[%s1967 + $0x30] sm:$0xff]
        %v1975 = vld [vmem:[%s1967 + $0x38] sm:$0xff]
        %v1976 = vld [vmem:[%s1967 + $0x40] sm:$0xff]
        %v1977 = vld [vmem:[%s1967 + $0x48] sm:$0xff]
        %v1978 = vld [vmem:[%s1967 + $0x50] sm:$0xff]
        %v1979 = vld [vmem:[%s1967 + $0x58] sm:$0xff]
        %v1980 = vld [vmem:[%s1967 + $0x60] sm:$0xff]
        %v1981 = vld [vmem:[%s1967 + $0x68] sm:$0xff]
        %v1982 = vld [vmem:[%s1967 + $0x70] sm:$0xff]
        %v1983 = vld [vmem:[%s1967 + $0x78] sm:$0xff]
        %v1984 = vld [vmem:[%s1967 + $0x80] sm:$0xff]
        %v1985 = vld [vmem:[%s1967 + $0x88] sm:$0xff]
        %v1986 = vld [vmem:[%s1967 + $0x90] sm:$0xff]
        %v1987 = vld [vmem:[%s1967 + $0x98] sm:$0xff]
        %v1988 = vld [vmem:[%s1967 + $0xa0] sm:$0xff]
        %v1989 = vld [vmem:[%s1967 + $0xa8] sm:$0xff]
        %v1990 = vld [vmem:[%s1967 + $0xb0] sm:$0xff]
        %v1991 = vld [vmem:[%s1967 + $0xb8] sm:$0xff]
        %v1992 = vld [vmem:[%s1967 + $0xc0] sm:$0xff]
        %v1993 = vld [vmem:[%s1967 + $0xc8] sm:$0xff]
        %v1994 = vld [vmem:[%s1967 + $0xd0] sm:$0xff]
        %v1995 = vld [vmem:[%s1967 + $0xd8] sm:$0xff]
        %v1996 = vld [vmem:[%s1967 + $0xe0] sm:$0xff]
        %v1997 = vld [vmem:[%s1967 + $0xe8] sm:$0xff]
        %v1998 = vld [vmem:[%s1967 + $0xf0] sm:$0xff]
        %v1999 = vld [vmem:[%s1967 + $0xf8] sm:$0xff]
        %s2000 = scalar_lea.vmem [#allocation12], 4
        %v2001 = vld [vmem:[%s2000] sm:$0xf]
        %v2003 = vperm.slane %v2001, 0
        %v2004 = vperm.slane %v2001, 1
        %v2005 = vperm.slane %v2001, 2
        %v2006 = vperm.slane %v2001, 3
        %v2043 = vunpack.c.l.b16 %v1968
        %v2044 = vunpack.c.h.b16 %v1968
        %v2045 = vunpack.c.l.b16 %v1969
        %v2046 = vunpack.c.h.b16 %v1969
        %v2047 = vunpack.c.l.b16 %v1970
        %v2048 = vunpack.c.h.b16 %v1970
        %v2049 = vunpack.c.l.b16 %v1971
        %v2050 = vunpack.c.h.b16 %v1971
        %v2051 = vunpack.c.l.b16 %v1972
        %v2052 = vunpack.c.h.b16 %v1972
        %v2053 = vunpack.c.l.b16 %v1973
        %v2054 = vunpack.c.h.b16 %v1973
        %v2055 = vunpack.c.l.b16 %v1974
        %v2056 = vunpack.c.h.b16 %v1974
        %v2057 = vunpack.c.l.b16 %v1975
        %v2058 = vunpack.c.h.b16 %v1975
        %v2059 = vunpack.c.l.b16 %v1976
        %v2060 = vunpack.c.h.b16 %v1976
        %v2061 = vunpack.c.l.b16 %v1977
        %v2062 = vunpack.c.h.b16 %v1977
        %v2063 = vunpack.c.l.b16 %v1978
        %v2064 = vunpack.c.h.b16 %v1978
        %v2065 = vunpack.c.l.b16 %v1979
        %v2066 = vunpack.c.h.b16 %v1979
        %v2067 = vunpack.c.l.b16 %v1980
        %v2068 = vunpack.c.h.b16 %v1980
        %v2069 = vunpack.c.l.b16 %v1981
        %v2070 = vunpack.c.h.b16 %v1981
        %v2071 = vunpack.c.l.b16 %v1982
        %v2072 = vunpack.c.h.b16 %v1982
        %v2073 = vunpack.c.l.b16 %v1983
        %v2074 = vunpack.c.h.b16 %v1983
        %v2075 = vunpack.c.l.b16 %v1984
        %v2076 = vunpack.c.h.b16 %v1984
        %v2077 = vunpack.c.l.b16 %v1985
        %v2078 = vunpack.c.h.b16 %v1985
        %v2079 = vunpack.c.l.b16 %v1986
        %v2080 = vunpack.c.h.b16 %v1986
        %v2081 = vunpack.c.l.b16 %v1987
        %v2082 = vunpack.c.h.b16 %v1987
        %v2083 = vunpack.c.l.b16 %v1988
        %v2084 = vunpack.c.h.b16 %v1988
        %v2085 = vunpack.c.l.b16 %v1989
        %v2086 = vunpack.c.h.b16 %v1989
        %v2087 = vunpack.c.l.b16 %v1990
        %v2088 = vunpack.c.h.b16 %v1990
        %v2089 = vunpack.c.l.b16 %v1991
        %v2090 = vunpack.c.h.b16 %v1991
        %v2091 = vunpack.c.l.b16 %v1992
        %v2092 = vunpack.c.h.b16 %v1992
        %v2093 = vunpack.c.l.b16 %v1993
        %v2094 = vunpack.c.h.b16 %v1993
        %v2095 = vunpack.c.l.b16 %v1994
        %v2096 = vunpack.c.h.b16 %v1994
        %v2097 = vunpack.c.l.b16 %v1995
        %v2098 = vunpack.c.h.b16 %v1995
        %v2099 = vunpack.c.l.b16 %v1996
        %v2100 = vunpack.c.h.b16 %v1996
        %v2101 = vunpack.c.l.b16 %v1997
        %v2102 = vunpack.c.h.b16 %v1997
        %v2103 = vunpack.c.l.b16 %v1998
        %v2104 = vunpack.c.h.b16 %v1998
        %v2105 = vunpack.c.l.b16 %v1999
        %v2106 = vunpack.c.h.b16 %v1999
        %v2107 = vpack.c.b16 %v2047, %v2043
        %v2108 = vpack.c.b16 %v2048, %v2044
        %v2109 = vpack.c.b16 %v2049, %v2045
        %v2110 = vpack.c.b16 %v2050, %v2046
        %v2111 = vpack.c.b16 %v2055, %v2051
        %v2112 = vpack.c.b16 %v2056, %v2052
        %v2113 = vpack.c.b16 %v2057, %v2053
        %v2114 = vpack.c.b16 %v2058, %v2054
        %v2115 = vpack.c.b16 %v2063, %v2059
        %v2116 = vpack.c.b16 %v2064, %v2060
        %v2117 = vpack.c.b16 %v2065, %v2061
        %v2118 = vpack.c.b16 %v2066, %v2062
        %v2119 = vpack.c.b16 %v2071, %v2067
        %v2120 = vpack.c.b16 %v2072, %v2068
        %v2121 = vpack.c.b16 %v2073, %v2069
        %v2122 = vpack.c.b16 %v2074, %v2070
        %v2123 = vpack.c.b16 %v2079, %v2075
        %v2124 = vpack.c.b16 %v2080, %v2076
        %v2125 = vpack.c.b16 %v2081, %v2077
        %v2126 = vpack.c.b16 %v2082, %v2078
        %v2127 = vpack.c.b16 %v2087, %v2083
        %v2128 = vpack.c.b16 %v2088, %v2084
        %v2129 = vpack.c.b16 %v2089, %v2085
        %v2130 = vpack.c.b16 %v2090, %v2086
        %v2131 = vpack.c.b16 %v2095, %v2091
        %v2132 = vpack.c.b16 %v2096, %v2092
        %v2133 = vpack.c.b16 %v2097, %v2093
        %v2134 = vpack.c.b16 %v2098, %v2094
        %v2135 = vpack.c.b16 %v2103, %v2099
        %v2136 = vpack.c.b16 %v2104, %v2100
        %v2137 = vpack.c.b16 %v2105, %v2101
        %v2138 = vpack.c.b16 %v2106, %v2102
        %2171 = vmatpush.bf16.msra.mxu0 %v2135
        %2172 = vmatpush.bf16.msra.mxu0 %v2131
        %2173 = vmatpush.bf16.msra.mxu0 %v2127
        %2174 = vmatpush.bf16.msra.mxu0 %v2123
        %2175 = vmatpush.bf16.msra.mxu0 %v2119
        %2176 = vmatpush.bf16.msra.mxu0 %v2115
        %2177 = vmatpush.bf16.msra.mxu0 %v2111
        %2178 = vmatpush.bf16.msra.mxu0 %v2107
        %2179 = vmatmul.bf16.gmra.mxu0 %v1963
        %v2180 = vpop.f32.mrf.mxu0
        %v2181 = vadd.f32 %v2003, %v2180
        %v2182 = vpop.f32.mrf.mxu0
        %v2183 = vadd.f32 %v2003, %v2182
        %2184 = vmatmul.bf16.gmra.mxu0 %v1964
        %v2185 = vpop.f32.mrf.mxu0
        %v2186 = vadd.f32 %v2003, %v2185
        %v2187 = vpop.f32.mrf.mxu0
        %v2188 = vadd.f32 %v2003, %v2187
        %2189 = vmatmul.bf16.gmra.mxu0 %v1965
        %v2190 = vpop.f32.mrf.mxu0
        %v2191 = vadd.f32 %v2003, %v2190
        %v2192 = vpop.f32.mrf.mxu0
        %v2193 = vadd.f32 %v2003, %v2192
        %2194 = vmatmul.bf16.gmra.mxu0 %v1966
        %v2195 = vpop.f32.mrf.mxu0
        %v2196 = vadd.f32 %v2003, %v2195
        %v2197 = vpop.f32.mrf.mxu0
        %v2198 = vadd.f32 %v2003, %v2197
        %2199 = vdwg.mxu0
        %2200 = vmatpush.bf16.msra.mxu0 %v2136
        %2201 = vmatpush.bf16.msra.mxu0 %v2132
        %2202 = vmatpush.bf16.msra.mxu0 %v2128
        %2203 = vmatpush.bf16.msra.mxu0 %v2124
        %2204 = vmatpush.bf16.msra.mxu0 %v2120
        %2205 = vmatpush.bf16.msra.mxu0 %v2116
        %2206 = vmatpush.bf16.msra.mxu0 %v2112
        %2207 = vmatpush.bf16.msra.mxu0 %v2108
        %2208 = vmatmul.bf16.gmra.mxu0 %v1963
        %v2209 = vpop.f32.mrf.mxu0
        %v2210 = vadd.f32 %v2004, %v2209
        %v2211 = vpop.f32.mrf.mxu0
        %v2212 = vadd.f32 %v2004, %v2211
        %2213 = vmatmul.bf16.gmra.mxu0 %v1964
        %v2214 = vpop.f32.mrf.mxu0
        %v2215 = vadd.f32 %v2004, %v2214
        %v2216 = vpop.f32.mrf.mxu0
        %v2217 = vadd.f32 %v2004, %v2216
        %2218 = vmatmul.bf16.gmra.mxu0 %v1965
        %v2219 = vpop.f32.mrf.mxu0
        %v2220 = vadd.f32 %v2004, %v2219
        %v2221 = vpop.f32.mrf.mxu0
        %v2222 = vadd.f32 %v2004, %v2221
        %2223 = vmatmul.bf16.gmra.mxu0 %v1966
        %v2224 = vpop.f32.mrf.mxu0
        %v2225 = vadd.f32 %v2004, %v2224
        %v2226 = vpop.f32.mrf.mxu0
        %v2227 = vadd.f32 %v2004, %v2226
        %2228 = vdwg.mxu0
        %2229 = vmatpush.bf16.msra.mxu0 %v2137
        %2230 = vmatpush.bf16.msra.mxu0 %v2133
        %2231 = vmatpush.bf16.msra.mxu0 %v2129
        %2232 = vmatpush.bf16.msra.mxu0 %v2125
        %2233 = vmatpush.bf16.msra.mxu0 %v2121
        %2234 = vmatpush.bf16.msra.mxu0 %v2117
        %2235 = vmatpush.bf16.msra.mxu0 %v2113
        %2236 = vmatpush.bf16.msra.mxu0 %v2109
        %2237 = vmatmul.bf16.gmra.mxu0 %v1963
        %v2238 = vpop.f32.mrf.mxu0
        %v2239 = vadd.f32 %v2005, %v2238
        %v2240 = vpop.f32.mrf.mxu0
        %v2241 = vadd.f32 %v2005, %v2240
        %2242 = vmatmul.bf16.gmra.mxu0 %v1964
        %v2243 = vpop.f32.mrf.mxu0
        %v2244 = vadd.f32 %v2005, %v2243
        %v2245 = vpop.f32.mrf.mxu0
        %v2246 = vadd.f32 %v2005, %v2245
        %2247 = vmatmul.bf16.gmra.mxu0 %v1965
        %v2248 = vpop.f32.mrf.mxu0
        %v2249 = vadd.f32 %v2005, %v2248
        %v2250 = vpop.f32.mrf.mxu0
        %v2251 = vadd.f32 %v2005, %v2250
        %2252 = vmatmul.bf16.gmra.mxu0 %v1966
        %v2253 = vpop.f32.mrf.mxu0
        %v2254 = vadd.f32 %v2005, %v2253
        %v2255 = vpop.f32.mrf.mxu0
        %v2256 = vadd.f32 %v2005, %v2255
        %2257 = vdwg.mxu0
        %2258 = vmatpush.bf16.msra.mxu0 %v2138
        %2259 = vmatpush.bf16.msra.mxu0 %v2134
        %2260 = vmatpush.bf16.msra.mxu0 %v2130
        %2261 = vmatpush.bf16.msra.mxu0 %v2126
        %2262 = vmatpush.bf16.msra.mxu0 %v2122
        %2263 = vmatpush.bf16.msra.mxu0 %v2118
        %2264 = vmatpush.bf16.msra.mxu0 %v2114
        %2265 = vmatpush.bf16.msra.mxu0 %v2110
        %2266 = vmatmul.bf16.gmra.mxu0 %v1963
        %v2267 = vpop.f32.mrf.mxu0
        %v2268 = vadd.f32 %v2006, %v2267
        %v2269 = vpop.f32.mrf.mxu0
        %v2270 = vadd.f32 %v2006, %v2269
        %2271 = vmatmul.bf16.gmra.mxu0 %v1964
        %v2272 = vpop.f32.mrf.mxu0
        %v2273 = vadd.f32 %v2006, %v2272
        %v2274 = vpop.f32.mrf.mxu0
        %v2275 = vadd.f32 %v2006, %v2274
        %2276 = vmatmul.bf16.gmra.mxu0 %v1965
        %v2277 = vpop.f32.mrf.mxu0
        %v2278 = vadd.f32 %v2006, %v2277
        %v2279 = vpop.f32.mrf.mxu0
        %v2280 = vadd.f32 %v2006, %v2279
        %2281 = vmatmul.bf16.gmra.mxu0 %v1966
        %v2282 = vpop.f32.mrf.mxu0
        %v2283 = vadd.f32 %v2006, %v2282
        %v2284 = vpop.f32.mrf.mxu0
        %v2285 = vadd.f32 %v2006, %v2284
        %2286 = vdwg.mxu0
        %2287 = vst [vmem:[#allocation5] sm:$0xff] %v2181
        %2288 = vst [vmem:[#allocation5 + $0x8] sm:$0xff] %v2210
        %2289 = vst [vmem:[#allocation5 + $0x10] sm:$0xff] %v2239
        %2290 = vst [vmem:[#allocation5 + $0x18] sm:$0xff] %v2268
        %2291 = vst [vmem:[#allocation5 + $0x20] sm:$0xff] %v2183
        %2292 = vst [vmem:[#allocation5 + $0x28] sm:$0xff] %v2212
        %2293 = vst [vmem:[#allocation5 + $0x30] sm:$0xff] %v2241
        %2294 = vst [vmem:[#allocation5 + $0x38] sm:$0xff] %v2270
        %2295 = vst [vmem:[#allocation5 + $0x40] sm:$0xff] %v2186
        %2296 = vst [vmem:[#allocation5 + $0x48] sm:$0xff] %v2215
        %2297 = vst [vmem:[#allocation5 + $0x50] sm:$0xff] %v2244
        %2298 = vst [vmem:[#allocation5 + $0x58] sm:$0xff] %v2273
        %2299 = vst [vmem:[#allocation5 + $0x60] sm:$0xff] %v2188
        %2300 = vst [vmem:[#allocation5 + $0x68] sm:$0xff] %v2217
        %2301 = vst [vmem:[#allocation5 + $0x70] sm:$0xff] %v2246
        %2302 = vst [vmem:[#allocation5 + $0x78] sm:$0xff] %v2275
        %2303 = vst [vmem:[#allocation5 + $0x80] sm:$0xff] %v2191
        %2304 = vst [vmem:[#allocation5 + $0x88] sm:$0xff] %v2220
        %2305 = vst [vmem:[#allocation5 + $0x90] sm:$0xff] %v2249
        %2306 = vst [vmem:[#allocation5 + $0x98] sm:$0xff] %v2278
        %2307 = vst [vmem:[#allocation5 + $0xa0] sm:$0xff] %v2193
        %2308 = vst [vmem:[#allocation5 + $0xa8] sm:$0xff] %v2222
        %2309 = vst [vmem:[#allocation5 + $0xb0] sm:$0xff] %v2251
        %2310 = vst [vmem:[#allocation5 + $0xb8] sm:$0xff] %v2280
        %2311 = vst [vmem:[#allocation5 + $0xc0] sm:$0xff] %v2196
        %2312 = vst [vmem:[#allocation5 + $0xc8] sm:$0xff] %v2225
        %2313 = vst [vmem:[#allocation5 + $0xd0] sm:$0xff] %v2254
        %2314 = vst [vmem:[#allocation5 + $0xd8] sm:$0xff] %v2283
        %2315 = vst [vmem:[#allocation5 + $0xe0] sm:$0xff] %v2198
        %2316 = vst [vmem:[#allocation5 + $0xe8] sm:$0xff] %v2227
        %2317 = vst [vmem:[#allocation5 + $0xf0] sm:$0xff] %v2256
        %2318 = vst [vmem:[#allocation5 + $0xf8] sm:$0xff] %v2285
        %s2319 = scalar_lea.vmem [#allocation11], 256
        %v2320 = vld [vmem:[%s2319] sm:$0xff]
        %v2321 = vld [vmem:[%s2319 + $0x8] sm:$0xff]
        %v2322 = vld [vmem:[%s2319 + $0x10] sm:$0xff]
        %v2323 = vld [vmem:[%s2319 + $0x18] sm:$0xff]
        %v2324 = vld [vmem:[%s2319 + $0x20] sm:$0xff]
        %v2325 = vld [vmem:[%s2319 + $0x28] sm:$0xff]
        %v2326 = vld [vmem:[%s2319 + $0x30] sm:$0xff]
        %v2327 = vld [vmem:[%s2319 + $0x38] sm:$0xff]
        %v2328 = vld [vmem:[%s2319 + $0x40] sm:$0xff]
        %v2329 = vld [vmem:[%s2319 + $0x48] sm:$0xff]
        %v2330 = vld [vmem:[%s2319 + $0x50] sm:$0xff]
        %v2331 = vld [vmem:[%s2319 + $0x58] sm:$0xff]
        %v2332 = vld [vmem:[%s2319 + $0x60] sm:$0xff]
        %v2333 = vld [vmem:[%s2319 + $0x68] sm:$0xff]
        %v2334 = vld [vmem:[%s2319 + $0x70] sm:$0xff]
        %v2335 = vld [vmem:[%s2319 + $0x78] sm:$0xff]
        %v2336 = vld [vmem:[%s2319 + $0x80] sm:$0xff]
        %v2337 = vld [vmem:[%s2319 + $0x88] sm:$0xff]
        %v2338 = vld [vmem:[%s2319 + $0x90] sm:$0xff]
        %v2339 = vld [vmem:[%s2319 + $0x98] sm:$0xff]
        %v2340 = vld [vmem:[%s2319 + $0xa0] sm:$0xff]
        %v2341 = vld [vmem:[%s2319 + $0xa8] sm:$0xff]
        %v2342 = vld [vmem:[%s2319 + $0xb0] sm:$0xff]
        %v2343 = vld [vmem:[%s2319 + $0xb8] sm:$0xff]
        %v2344 = vld [vmem:[%s2319 + $0xc0] sm:$0xff]
        %v2345 = vld [vmem:[%s2319 + $0xc8] sm:$0xff]
        %v2346 = vld [vmem:[%s2319 + $0xd0] sm:$0xff]
        %v2347 = vld [vmem:[%s2319 + $0xd8] sm:$0xff]
        %v2348 = vld [vmem:[%s2319 + $0xe0] sm:$0xff]
        %v2349 = vld [vmem:[%s2319 + $0xe8] sm:$0xff]
        %v2350 = vld [vmem:[%s2319 + $0xf0] sm:$0xff]
        %v2351 = vld [vmem:[%s2319 + $0xf8] sm:$0xff]
        %s2352 = scalar_lea.vmem [#allocation2], 8
        %v2353 = vld [vmem:[%s2352] sm:$0xff]
        %s2354 = scalar_lea.vmem [#allocation3], 8
        %v2355 = vld [vmem:[%s2354] sm:$0xff]
        %v2356 = vld [vmem:[#allocation5] sm:$0xff]
        %v2357 = vld [vmem:[#allocation5 + $0x8] sm:$0xff]
        %v2358 = vld [vmem:[#allocation5 + $0x10] sm:$0xff]
        %v2359 = vld [vmem:[#allocation5 + $0x18] sm:$0xff]
        %v2360 = vpack.c.bf16 %v2353, %v2353
        %v2393 = vunpack.c.l.b16 %v2320
        %v2394 = vunpack.c.h.b16 %v2320
        %v2395 = vunpack.c.l.b16 %v2321
        %v2396 = vunpack.c.h.b16 %v2321
        %v2397 = vunpack.c.l.b16 %v2322
        %v2398 = vunpack.c.h.b16 %v2322
        %v2399 = vunpack.c.l.b16 %v2323
        %v2400 = vunpack.c.h.b16 %v2323
        %v2401 = vunpack.c.l.b16 %v2324
        %v2402 = vunpack.c.h.b16 %v2324
        %v2403 = vunpack.c.l.b16 %v2325
        %v2404 = vunpack.c.h.b16 %v2325
        %v2405 = vunpack.c.l.b16 %v2326
        %v2406 = vunpack.c.h.b16 %v2326
        %v2407 = vunpack.c.l.b16 %v2327
        %v2408 = vunpack.c.h.b16 %v2327
        %v2409 = vunpack.c.l.b16 %v2328
        %v2410 = vunpack.c.h.b16 %v2328
        %v2411 = vunpack.c.l.b16 %v2329
        %v2412 = vunpack.c.h.b16 %v2329
        %v2413 = vunpack.c.l.b16 %v2330
        %v2414 = vunpack.c.h.b16 %v2330
        %v2415 = vunpack.c.l.b16 %v2331
        %v2416 = vunpack.c.h.b16 %v2331
        %v2417 = vunpack.c.l.b16 %v2332
        %v2418 = vunpack.c.h.b16 %v2332
        %v2419 = vunpack.c.l.b16 %v2333
        %v2420 = vunpack.c.h.b16 %v2333
        %v2421 = vunpack.c.l.b16 %v2334
        %v2422 = vunpack.c.h.b16 %v2334
        %v2423 = vunpack.c.l.b16 %v2335
        %v2424 = vunpack.c.h.b16 %v2335
        %v2425 = vunpack.c.l.b16 %v2336
        %v2426 = vunpack.c.h.b16 %v2336
        %v2427 = vunpack.c.l.b16 %v2337
        %v2428 = vunpack.c.h.b16 %v2337
        %v2429 = vunpack.c.l.b16 %v2338
        %v2430 = vunpack.c.h.b16 %v2338
        %v2431 = vunpack.c.l.b16 %v2339
        %v2432 = vunpack.c.h.b16 %v2339
        %v2433 = vunpack.c.l.b16 %v2340
        %v2434 = vunpack.c.h.b16 %v2340
        %v2435 = vunpack.c.l.b16 %v2341
        %v2436 = vunpack.c.h.b16 %v2341
        %v2437 = vunpack.c.l.b16 %v2342
        %v2438 = vunpack.c.h.b16 %v2342
        %v2439 = vunpack.c.l.b16 %v2343
        %v2440 = vunpack.c.h.b16 %v2343
        %v2441 = vunpack.c.l.b16 %v2344
        %v2442 = vunpack.c.h.b16 %v2344
        %v2443 = vunpack.c.l.b16 %v2345
        %v2444 = vunpack.c.h.b16 %v2345
        %v2445 = vunpack.c.l.b16 %v2346
        %v2446 = vunpack.c.h.b16 %v2346
        %v2447 = vunpack.c.l.b16 %v2347
        %v2448 = vunpack.c.h.b16 %v2347
        %v2449 = vunpack.c.l.b16 %v2348
        %v2450 = vunpack.c.h.b16 %v2348
        %v2451 = vunpack.c.l.b16 %v2349
        %v2452 = vunpack.c.h.b16 %v2349
        %v2453 = vunpack.c.l.b16 %v2350
        %v2454 = vunpack.c.h.b16 %v2350
        %v2455 = vunpack.c.l.b16 %v2351
        %v2456 = vunpack.c.h.b16 %v2351
        %v2457 = vpack.c.b16 %v2397, %v2393
        %v2458 = vpack.c.b16 %v2398, %v2394
        %v2459 = vpack.c.b16 %v2399, %v2395
        %v2460 = vpack.c.b16 %v2400, %v2396
        %v2461 = vpack.c.b16 %v2405, %v2401
        %v2462 = vpack.c.b16 %v2406, %v2402
        %v2463 = vpack.c.b16 %v2407, %v2403
        %v2464 = vpack.c.b16 %v2408, %v2404
        %v2465 = vpack.c.b16 %v2413, %v2409
        %v2466 = vpack.c.b16 %v2414, %v2410
        %v2467 = vpack.c.b16 %v2415, %v2411
        %v2468 = vpack.c.b16 %v2416, %v2412
        %v2469 = vpack.c.b16 %v2421, %v2417
        %v2470 = vpack.c.b16 %v2422, %v2418
        %v2471 = vpack.c.b16 %v2423, %v2419
        %v2472 = vpack.c.b16 %v2424, %v2420
        %v2473 = vpack.c.b16 %v2429, %v2425
        %v2474 = vpack.c.b16 %v2430, %v2426
        %v2475 = vpack.c.b16 %v2431, %v2427
        %v2476 = vpack.c.b16 %v2432, %v2428
        %v2477 = vpack.c.b16 %v2437, %v2433
        %v2478 = vpack.c.b16 %v2438, %v2434
        %v2479 = vpack.c.b16 %v2439, %v2435
        %v2480 = vpack.c.b16 %v2440, %v2436
        %v2481 = vpack.c.b16 %v2445, %v2441
        %v2482 = vpack.c.b16 %v2446, %v2442
        %v2483 = vpack.c.b16 %v2447, %v2443
        %v2484 = vpack.c.b16 %v2448, %v2444
        %v2485 = vpack.c.b16 %v2453, %v2449
        %v2486 = vpack.c.b16 %v2454, %v2450
        %v2487 = vpack.c.b16 %v2455, %v2451
        %v2488 = vpack.c.b16 %v2456, %v2452
        %2521 = vmatpush.bf16.msra.mxu0 %v2485
        %2522 = vmatpush.bf16.msra.mxu0 %v2481
        %2523 = vmatpush.bf16.msra.mxu0 %v2477
        %2524 = vmatpush.bf16.msra.mxu0 %v2473
        %2525 = vmatpush.bf16.msra.mxu0 %v2469
        %2526 = vmatpush.bf16.msra.mxu0 %v2465
        %2527 = vmatpush.bf16.msra.mxu0 %v2461
        %2528 = vmatpush.bf16.msra.mxu0 %v2457
        %2529 = vmatmul.bf16.gmra.mxu0 %v2360
        %v2530 = vpop.f32.mrf.mxu0
        %v2531 = vadd.f32 0.0, %v2530
        %v2532 = vpop.f32.mrf.mxu0
        %2533 = vdwg.mxu0
        %2534 = vmatpush.bf16.msra.mxu0 %v2486
        %2535 = vmatpush.bf16.msra.mxu0 %v2482
        %2536 = vmatpush.bf16.msra.mxu0 %v2478
        %2537 = vmatpush.bf16.msra.mxu0 %v2474
        %2538 = vmatpush.bf16.msra.mxu0 %v2470
        %2539 = vmatpush.bf16.msra.mxu0 %v2466
        %2540 = vmatpush.bf16.msra.mxu0 %v2462
        %2541 = vmatpush.bf16.msra.mxu0 %v2458
        %2542 = vmatmul.bf16.gmra.mxu0 %v2360
        %v2543 = vpop.f32.mrf.mxu0
        %v2544 = vadd.f32 0.0, %v2543
        %v2545 = vpop.f32.mrf.mxu0
        %2546 = vdwg.mxu0
        %2547 = vmatpush.bf16.msra.mxu0 %v2487
        %2548 = vmatpush.bf16.msra.mxu0 %v2483
        %2549 = vmatpush.bf16.msra.mxu0 %v2479
        %2550 = vmatpush.bf16.msra.mxu0 %v2475
        %2551 = vmatpush.bf16.msra.mxu0 %v2471
        %2552 = vmatpush.bf16.msra.mxu0 %v2467
        %2553 = vmatpush.bf16.msra.mxu0 %v2463
        %2554 = vmatpush.bf16.msra.mxu0 %v2459
        %2555 = vmatmul.bf16.gmra.mxu0 %v2360
        %v2556 = vpop.f32.mrf.mxu0
        %v2557 = vadd.f32 0.0, %v2556
        %v2558 = vpop.f32.mrf.mxu0
        %2559 = vdwg.mxu0
        %2560 = vmatpush.bf16.msra.mxu0 %v2488
        %2561 = vmatpush.bf16.msra.mxu0 %v2484
        %2562 = vmatpush.bf16.msra.mxu0 %v2480
        %2563 = vmatpush.bf16.msra.mxu0 %v2476
        %2564 = vmatpush.bf16.msra.mxu0 %v2472
        %2565 = vmatpush.bf16.msra.mxu0 %v2468
        %2566 = vmatpush.bf16.msra.mxu0 %v2464
        %2567 = vmatpush.bf16.msra.mxu0 %v2460
        %2568 = vmatmul.bf16.gmra.mxu0 %v2360
        %v2569 = vpop.f32.mrf.mxu0
        %v2570 = vadd.f32 0.0, %v2569
        %v2571 = vpop.f32.mrf.mxu0
        %2572 = vdwg.mxu0
        %v2573 = vadd.f32 %v2356, %v2531
        %v2574 = vadd.f32 %v2357, %v2544
        %v2575 = vadd.f32 %v2358, %v2557
        %v2576 = vadd.f32 %v2359, %v2570
        %v2577 = vxor.u32 %v2573, 2147483648
        %v2578 = vxor.u32 %v2574, 2147483648
        %v2579 = vxor.u32 %v2575, 2147483648
        %v2580 = vmul.f32 %v2577, 1.442695
        %v2581 = vpow.pop %v2580
        %v2582 = vmul.f32 %v2578, 1.442695
        %v2583 = vpow.pop %v2582
        %v2584 = vmul.f32 %v2579, 1.442695
        %v2585 = vpow.pop %v2584
        %v2586 = vadd.f32 %v2581, 1.0
        %v2587 = vadd.f32 %v2583, 1.0
        %v2588 = vadd.f32 %v2585, 1.0
        %v2589 = vrcp.pop %v2586
        %v2590 = vmul.f32 %v2586, %v2589
        %v2591 = vsub.f32 1.0, %v2590
        %v2592 = vmul.f32 %v2589, %v2591
        %v2593 = vadd.f32 %v2589, %v2592
        %vm2594 = vweird.f32 %v2586
        %vm2595 = vweird.f32 %v2589
        %vm2596 = vmor %vm2594, %vm2595
        %v2597 = vsel %vm2596, %v2589, %v2593
        %v2598 = vand.u32 2147483647, %v2586
        %vm2599 = vcmp.eq.f32.partialorder %v2598, 8.507059e+37
        %v2600 = vand.u32 %v2586, 2147483648
        %v2601 = vor.u32 1.1754944e-38, %v2600
        %v2602 = vsel %vm2599, %v2601, %v2597
        %v2603 = vmul.f32 1.0, %v2602
        %v2604 = vrcp.pop %v2587
        %v2605 = vmul.f32 %v2587, %v2604
        %v2606 = vsub.f32 1.0, %v2605
        %v2607 = vmul.f32 %v2604, %v2606
        %v2608 = vadd.f32 %v2604, %v2607
        %vm2609 = vweird.f32 %v2587
        %vm2610 = vweird.f32 %v2604
        %vm2611 = vmor %vm2609, %vm2610
        %v2612 = vsel %vm2611, %v2604, %v2608
        %v2613 = vand.u32 2147483647, %v2587
        %vm2614 = vcmp.eq.f32.partialorder %v2613, 8.507059e+37
        %v2615 = vand.u32 %v2587, 2147483648
        %v2616 = vor.u32 1.1754944e-38, %v2615
        %v2617 = vsel %vm2614, %v2616, %v2612
        %v2618 = vmul.f32 1.0, %v2617
        %v2619 = vrcp.pop %v2588
        %v2620 = vmul.f32 %v2588, %v2619
        %v2621 = vsub.f32 1.0, %v2620
        %v2622 = vmul.f32 %v2619, %v2621
        %v2623 = vadd.f32 %v2619, %v2622
        %vm2624 = vweird.f32 %v2588
        %vm2625 = vweird.f32 %v2619
        %vm2626 = vmor %vm2624, %vm2625
        %v2627 = vsel %vm2626, %v2619, %v2623
        %v2628 = vand.u32 2147483647, %v2588
        %vm2629 = vcmp.eq.f32.partialorder %v2628, 8.507059e+37
        %v2630 = vand.u32 %v2588, 2147483648
        %v2631 = vor.u32 1.1754944e-38, %v2630
        %v2632 = vsel %vm2629, %v2631, %v2627
        %v2633 = vmul.f32 1.0, %v2632
        %v2634 = vtanh.pop %v2576
        %v2635 = vmul.f32 %v2618, %v2355
        %v2636 = vmul.f32 %v2603, %v2634
        %v2637 = vadd.f32 %v2635, %v2636
        %v2638 = vtanh.pop %v2637
        %v2639 = vmul.f32 %v2633, %v2638
        %2640 = vst [vmem:[#allocation4] sm:$0xff] %v2639
        %v2641 = vld [vmem:[#allocation5 + $0x20] sm:$0xff]
        %v2642 = vld [vmem:[#allocation5 + $0x28] sm:$0xff]
        %v2643 = vld [vmem:[#allocation5 + $0x30] sm:$0xff]
        %v2644 = vld [vmem:[#allocation5 + $0x38] sm:$0xff]
        %v2645 = vpack.c.bf16 %v2639, %v2639
        %2646 = vmatpush.bf16.msra.mxu0 %v2485
        %2647 = vmatpush.bf16.msra.mxu0 %v2481
        %2648 = vmatpush.bf16.msra.mxu0 %v2477
        %2649 = vmatpush.bf16.msra.mxu0 %v2473
        %2650 = vmatpush.bf16.msra.mxu0 %v2469
        %2651 = vmatpush.bf16.msra.mxu0 %v2465
        %2652 = vmatpush.bf16.msra.mxu0 %v2461
        %2653 = vmatpush.bf16.msra.mxu0 %v2457
        %2654 = vmatmul.bf16.gmra.mxu0 %v2645
        %v2655 = vpop.f32.mrf.mxu0
        %v2656 = vadd.f32 0.0, %v2655
        %v2657 = vpop.f32.mrf.mxu0
        %2658 = vdwg.mxu0
        %2659 = vmatpush.bf16.msra.mxu0 %v2486
        %2660 = vmatpush.bf16.msra.mxu0 %v2482
        %2661 = vmatpush.bf16.msra.mxu0 %v2478
        %2662 = vmatpush.bf16.msra.mxu0 %v2474
        %2663 = vmatpush.bf16.msra.mxu0 %v2470
        %2664 = vmatpush.bf16.msra.mxu0 %v2466
        %2665 = vmatpush.bf16.msra.mxu0 %v2462
        %2666 = vmatpush.bf16.msra.mxu0 %v2458
        %2667 = vmatmul.bf16.gmra.mxu0 %v2645
        %v2668 = vpop.f32.mrf.mxu0
        %v2669 = vadd.f32 0.0, %v2668
        %v2670 = vpop.f32.mrf.mxu0
        %2671 = vdwg.mxu0
        %2672 = vmatpush.bf16.msra.mxu0 %v2487
        %2673 = vmatpush.bf16.msra.mxu0 %v2483
        %2674 = vmatpush.bf16.msra.mxu0 %v2479
        %2675 = vmatpush.bf16.msra.mxu0 %v2475
        %2676 = vmatpush.bf16.msra.mxu0 %v2471
        %2677 = vmatpush.bf16.msra.mxu0 %v2467
        %2678 = vmatpush.bf16.msra.mxu0 %v2463
        %2679 = vmatpush.bf16.msra.mxu0 %v2459
        %2680 = vmatmul.bf16.gmra.mxu0 %v2645
        %v2681 = vpop.f32.mrf.mxu0
        %v2682 = vadd.f32 0.0, %v2681
        %v2683 = vpop.f32.mrf.mxu0
        %2684 = vdwg.mxu0
        %2685 = vmatpush.bf16.msra.mxu0 %v2488
        %2686 = vmatpush.bf16.msra.mxu0 %v2484
        %2687 = vmatpush.bf16.msra.mxu0 %v2480
        %2688 = vmatpush.bf16.msra.mxu0 %v2476
        %2689 = vmatpush.bf16.msra.mxu0 %v2472
        %2690 = vmatpush.bf16.msra.mxu0 %v2468
        %2691 = vmatpush.bf16.msra.mxu0 %v2464
        %2692 = vmatpush.bf16.msra.mxu0 %v2460
        %2693 = vmatmul.bf16.gmra.mxu0 %v2645
        %v2694 = vpop.f32.mrf.mxu0
        %v2695 = vadd.f32 0.0, %v2694
        %v2696 = vpop.f32.mrf.mxu0
        %2697 = vdwg.mxu0
        %v2698 = vadd.f32 %v2641, %v2656
        %v2699 = vadd.f32 %v2642, %v2669
        %v2700 = vadd.f32 %v2643, %v2682
        %v2701 = vadd.f32 %v2644, %v2695
        %v2702 = vxor.u32 %v2698, 2147483648
        %v2703 = vxor.u32 %v2699, 2147483648
        %v2704 = vxor.u32 %v2700, 2147483648
        %v2705 = vmul.f32 %v2702, 1.442695
        %v2706 = vpow.pop %v2705
        %v2707 = vmul.f32 %v2703, 1.442695
        %v2708 = vpow.pop %v2707
        %v2709 = vmul.f32 %v2704, 1.442695
        %v2710 = vpow.pop %v2709
        %v2711 = vadd.f32 %v2706, 1.0
        %v2712 = vadd.f32 %v2708, 1.0
        %v2713 = vadd.f32 %v2710, 1.0
        %v2714 = vrcp.pop %v2711
        %v2715 = vmul.f32 %v2711, %v2714
        %v2716 = vsub.f32 1.0, %v2715
        %v2717 = vmul.f32 %v2714, %v2716
        %v2718 = vadd.f32 %v2714, %v2717
        %vm2719 = vweird.f32 %v2711
        %vm2720 = vweird.f32 %v2714
        %vm2721 = vmor %vm2719, %vm2720
        %v2722 = vsel %vm2721, %v2714, %v2718
        %v2723 = vand.u32 2147483647, %v2711
        %vm2724 = vcmp.eq.f32.partialorder %v2723, 8.507059e+37
        %v2725 = vand.u32 %v2711, 2147483648
        %v2726 = vor.u32 1.1754944e-38, %v2725
        %v2727 = vsel %vm2724, %v2726, %v2722
        %v2728 = vmul.f32 1.0, %v2727
        %v2729 = vrcp.pop %v2712
        %v2730 = vmul.f32 %v2712, %v2729
        %v2731 = vsub.f32 1.0, %v2730
        %v2732 = vmul.f32 %v2729, %v2731
        %v2733 = vadd.f32 %v2729, %v2732
        %vm2734 = vweird.f32 %v2712
        %vm2735 = vweird.f32 %v2729
        %vm2736 = vmor %vm2734, %vm2735
        %v2737 = vsel %vm2736, %v2729, %v2733
        %v2738 = vand.u32 2147483647, %v2712
        %vm2739 = vcmp.eq.f32.partialorder %v2738, 8.507059e+37
        %v2740 = vand.u32 %v2712, 2147483648
        %v2741 = vor.u32 1.1754944e-38, %v2740
        %v2742 = vsel %vm2739, %v2741, %v2737
        %v2743 = vmul.f32 1.0, %v2742
        %v2744 = vrcp.pop %v2713
        %v2745 = vmul.f32 %v2713, %v2744
        %v2746 = vsub.f32 1.0, %v2745
        %v2747 = vmul.f32 %v2744, %v2746
        %v2748 = vadd.f32 %v2744, %v2747
        %vm2749 = vweird.f32 %v2713
        %vm2750 = vweird.f32 %v2744
        %vm2751 = vmor %vm2749, %vm2750
        %v2752 = vsel %vm2751, %v2744, %v2748
        %v2753 = vand.u32 2147483647, %v2713
        %vm2754 = vcmp.eq.f32.partialorder %v2753, 8.507059e+37
        %v2755 = vand.u32 %v2713, 2147483648
        %v2756 = vor.u32 1.1754944e-38, %v2755
        %v2757 = vsel %vm2754, %v2756, %v2752
        %v2758 = vmul.f32 1.0, %v2757
        %v2759 = vtanh.pop %v2701
        %v2760 = vmul.f32 %v2743, %v2637
        %v2761 = vmul.f32 %v2728, %v2759
        %v2762 = vadd.f32 %v2760, %v2761
        %v2763 = vtanh.pop %v2762
        %v2764 = vmul.f32 %v2758, %v2763
        %2765 = vst [vmem:[%s1195] sm:$0xff] %v2764
        %v2766 = vld [vmem:[#allocation5 + $0x40] sm:$0xff]
        %v2767 = vld [vmem:[#allocation5 + $0x48] sm:$0xff]
        %v2768 = vld [vmem:[#allocation5 + $0x50] sm:$0xff]
        %v2769 = vld [vmem:[#allocation5 + $0x58] sm:$0xff]
        %v2770 = vpack.c.bf16 %v2764, %v2764
        %2771 = vmatpush.bf16.msra.mxu0 %v2485
        %2772 = vmatpush.bf16.msra.mxu0 %v2481
        %2773 = vmatpush.bf16.msra.mxu0 %v2477
        %2774 = vmatpush.bf16.msra.mxu0 %v2473
        %2775 = vmatpush.bf16.msra.mxu0 %v2469
        %2776 = vmatpush.bf16.msra.mxu0 %v2465
        %2777 = vmatpush.bf16.msra.mxu0 %v2461
        %2778 = vmatpush.bf16.msra.mxu0 %v2457
        %2779 = vmatmul.bf16.gmra.mxu0 %v2770
        %v2780 = vpop.f32.mrf.mxu0
        %v2781 = vadd.f32 0.0, %v2780
        %v2782 = vpop.f32.mrf.mxu0
        %2783 = vdwg.mxu0
        %2784 = vmatpush.bf16.msra.mxu0 %v2486
        %2785 = vmatpush.bf16.msra.mxu0 %v2482
        %2786 = vmatpush.bf16.msra.mxu0 %v2478
        %2787 = vmatpush.bf16.msra.mxu0 %v2474
        %2788 = vmatpush.bf16.msra.mxu0 %v2470
        %2789 = vmatpush.bf16.msra.mxu0 %v2466
        %2790 = vmatpush.bf16.msra.mxu0 %v2462
        %2791 = vmatpush.bf16.msra.mxu0 %v2458
        %2792 = vmatmul.bf16.gmra.mxu0 %v2770
        %v2793 = vpop.f32.mrf.mxu0
        %v2794 = vadd.f32 0.0, %v2793
        %v2795 = vpop.f32.mrf.mxu0
        %2796 = vdwg.mxu0
        %2797 = vmatpush.bf16.msra.mxu0 %v2487
        %2798 = vmatpush.bf16.msra.mxu0 %v2483
        %2799 = vmatpush.bf16.msra.mxu0 %v2479
        %2800 = vmatpush.bf16.msra.mxu0 %v2475
        %2801 = vmatpush.bf16.msra.mxu0 %v2471
        %2802 = vmatpush.bf16.msra.mxu0 %v2467
        %2803 = vmatpush.bf16.msra.mxu0 %v2463
        %2804 = vmatpush.bf16.msra.mxu0 %v2459
        %2805 = vmatmul.bf16.gmra.mxu0 %v2770
        %v2806 = vpop.f32.mrf.mxu0
        %v2807 = vadd.f32 0.0, %v2806
        %v2808 = vpop.f32.mrf.mxu0
        %2809 = vdwg.mxu0
        %2810 = vmatpush.bf16.msra.mxu0 %v2488
        %2811 = vmatpush.bf16.msra.mxu0 %v2484
        %2812 = vmatpush.bf16.msra.mxu0 %v2480
        %2813 = vmatpush.bf16.msra.mxu0 %v2476
        %2814 = vmatpush.bf16.msra.mxu0 %v2472
        %2815 = vmatpush.bf16.msra.mxu0 %v2468
        %2816 = vmatpush.bf16.msra.mxu0 %v2464
        %2817 = vmatpush.bf16.msra.mxu0 %v2460
        %2818 = vmatmul.bf16.gmra.mxu0 %v2770
        %v2819 = vpop.f32.mrf.mxu0
        %v2820 = vadd.f32 0.0, %v2819
        %v2821 = vpop.f32.mrf.mxu0
        %2822 = vdwg.mxu0
        %v2823 = vadd.f32 %v2766, %v2781
        %v2824 = vadd.f32 %v2767, %v2794
        %v2825 = vadd.f32 %v2768, %v2807
        %v2826 = vadd.f32 %v2769, %v2820
        %v2827 = vxor.u32 %v2823, 2147483648
        %v2828 = vxor.u32 %v2824, 2147483648
        %v2829 = vxor.u32 %v2825, 2147483648
        %v2830 = vmul.f32 %v2827, 1.442695
        %v2831 = vpow.pop %v2830
        %v2832 = vmul.f32 %v2828, 1.442695
        %v2833 = vpow.pop %v2832
        %v2834 = vmul.f32 %v2829, 1.442695
        %v2835 = vpow.pop %v2834
        %v2836 = vadd.f32 %v2831, 1.0
        %v2837 = vadd.f32 %v2833, 1.0
        %v2838 = vadd.f32 %v2835, 1.0
        %v2839 = vrcp.pop %v2836
        %v2840 = vmul.f32 %v2836, %v2839
        %v2841 = vsub.f32 1.0, %v2840
        %v2842 = vmul.f32 %v2839, %v2841
        %v2843 = vadd.f32 %v2839, %v2842
        %vm2844 = vweird.f32 %v2836
        %vm2845 = vweird.f32 %v2839
        %vm2846 = vmor %vm2844, %vm2845
        %v2847 = vsel %vm2846, %v2839, %v2843
        %v2848 = vand.u32 2147483647, %v2836
        %vm2849 = vcmp.eq.f32.partialorder %v2848, 8.507059e+37
        %v2850 = vand.u32 %v2836, 2147483648
        %v2851 = vor.u32 1.1754944e-38, %v2850
        %v2852 = vsel %vm2849, %v2851, %v2847
        %v2853 = vmul.f32 1.0, %v2852
        %v2854 = vrcp.pop %v2837
        %v2855 = vmul.f32 %v2837, %v2854
        %v2856 = vsub.f32 1.0, %v2855
        %v2857 = vmul.f32 %v2854, %v2856
        %v2858 = vadd.f32 %v2854, %v2857
        %vm2859 = vweird.f32 %v2837
        %vm2860 = vweird.f32 %v2854
        %vm2861 = vmor %vm2859, %vm2860
        %v2862 = vsel %vm2861, %v2854, %v2858
        %v2863 = vand.u32 2147483647, %v2837
        %vm2864 = vcmp.eq.f32.partialorder %v2863, 8.507059e+37
        %v2865 = vand.u32 %v2837, 2147483648
        %v2866 = vor.u32 1.1754944e-38, %v2865
        %v2867 = vsel %vm2864, %v2866, %v2862
        %v2868 = vmul.f32 1.0, %v2867
        %v2869 = vrcp.pop %v2838
        %v2870 = vmul.f32 %v2838, %v2869
        %v2871 = vsub.f32 1.0, %v2870
        %v2872 = vmul.f32 %v2869, %v2871
        %v2873 = vadd.f32 %v2869, %v2872
        %vm2874 = vweird.f32 %v2838
        %vm2875 = vweird.f32 %v2869
        %vm2876 = vmor %vm2874, %vm2875
        %v2877 = vsel %vm2876, %v2869, %v2873
        %v2878 = vand.u32 2147483647, %v2838
        %vm2879 = vcmp.eq.f32.partialorder %v2878, 8.507059e+37
        %v2880 = vand.u32 %v2838, 2147483648
        %v2881 = vor.u32 1.1754944e-38, %v2880
        %v2882 = vsel %vm2879, %v2881, %v2877
        %v2883 = vmul.f32 1.0, %v2882
        %v2884 = vtanh.pop %v2826
        %v2885 = vmul.f32 %v2868, %v2762
        %v2886 = vmul.f32 %v2853, %v2884
        %v2887 = vadd.f32 %v2885, %v2886
        %v2888 = vtanh.pop %v2887
        %v2889 = vmul.f32 %v2883, %v2888
        %2890 = vst [vmem:[%s1321] sm:$0xff] %v2889
        %v2891 = vld [vmem:[#allocation5 + $0x60] sm:$0xff]
        %v2892 = vld [vmem:[#allocation5 + $0x68] sm:$0xff]
        %v2893 = vld [vmem:[#allocation5 + $0x70] sm:$0xff]
        %v2894 = vld [vmem:[#allocation5 + $0x78] sm:$0xff]
        %v2895 = vpack.c.bf16 %v2889, %v2889
        %2896 = vmatpush.bf16.msra.mxu0 %v2485
        %2897 = vmatpush.bf16.msra.mxu0 %v2481
        %2898 = vmatpush.bf16.msra.mxu0 %v2477
        %2899 = vmatpush.bf16.msra.mxu0 %v2473
        %2900 = vmatpush.bf16.msra.mxu0 %v2469
        %2901 = vmatpush.bf16.msra.mxu0 %v2465
        %2902 = vmatpush.bf16.msra.mxu0 %v2461
        %2903 = vmatpush.bf16.msra.mxu0 %v2457
        %2904 = vmatmul.bf16.gmra.mxu0 %v2895
        %v2905 = vpop.f32.mrf.mxu0
        %v2906 = vadd.f32 0.0, %v2905
        %v2907 = vpop.f32.mrf.mxu0
        %2908 = vdwg.mxu0
        %2909 = vmatpush.bf16.msra.mxu0 %v2486
        %2910 = vmatpush.bf16.msra.mxu0 %v2482
        %2911 = vmatpush.bf16.msra.mxu0 %v2478
        %2912 = vmatpush.bf16.msra.mxu0 %v2474
        %2913 = vmatpush.bf16.msra.mxu0 %v2470
        %2914 = vmatpush.bf16.msra.mxu0 %v2466
        %2915 = vmatpush.bf16.msra.mxu0 %v2462
        %2916 = vmatpush.bf16.msra.mxu0 %v2458
        %2917 = vmatmul.bf16.gmra.mxu0 %v2895
        %v2918 = vpop.f32.mrf.mxu0
        %v2919 = vadd.f32 0.0, %v2918
        %v2920 = vpop.f32.mrf.mxu0
        %2921 = vdwg.mxu0
        %2922 = vmatpush.bf16.msra.mxu0 %v2487
        %2923 = vmatpush.bf16.msra.mxu0 %v2483
        %2924 = vmatpush.bf16.msra.mxu0 %v2479
        %2925 = vmatpush.bf16.msra.mxu0 %v2475
        %2926 = vmatpush.bf16.msra.mxu0 %v2471
        %2927 = vmatpush.bf16.msra.mxu0 %v2467
        %2928 = vmatpush.bf16.msra.mxu0 %v2463
        %2929 = vmatpush.bf16.msra.mxu0 %v2459
        %2930 = vmatmul.bf16.gmra.mxu0 %v2895
        %v2931 = vpop.f32.mrf.mxu0
        %v2932 = vadd.f32 0.0, %v2931
        %v2933 = vpop.f32.mrf.mxu0
        %2934 = vdwg.mxu0
        %2935 = vmatpush.bf16.msra.mxu0 %v2488
        %2936 = vmatpush.bf16.msra.mxu0 %v2484
        %2937 = vmatpush.bf16.msra.mxu0 %v2480
        %2938 = vmatpush.bf16.msra.mxu0 %v2476
        %2939 = vmatpush.bf16.msra.mxu0 %v2472
        %2940 = vmatpush.bf16.msra.mxu0 %v2468
        %2941 = vmatpush.bf16.msra.mxu0 %v2464
        %2942 = vmatpush.bf16.msra.mxu0 %v2460
        %2943 = vmatmul.bf16.gmra.mxu0 %v2895
        %v2944 = vpop.f32.mrf.mxu0
        %v2945 = vadd.f32 0.0, %v2944
        %v2946 = vpop.f32.mrf.mxu0
        %2947 = vdwg.mxu0
        %v2948 = vadd.f32 %v2891, %v2906
        %v2949 = vadd.f32 %v2892, %v2919
        %v2950 = vadd.f32 %v2893, %v2932
        %v2951 = vadd.f32 %v2894, %v2945
        %v2952 = vxor.u32 %v2948, 2147483648
        %v2953 = vxor.u32 %v2949, 2147483648
        %v2954 = vxor.u32 %v2950, 2147483648
        %v2955 = vmul.f32 %v2952, 1.442695
        %v2956 = vpow.pop %v2955
        %v2957 = vmul.f32 %v2953, 1.442695
        %v2958 = vpow.pop %v2957
        %v2959 = vmul.f32 %v2954, 1.442695
        %v2960 = vpow.pop %v2959
        %v2961 = vadd.f32 %v2956, 1.0
        %v2962 = vadd.f32 %v2958, 1.0
        %v2963 = vadd.f32 %v2960, 1.0
        %v2964 = vrcp.pop %v2961
        %v2965 = vmul.f32 %v2961, %v2964
        %v2966 = vsub.f32 1.0, %v2965
        %v2967 = vmul.f32 %v2964, %v2966
        %v2968 = vadd.f32 %v2964, %v2967
        %vm2969 = vweird.f32 %v2961
        %vm2970 = vweird.f32 %v2964
        %vm2971 = vmor %vm2969, %vm2970
        %v2972 = vsel %vm2971, %v2964, %v2968
        %v2973 = vand.u32 2147483647, %v2961
        %vm2974 = vcmp.eq.f32.partialorder %v2973, 8.507059e+37
        %v2975 = vand.u32 %v2961, 2147483648
        %v2976 = vor.u32 1.1754944e-38, %v2975
        %v2977 = vsel %vm2974, %v2976, %v2972
        %v2978 = vmul.f32 1.0, %v2977
        %v2979 = vrcp.pop %v2962
        %v2980 = vmul.f32 %v2962, %v2979
        %v2981 = vsub.f32 1.0, %v2980
        %v2982 = vmul.f32 %v2979, %v2981
        %v2983 = vadd.f32 %v2979, %v2982
        %vm2984 = vweird.f32 %v2962
        %vm2985 = vweird.f32 %v2979
        %vm2986 = vmor %vm2984, %vm2985
        %v2987 = vsel %vm2986, %v2979, %v2983
        %v2988 = vand.u32 2147483647, %v2962
        %vm2989 = vcmp.eq.f32.partialorder %v2988, 8.507059e+37
        %v2990 = vand.u32 %v2962, 2147483648
        %v2991 = vor.u32 1.1754944e-38, %v2990
        %v2992 = vsel %vm2989, %v2991, %v2987
        %v2993 = vmul.f32 1.0, %v2992
        %v2994 = vrcp.pop %v2963
        %v2995 = vmul.f32 %v2963, %v2994
        %v2996 = vsub.f32 1.0, %v2995
        %v2997 = vmul.f32 %v2994, %v2996
        %v2998 = vadd.f32 %v2994, %v2997
        %vm2999 = vweird.f32 %v2963
        %vm3000 = vweird.f32 %v2994
        %vm3001 = vmor %vm2999, %vm3000
        %v3002 = vsel %vm3001, %v2994, %v2998
        %v3003 = vand.u32 2147483647, %v2963
        %vm3004 = vcmp.eq.f32.partialorder %v3003, 8.507059e+37
        %v3005 = vand.u32 %v2963, 2147483648
        %v3006 = vor.u32 1.1754944e-38, %v3005
        %v3007 = vsel %vm3004, %v3006, %v3002
        %v3008 = vmul.f32 1.0, %v3007
        %v3009 = vtanh.pop %v2951
        %v3010 = vmul.f32 %v2993, %v2887
        %v3011 = vmul.f32 %v2978, %v3009
        %v3012 = vadd.f32 %v3010, %v3011
        %v3013 = vtanh.pop %v3012
        %v3014 = vmul.f32 %v3008, %v3013
        %3015 = vst [vmem:[%s1447] sm:$0xff] %v3014
        %v3016 = vld [vmem:[#allocation5 + $0x80] sm:$0xff]
        %v3017 = vld [vmem:[#allocation5 + $0x88] sm:$0xff]
        %v3018 = vld [vmem:[#allocation5 + $0x90] sm:$0xff]
        %v3019 = vld [vmem:[#allocation5 + $0x98] sm:$0xff]
        %v3020 = vpack.c.bf16 %v3014, %v3014
        %3021 = vmatpush.bf16.msra.mxu0 %v2485
        %3022 = vmatpush.bf16.msra.mxu0 %v2481
        %3023 = vmatpush.bf16.msra.mxu0 %v2477
        %3024 = vmatpush.bf16.msra.mxu0 %v2473
        %3025 = vmatpush.bf16.msra.mxu0 %v2469
        %3026 = vmatpush.bf16.msra.mxu0 %v2465
        %3027 = vmatpush.bf16.msra.mxu0 %v2461
        %3028 = vmatpush.bf16.msra.mxu0 %v2457
        %3029 = vmatmul.bf16.gmra.mxu0 %v3020
        %v3030 = vpop.f32.mrf.mxu0
        %v3031 = vadd.f32 0.0, %v3030
        %v3032 = vpop.f32.mrf.mxu0
        %3033 = vdwg.mxu0
        %3034 = vmatpush.bf16.msra.mxu0 %v2486
        %3035 = vmatpush.bf16.msra.mxu0 %v2482
        %3036 = vmatpush.bf16.msra.mxu0 %v2478
        %3037 = vmatpush.bf16.msra.mxu0 %v2474
        %3038 = vmatpush.bf16.msra.mxu0 %v2470
        %3039 = vmatpush.bf16.msra.mxu0 %v2466
        %3040 = vmatpush.bf16.msra.mxu0 %v2462
        %3041 = vmatpush.bf16.msra.mxu0 %v2458
        %3042 = vmatmul.bf16.gmra.mxu0 %v3020
        %v3043 = vpop.f32.mrf.mxu0
        %v3044 = vadd.f32 0.0, %v3043
        %v3045 = vpop.f32.mrf.mxu0
        %3046 = vdwg.mxu0
        %3047 = vmatpush.bf16.msra.mxu0 %v2487
        %3048 = vmatpush.bf16.msra.mxu0 %v2483
        %3049 = vmatpush.bf16.msra.mxu0 %v2479
        %3050 = vmatpush.bf16.msra.mxu0 %v2475
        %3051 = vmatpush.bf16.msra.mxu0 %v2471
        %3052 = vmatpush.bf16.msra.mxu0 %v2467
        %3053 = vmatpush.bf16.msra.mxu0 %v2463
        %3054 = vmatpush.bf16.msra.mxu0 %v2459
        %3055 = vmatmul.bf16.gmra.mxu0 %v3020
        %v3056 = vpop.f32.mrf.mxu0
        %v3057 = vadd.f32 0.0, %v3056
        %v3058 = vpop.f32.mrf.mxu0
        %3059 = vdwg.mxu0
        %3060 = vmatpush.bf16.msra.mxu0 %v2488
        %3061 = vmatpush.bf16.msra.mxu0 %v2484
        %3062 = vmatpush.bf16.msra.mxu0 %v2480
        %3063 = vmatpush.bf16.msra.mxu0 %v2476
        %3064 = vmatpush.bf16.msra.mxu0 %v2472
        %3065 = vmatpush.bf16.msra.mxu0 %v2468
        %3066 = vmatpush.bf16.msra.mxu0 %v2464
        %3067 = vmatpush.bf16.msra.mxu0 %v2460
        %3068 = vmatmul.bf16.gmra.mxu0 %v3020
        %v3069 = vpop.f32.mrf.mxu0
        %v3070 = vadd.f32 0.0, %v3069
        %v3071 = vpop.f32.mrf.mxu0
        %3072 = vdwg.mxu0
        %v3073 = vadd.f32 %v3016, %v3031
        %v3074 = vadd.f32 %v3017, %v3044
        %v3075 = vadd.f32 %v3018, %v3057
        %v3076 = vadd.f32 %v3019, %v3070
        %v3077 = vxor.u32 %v3073, 2147483648
        %v3078 = vxor.u32 %v3074, 2147483648
        %v3079 = vxor.u32 %v3075, 2147483648
        %v3080 = vmul.f32 %v3077, 1.442695
        %v3081 = vpow.pop %v3080
        %v3082 = vmul.f32 %v3078, 1.442695
        %v3083 = vpow.pop %v3082
        %v3084 = vmul.f32 %v3079, 1.442695
        %v3085 = vpow.pop %v3084
        %v3086 = vadd.f32 %v3081, 1.0
        %v3087 = vadd.f32 %v3083, 1.0
        %v3088 = vadd.f32 %v3085, 1.0
        %v3089 = vrcp.pop %v3086
        %v3090 = vmul.f32 %v3086, %v3089
        %v3091 = vsub.f32 1.0, %v3090
        %v3092 = vmul.f32 %v3089, %v3091
        %v3093 = vadd.f32 %v3089, %v3092
        %vm3094 = vweird.f32 %v3086
        %vm3095 = vweird.f32 %v3089
        %vm3096 = vmor %vm3094, %vm3095
        %v3097 = vsel %vm3096, %v3089, %v3093
        %v3098 = vand.u32 2147483647, %v3086
        %vm3099 = vcmp.eq.f32.partialorder %v3098, 8.507059e+37
        %v3100 = vand.u32 %v3086, 2147483648
        %v3101 = vor.u32 1.1754944e-38, %v3100
        %v3102 = vsel %vm3099, %v3101, %v3097
        %v3103 = vmul.f32 1.0, %v3102
        %v3104 = vrcp.pop %v3087
        %v3105 = vmul.f32 %v3087, %v3104
        %v3106 = vsub.f32 1.0, %v3105
        %v3107 = vmul.f32 %v3104, %v3106
        %v3108 = vadd.f32 %v3104, %v3107
        %vm3109 = vweird.f32 %v3087
        %vm3110 = vweird.f32 %v3104
        %vm3111 = vmor %vm3109, %vm3110
        %v3112 = vsel %vm3111, %v3104, %v3108
        %v3113 = vand.u32 2147483647, %v3087
        %vm3114 = vcmp.eq.f32.partialorder %v3113, 8.507059e+37
        %v3115 = vand.u32 %v3087, 2147483648
        %v3116 = vor.u32 1.1754944e-38, %v3115
        %v3117 = vsel %vm3114, %v3116, %v3112
        %v3118 = vmul.f32 1.0, %v3117
        %v3119 = vrcp.pop %v3088
        %v3120 = vmul.f32 %v3088, %v3119
        %v3121 = vsub.f32 1.0, %v3120
        %v3122 = vmul.f32 %v3119, %v3121
        %v3123 = vadd.f32 %v3119, %v3122
        %vm3124 = vweird.f32 %v3088
        %vm3125 = vweird.f32 %v3119
        %vm3126 = vmor %vm3124, %vm3125
        %v3127 = vsel %vm3126, %v3119, %v3123
        %v3128 = vand.u32 2147483647, %v3088
        %vm3129 = vcmp.eq.f32.partialorder %v3128, 8.507059e+37
        %v3130 = vand.u32 %v3088, 2147483648
        %v3131 = vor.u32 1.1754944e-38, %v3130
        %v3132 = vsel %vm3129, %v3131, %v3127
        %v3133 = vmul.f32 1.0, %v3132
        %v3134 = vtanh.pop %v3076
        %v3135 = vmul.f32 %v3118, %v3012
        %v3136 = vmul.f32 %v3103, %v3134
        %v3137 = vadd.f32 %v3135, %v3136
        %v3138 = vtanh.pop %v3137
        %v3139 = vmul.f32 %v3133, %v3138
        %3140 = vst [vmem:[%s1573] sm:$0xff] %v3139
        %v3141 = vld [vmem:[#allocation5 + $0xa0] sm:$0xff]
        %v3142 = vld [vmem:[#allocation5 + $0xa8] sm:$0xff]
        %v3143 = vld [vmem:[#allocation5 + $0xb0] sm:$0xff]
        %v3144 = vld [vmem:[#allocation5 + $0xb8] sm:$0xff]
        %v3145 = vpack.c.bf16 %v3139, %v3139
        %3146 = vmatpush.bf16.msra.mxu0 %v2485
        %3147 = vmatpush.bf16.msra.mxu0 %v2481
        %3148 = vmatpush.bf16.msra.mxu0 %v2477
        %3149 = vmatpush.bf16.msra.mxu0 %v2473
        %3150 = vmatpush.bf16.msra.mxu0 %v2469
        %3151 = vmatpush.bf16.msra.mxu0 %v2465
        %3152 = vmatpush.bf16.msra.mxu0 %v2461
        %3153 = vmatpush.bf16.msra.mxu0 %v2457
        %3154 = vmatmul.bf16.gmra.mxu0 %v3145
        %v3155 = vpop.f32.mrf.mxu0
        %v3156 = vadd.f32 0.0, %v3155
        %v3157 = vpop.f32.mrf.mxu0
        %3158 = vdwg.mxu0
        %3159 = vmatpush.bf16.msra.mxu0 %v2486
        %3160 = vmatpush.bf16.msra.mxu0 %v2482
        %3161 = vmatpush.bf16.msra.mxu0 %v2478
        %3162 = vmatpush.bf16.msra.mxu0 %v2474
        %3163 = vmatpush.bf16.msra.mxu0 %v2470
        %3164 = vmatpush.bf16.msra.mxu0 %v2466
        %3165 = vmatpush.bf16.msra.mxu0 %v2462
        %3166 = vmatpush.bf16.msra.mxu0 %v2458
        %3167 = vmatmul.bf16.gmra.mxu0 %v3145
        %v3168 = vpop.f32.mrf.mxu0
        %v3169 = vadd.f32 0.0, %v3168
        %v3170 = vpop.f32.mrf.mxu0
        %3171 = vdwg.mxu0
        %3172 = vmatpush.bf16.msra.mxu0 %v2487
        %3173 = vmatpush.bf16.msra.mxu0 %v2483
        %3174 = vmatpush.bf16.msra.mxu0 %v2479
        %3175 = vmatpush.bf16.msra.mxu0 %v2475
        %3176 = vmatpush.bf16.msra.mxu0 %v2471
        %3177 = vmatpush.bf16.msra.mxu0 %v2467
        %3178 = vmatpush.bf16.msra.mxu0 %v2463
        %3179 = vmatpush.bf16.msra.mxu0 %v2459
        %3180 = vmatmul.bf16.gmra.mxu0 %v3145
        %v3181 = vpop.f32.mrf.mxu0
        %v3182 = vadd.f32 0.0, %v3181
        %v3183 = vpop.f32.mrf.mxu0
        %3184 = vdwg.mxu0
        %3185 = vmatpush.bf16.msra.mxu0 %v2488
        %3186 = vmatpush.bf16.msra.mxu0 %v2484
        %3187 = vmatpush.bf16.msra.mxu0 %v2480
        %3188 = vmatpush.bf16.msra.mxu0 %v2476
        %3189 = vmatpush.bf16.msra.mxu0 %v2472
        %3190 = vmatpush.bf16.msra.mxu0 %v2468
        %3191 = vmatpush.bf16.msra.mxu0 %v2464
        %3192 = vmatpush.bf16.msra.mxu0 %v2460
        %3193 = vmatmul.bf16.gmra.mxu0 %v3145
        %v3194 = vpop.f32.mrf.mxu0
        %v3195 = vadd.f32 0.0, %v3194
        %v3196 = vpop.f32.mrf.mxu0
        %3197 = vdwg.mxu0
        %v3198 = vadd.f32 %v3141, %v3156
        %v3199 = vadd.f32 %v3142, %v3169
        %v3200 = vadd.f32 %v3143, %v3182
        %v3201 = vadd.f32 %v3144, %v3195
        %v3202 = vxor.u32 %v3198, 2147483648
        %v3203 = vxor.u32 %v3199, 2147483648
        %v3204 = vxor.u32 %v3200, 2147483648
        %v3205 = vmul.f32 %v3202, 1.442695
        %v3206 = vpow.pop %v3205
        %v3207 = vmul.f32 %v3203, 1.442695
        %v3208 = vpow.pop %v3207
        %v3209 = vmul.f32 %v3204, 1.442695
        %v3210 = vpow.pop %v3209
        %v3211 = vadd.f32 %v3206, 1.0
        %v3212 = vadd.f32 %v3208, 1.0
        %v3213 = vadd.f32 %v3210, 1.0
        %v3214 = vrcp.pop %v3211
        %v3215 = vmul.f32 %v3211, %v3214
        %v3216 = vsub.f32 1.0, %v3215
        %v3217 = vmul.f32 %v3214, %v3216
        %v3218 = vadd.f32 %v3214, %v3217
        %vm3219 = vweird.f32 %v3211
        %vm3220 = vweird.f32 %v3214
        %vm3221 = vmor %vm3219, %vm3220
        %v3222 = vsel %vm3221, %v3214, %v3218
        %v3223 = vand.u32 2147483647, %v3211
        %vm3224 = vcmp.eq.f32.partialorder %v3223, 8.507059e+37
        %v3225 = vand.u32 %v3211, 2147483648
        %v3226 = vor.u32 1.1754944e-38, %v3225
        %v3227 = vsel %vm3224, %v3226, %v3222
        %v3228 = vmul.f32 1.0, %v3227
        %v3229 = vrcp.pop %v3212
        %v3230 = vmul.f32 %v3212, %v3229
        %v3231 = vsub.f32 1.0, %v3230
        %v3232 = vmul.f32 %v3229, %v3231
        %v3233 = vadd.f32 %v3229, %v3232
        %vm3234 = vweird.f32 %v3212
        %vm3235 = vweird.f32 %v3229
        %vm3236 = vmor %vm3234, %vm3235
        %v3237 = vsel %vm3236, %v3229, %v3233
        %v3238 = vand.u32 2147483647, %v3212
        %vm3239 = vcmp.eq.f32.partialorder %v3238, 8.507059e+37
        %v3240 = vand.u32 %v3212, 2147483648
        %v3241 = vor.u32 1.1754944e-38, %v3240
        %v3242 = vsel %vm3239, %v3241, %v3237
        %v3243 = vmul.f32 1.0, %v3242
        %v3244 = vrcp.pop %v3213
        %v3245 = vmul.f32 %v3213, %v3244
        %v3246 = vsub.f32 1.0, %v3245
        %v3247 = vmul.f32 %v3244, %v3246
        %v3248 = vadd.f32 %v3244, %v3247
        %vm3249 = vweird.f32 %v3213
        %vm3250 = vweird.f32 %v3244
        %vm3251 = vmor %vm3249, %vm3250
        %v3252 = vsel %vm3251, %v3244, %v3248
        %v3253 = vand.u32 2147483647, %v3213
        %vm3254 = vcmp.eq.f32.partialorder %v3253, 8.507059e+37
        %v3255 = vand.u32 %v3213, 2147483648
        %v3256 = vor.u32 1.1754944e-38, %v3255
        %v3257 = vsel %vm3254, %v3256, %v3252
        %v3258 = vmul.f32 1.0, %v3257
        %v3259 = vtanh.pop %v3201
        %v3260 = vmul.f32 %v3243, %v3137
        %v3261 = vmul.f32 %v3228, %v3259
        %v3262 = vadd.f32 %v3260, %v3261
        %v3263 = vtanh.pop %v3262
        %v3264 = vmul.f32 %v3258, %v3263
        %3265 = vst [vmem:[%s1699] sm:$0xff] %v3264
        %v3266 = vld [vmem:[#allocation5 + $0xc0] sm:$0xff]
        %v3267 = vld [vmem:[#allocation5 + $0xc8] sm:$0xff]
        %v3268 = vld [vmem:[#allocation5 + $0xd0] sm:$0xff]
        %v3269 = vld [vmem:[#allocation5 + $0xd8] sm:$0xff]
        %v3270 = vpack.c.bf16 %v3264, %v3264
        %3271 = vmatpush.bf16.msra.mxu0 %v2485
        %3272 = vmatpush.bf16.msra.mxu0 %v2481
        %3273 = vmatpush.bf16.msra.mxu0 %v2477
        %3274 = vmatpush.bf16.msra.mxu0 %v2473
        %3275 = vmatpush.bf16.msra.mxu0 %v2469
        %3276 = vmatpush.bf16.msra.mxu0 %v2465
        %3277 = vmatpush.bf16.msra.mxu0 %v2461
        %3278 = vmatpush.bf16.msra.mxu0 %v2457
        %3279 = vmatmul.bf16.gmra.mxu0 %v3270
        %v3280 = vpop.f32.mrf.mxu0
        %v3281 = vadd.f32 0.0, %v3280
        %v3282 = vpop.f32.mrf.mxu0
        %3283 = vdwg.mxu0
        %3284 = vmatpush.bf16.msra.mxu0 %v2486
        %3285 = vmatpush.bf16.msra.mxu0 %v2482
        %3286 = vmatpush.bf16.msra.mxu0 %v2478
        %3287 = vmatpush.bf16.msra.mxu0 %v2474
        %3288 = vmatpush.bf16.msra.mxu0 %v2470
        %3289 = vmatpush.bf16.msra.mxu0 %v2466
        %3290 = vmatpush.bf16.msra.mxu0 %v2462
        %3291 = vmatpush.bf16.msra.mxu0 %v2458
        %3292 = vmatmul.bf16.gmra.mxu0 %v3270
        %v3293 = vpop.f32.mrf.mxu0
        %v3294 = vadd.f32 0.0, %v3293
        %v3295 = vpop.f32.mrf.mxu0
        %3296 = vdwg.mxu0
        %3297 = vmatpush.bf16.msra.mxu0 %v2487
        %3298 = vmatpush.bf16.msra.mxu0 %v2483
        %3299 = vmatpush.bf16.msra.mxu0 %v2479
        %3300 = vmatpush.bf16.msra.mxu0 %v2475
        %3301 = vmatpush.bf16.msra.mxu0 %v2471
        %3302 = vmatpush.bf16.msra.mxu0 %v2467
        %3303 = vmatpush.bf16.msra.mxu0 %v2463
        %3304 = vmatpush.bf16.msra.mxu0 %v2459
        %3305 = vmatmul.bf16.gmra.mxu0 %v3270
        %v3306 = vpop.f32.mrf.mxu0
        %v3307 = vadd.f32 0.0, %v3306
        %v3308 = vpop.f32.mrf.mxu0
        %3309 = vdwg.mxu0
        %3310 = vmatpush.bf16.msra.mxu0 %v2488
        %3311 = vmatpush.bf16.msra.mxu0 %v2484
        %3312 = vmatpush.bf16.msra.mxu0 %v2480
        %3313 = vmatpush.bf16.msra.mxu0 %v2476
        %3314 = vmatpush.bf16.msra.mxu0 %v2472
        %3315 = vmatpush.bf16.msra.mxu0 %v2468
        %3316 = vmatpush.bf16.msra.mxu0 %v2464
        %3317 = vmatpush.bf16.msra.mxu0 %v2460
        %3318 = vmatmul.bf16.gmra.mxu0 %v3270
        %v3319 = vpop.f32.mrf.mxu0
        %v3320 = vadd.f32 0.0, %v3319
        %v3321 = vpop.f32.mrf.mxu0
        %3322 = vdwg.mxu0
        %v3323 = vadd.f32 %v3266, %v3281
        %v3324 = vadd.f32 %v3267, %v3294
        %v3325 = vadd.f32 %v3268, %v3307
        %v3326 = vadd.f32 %v3269, %v3320
        %v3327 = vxor.u32 %v3323, 2147483648
        %v3328 = vxor.u32 %v3324, 2147483648
        %v3329 = vxor.u32 %v3325, 2147483648
        %v3330 = vmul.f32 %v3327, 1.442695
        %v3331 = vpow.pop %v3330
        %v3332 = vmul.f32 %v3328, 1.442695
        %v3333 = vpow.pop %v3332
        %v3334 = vmul.f32 %v3329, 1.442695
        %v3335 = vpow.pop %v3334
        %v3336 = vadd.f32 %v3331, 1.0
        %v3337 = vadd.f32 %v3333, 1.0
        %v3338 = vadd.f32 %v3335, 1.0
        %v3339 = vrcp.pop %v3336
        %v3340 = vmul.f32 %v3336, %v3339
        %v3341 = vsub.f32 1.0, %v3340
        %v3342 = vmul.f32 %v3339, %v3341
        %v3343 = vadd.f32 %v3339, %v3342
        %vm3344 = vweird.f32 %v3336
        %vm3345 = vweird.f32 %v3339
        %vm3346 = vmor %vm3344, %vm3345
        %v3347 = vsel %vm3346, %v3339, %v3343
        %v3348 = vand.u32 2147483647, %v3336
        %vm3349 = vcmp.eq.f32.partialorder %v3348, 8.507059e+37
        %v3350 = vand.u32 %v3336, 2147483648
        %v3351 = vor.u32 1.1754944e-38, %v3350
        %v3352 = vsel %vm3349, %v3351, %v3347
        %v3353 = vmul.f32 1.0, %v3352
        %v3354 = vrcp.pop %v3337
        %v3355 = vmul.f32 %v3337, %v3354
        %v3356 = vsub.f32 1.0, %v3355
        %v3357 = vmul.f32 %v3354, %v3356
        %v3358 = vadd.f32 %v3354, %v3357
        %vm3359 = vweird.f32 %v3337
        %vm3360 = vweird.f32 %v3354
        %vm3361 = vmor %vm3359, %vm3360
        %v3362 = vsel %vm3361, %v3354, %v3358
        %v3363 = vand.u32 2147483647, %v3337
        %vm3364 = vcmp.eq.f32.partialorder %v3363, 8.507059e+37
        %v3365 = vand.u32 %v3337, 2147483648
        %v3366 = vor.u32 1.1754944e-38, %v3365
        %v3367 = vsel %vm3364, %v3366, %v3362
        %v3368 = vmul.f32 1.0, %v3367
        %v3369 = vrcp.pop %v3338
        %v3370 = vmul.f32 %v3338, %v3369
        %v3371 = vsub.f32 1.0, %v3370
        %v3372 = vmul.f32 %v3369, %v3371
        %v3373 = vadd.f32 %v3369, %v3372
        %vm3374 = vweird.f32 %v3338
        %vm3375 = vweird.f32 %v3369
        %vm3376 = vmor %vm3374, %vm3375
        %v3377 = vsel %vm3376, %v3369, %v3373
        %v3378 = vand.u32 2147483647, %v3338
        %vm3379 = vcmp.eq.f32.partialorder %v3378, 8.507059e+37
        %v3380 = vand.u32 %v3338, 2147483648
        %v3381 = vor.u32 1.1754944e-38, %v3380
        %v3382 = vsel %vm3379, %v3381, %v3377
        %v3383 = vmul.f32 1.0, %v3382
        %v3384 = vtanh.pop %v3326
        %v3385 = vmul.f32 %v3368, %v3262
        %v3386 = vmul.f32 %v3353, %v3384
        %v3387 = vadd.f32 %v3385, %v3386
        %v3388 = vtanh.pop %v3387
        %v3389 = vmul.f32 %v3383, %v3388
        %3390 = vst [vmem:[%s1825] sm:$0xff] %v3389
        %v3391 = vld [vmem:[#allocation5 + $0xe0] sm:$0xff]
        %v3392 = vld [vmem:[#allocation5 + $0xe8] sm:$0xff]
        %v3393 = vld [vmem:[#allocation5 + $0xf0] sm:$0xff]
        %v3394 = vld [vmem:[#allocation5 + $0xf8] sm:$0xff]
        %v3395 = vpack.c.bf16 %v3389, %v3389
        %3396 = vmatpush.bf16.msra.mxu0 %v2485
        %3397 = vmatpush.bf16.msra.mxu0 %v2481
        %3398 = vmatpush.bf16.msra.mxu0 %v2477
        %3399 = vmatpush.bf16.msra.mxu0 %v2473
        %3400 = vmatpush.bf16.msra.mxu0 %v2469
        %3401 = vmatpush.bf16.msra.mxu0 %v2465
        %3402 = vmatpush.bf16.msra.mxu0 %v2461
        %3403 = vmatpush.bf16.msra.mxu0 %v2457
        %3404 = vmatmul.bf16.gmra.mxu0 %v3395
        %v3405 = vpop.f32.mrf.mxu0
        %v3406 = vadd.f32 0.0, %v3405
        %v3407 = vpop.f32.mrf.mxu0
        %3408 = vdwg.mxu0
        %3409 = vmatpush.bf16.msra.mxu0 %v2486
        %3410 = vmatpush.bf16.msra.mxu0 %v2482
        %3411 = vmatpush.bf16.msra.mxu0 %v2478
        %3412 = vmatpush.bf16.msra.mxu0 %v2474
        %3413 = vmatpush.bf16.msra.mxu0 %v2470
        %3414 = vmatpush.bf16.msra.mxu0 %v2466
        %3415 = vmatpush.bf16.msra.mxu0 %v2462
        %3416 = vmatpush.bf16.msra.mxu0 %v2458
        %3417 = vmatmul.bf16.gmra.mxu0 %v3395
        %v3418 = vpop.f32.mrf.mxu0
        %v3419 = vadd.f32 0.0, %v3418
        %v3420 = vpop.f32.mrf.mxu0
        %3421 = vdwg.mxu0
        %3422 = vmatpush.bf16.msra.mxu0 %v2487
        %3423 = vmatpush.bf16.msra.mxu0 %v2483
        %3424 = vmatpush.bf16.msra.mxu0 %v2479
        %3425 = vmatpush.bf16.msra.mxu0 %v2475
        %3426 = vmatpush.bf16.msra.mxu0 %v2471
        %3427 = vmatpush.bf16.msra.mxu0 %v2467
        %3428 = vmatpush.bf16.msra.mxu0 %v2463
        %3429 = vmatpush.bf16.msra.mxu0 %v2459
        %3430 = vmatmul.bf16.gmra.mxu0 %v3395
        %v3431 = vpop.f32.mrf.mxu0
        %v3432 = vadd.f32 0.0, %v3431
        %v3433 = vpop.f32.mrf.mxu0
        %3434 = vdwg.mxu0
        %3435 = vmatpush.bf16.msra.mxu0 %v2488
        %3436 = vmatpush.bf16.msra.mxu0 %v2484
        %3437 = vmatpush.bf16.msra.mxu0 %v2480
        %3438 = vmatpush.bf16.msra.mxu0 %v2476
        %3439 = vmatpush.bf16.msra.mxu0 %v2472
        %3440 = vmatpush.bf16.msra.mxu0 %v2468
        %3441 = vmatpush.bf16.msra.mxu0 %v2464
        %3442 = vmatpush.bf16.msra.mxu0 %v2460
        %3443 = vmatmul.bf16.gmra.mxu0 %v3395
        %v3444 = vpop.f32.mrf.mxu0
        %v3445 = vadd.f32 0.0, %v3444
        %v3446 = vpop.f32.mrf.mxu0
        %3447 = vdwg.mxu0
        %v3448 = vadd.f32 %v3391, %v3406
        %v3449 = vadd.f32 %v3392, %v3419
        %v3450 = vadd.f32 %v3393, %v3432
        %v3451 = vadd.f32 %v3394, %v3445
        %v3452 = vxor.u32 %v3448, 2147483648
        %v3453 = vxor.u32 %v3449, 2147483648
        %v3454 = vxor.u32 %v3450, 2147483648
        %v3455 = vmul.f32 %v3452, 1.442695
        %v3456 = vpow.pop %v3455
        %v3457 = vmul.f32 %v3453, 1.442695
        %v3458 = vpow.pop %v3457
        %v3459 = vmul.f32 %v3454, 1.442695
        %v3460 = vpow.pop %v3459
        %v3461 = vadd.f32 %v3456, 1.0
        %v3462 = vadd.f32 %v3458, 1.0
        %v3463 = vadd.f32 %v3460, 1.0
        %v3464 = vrcp.pop %v3461
        %v3465 = vmul.f32 %v3461, %v3464
        %v3466 = vsub.f32 1.0, %v3465
        %v3467 = vmul.f32 %v3464, %v3466
        %v3468 = vadd.f32 %v3464, %v3467
        %vm3469 = vweird.f32 %v3461
        %vm3470 = vweird.f32 %v3464
        %vm3471 = vmor %vm3469, %vm3470
        %v3472 = vsel %vm3471, %v3464, %v3468
        %v3473 = vand.u32 2147483647, %v3461
        %vm3474 = vcmp.eq.f32.partialorder %v3473, 8.507059e+37
        %v3475 = vand.u32 %v3461, 2147483648
        %v3476 = vor.u32 1.1754944e-38, %v3475
        %v3477 = vsel %vm3474, %v3476, %v3472
        %v3478 = vmul.f32 1.0, %v3477
        %v3479 = vrcp.pop %v3462
        %v3480 = vmul.f32 %v3462, %v3479
        %v3481 = vsub.f32 1.0, %v3480
        %v3482 = vmul.f32 %v3479, %v3481
        %v3483 = vadd.f32 %v3479, %v3482
        %vm3484 = vweird.f32 %v3462
        %vm3485 = vweird.f32 %v3479
        %vm3486 = vmor %vm3484, %vm3485
        %v3487 = vsel %vm3486, %v3479, %v3483
        %v3488 = vand.u32 2147483647, %v3462
        %vm3489 = vcmp.eq.f32.partialorder %v3488, 8.507059e+37
        %v3490 = vand.u32 %v3462, 2147483648
        %v3491 = vor.u32 1.1754944e-38, %v3490
        %v3492 = vsel %vm3489, %v3491, %v3487
        %v3493 = vmul.f32 1.0, %v3492
        %v3494 = vrcp.pop %v3463
        %v3495 = vmul.f32 %v3463, %v3494
        %v3496 = vsub.f32 1.0, %v3495
        %v3497 = vmul.f32 %v3494, %v3496
        %v3498 = vadd.f32 %v3494, %v3497
        %vm3499 = vweird.f32 %v3463
        %vm3500 = vweird.f32 %v3494
        %vm3501 = vmor %vm3499, %vm3500
        %v3502 = vsel %vm3501, %v3494, %v3498
        %v3503 = vand.u32 2147483647, %v3463
        %vm3504 = vcmp.eq.f32.partialorder %v3503, 8.507059e+37
        %v3505 = vand.u32 %v3463, 2147483648
        %v3506 = vor.u32 1.1754944e-38, %v3505
        %v3507 = vsel %vm3504, %v3506, %v3502
        %v3508 = vmul.f32 1.0, %v3507
        %v3509 = vtanh.pop %v3451
        %v3510 = vmul.f32 %v3493, %v3387
        %v3511 = vmul.f32 %v3478, %v3509
        %v3512 = vadd.f32 %v3510, %v3511
        %v3513 = vtanh.pop %v3512
        %v3514 = vmul.f32 %v3508, %v3513
        %3515 = vst [vmem:[%s1951] sm:$0xff] %v3514
        %3516 = vst [vmem:[%s2352] sm:$0xff] %v3514
        %3517 = vst [vmem:[%s2354] sm:$0xff] %v3512
        %v3518 = vld [vmem:[#allocation4] sm:$0xff]
        %v3519 = vld [vmem:[#allocation4 + $0x8] sm:$0xff]
        %v3520 = vld [vmem:[#allocation4 + $0x10] sm:$0xff]
        %v3521 = vld [vmem:[#allocation4 + $0x18] sm:$0xff]
        %v3522 = vld [vmem:[#allocation4 + $0x20] sm:$0xff]
        %v3523 = vld [vmem:[#allocation4 + $0x28] sm:$0xff]
        %v3524 = vld [vmem:[#allocation4 + $0x30] sm:$0xff]
        %v3525 = vld [vmem:[#allocation4 + $0x38] sm:$0xff]
        %v3526 = vpack.c.bf16 %v3519, %v3518
        %v3527 = vpack.c.bf16 %v3521, %v3520
        %v3528 = vpack.c.bf16 %v3523, %v3522
        %v3529 = vpack.c.bf16 %v3525, %v3524
        %s3530 = scalar_lea.vmem [#allocation9], 512
        %v3531 = vld [vmem:[%s3530] sm:$0xff]
        %v3532 = vld [vmem:[%s3530 + $0x8] sm:$0xff]
        %v3533 = vld [vmem:[%s3530 + $0x10] sm:$0xff]
        %v3534 = vld [vmem:[%s3530 + $0x18] sm:$0xff]
        %v3535 = vld [vmem:[%s3530 + $0x20] sm:$0xff]
        %v3536 = vld [vmem:[%s3530 + $0x28] sm:$0xff]
        %v3537 = vld [vmem:[%s3530 + $0x30] sm:$0xff]
        %v3538 = vld [vmem:[%s3530 + $0x38] sm:$0xff]
        %v3539 = vld [vmem:[%s3530 + $0x40] sm:$0xff]
        %v3540 = vld [vmem:[%s3530 + $0x48] sm:$0xff]
        %v3541 = vld [vmem:[%s3530 + $0x50] sm:$0xff]
        %v3542 = vld [vmem:[%s3530 + $0x58] sm:$0xff]
        %v3543 = vld [vmem:[%s3530 + $0x60] sm:$0xff]
        %v3544 = vld [vmem:[%s3530 + $0x68] sm:$0xff]
        %v3545 = vld [vmem:[%s3530 + $0x70] sm:$0xff]
        %v3546 = vld [vmem:[%s3530 + $0x78] sm:$0xff]
        %v3547 = vld [vmem:[%s3530 + $0x80] sm:$0xff]
        %v3548 = vld [vmem:[%s3530 + $0x88] sm:$0xff]
        %v3549 = vld [vmem:[%s3530 + $0x90] sm:$0xff]
        %v3550 = vld [vmem:[%s3530 + $0x98] sm:$0xff]
        %v3551 = vld [vmem:[%s3530 + $0xa0] sm:$0xff]
        %v3552 = vld [vmem:[%s3530 + $0xa8] sm:$0xff]
        %v3553 = vld [vmem:[%s3530 + $0xb0] sm:$0xff]
        %v3554 = vld [vmem:[%s3530 + $0xb8] sm:$0xff]
        %v3555 = vld [vmem:[%s3530 + $0xc0] sm:$0xff]
        %v3556 = vld [vmem:[%s3530 + $0xc8] sm:$0xff]
        %v3557 = vld [vmem:[%s3530 + $0xd0] sm:$0xff]
        %v3558 = vld [vmem:[%s3530 + $0xd8] sm:$0xff]
        %v3559 = vld [vmem:[%s3530 + $0xe0] sm:$0xff]
        %v3560 = vld [vmem:[%s3530 + $0xe8] sm:$0xff]
        %v3561 = vld [vmem:[%s3530 + $0xf0] sm:$0xff]
        %v3562 = vld [vmem:[%s3530 + $0xf8] sm:$0xff]
        %s3563 = scalar_lea.vmem [#allocation12], 8
        %v3564 = vld [vmem:[%s3563] sm:$0xf]
        %v3566 = vperm.slane %v3564, 0
        %v3567 = vperm.slane %v3564, 1
        %v3568 = vperm.slane %v3564, 2
        %v3569 = vperm.slane %v3564, 3
        %v3606 = vunpack.c.l.b16 %v3531
        %v3607 = vunpack.c.h.b16 %v3531
        %v3608 = vunpack.c.l.b16 %v3532
        %v3609 = vunpack.c.h.b16 %v3532
        %v3610 = vunpack.c.l.b16 %v3533
        %v3611 = vunpack.c.h.b16 %v3533
        %v3612 = vunpack.c.l.b16 %v3534
        %v3613 = vunpack.c.h.b16 %v3534
        %v3614 = vunpack.c.l.b16 %v3535
        %v3615 = vunpack.c.h.b16 %v3535
        %v3616 = vunpack.c.l.b16 %v3536
        %v3617 = vunpack.c.h.b16 %v3536
        %v3618 = vunpack.c.l.b16 %v3537
        %v3619 = vunpack.c.h.b16 %v3537
        %v3620 = vunpack.c.l.b16 %v3538
        %v3621 = vunpack.c.h.b16 %v3538
        %v3622 = vunpack.c.l.b16 %v3539
        %v3623 = vunpack.c.h.b16 %v3539
        %v3624 = vunpack.c.l.b16 %v3540
        %v3625 = vunpack.c.h.b16 %v3540
        %v3626 = vunpack.c.l.b16 %v3541
        %v3627 = vunpack.c.h.b16 %v3541
        %v3628 = vunpack.c.l.b16 %v3542
        %v3629 = vunpack.c.h.b16 %v3542
        %v3630 = vunpack.c.l.b16 %v3543
        %v3631 = vunpack.c.h.b16 %v3543
        %v3632 = vunpack.c.l.b16 %v3544
        %v3633 = vunpack.c.h.b16 %v3544
        %v3634 = vunpack.c.l.b16 %v3545
        %v3635 = vunpack.c.h.b16 %v3545
        %v3636 = vunpack.c.l.b16 %v3546
        %v3637 = vunpack.c.h.b16 %v3546
        %v3638 = vunpack.c.l.b16 %v3547
        %v3639 = vunpack.c.h.b16 %v3547
        %v3640 = vunpack.c.l.b16 %v3548
        %v3641 = vunpack.c.h.b16 %v3548
        %v3642 = vunpack.c.l.b16 %v3549
        %v3643 = vunpack.c.h.b16 %v3549
        %v3644 = vunpack.c.l.b16 %v3550
        %v3645 = vunpack.c.h.b16 %v3550
        %v3646 = vunpack.c.l.b16 %v3551
        %v3647 = vunpack.c.h.b16 %v3551
        %v3648 = vunpack.c.l.b16 %v3552
        %v3649 = vunpack.c.h.b16 %v3552
        %v3650 = vunpack.c.l.b16 %v3553
        %v3651 = vunpack.c.h.b16 %v3553
        %v3652 = vunpack.c.l.b16 %v3554
        %v3653 = vunpack.c.h.b16 %v3554
        %v3654 = vunpack.c.l.b16 %v3555
        %v3655 = vunpack.c.h.b16 %v3555
        %v3656 = vunpack.c.l.b16 %v3556
        %v3657 = vunpack.c.h.b16 %v3556
        %v3658 = vunpack.c.l.b16 %v3557
        %v3659 = vunpack.c.h.b16 %v3557
        %v3660 = vunpack.c.l.b16 %v3558
        %v3661 = vunpack.c.h.b16 %v3558
        %v3662 = vunpack.c.l.b16 %v3559
        %v3663 = vunpack.c.h.b16 %v3559
        %v3664 = vunpack.c.l.b16 %v3560
        %v3665 = vunpack.c.h.b16 %v3560
        %v3666 = vunpack.c.l.b16 %v3561
        %v3667 = vunpack.c.h.b16 %v3561
        %v3668 = vunpack.c.l.b16 %v3562
        %v3669 = vunpack.c.h.b16 %v3562
        %v3670 = vpack.c.b16 %v3610, %v3606
        %v3671 = vpack.c.b16 %v3611, %v3607
        %v3672 = vpack.c.b16 %v3612, %v3608
        %v3673 = vpack.c.b16 %v3613, %v3609
        %v3674 = vpack.c.b16 %v3618, %v3614
        %v3675 = vpack.c.b16 %v3619, %v3615
        %v3676 = vpack.c.b16 %v3620, %v3616
        %v3677 = vpack.c.b16 %v3621, %v3617
        %v3678 = vpack.c.b16 %v3626, %v3622
        %v3679 = vpack.c.b16 %v3627, %v3623
        %v3680 = vpack.c.b16 %v3628, %v3624
        %v3681 = vpack.c.b16 %v3629, %v3625
        %v3682 = vpack.c.b16 %v3634, %v3630
        %v3683 = vpack.c.b16 %v3635, %v3631
        %v3684 = vpack.c.b16 %v3636, %v3632
        %v3685 = vpack.c.b16 %v3637, %v3633
        %v3686 = vpack.c.b16 %v3642, %v3638
        %v3687 = vpack.c.b16 %v3643, %v3639
        %v3688 = vpack.c.b16 %v3644, %v3640
        %v3689 = vpack.c.b16 %v3645, %v3641
        %v3690 = vpack.c.b16 %v3650, %v3646
        %v3691 = vpack.c.b16 %v3651, %v3647
        %v3692 = vpack.c.b16 %v3652, %v3648
        %v3693 = vpack.c.b16 %v3653, %v3649
        %v3694 = vpack.c.b16 %v3658, %v3654
        %v3695 = vpack.c.b16 %v3659, %v3655
        %v3696 = vpack.c.b16 %v3660, %v3656
        %v3697 = vpack.c.b16 %v3661, %v3657
        %v3698 = vpack.c.b16 %v3666, %v3662
        %v3699 = vpack.c.b16 %v3667, %v3663
        %v3700 = vpack.c.b16 %v3668, %v3664
        %v3701 = vpack.c.b16 %v3669, %v3665
        %3734 = vmatpush.bf16.msra.mxu0 %v3698
        %3735 = vmatpush.bf16.msra.mxu0 %v3694
        %3736 = vmatpush.bf16.msra.mxu0 %v3690
        %3737 = vmatpush.bf16.msra.mxu0 %v3686
        %3738 = vmatpush.bf16.msra.mxu0 %v3682
        %3739 = vmatpush.bf16.msra.mxu0 %v3678
        %3740 = vmatpush.bf16.msra.mxu0 %v3674
        %3741 = vmatpush.bf16.msra.mxu0 %v3670
        %3742 = vmatmul.bf16.gmra.mxu0 %v3526
        %v3743 = vpop.f32.mrf.mxu0
        %v3744 = vadd.f32 %v3566, %v3743
        %v3745 = vpop.f32.mrf.mxu0
        %v3746 = vadd.f32 %v3566, %v3745
        %3747 = vmatmul.bf16.gmra.mxu0 %v3527
        %v3748 = vpop.f32.mrf.mxu0
        %v3749 = vadd.f32 %v3566, %v3748
        %v3750 = vpop.f32.mrf.mxu0
        %v3751 = vadd.f32 %v3566, %v3750
        %3752 = vmatmul.bf16.gmra.mxu0 %v3528
        %v3753 = vpop.f32.mrf.mxu0
        %v3754 = vadd.f32 %v3566, %v3753
        %v3755 = vpop.f32.mrf.mxu0
        %v3756 = vadd.f32 %v3566, %v3755
        %3757 = vmatmul.bf16.gmra.mxu0 %v3529
        %v3758 = vpop.f32.mrf.mxu0
        %v3759 = vadd.f32 %v3566, %v3758
        %v3760 = vpop.f32.mrf.mxu0
        %v3761 = vadd.f32 %v3566, %v3760
        %3762 = vdwg.mxu0
        %3763 = vmatpush.bf16.msra.mxu0 %v3699
        %3764 = vmatpush.bf16.msra.mxu0 %v3695
        %3765 = vmatpush.bf16.msra.mxu0 %v3691
        %3766 = vmatpush.bf16.msra.mxu0 %v3687
        %3767 = vmatpush.bf16.msra.mxu0 %v3683
        %3768 = vmatpush.bf16.msra.mxu0 %v3679
        %3769 = vmatpush.bf16.msra.mxu0 %v3675
        %3770 = vmatpush.bf16.msra.mxu0 %v3671
        %3771 = vmatmul.bf16.gmra.mxu0 %v3526
        %v3772 = vpop.f32.mrf.mxu0
        %v3773 = vadd.f32 %v3567, %v3772
        %v3774 = vpop.f32.mrf.mxu0
        %v3775 = vadd.f32 %v3567, %v3774
        %3776 = vmatmul.bf16.gmra.mxu0 %v3527
        %v3777 = vpop.f32.mrf.mxu0
        %v3778 = vadd.f32 %v3567, %v3777
        %v3779 = vpop.f32.mrf.mxu0
        %v3780 = vadd.f32 %v3567, %v3779
        %3781 = vmatmul.bf16.gmra.mxu0 %v3528
        %v3782 = vpop.f32.mrf.mxu0
        %v3783 = vadd.f32 %v3567, %v3782
        %v3784 = vpop.f32.mrf.mxu0
        %v3785 = vadd.f32 %v3567, %v3784
        %3786 = vmatmul.bf16.gmra.mxu0 %v3529
        %v3787 = vpop.f32.mrf.mxu0
        %v3788 = vadd.f32 %v3567, %v3787
        %v3789 = vpop.f32.mrf.mxu0
        %v3790 = vadd.f32 %v3567, %v3789
        %3791 = vdwg.mxu0
        %3792 = vmatpush.bf16.msra.mxu0 %v3700
        %3793 = vmatpush.bf16.msra.mxu0 %v3696
        %3794 = vmatpush.bf16.msra.mxu0 %v3692
        %3795 = vmatpush.bf16.msra.mxu0 %v3688
        %3796 = vmatpush.bf16.msra.mxu0 %v3684
        %3797 = vmatpush.bf16.msra.mxu0 %v3680
        %3798 = vmatpush.bf16.msra.mxu0 %v3676
        %3799 = vmatpush.bf16.msra.mxu0 %v3672
        %3800 = vmatmul.bf16.gmra.mxu0 %v3526
        %v3801 = vpop.f32.mrf.mxu0
        %v3802 = vadd.f32 %v3568, %v3801
        %v3803 = vpop.f32.mrf.mxu0
        %v3804 = vadd.f32 %v3568, %v3803
        %3805 = vmatmul.bf16.gmra.mxu0 %v3527
        %v3806 = vpop.f32.mrf.mxu0
        %v3807 = vadd.f32 %v3568, %v3806
        %v3808 = vpop.f32.mrf.mxu0
        %v3809 = vadd.f32 %v3568, %v3808
        %3810 = vmatmul.bf16.gmra.mxu0 %v3528
        %v3811 = vpop.f32.mrf.mxu0
        %v3812 = vadd.f32 %v3568, %v3811
        %v3813 = vpop.f32.mrf.mxu0
        %v3814 = vadd.f32 %v3568, %v3813
        %3815 = vmatmul.bf16.gmra.mxu0 %v3529
        %v3816 = vpop.f32.mrf.mxu0
        %v3817 = vadd.f32 %v3568, %v3816
        %v3818 = vpop.f32.mrf.mxu0
        %v3819 = vadd.f32 %v3568, %v3818
        %3820 = vdwg.mxu0
        %3821 = vmatpush.bf16.msra.mxu0 %v3701
        %3822 = vmatpush.bf16.msra.mxu0 %v3697
        %3823 = vmatpush.bf16.msra.mxu0 %v3693
        %3824 = vmatpush.bf16.msra.mxu0 %v3689
        %3825 = vmatpush.bf16.msra.mxu0 %v3685
        %3826 = vmatpush.bf16.msra.mxu0 %v3681
        %3827 = vmatpush.bf16.msra.mxu0 %v3677
        %3828 = vmatpush.bf16.msra.mxu0 %v3673
        %3829 = vmatmul.bf16.gmra.mxu0 %v3526
        %v3830 = vpop.f32.mrf.mxu0
        %v3831 = vadd.f32 %v3569, %v3830
        %v3832 = vpop.f32.mrf.mxu0
        %v3833 = vadd.f32 %v3569, %v3832
        %3834 = vmatmul.bf16.gmra.mxu0 %v3527
        %v3835 = vpop.f32.mrf.mxu0
        %v3836 = vadd.f32 %v3569, %v3835
        %v3837 = vpop.f32.mrf.mxu0
        %v3838 = vadd.f32 %v3569, %v3837
        %3839 = vmatmul.bf16.gmra.mxu0 %v3528
        %v3840 = vpop.f32.mrf.mxu0
        %v3841 = vadd.f32 %v3569, %v3840
        %v3842 = vpop.f32.mrf.mxu0
        %v3843 = vadd.f32 %v3569, %v3842
        %3844 = vmatmul.bf16.gmra.mxu0 %v3529
        %v3845 = vpop.f32.mrf.mxu0
        %v3846 = vadd.f32 %v3569, %v3845
        %v3847 = vpop.f32.mrf.mxu0
        %v3848 = vadd.f32 %v3569, %v3847
        %3849 = vdwg.mxu0
        %3850 = vst [vmem:[#allocation5] sm:$0xff] %v3744
        %3851 = vst [vmem:[#allocation5 + $0x8] sm:$0xff] %v3773
        %3852 = vst [vmem:[#allocation5 + $0x10] sm:$0xff] %v3802
        %3853 = vst [vmem:[#allocation5 + $0x18] sm:$0xff] %v3831
        %3854 = vst [vmem:[#allocation5 + $0x20] sm:$0xff] %v3746
        %3855 = vst [vmem:[#allocation5 + $0x28] sm:$0xff] %v3775
        %3856 = vst [vmem:[#allocation5 + $0x30] sm:$0xff] %v3804
        %3857 = vst [vmem:[#allocation5 + $0x38] sm:$0xff] %v3833
        %3858 = vst [vmem:[#allocation5 + $0x40] sm:$0xff] %v3749
        %3859 = vst [vmem:[#allocation5 + $0x48] sm:$0xff] %v3778
        %3860 = vst [vmem:[#allocation5 + $0x50] sm:$0xff] %v3807
        %3861 = vst [vmem:[#allocation5 + $0x58] sm:$0xff] %v3836
        %3862 = vst [vmem:[#allocation5 + $0x60] sm:$0xff] %v3751
        %3863 = vst [vmem:[#allocation5 + $0x68] sm:$0xff] %v3780
        %3864 = vst [vmem:[#allocation5 + $0x70] sm:$0xff] %v3809
        %3865 = vst [vmem:[#allocation5 + $0x78] sm:$0xff] %v3838
        %3866 = vst [vmem:[#allocation5 + $0x80] sm:$0xff] %v3754
        %3867 = vst [vmem:[#allocation5 + $0x88] sm:$0xff] %v3783
        %3868 = vst [vmem:[#allocation5 + $0x90] sm:$0xff] %v3812
        %3869 = vst [vmem:[#allocation5 + $0x98] sm:$0xff] %v3841
        %3870 = vst [vmem:[#allocation5 + $0xa0] sm:$0xff] %v3756
        %3871 = vst [vmem:[#allocation5 + $0xa8] sm:$0xff] %v3785
        %3872 = vst [vmem:[#allocation5 + $0xb0] sm:$0xff] %v3814
        %3873 = vst [vmem:[#allocation5 + $0xb8] sm:$0xff] %v3843
        %3874 = vst [vmem:[#allocation5 + $0xc0] sm:$0xff] %v3759
        %3875 = vst [vmem:[#allocation5 + $0xc8] sm:$0xff] %v3788
        %3876 = vst [vmem:[#allocation5 + $0xd0] sm:$0xff] %v3817
        %3877 = vst [vmem:[#allocation5 + $0xd8] sm:$0xff] %v3846
        %3878 = vst [vmem:[#allocation5 + $0xe0] sm:$0xff] %v3761
        %3879 = vst [vmem:[#allocation5 + $0xe8] sm:$0xff] %v3790
        %3880 = vst [vmem:[#allocation5 + $0xf0] sm:$0xff] %v3819
        %3881 = vst [vmem:[#allocation5 + $0xf8] sm:$0xff] %v3848
        %s3882 = scalar_lea.vmem [#allocation11], 512
        %v3883 = vld [vmem:[%s3882] sm:$0xff]
        %v3884 = vld [vmem:[%s3882 + $0x8] sm:$0xff]
        %v3885 = vld [vmem:[%s3882 + $0x10] sm:$0xff]
        %v3886 = vld [vmem:[%s3882 + $0x18] sm:$0xff]
        %v3887 = vld [vmem:[%s3882 + $0x20] sm:$0xff]
        %v3888 = vld [vmem:[%s3882 + $0x28] sm:$0xff]
        %v3889 = vld [vmem:[%s3882 + $0x30] sm:$0xff]
        %v3890 = vld [vmem:[%s3882 + $0x38] sm:$0xff]
        %v3891 = vld [vmem:[%s3882 + $0x40] sm:$0xff]
        %v3892 = vld [vmem:[%s3882 + $0x48] sm:$0xff]
        %v3893 = vld [vmem:[%s3882 + $0x50] sm:$0xff]
        %v3894 = vld [vmem:[%s3882 + $0x58] sm:$0xff]
        %v3895 = vld [vmem:[%s3882 + $0x60] sm:$0xff]
        %v3896 = vld [vmem:[%s3882 + $0x68] sm:$0xff]
        %v3897 = vld [vmem:[%s3882 + $0x70] sm:$0xff]
        %v3898 = vld [vmem:[%s3882 + $0x78] sm:$0xff]
        %v3899 = vld [vmem:[%s3882 + $0x80] sm:$0xff]
        %v3900 = vld [vmem:[%s3882 + $0x88] sm:$0xff]
        %v3901 = vld [vmem:[%s3882 + $0x90] sm:$0xff]
        %v3902 = vld [vmem:[%s3882 + $0x98] sm:$0xff]
        %v3903 = vld [vmem:[%s3882 + $0xa0] sm:$0xff]
        %v3904 = vld [vmem:[%s3882 + $0xa8] sm:$0xff]
        %v3905 = vld [vmem:[%s3882 + $0xb0] sm:$0xff]
        %v3906 = vld [vmem:[%s3882 + $0xb8] sm:$0xff]
        %v3907 = vld [vmem:[%s3882 + $0xc0] sm:$0xff]
        %v3908 = vld [vmem:[%s3882 + $0xc8] sm:$0xff]
        %v3909 = vld [vmem:[%s3882 + $0xd0] sm:$0xff]
        %v3910 = vld [vmem:[%s3882 + $0xd8] sm:$0xff]
        %v3911 = vld [vmem:[%s3882 + $0xe0] sm:$0xff]
        %v3912 = vld [vmem:[%s3882 + $0xe8] sm:$0xff]
        %v3913 = vld [vmem:[%s3882 + $0xf0] sm:$0xff]
        %v3914 = vld [vmem:[%s3882 + $0xf8] sm:$0xff]
        %s3915 = scalar_lea.vmem [#allocation2], 16
        %v3916 = vld [vmem:[%s3915] sm:$0xff]
        %s3917 = scalar_lea.vmem [#allocation3], 16
        %v3918 = vld [vmem:[%s3917] sm:$0xff]
        %v3919 = vld [vmem:[#allocation5] sm:$0xff]
        %v3920 = vld [vmem:[#allocation5 + $0x8] sm:$0xff]
        %v3921 = vld [vmem:[#allocation5 + $0x10] sm:$0xff]
        %v3922 = vld [vmem:[#allocation5 + $0x18] sm:$0xff]
        %v3923 = vpack.c.bf16 %v3916, %v3916
        %v3956 = vunpack.c.l.b16 %v3883
        %v3957 = vunpack.c.h.b16 %v3883
        %v3958 = vunpack.c.l.b16 %v3884
        %v3959 = vunpack.c.h.b16 %v3884
        %v3960 = vunpack.c.l.b16 %v3885
        %v3961 = vunpack.c.h.b16 %v3885
        %v3962 = vunpack.c.l.b16 %v3886
        %v3963 = vunpack.c.h.b16 %v3886
        %v3964 = vunpack.c.l.b16 %v3887
        %v3965 = vunpack.c.h.b16 %v3887
        %v3966 = vunpack.c.l.b16 %v3888
        %v3967 = vunpack.c.h.b16 %v3888
        %v3968 = vunpack.c.l.b16 %v3889
        %v3969 = vunpack.c.h.b16 %v3889
        %v3970 = vunpack.c.l.b16 %v3890
        %v3971 = vunpack.c.h.b16 %v3890
        %v3972 = vunpack.c.l.b16 %v3891
        %v3973 = vunpack.c.h.b16 %v3891
        %v3974 = vunpack.c.l.b16 %v3892
        %v3975 = vunpack.c.h.b16 %v3892
        %v3976 = vunpack.c.l.b16 %v3893
        %v3977 = vunpack.c.h.b16 %v3893
        %v3978 = vunpack.c.l.b16 %v3894
        %v3979 = vunpack.c.h.b16 %v3894
        %v3980 = vunpack.c.l.b16 %v3895
        %v3981 = vunpack.c.h.b16 %v3895
        %v3982 = vunpack.c.l.b16 %v3896
        %v3983 = vunpack.c.h.b16 %v3896
        %v3984 = vunpack.c.l.b16 %v3897
        %v3985 = vunpack.c.h.b16 %v3897
        %v3986 = vunpack.c.l.b16 %v3898
        %v3987 = vunpack.c.h.b16 %v3898
        %v3988 = vunpack.c.l.b16 %v3899
        %v3989 = vunpack.c.h.b16 %v3899
        %v3990 = vunpack.c.l.b16 %v3900
        %v3991 = vunpack.c.h.b16 %v3900
        %v3992 = vunpack.c.l.b16 %v3901
        %v3993 = vunpack.c.h.b16 %v3901
        %v3994 = vunpack.c.l.b16 %v3902
        %v3995 = vunpack.c.h.b16 %v3902
        %v3996 = vunpack.c.l.b16 %v3903
        %v3997 = vunpack.c.h.b16 %v3903
        %v3998 = vunpack.c.l.b16 %v3904
        %v3999 = vunpack.c.h.b16 %v3904
        %v4000 = vunpack.c.l.b16 %v3905
        %v4001 = vunpack.c.h.b16 %v3905
        %v4002 = vunpack.c.l.b16 %v3906
        %v4003 = vunpack.c.h.b16 %v3906
        %v4004 = vunpack.c.l.b16 %v3907
        %v4005 = vunpack.c.h.b16 %v3907
        %v4006 = vunpack.c.l.b16 %v3908
        %v4007 = vunpack.c.h.b16 %v3908
        %v4008 = vunpack.c.l.b16 %v3909
        %v4009 = vunpack.c.h.b16 %v3909
        %v4010 = vunpack.c.l.b16 %v3910
        %v4011 = vunpack.c.h.b16 %v3910
        %v4012 = vunpack.c.l.b16 %v3911
        %v4013 = vunpack.c.h.b16 %v3911
        %v4014 = vunpack.c.l.b16 %v3912
        %v4015 = vunpack.c.h.b16 %v3912
        %v4016 = vunpack.c.l.b16 %v3913
        %v4017 = vunpack.c.h.b16 %v3913
        %v4018 = vunpack.c.l.b16 %v3914
        %v4019 = vunpack.c.h.b16 %v3914
        %v4020 = vpack.c.b16 %v3960, %v3956
        %v4021 = vpack.c.b16 %v3961, %v3957
        %v4022 = vpack.c.b16 %v3962, %v3958
        %v4023 = vpack.c.b16 %v3963, %v3959
        %v4024 = vpack.c.b16 %v3968, %v3964
        %v4025 = vpack.c.b16 %v3969, %v3965
        %v4026 = vpack.c.b16 %v3970, %v3966
        %v4027 = vpack.c.b16 %v3971, %v3967
        %v4028 = vpack.c.b16 %v3976, %v3972
        %v4029 = vpack.c.b16 %v3977, %v3973
        %v4030 = vpack.c.b16 %v3978, %v3974
        %v4031 = vpack.c.b16 %v3979, %v3975
        %v4032 = vpack.c.b16 %v3984, %v3980
        %v4033 = vpack.c.b16 %v3985, %v3981
        %v4034 = vpack.c.b16 %v3986, %v3982
        %v4035 = vpack.c.b16 %v3987, %v3983
        %v4036 = vpack.c.b16 %v3992, %v3988
        %v4037 = vpack.c.b16 %v3993, %v3989
        %v4038 = vpack.c.b16 %v3994, %v3990
        %v4039 = vpack.c.b16 %v3995, %v3991
        %v4040 = vpack.c.b16 %v4000, %v3996
        %v4041 = vpack.c.b16 %v4001, %v3997
        %v4042 = vpack.c.b16 %v4002, %v3998
        %v4043 = vpack.c.b16 %v4003, %v3999
        %v4044 = vpack.c.b16 %v4008, %v4004
        %v4045 = vpack.c.b16 %v4009, %v4005
        %v4046 = vpack.c.b16 %v4010, %v4006
        %v4047 = vpack.c.b16 %v4011, %v4007
        %v4048 = vpack.c.b16 %v4016, %v4012
        %v4049 = vpack.c.b16 %v4017, %v4013
        %v4050 = vpack.c.b16 %v4018, %v4014
        %v4051 = vpack.c.b16 %v4019, %v4015
        %4084 = vmatpush.bf16.msra.mxu0 %v4048
        %4085 = vmatpush.bf16.msra.mxu0 %v4044
        %4086 = vmatpush.bf16.msra.mxu0 %v4040
        %4087 = vmatpush.bf16.msra.mxu0 %v4036
        %4088 = vmatpush.bf16.msra.mxu0 %v4032
        %4089 = vmatpush.bf16.msra.mxu0 %v4028
        %4090 = vmatpush.bf16.msra.mxu0 %v4024
        %4091 = vmatpush.bf16.msra.mxu0 %v4020
        %4092 = vmatmul.bf16.gmra.mxu0 %v3923
        %v4093 = vpop.f32.mrf.mxu0
        %v4094 = vadd.f32 0.0, %v4093
        %v4095 = vpop.f32.mrf.mxu0
        %4096 = vdwg.mxu0
        %4097 = vmatpush.bf16.msra.mxu0 %v4049
        %4098 = vmatpush.bf16.msra.mxu0 %v4045
        %4099 = vmatpush.bf16.msra.mxu0 %v4041
        %4100 = vmatpush.bf16.msra.mxu0 %v4037
        %4101 = vmatpush.bf16.msra.mxu0 %v4033
        %4102 = vmatpush.bf16.msra.mxu0 %v4029
        %4103 = vmatpush.bf16.msra.mxu0 %v4025
        %4104 = vmatpush.bf16.msra.mxu0 %v4021
        %4105 = vmatmul.bf16.gmra.mxu0 %v3923
        %v4106 = vpop.f32.mrf.mxu0
        %v4107 = vadd.f32 0.0, %v4106
        %v4108 = vpop.f32.mrf.mxu0
        %4109 = vdwg.mxu0
        %4110 = vmatpush.bf16.msra.mxu0 %v4050
        %4111 = vmatpush.bf16.msra.mxu0 %v4046
        %4112 = vmatpush.bf16.msra.mxu0 %v4042
        %4113 = vmatpush.bf16.msra.mxu0 %v4038
        %4114 = vmatpush.bf16.msra.mxu0 %v4034
        %4115 = vmatpush.bf16.msra.mxu0 %v4030
        %4116 = vmatpush.bf16.msra.mxu0 %v4026
        %4117 = vmatpush.bf16.msra.mxu0 %v4022
        %4118 = vmatmul.bf16.gmra.mxu0 %v3923
        %v4119 = vpop.f32.mrf.mxu0
        %v4120 = vadd.f32 0.0, %v4119
        %v4121 = vpop.f32.mrf.mxu0
        %4122 = vdwg.mxu0
        %4123 = vmatpush.bf16.msra.mxu0 %v4051
        %4124 = vmatpush.bf16.msra.mxu0 %v4047
        %4125 = vmatpush.bf16.msra.mxu0 %v4043
        %4126 = vmatpush.bf16.msra.mxu0 %v4039
        %4127 = vmatpush.bf16.msra.mxu0 %v4035
        %4128 = vmatpush.bf16.msra.mxu0 %v4031
        %4129 = vmatpush.bf16.msra.mxu0 %v4027
        %4130 = vmatpush.bf16.msra.mxu0 %v4023
        %4131 = vmatmul.bf16.gmra.mxu0 %v3923
        %v4132 = vpop.f32.mrf.mxu0
        %v4133 = vadd.f32 0.0, %v4132
        %v4134 = vpop.f32.mrf.mxu0
        %4135 = vdwg.mxu0
        %v4136 = vadd.f32 %v3919, %v4094
        %v4137 = vadd.f32 %v3920, %v4107
        %v4138 = vadd.f32 %v3921, %v4120
        %v4139 = vadd.f32 %v3922, %v4133
        %v4140 = vxor.u32 %v4136, 2147483648
        %v4141 = vxor.u32 %v4137, 2147483648
        %v4142 = vxor.u32 %v4138, 2147483648
        %v4143 = vmul.f32 %v4140, 1.442695
        %v4144 = vpow.pop %v4143
        %v4145 = vmul.f32 %v4141, 1.442695
        %v4146 = vpow.pop %v4145
        %v4147 = vmul.f32 %v4142, 1.442695
        %v4148 = vpow.pop %v4147
        %v4149 = vadd.f32 %v4144, 1.0
        %v4150 = vadd.f32 %v4146, 1.0
        %v4151 = vadd.f32 %v4148, 1.0
        %v4152 = vrcp.pop %v4149
        %v4153 = vmul.f32 %v4149, %v4152
        %v4154 = vsub.f32 1.0, %v4153
        %v4155 = vmul.f32 %v4152, %v4154
        %v4156 = vadd.f32 %v4152, %v4155
        %vm4157 = vweird.f32 %v4149
        %vm4158 = vweird.f32 %v4152
        %vm4159 = vmor %vm4157, %vm4158
        %v4160 = vsel %vm4159, %v4152, %v4156
        %v4161 = vand.u32 2147483647, %v4149
        %vm4162 = vcmp.eq.f32.partialorder %v4161, 8.507059e+37
        %v4163 = vand.u32 %v4149, 2147483648
        %v4164 = vor.u32 1.1754944e-38, %v4163
        %v4165 = vsel %vm4162, %v4164, %v4160
        %v4166 = vmul.f32 1.0, %v4165
        %v4167 = vrcp.pop %v4150
        %v4168 = vmul.f32 %v4150, %v4167
        %v4169 = vsub.f32 1.0, %v4168
        %v4170 = vmul.f32 %v4167, %v4169
        %v4171 = vadd.f32 %v4167, %v4170
        %vm4172 = vweird.f32 %v4150
        %vm4173 = vweird.f32 %v4167
        %vm4174 = vmor %vm4172, %vm4173
        %v4175 = vsel %vm4174, %v4167, %v4171
        %v4176 = vand.u32 2147483647, %v4150
        %vm4177 = vcmp.eq.f32.partialorder %v4176, 8.507059e+37
        %v4178 = vand.u32 %v4150, 2147483648
        %v4179 = vor.u32 1.1754944e-38, %v4178
        %v4180 = vsel %vm4177, %v4179, %v4175
        %v4181 = vmul.f32 1.0, %v4180
        %v4182 = vrcp.pop %v4151
        %v4183 = vmul.f32 %v4151, %v4182
        %v4184 = vsub.f32 1.0, %v4183
        %v4185 = vmul.f32 %v4182, %v4184
        %v4186 = vadd.f32 %v4182, %v4185
        %vm4187 = vweird.f32 %v4151
        %vm4188 = vweird.f32 %v4182
        %vm4189 = vmor %vm4187, %vm4188
        %v4190 = vsel %vm4189, %v4182, %v4186
        %v4191 = vand.u32 2147483647, %v4151
        %vm4192 = vcmp.eq.f32.partialorder %v4191, 8.507059e+37
        %v4193 = vand.u32 %v4151, 2147483648
        %v4194 = vor.u32 1.1754944e-38, %v4193
        %v4195 = vsel %vm4192, %v4194, %v4190
        %v4196 = vmul.f32 1.0, %v4195
        %v4197 = vtanh.pop %v4139
        %v4198 = vmul.f32 %v4181, %v3918
        %v4199 = vmul.f32 %v4166, %v4197
        %v4200 = vadd.f32 %v4198, %v4199
        %v4201 = vtanh.pop %v4200
        %v4202 = vmul.f32 %v4196, %v4201
        %4203 = vst [vmem:[#allocation4] sm:$0xff] %v4202
        %v4204 = vld [vmem:[#allocation5 + $0x20] sm:$0xff]
        %v4205 = vld [vmem:[#allocation5 + $0x28] sm:$0xff]
        %v4206 = vld [vmem:[#allocation5 + $0x30] sm:$0xff]
        %v4207 = vld [vmem:[#allocation5 + $0x38] sm:$0xff]
        %v4208 = vpack.c.bf16 %v4202, %v4202
        %4209 = vmatpush.bf16.msra.mxu0 %v4048
        %4210 = vmatpush.bf16.msra.mxu0 %v4044
        %4211 = vmatpush.bf16.msra.mxu0 %v4040
        %4212 = vmatpush.bf16.msra.mxu0 %v4036
        %4213 = vmatpush.bf16.msra.mxu0 %v4032
        %4214 = vmatpush.bf16.msra.mxu0 %v4028
        %4215 = vmatpush.bf16.msra.mxu0 %v4024
        %4216 = vmatpush.bf16.msra.mxu0 %v4020
        %4217 = vmatmul.bf16.gmra.mxu0 %v4208
        %v4218 = vpop.f32.mrf.mxu0
        %v4219 = vadd.f32 0.0, %v4218
        %v4220 = vpop.f32.mrf.mxu0
        %4221 = vdwg.mxu0
        %4222 = vmatpush.bf16.msra.mxu0 %v4049
        %4223 = vmatpush.bf16.msra.mxu0 %v4045
        %4224 = vmatpush.bf16.msra.mxu0 %v4041
        %4225 = vmatpush.bf16.msra.mxu0 %v4037
        %4226 = vmatpush.bf16.msra.mxu0 %v4033
        %4227 = vmatpush.bf16.msra.mxu0 %v4029
        %4228 = vmatpush.bf16.msra.mxu0 %v4025
        %4229 = vmatpush.bf16.msra.mxu0 %v4021
        %4230 = vmatmul.bf16.gmra.mxu0 %v4208
        %v4231 = vpop.f32.mrf.mxu0
        %v4232 = vadd.f32 0.0, %v4231
        %v4233 = vpop.f32.mrf.mxu0
        %4234 = vdwg.mxu0
        %4235 = vmatpush.bf16.msra.mxu0 %v4050
        %4236 = vmatpush.bf16.msra.mxu0 %v4046
        %4237 = vmatpush.bf16.msra.mxu0 %v4042
        %4238 = vmatpush.bf16.msra.mxu0 %v4038
        %4239 = vmatpush.bf16.msra.mxu0 %v4034
        %4240 = vmatpush.bf16.msra.mxu0 %v4030
        %4241 = vmatpush.bf16.msra.mxu0 %v4026
        %4242 = vmatpush.bf16.msra.mxu0 %v4022
        %4243 = vmatmul.bf16.gmra.mxu0 %v4208
        %v4244 = vpop.f32.mrf.mxu0
        %v4245 = vadd.f32 0.0, %v4244
        %v4246 = vpop.f32.mrf.mxu0
        %4247 = vdwg.mxu0
        %4248 = vmatpush.bf16.msra.mxu0 %v4051
        %4249 = vmatpush.bf16.msra.mxu0 %v4047
        %4250 = vmatpush.bf16.msra.mxu0 %v4043
        %4251 = vmatpush.bf16.msra.mxu0 %v4039
        %4252 = vmatpush.bf16.msra.mxu0 %v4035
        %4253 = vmatpush.bf16.msra.mxu0 %v4031
        %4254 = vmatpush.bf16.msra.mxu0 %v4027
        %4255 = vmatpush.bf16.msra.mxu0 %v4023
        %4256 = vmatmul.bf16.gmra.mxu0 %v4208
        %v4257 = vpop.f32.mrf.mxu0
        %v4258 = vadd.f32 0.0, %v4257
        %v4259 = vpop.f32.mrf.mxu0
        %4260 = vdwg.mxu0
        %v4261 = vadd.f32 %v4204, %v4219
        %v4262 = vadd.f32 %v4205, %v4232
        %v4263 = vadd.f32 %v4206, %v4245
        %v4264 = vadd.f32 %v4207, %v4258
        %v4265 = vxor.u32 %v4261, 2147483648
        %v4266 = vxor.u32 %v4262, 2147483648
        %v4267 = vxor.u32 %v4263, 2147483648
        %v4268 = vmul.f32 %v4265, 1.442695
        %v4269 = vpow.pop %v4268
        %v4270 = vmul.f32 %v4266, 1.442695
        %v4271 = vpow.pop %v4270
        %v4272 = vmul.f32 %v4267, 1.442695
        %v4273 = vpow.pop %v4272
        %v4274 = vadd.f32 %v4269, 1.0
        %v4275 = vadd.f32 %v4271, 1.0
        %v4276 = vadd.f32 %v4273, 1.0
        %v4277 = vrcp.pop %v4274
        %v4278 = vmul.f32 %v4274, %v4277
        %v4279 = vsub.f32 1.0, %v4278
        %v4280 = vmul.f32 %v4277, %v4279
        %v4281 = vadd.f32 %v4277, %v4280
        %vm4282 = vweird.f32 %v4274
        %vm4283 = vweird.f32 %v4277
        %vm4284 = vmor %vm4282, %vm4283
        %v4285 = vsel %vm4284, %v4277, %v4281
        %v4286 = vand.u32 2147483647, %v4274
        %vm4287 = vcmp.eq.f32.partialorder %v4286, 8.507059e+37
        %v4288 = vand.u32 %v4274, 2147483648
        %v4289 = vor.u32 1.1754944e-38, %v4288
        %v4290 = vsel %vm4287, %v4289, %v4285
        %v4291 = vmul.f32 1.0, %v4290
        %v4292 = vrcp.pop %v4275
        %v4293 = vmul.f32 %v4275, %v4292
        %v4294 = vsub.f32 1.0, %v4293
        %v4295 = vmul.f32 %v4292, %v4294
        %v4296 = vadd.f32 %v4292, %v4295
        %vm4297 = vweird.f32 %v4275
        %vm4298 = vweird.f32 %v4292
        %vm4299 = vmor %vm4297, %vm4298
        %v4300 = vsel %vm4299, %v4292, %v4296
        %v4301 = vand.u32 2147483647, %v4275
        %vm4302 = vcmp.eq.f32.partialorder %v4301, 8.507059e+37
        %v4303 = vand.u32 %v4275, 2147483648
        %v4304 = vor.u32 1.1754944e-38, %v4303
        %v4305 = vsel %vm4302, %v4304, %v4300
        %v4306 = vmul.f32 1.0, %v4305
        %v4307 = vrcp.pop %v4276
        %v4308 = vmul.f32 %v4276, %v4307
        %v4309 = vsub.f32 1.0, %v4308
        %v4310 = vmul.f32 %v4307, %v4309
        %v4311 = vadd.f32 %v4307, %v4310
        %vm4312 = vweird.f32 %v4276
        %vm4313 = vweird.f32 %v4307
        %vm4314 = vmor %vm4312, %vm4313
        %v4315 = vsel %vm4314, %v4307, %v4311
        %v4316 = vand.u32 2147483647, %v4276
        %vm4317 = vcmp.eq.f32.partialorder %v4316, 8.507059e+37
        %v4318 = vand.u32 %v4276, 2147483648
        %v4319 = vor.u32 1.1754944e-38, %v4318
        %v4320 = vsel %vm4317, %v4319, %v4315
        %v4321 = vmul.f32 1.0, %v4320
        %v4322 = vtanh.pop %v4264
        %v4323 = vmul.f32 %v4306, %v4200
        %v4324 = vmul.f32 %v4291, %v4322
        %v4325 = vadd.f32 %v4323, %v4324
        %v4326 = vtanh.pop %v4325
        %v4327 = vmul.f32 %v4321, %v4326
        %4328 = vst [vmem:[%s1195] sm:$0xff] %v4327
        %v4329 = vld [vmem:[#allocation5 + $0x40] sm:$0xff]
        %v4330 = vld [vmem:[#allocation5 + $0x48] sm:$0xff]
        %v4331 = vld [vmem:[#allocation5 + $0x50] sm:$0xff]
        %v4332 = vld [vmem:[#allocation5 + $0x58] sm:$0xff]
        %v4333 = vpack.c.bf16 %v4327, %v4327
        %4334 = vmatpush.bf16.msra.mxu0 %v4048
        %4335 = vmatpush.bf16.msra.mxu0 %v4044
        %4336 = vmatpush.bf16.msra.mxu0 %v4040
        %4337 = vmatpush.bf16.msra.mxu0 %v4036
        %4338 = vmatpush.bf16.msra.mxu0 %v4032
        %4339 = vmatpush.bf16.msra.mxu0 %v4028
        %4340 = vmatpush.bf16.msra.mxu0 %v4024
        %4341 = vmatpush.bf16.msra.mxu0 %v4020
        %4342 = vmatmul.bf16.gmra.mxu0 %v4333
        %v4343 = vpop.f32.mrf.mxu0
        %v4344 = vadd.f32 0.0, %v4343
        %v4345 = vpop.f32.mrf.mxu0
        %4346 = vdwg.mxu0
        %4347 = vmatpush.bf16.msra.mxu0 %v4049
        %4348 = vmatpush.bf16.msra.mxu0 %v4045
        %4349 = vmatpush.bf16.msra.mxu0 %v4041
        %4350 = vmatpush.bf16.msra.mxu0 %v4037
        %4351 = vmatpush.bf16.msra.mxu0 %v4033
        %4352 = vmatpush.bf16.msra.mxu0 %v4029
        %4353 = vmatpush.bf16.msra.mxu0 %v4025
        %4354 = vmatpush.bf16.msra.mxu0 %v4021
        %4355 = vmatmul.bf16.gmra.mxu0 %v4333
        %v4356 = vpop.f32.mrf.mxu0
        %v4357 = vadd.f32 0.0, %v4356
        %v4358 = vpop.f32.mrf.mxu0
        %4359 = vdwg.mxu0
        %4360 = vmatpush.bf16.msra.mxu0 %v4050
        %4361 = vmatpush.bf16.msra.mxu0 %v4046
        %4362 = vmatpush.bf16.msra.mxu0 %v4042
        %4363 = vmatpush.bf16.msra.mxu0 %v4038
        %4364 = vmatpush.bf16.msra.mxu0 %v4034
        %4365 = vmatpush.bf16.msra.mxu0 %v4030
        %4366 = vmatpush.bf16.msra.mxu0 %v4026
        %4367 = vmatpush.bf16.msra.mxu0 %v4022
        %4368 = vmatmul.bf16.gmra.mxu0 %v4333
        %v4369 = vpop.f32.mrf.mxu0
        %v4370 = vadd.f32 0.0, %v4369
        %v4371 = vpop.f32.mrf.mxu0
        %4372 = vdwg.mxu0
        %4373 = vmatpush.bf16.msra.mxu0 %v4051
        %4374 = vmatpush.bf16.msra.mxu0 %v4047
        %4375 = vmatpush.bf16.msra.mxu0 %v4043
        %4376 = vmatpush.bf16.msra.mxu0 %v4039
        %4377 = vmatpush.bf16.msra.mxu0 %v4035
        %4378 = vmatpush.bf16.msra.mxu0 %v4031
        %4379 = vmatpush.bf16.msra.mxu0 %v4027
        %4380 = vmatpush.bf16.msra.mxu0 %v4023
        %4381 = vmatmul.bf16.gmra.mxu0 %v4333
        %v4382 = vpop.f32.mrf.mxu0
        %v4383 = vadd.f32 0.0, %v4382
        %v4384 = vpop.f32.mrf.mxu0
        %4385 = vdwg.mxu0
        %v4386 = vadd.f32 %v4329, %v4344
        %v4387 = vadd.f32 %v4330, %v4357
        %v4388 = vadd.f32 %v4331, %v4370
        %v4389 = vadd.f32 %v4332, %v4383
        %v4390 = vxor.u32 %v4386, 2147483648
        %v4391 = vxor.u32 %v4387, 2147483648
        %v4392 = vxor.u32 %v4388, 2147483648
        %v4393 = vmul.f32 %v4390, 1.442695
        %v4394 = vpow.pop %v4393
        %v4395 = vmul.f32 %v4391, 1.442695
        %v4396 = vpow.pop %v4395
        %v4397 = vmul.f32 %v4392, 1.442695
        %v4398 = vpow.pop %v4397
        %v4399 = vadd.f32 %v4394, 1.0
        %v4400 = vadd.f32 %v4396, 1.0
        %v4401 = vadd.f32 %v4398, 1.0
        %v4402 = vrcp.pop %v4399
        %v4403 = vmul.f32 %v4399, %v4402
        %v4404 = vsub.f32 1.0, %v4403
        %v4405 = vmul.f32 %v4402, %v4404
        %v4406 = vadd.f32 %v4402, %v4405
        %vm4407 = vweird.f32 %v4399
        %vm4408 = vweird.f32 %v4402
        %vm4409 = vmor %vm4407, %vm4408
        %v4410 = vsel %vm4409, %v4402, %v4406
        %v4411 = vand.u32 2147483647, %v4399
        %vm4412 = vcmp.eq.f32.partialorder %v4411, 8.507059e+37
        %v4413 = vand.u32 %v4399, 2147483648
        %v4414 = vor.u32 1.1754944e-38, %v4413
        %v4415 = vsel %vm4412, %v4414, %v4410
        %v4416 = vmul.f32 1.0, %v4415
        %v4417 = vrcp.pop %v4400
        %v4418 = vmul.f32 %v4400, %v4417
        %v4419 = vsub.f32 1.0, %v4418
        %v4420 = vmul.f32 %v4417, %v4419
        %v4421 = vadd.f32 %v4417, %v4420
        %vm4422 = vweird.f32 %v4400
        %vm4423 = vweird.f32 %v4417
        %vm4424 = vmor %vm4422, %vm4423
        %v4425 = vsel %vm4424, %v4417, %v4421
        %v4426 = vand.u32 2147483647, %v4400
        %vm4427 = vcmp.eq.f32.partialorder %v4426, 8.507059e+37
        %v4428 = vand.u32 %v4400, 2147483648
        %v4429 = vor.u32 1.1754944e-38, %v4428
        %v4430 = vsel %vm4427, %v4429, %v4425
        %v4431 = vmul.f32 1.0, %v4430
        %v4432 = vrcp.pop %v4401
        %v4433 = vmul.f32 %v4401, %v4432
        %v4434 = vsub.f32 1.0, %v4433
        %v4435 = vmul.f32 %v4432, %v4434
        %v4436 = vadd.f32 %v4432, %v4435
        %vm4437 = vweird.f32 %v4401
        %vm4438 = vweird.f32 %v4432
        %vm4439 = vmor %vm4437, %vm4438
        %v4440 = vsel %vm4439, %v4432, %v4436
        %v4441 = vand.u32 2147483647, %v4401
        %vm4442 = vcmp.eq.f32.partialorder %v4441, 8.507059e+37
        %v4443 = vand.u32 %v4401, 2147483648
        %v4444 = vor.u32 1.1754944e-38, %v4443
        %v4445 = vsel %vm4442, %v4444, %v4440
        %v4446 = vmul.f32 1.0, %v4445
        %v4447 = vtanh.pop %v4389
        %v4448 = vmul.f32 %v4431, %v4325
        %v4449 = vmul.f32 %v4416, %v4447
        %v4450 = vadd.f32 %v4448, %v4449
        %v4451 = vtanh.pop %v4450
        %v4452 = vmul.f32 %v4446, %v4451
        %4453 = vst [vmem:[%s1321] sm:$0xff] %v4452
        %v4454 = vld [vmem:[#allocation5 + $0x60] sm:$0xff]
        %v4455 = vld [vmem:[#allocation5 + $0x68] sm:$0xff]
        %v4456 = vld [vmem:[#allocation5 + $0x70] sm:$0xff]
        %v4457 = vld [vmem:[#allocation5 + $0x78] sm:$0xff]
        %v4458 = vpack.c.bf16 %v4452, %v4452
        %4459 = vmatpush.bf16.msra.mxu0 %v4048
        %4460 = vmatpush.bf16.msra.mxu0 %v4044
        %4461 = vmatpush.bf16.msra.mxu0 %v4040
        %4462 = vmatpush.bf16.msra.mxu0 %v4036
        %4463 = vmatpush.bf16.msra.mxu0 %v4032
        %4464 = vmatpush.bf16.msra.mxu0 %v4028
        %4465 = vmatpush.bf16.msra.mxu0 %v4024
        %4466 = vmatpush.bf16.msra.mxu0 %v4020
        %4467 = vmatmul.bf16.gmra.mxu0 %v4458
        %v4468 = vpop.f32.mrf.mxu0
        %v4469 = vadd.f32 0.0, %v4468
        %v4470 = vpop.f32.mrf.mxu0
        %4471 = vdwg.mxu0
        %4472 = vmatpush.bf16.msra.mxu0 %v4049
        %4473 = vmatpush.bf16.msra.mxu0 %v4045
        %4474 = vmatpush.bf16.msra.mxu0 %v4041
        %4475 = vmatpush.bf16.msra.mxu0 %v4037
        %4476 = vmatpush.bf16.msra.mxu0 %v4033
        %4477 = vmatpush.bf16.msra.mxu0 %v4029
        %4478 = vmatpush.bf16.msra.mxu0 %v4025
        %4479 = vmatpush.bf16.msra.mxu0 %v4021
        %4480 = vmatmul.bf16.gmra.mxu0 %v4458
        %v4481 = vpop.f32.mrf.mxu0
        %v4482 = vadd.f32 0.0, %v4481
        %v4483 = vpop.f32.mrf.mxu0
        %4484 = vdwg.mxu0
        %4485 = vmatpush.bf16.msra.mxu0 %v4050
        %4486 = vmatpush.bf16.msra.mxu0 %v4046
        %4487 = vmatpush.bf16.msra.mxu0 %v4042
        %4488 = vmatpush.bf16.msra.mxu0 %v4038
        %4489 = vmatpush.bf16.msra.mxu0 %v4034
        %4490 = vmatpush.bf16.msra.mxu0 %v4030
        %4491 = vmatpush.bf16.msra.mxu0 %v4026
        %4492 = vmatpush.bf16.msra.mxu0 %v4022
        %4493 = vmatmul.bf16.gmra.mxu0 %v4458
        %v4494 = vpop.f32.mrf.mxu0
        %v4495 = vadd.f32 0.0, %v4494
        %v4496 = vpop.f32.mrf.mxu0
        %4497 = vdwg.mxu0
        %4498 = vmatpush.bf16.msra.mxu0 %v4051
        %4499 = vmatpush.bf16.msra.mxu0 %v4047
        %4500 = vmatpush.bf16.msra.mxu0 %v4043
        %4501 = vmatpush.bf16.msra.mxu0 %v4039
        %4502 = vmatpush.bf16.msra.mxu0 %v4035
        %4503 = vmatpush.bf16.msra.mxu0 %v4031
        %4504 = vmatpush.bf16.msra.mxu0 %v4027
        %4505 = vmatpush.bf16.msra.mxu0 %v4023
        %4506 = vmatmul.bf16.gmra.mxu0 %v4458
        %v4507 = vpop.f32.mrf.mxu0
        %v4508 = vadd.f32 0.0, %v4507
        %v4509 = vpop.f32.mrf.mxu0
        %4510 = vdwg.mxu0
        %v4511 = vadd.f32 %v4454, %v4469
        %v4512 = vadd.f32 %v4455, %v4482
        %v4513 = vadd.f32 %v4456, %v4495
        %v4514 = vadd.f32 %v4457, %v4508
        %v4515 = vxor.u32 %v4511, 2147483648
        %v4516 = vxor.u32 %v4512, 2147483648
        %v4517 = vxor.u32 %v4513, 2147483648
        %v4518 = vmul.f32 %v4515, 1.442695
        %v4519 = vpow.pop %v4518
        %v4520 = vmul.f32 %v4516, 1.442695
        %v4521 = vpow.pop %v4520
        %v4522 = vmul.f32 %v4517, 1.442695
        %v4523 = vpow.pop %v4522
        %v4524 = vadd.f32 %v4519, 1.0
        %v4525 = vadd.f32 %v4521, 1.0
        %v4526 = vadd.f32 %v4523, 1.0
        %v4527 = vrcp.pop %v4524
        %v4528 = vmul.f32 %v4524, %v4527
        %v4529 = vsub.f32 1.0, %v4528
        %v4530 = vmul.f32 %v4527, %v4529
        %v4531 = vadd.f32 %v4527, %v4530
        %vm4532 = vweird.f32 %v4524
        %vm4533 = vweird.f32 %v4527
        %vm4534 = vmor %vm4532, %vm4533
        %v4535 = vsel %vm4534, %v4527, %v4531
        %v4536 = vand.u32 2147483647, %v4524
        %vm4537 = vcmp.eq.f32.partialorder %v4536, 8.507059e+37
        %v4538 = vand.u32 %v4524, 2147483648
        %v4539 = vor.u32 1.1754944e-38, %v4538
        %v4540 = vsel %vm4537, %v4539, %v4535
        %v4541 = vmul.f32 1.0, %v4540
        %v4542 = vrcp.pop %v4525
        %v4543 = vmul.f32 %v4525, %v4542
        %v4544 = vsub.f32 1.0, %v4543
        %v4545 = vmul.f32 %v4542, %v4544
        %v4546 = vadd.f32 %v4542, %v4545
        %vm4547 = vweird.f32 %v4525
        %vm4548 = vweird.f32 %v4542
        %vm4549 = vmor %vm4547, %vm4548
        %v4550 = vsel %vm4549, %v4542, %v4546
        %v4551 = vand.u32 2147483647, %v4525
        %vm4552 = vcmp.eq.f32.partialorder %v4551, 8.507059e+37
        %v4553 = vand.u32 %v4525, 2147483648
        %v4554 = vor.u32 1.1754944e-38, %v4553
        %v4555 = vsel %vm4552, %v4554, %v4550
        %v4556 = vmul.f32 1.0, %v4555
        %v4557 = vrcp.pop %v4526
        %v4558 = vmul.f32 %v4526, %v4557
        %v4559 = vsub.f32 1.0, %v4558
        %v4560 = vmul.f32 %v4557, %v4559
        %v4561 = vadd.f32 %v4557, %v4560
        %vm4562 = vweird.f32 %v4526
        %vm4563 = vweird.f32 %v4557
        %vm4564 = vmor %vm4562, %vm4563
        %v4565 = vsel %vm4564, %v4557, %v4561
        %v4566 = vand.u32 2147483647, %v4526
        %vm4567 = vcmp.eq.f32.partialorder %v4566, 8.507059e+37
        %v4568 = vand.u32 %v4526, 2147483648
        %v4569 = vor.u32 1.1754944e-38, %v4568
        %v4570 = vsel %vm4567, %v4569, %v4565
        %v4571 = vmul.f32 1.0, %v4570
        %v4572 = vtanh.pop %v4514
        %v4573 = vmul.f32 %v4556, %v4450
        %v4574 = vmul.f32 %v4541, %v4572
        %v4575 = vadd.f32 %v4573, %v4574
        %v4576 = vtanh.pop %v4575
        %v4577 = vmul.f32 %v4571, %v4576
        %4578 = vst [vmem:[%s1447] sm:$0xff] %v4577
        %v4579 = vld [vmem:[#allocation5 + $0x80] sm:$0xff]
        %v4580 = vld [vmem:[#allocation5 + $0x88] sm:$0xff]
        %v4581 = vld [vmem:[#allocation5 + $0x90] sm:$0xff]
        %v4582 = vld [vmem:[#allocation5 + $0x98] sm:$0xff]
        %v4583 = vpack.c.bf16 %v4577, %v4577
        %4584 = vmatpush.bf16.msra.mxu0 %v4048
        %4585 = vmatpush.bf16.msra.mxu0 %v4044
        %4586 = vmatpush.bf16.msra.mxu0 %v4040
        %4587 = vmatpush.bf16.msra.mxu0 %v4036
        %4588 = vmatpush.bf16.msra.mxu0 %v4032
        %4589 = vmatpush.bf16.msra.mxu0 %v4028
        %4590 = vmatpush.bf16.msra.mxu0 %v4024
        %4591 = vmatpush.bf16.msra.mxu0 %v4020
        %4592 = vmatmul.bf16.gmra.mxu0 %v4583
        %v4593 = vpop.f32.mrf.mxu0
        %v4594 = vadd.f32 0.0, %v4593
        %v4595 = vpop.f32.mrf.mxu0
        %4596 = vdwg.mxu0
        %4597 = vmatpush.bf16.msra.mxu0 %v4049
        %4598 = vmatpush.bf16.msra.mxu0 %v4045
        %4599 = vmatpush.bf16.msra.mxu0 %v4041
        %4600 = vmatpush.bf16.msra.mxu0 %v4037
        %4601 = vmatpush.bf16.msra.mxu0 %v4033
        %4602 = vmatpush.bf16.msra.mxu0 %v4029
        %4603 = vmatpush.bf16.msra.mxu0 %v4025
        %4604 = vmatpush.bf16.msra.mxu0 %v4021
        %4605 = vmatmul.bf16.gmra.mxu0 %v4583
        %v4606 = vpop.f32.mrf.mxu0
        %v4607 = vadd.f32 0.0, %v4606
        %v4608 = vpop.f32.mrf.mxu0
        %4609 = vdwg.mxu0
        %4610 = vmatpush.bf16.msra.mxu0 %v4050
        %4611 = vmatpush.bf16.msra.mxu0 %v4046
        %4612 = vmatpush.bf16.msra.mxu0 %v4042
        %4613 = vmatpush.bf16.msra.mxu0 %v4038
        %4614 = vmatpush.bf16.msra.mxu0 %v4034
        %4615 = vmatpush.bf16.msra.mxu0 %v4030
        %4616 = vmatpush.bf16.msra.mxu0 %v4026
        %4617 = vmatpush.bf16.msra.mxu0 %v4022
        %4618 = vmatmul.bf16.gmra.mxu0 %v4583
        %v4619 = vpop.f32.mrf.mxu0
        %v4620 = vadd.f32 0.0, %v4619
        %v4621 = vpop.f32.mrf.mxu0
        %4622 = vdwg.mxu0
        %4623 = vmatpush.bf16.msra.mxu0 %v4051
        %4624 = vmatpush.bf16.msra.mxu0 %v4047
        %4625 = vmatpush.bf16.msra.mxu0 %v4043
        %4626 = vmatpush.bf16.msra.mxu0 %v4039
        %4627 = vmatpush.bf16.msra.mxu0 %v4035
        %4628 = vmatpush.bf16.msra.mxu0 %v4031
        %4629 = vmatpush.bf16.msra.mxu0 %v4027
        %4630 = vmatpush.bf16.msra.mxu0 %v4023
        %4631 = vmatmul.bf16.gmra.mxu0 %v4583
        %v4632 = vpop.f32.mrf.mxu0
        %v4633 = vadd.f32 0.0, %v4632
        %v4634 = vpop.f32.mrf.mxu0
        %4635 = vdwg.mxu0
        %v4636 = vadd.f32 %v4579, %v4594
        %v4637 = vadd.f32 %v4580, %v4607
        %v4638 = vadd.f32 %v4581, %v4620
        %v4639 = vadd.f32 %v4582, %v4633
        %v4640 = vxor.u32 %v4636, 2147483648
        %v4641 = vxor.u32 %v4637, 2147483648
        %v4642 = vxor.u32 %v4638, 2147483648
        %v4643 = vmul.f32 %v4640, 1.442695
        %v4644 = vpow.pop %v4643
        %v4645 = vmul.f32 %v4641, 1.442695
        %v4646 = vpow.pop %v4645
        %v4647 = vmul.f32 %v4642, 1.442695
        %v4648 = vpow.pop %v4647
        %v4649 = vadd.f32 %v4644, 1.0
        %v4650 = vadd.f32 %v4646, 1.0
        %v4651 = vadd.f32 %v4648, 1.0
        %v4652 = vrcp.pop %v4649
        %v4653 = vmul.f32 %v4649, %v4652
        %v4654 = vsub.f32 1.0, %v4653
        %v4655 = vmul.f32 %v4652, %v4654
        %v4656 = vadd.f32 %v4652, %v4655
        %vm4657 = vweird.f32 %v4649
        %vm4658 = vweird.f32 %v4652
        %vm4659 = vmor %vm4657, %vm4658
        %v4660 = vsel %vm4659, %v4652, %v4656
        %v4661 = vand.u32 2147483647, %v4649
        %vm4662 = vcmp.eq.f32.partialorder %v4661, 8.507059e+37
        %v4663 = vand.u32 %v4649, 2147483648
        %v4664 = vor.u32 1.1754944e-38, %v4663
        %v4665 = vsel %vm4662, %v4664, %v4660
        %v4666 = vmul.f32 1.0, %v4665
        %v4667 = vrcp.pop %v4650
        %v4668 = vmul.f32 %v4650, %v4667
        %v4669 = vsub.f32 1.0, %v4668
        %v4670 = vmul.f32 %v4667, %v4669
        %v4671 = vadd.f32 %v4667, %v4670
        %vm4672 = vweird.f32 %v4650
        %vm4673 = vweird.f32 %v4667
        %vm4674 = vmor %vm4672, %vm4673
        %v4675 = vsel %vm4674, %v4667, %v4671
        %v4676 = vand.u32 2147483647, %v4650
        %vm4677 = vcmp.eq.f32.partialorder %v4676, 8.507059e+37
        %v4678 = vand.u32 %v4650, 2147483648
        %v4679 = vor.u32 1.1754944e-38, %v4678
        %v4680 = vsel %vm4677, %v4679, %v4675
        %v4681 = vmul.f32 1.0, %v4680
        %v4682 = vrcp.pop %v4651
        %v4683 = vmul.f32 %v4651, %v4682
        %v4684 = vsub.f32 1.0, %v4683
        %v4685 = vmul.f32 %v4682, %v4684
        %v4686 = vadd.f32 %v4682, %v4685
        %vm4687 = vweird.f32 %v4651
        %vm4688 = vweird.f32 %v4682
        %vm4689 = vmor %vm4687, %vm4688
        %v4690 = vsel %vm4689, %v4682, %v4686
        %v4691 = vand.u32 2147483647, %v4651
        %vm4692 = vcmp.eq.f32.partialorder %v4691, 8.507059e+37
        %v4693 = vand.u32 %v4651, 2147483648
        %v4694 = vor.u32 1.1754944e-38, %v4693
        %v4695 = vsel %vm4692, %v4694, %v4690
        %v4696 = vmul.f32 1.0, %v4695
        %v4697 = vtanh.pop %v4639
        %v4698 = vmul.f32 %v4681, %v4575
        %v4699 = vmul.f32 %v4666, %v4697
        %v4700 = vadd.f32 %v4698, %v4699
        %v4701 = vtanh.pop %v4700
        %v4702 = vmul.f32 %v4696, %v4701
        %4703 = vst [vmem:[%s1573] sm:$0xff] %v4702
        %v4704 = vld [vmem:[#allocation5 + $0xa0] sm:$0xff]
        %v4705 = vld [vmem:[#allocation5 + $0xa8] sm:$0xff]
        %v4706 = vld [vmem:[#allocation5 + $0xb0] sm:$0xff]
        %v4707 = vld [vmem:[#allocation5 + $0xb8] sm:$0xff]
        %v4708 = vpack.c.bf16 %v4702, %v4702
        %4709 = vmatpush.bf16.msra.mxu0 %v4048
        %4710 = vmatpush.bf16.msra.mxu0 %v4044
        %4711 = vmatpush.bf16.msra.mxu0 %v4040
        %4712 = vmatpush.bf16.msra.mxu0 %v4036
        %4713 = vmatpush.bf16.msra.mxu0 %v4032
        %4714 = vmatpush.bf16.msra.mxu0 %v4028
        %4715 = vmatpush.bf16.msra.mxu0 %v4024
        %4716 = vmatpush.bf16.msra.mxu0 %v4020
        %4717 = vmatmul.bf16.gmra.mxu0 %v4708
        %v4718 = vpop.f32.mrf.mxu0
        %v4719 = vadd.f32 0.0, %v4718
        %v4720 = vpop.f32.mrf.mxu0
        %4721 = vdwg.mxu0
        %4722 = vmatpush.bf16.msra.mxu0 %v4049
        %4723 = vmatpush.bf16.msra.mxu0 %v4045
        %4724 = vmatpush.bf16.msra.mxu0 %v4041
        %4725 = vmatpush.bf16.msra.mxu0 %v4037
        %4726 = vmatpush.bf16.msra.mxu0 %v4033
        %4727 = vmatpush.bf16.msra.mxu0 %v4029
        %4728 = vmatpush.bf16.msra.mxu0 %v4025
        %4729 = vmatpush.bf16.msra.mxu0 %v4021
        %4730 = vmatmul.bf16.gmra.mxu0 %v4708
        %v4731 = vpop.f32.mrf.mxu0
        %v4732 = vadd.f32 0.0, %v4731
        %v4733 = vpop.f32.mrf.mxu0
        %4734 = vdwg.mxu0
        %4735 = vmatpush.bf16.msra.mxu0 %v4050
        %4736 = vmatpush.bf16.msra.mxu0 %v4046
        %4737 = vmatpush.bf16.msra.mxu0 %v4042
        %4738 = vmatpush.bf16.msra.mxu0 %v4038
        %4739 = vmatpush.bf16.msra.mxu0 %v4034
        %4740 = vmatpush.bf16.msra.mxu0 %v4030
        %4741 = vmatpush.bf16.msra.mxu0 %v4026
        %4742 = vmatpush.bf16.msra.mxu0 %v4022
        %4743 = vmatmul.bf16.gmra.mxu0 %v4708
        %v4744 = vpop.f32.mrf.mxu0
        %v4745 = vadd.f32 0.0, %v4744
        %v4746 = vpop.f32.mrf.mxu0
        %4747 = vdwg.mxu0
        %4748 = vmatpush.bf16.msra.mxu0 %v4051
        %4749 = vmatpush.bf16.msra.mxu0 %v4047
        %4750 = vmatpush.bf16.msra.mxu0 %v4043
        %4751 = vmatpush.bf16.msra.mxu0 %v4039
        %4752 = vmatpush.bf16.msra.mxu0 %v4035
        %4753 = vmatpush.bf16.msra.mxu0 %v4031
        %4754 = vmatpush.bf16.msra.mxu0 %v4027
        %4755 = vmatpush.bf16.msra.mxu0 %v4023
        %4756 = vmatmul.bf16.gmra.mxu0 %v4708
        %v4757 = vpop.f32.mrf.mxu0
        %v4758 = vadd.f32 0.0, %v4757
        %v4759 = vpop.f32.mrf.mxu0
        %4760 = vdwg.mxu0
        %v4761 = vadd.f32 %v4704, %v4719
        %v4762 = vadd.f32 %v4705, %v4732
        %v4763 = vadd.f32 %v4706, %v4745
        %v4764 = vadd.f32 %v4707, %v4758
        %v4765 = vxor.u32 %v4761, 2147483648
        %v4766 = vxor.u32 %v4762, 2147483648
        %v4767 = vxor.u32 %v4763, 2147483648
        %v4768 = vmul.f32 %v4765, 1.442695
        %v4769 = vpow.pop %v4768
        %v4770 = vmul.f32 %v4766, 1.442695
        %v4771 = vpow.pop %v4770
        %v4772 = vmul.f32 %v4767, 1.442695
        %v4773 = vpow.pop %v4772
        %v4774 = vadd.f32 %v4769, 1.0
        %v4775 = vadd.f32 %v4771, 1.0
        %v4776 = vadd.f32 %v4773, 1.0
        %v4777 = vrcp.pop %v4774
        %v4778 = vmul.f32 %v4774, %v4777
        %v4779 = vsub.f32 1.0, %v4778
        %v4780 = vmul.f32 %v4777, %v4779
        %v4781 = vadd.f32 %v4777, %v4780
        %vm4782 = vweird.f32 %v4774
        %vm4783 = vweird.f32 %v4777
        %vm4784 = vmor %vm4782, %vm4783
        %v4785 = vsel %vm4784, %v4777, %v4781
        %v4786 = vand.u32 2147483647, %v4774
        %vm4787 = vcmp.eq.f32.partialorder %v4786, 8.507059e+37
        %v4788 = vand.u32 %v4774, 2147483648
        %v4789 = vor.u32 1.1754944e-38, %v4788
        %v4790 = vsel %vm4787, %v4789, %v4785
        %v4791 = vmul.f32 1.0, %v4790
        %v4792 = vrcp.pop %v4775
        %v4793 = vmul.f32 %v4775, %v4792
        %v4794 = vsub.f32 1.0, %v4793
        %v4795 = vmul.f32 %v4792, %v4794
        %v4796 = vadd.f32 %v4792, %v4795
        %vm4797 = vweird.f32 %v4775
        %vm4798 = vweird.f32 %v4792
        %vm4799 = vmor %vm4797, %vm4798
        %v4800 = vsel %vm4799, %v4792, %v4796
        %v4801 = vand.u32 2147483647, %v4775
        %vm4802 = vcmp.eq.f32.partialorder %v4801, 8.507059e+37
        %v4803 = vand.u32 %v4775, 2147483648
        %v4804 = vor.u32 1.1754944e-38, %v4803
        %v4805 = vsel %vm4802, %v4804, %v4800
        %v4806 = vmul.f32 1.0, %v4805
        %v4807 = vrcp.pop %v4776
        %v4808 = vmul.f32 %v4776, %v4807
        %v4809 = vsub.f32 1.0, %v4808
        %v4810 = vmul.f32 %v4807, %v4809
        %v4811 = vadd.f32 %v4807, %v4810
        %vm4812 = vweird.f32 %v4776
        %vm4813 = vweird.f32 %v4807
        %vm4814 = vmor %vm4812, %vm4813
        %v4815 = vsel %vm4814, %v4807, %v4811
        %v4816 = vand.u32 2147483647, %v4776
        %vm4817 = vcmp.eq.f32.partialorder %v4816, 8.507059e+37
        %v4818 = vand.u32 %v4776, 2147483648
        %v4819 = vor.u32 1.1754944e-38, %v4818
        %v4820 = vsel %vm4817, %v4819, %v4815
        %v4821 = vmul.f32 1.0, %v4820
        %v4822 = vtanh.pop %v4764
        %v4823 = vmul.f32 %v4806, %v4700
        %v4824 = vmul.f32 %v4791, %v4822
        %v4825 = vadd.f32 %v4823, %v4824
        %v4826 = vtanh.pop %v4825
        %v4827 = vmul.f32 %v4821, %v4826
        %4828 = vst [vmem:[%s1699] sm:$0xff] %v4827
        %v4829 = vld [vmem:[#allocation5 + $0xc0] sm:$0xff]
        %v4830 = vld [vmem:[#allocation5 + $0xc8] sm:$0xff]
        %v4831 = vld [vmem:[#allocation5 + $0xd0] sm:$0xff]
        %v4832 = vld [vmem:[#allocation5 + $0xd8] sm:$0xff]
        %v4833 = vpack.c.bf16 %v4827, %v4827
        %4834 = vmatpush.bf16.msra.mxu0 %v4048
        %4835 = vmatpush.bf16.msra.mxu0 %v4044
        %4836 = vmatpush.bf16.msra.mxu0 %v4040
        %4837 = vmatpush.bf16.msra.mxu0 %v4036
        %4838 = vmatpush.bf16.msra.mxu0 %v4032
        %4839 = vmatpush.bf16.msra.mxu0 %v4028
        %4840 = vmatpush.bf16.msra.mxu0 %v4024
        %4841 = vmatpush.bf16.msra.mxu0 %v4020
        %4842 = vmatmul.bf16.gmra.mxu0 %v4833
        %v4843 = vpop.f32.mrf.mxu0
        %v4844 = vadd.f32 0.0, %v4843
        %v4845 = vpop.f32.mrf.mxu0
        %4846 = vdwg.mxu0
        %4847 = vmatpush.bf16.msra.mxu0 %v4049
        %4848 = vmatpush.bf16.msra.mxu0 %v4045
        %4849 = vmatpush.bf16.msra.mxu0 %v4041
        %4850 = vmatpush.bf16.msra.mxu0 %v4037
        %4851 = vmatpush.bf16.msra.mxu0 %v4033
        %4852 = vmatpush.bf16.msra.mxu0 %v4029
        %4853 = vmatpush.bf16.msra.mxu0 %v4025
        %4854 = vmatpush.bf16.msra.mxu0 %v4021
        %4855 = vmatmul.bf16.gmra.mxu0 %v4833
        %v4856 = vpop.f32.mrf.mxu0
        %v4857 = vadd.f32 0.0, %v4856
        %v4858 = vpop.f32.mrf.mxu0
        %4859 = vdwg.mxu0
        %4860 = vmatpush.bf16.msra.mxu0 %v4050
        %4861 = vmatpush.bf16.msra.mxu0 %v4046
        %4862 = vmatpush.bf16.msra.mxu0 %v4042
        %4863 = vmatpush.bf16.msra.mxu0 %v4038
        %4864 = vmatpush.bf16.msra.mxu0 %v4034
        %4865 = vmatpush.bf16.msra.mxu0 %v4030
        %4866 = vmatpush.bf16.msra.mxu0 %v4026
        %4867 = vmatpush.bf16.msra.mxu0 %v4022
        %4868 = vmatmul.bf16.gmra.mxu0 %v4833
        %v4869 = vpop.f32.mrf.mxu0
        %v4870 = vadd.f32 0.0, %v4869
        %v4871 = vpop.f32.mrf.mxu0
        %4872 = vdwg.mxu0
        %4873 = vmatpush.bf16.msra.mxu0 %v4051
        %4874 = vmatpush.bf16.msra.mxu0 %v4047
        %4875 = vmatpush.bf16.msra.mxu0 %v4043
        %4876 = vmatpush.bf16.msra.mxu0 %v4039
        %4877 = vmatpush.bf16.msra.mxu0 %v4035
        %4878 = vmatpush.bf16.msra.mxu0 %v4031
        %4879 = vmatpush.bf16.msra.mxu0 %v4027
        %4880 = vmatpush.bf16.msra.mxu0 %v4023
        %4881 = vmatmul.bf16.gmra.mxu0 %v4833
        %v4882 = vpop.f32.mrf.mxu0
        %v4883 = vadd.f32 0.0, %v4882
        %v4884 = vpop.f32.mrf.mxu0
        %4885 = vdwg.mxu0
        %v4886 = vadd.f32 %v4829, %v4844
        %v4887 = vadd.f32 %v4830, %v4857
        %v4888 = vadd.f32 %v4831, %v4870
        %v4889 = vadd.f32 %v4832, %v4883
        %v4890 = vxor.u32 %v4886, 2147483648
        %v4891 = vxor.u32 %v4887, 2147483648
        %v4892 = vxor.u32 %v4888, 2147483648
        %v4893 = vmul.f32 %v4890, 1.442695
        %v4894 = vpow.pop %v4893
        %v4895 = vmul.f32 %v4891, 1.442695
        %v4896 = vpow.pop %v4895
        %v4897 = vmul.f32 %v4892, 1.442695
        %v4898 = vpow.pop %v4897
        %v4899 = vadd.f32 %v4894, 1.0
        %v4900 = vadd.f32 %v4896, 1.0
        %v4901 = vadd.f32 %v4898, 1.0
        %v4902 = vrcp.pop %v4899
        %v4903 = vmul.f32 %v4899, %v4902
        %v4904 = vsub.f32 1.0, %v4903
        %v4905 = vmul.f32 %v4902, %v4904
        %v4906 = vadd.f32 %v4902, %v4905
        %vm4907 = vweird.f32 %v4899
        %vm4908 = vweird.f32 %v4902
        %vm4909 = vmor %vm4907, %vm4908
        %v4910 = vsel %vm4909, %v4902, %v4906
        %v4911 = vand.u32 2147483647, %v4899
        %vm4912 = vcmp.eq.f32.partialorder %v4911, 8.507059e+37
        %v4913 = vand.u32 %v4899, 2147483648
        %v4914 = vor.u32 1.1754944e-38, %v4913
        %v4915 = vsel %vm4912, %v4914, %v4910
        %v4916 = vmul.f32 1.0, %v4915
        %v4917 = vrcp.pop %v4900
        %v4918 = vmul.f32 %v4900, %v4917
        %v4919 = vsub.f32 1.0, %v4918
        %v4920 = vmul.f32 %v4917, %v4919
        %v4921 = vadd.f32 %v4917, %v4920
        %vm4922 = vweird.f32 %v4900
        %vm4923 = vweird.f32 %v4917
        %vm4924 = vmor %vm4922, %vm4923
        %v4925 = vsel %vm4924, %v4917, %v4921
        %v4926 = vand.u32 2147483647, %v4900
        %vm4927 = vcmp.eq.f32.partialorder %v4926, 8.507059e+37
        %v4928 = vand.u32 %v4900, 2147483648
        %v4929 = vor.u32 1.1754944e-38, %v4928
        %v4930 = vsel %vm4927, %v4929, %v4925
        %v4931 = vmul.f32 1.0, %v4930
        %v4932 = vrcp.pop %v4901
        %v4933 = vmul.f32 %v4901, %v4932
        %v4934 = vsub.f32 1.0, %v4933
        %v4935 = vmul.f32 %v4932, %v4934
        %v4936 = vadd.f32 %v4932, %v4935
        %vm4937 = vweird.f32 %v4901
        %vm4938 = vweird.f32 %v4932
        %vm4939 = vmor %vm4937, %vm4938
        %v4940 = vsel %vm4939, %v4932, %v4936
        %v4941 = vand.u32 2147483647, %v4901
        %vm4942 = vcmp.eq.f32.partialorder %v4941, 8.507059e+37
        %v4943 = vand.u32 %v4901, 2147483648
        %v4944 = vor.u32 1.1754944e-38, %v4943
        %v4945 = vsel %vm4942, %v4944, %v4940
        %v4946 = vmul.f32 1.0, %v4945
        %v4947 = vtanh.pop %v4889
        %v4948 = vmul.f32 %v4931, %v4825
        %v4949 = vmul.f32 %v4916, %v4947
        %v4950 = vadd.f32 %v4948, %v4949
        %v4951 = vtanh.pop %v4950
        %v4952 = vmul.f32 %v4946, %v4951
        %4953 = vst [vmem:[%s1825] sm:$0xff] %v4952
        %v4954 = vld [vmem:[#allocation5 + $0xe0] sm:$0xff]
        %v4955 = vld [vmem:[#allocation5 + $0xe8] sm:$0xff]
        %v4956 = vld [vmem:[#allocation5 + $0xf0] sm:$0xff]
        %v4957 = vld [vmem:[#allocation5 + $0xf8] sm:$0xff]
        %v4958 = vpack.c.bf16 %v4952, %v4952
        %4959 = vmatpush.bf16.msra.mxu0 %v4048
        %4960 = vmatpush.bf16.msra.mxu0 %v4044
        %4961 = vmatpush.bf16.msra.mxu0 %v4040
        %4962 = vmatpush.bf16.msra.mxu0 %v4036
        %4963 = vmatpush.bf16.msra.mxu0 %v4032
        %4964 = vmatpush.bf16.msra.mxu0 %v4028
        %4965 = vmatpush.bf16.msra.mxu0 %v4024
        %4966 = vmatpush.bf16.msra.mxu0 %v4020
        %4967 = vmatmul.bf16.gmra.mxu0 %v4958
        %v4968 = vpop.f32.mrf.mxu0
        %v4969 = vadd.f32 0.0, %v4968
        %v4970 = vpop.f32.mrf.mxu0
        %4971 = vdwg.mxu0
        %4972 = vmatpush.bf16.msra.mxu0 %v4049
        %4973 = vmatpush.bf16.msra.mxu0 %v4045
        %4974 = vmatpush.bf16.msra.mxu0 %v4041
        %4975 = vmatpush.bf16.msra.mxu0 %v4037
        %4976 = vmatpush.bf16.msra.mxu0 %v4033
        %4977 = vmatpush.bf16.msra.mxu0 %v4029
        %4978 = vmatpush.bf16.msra.mxu0 %v4025
        %4979 = vmatpush.bf16.msra.mxu0 %v4021
        %4980 = vmatmul.bf16.gmra.mxu0 %v4958
        %v4981 = vpop.f32.mrf.mxu0
        %v4982 = vadd.f32 0.0, %v4981
        %v4983 = vpop.f32.mrf.mxu0
        %4984 = vdwg.mxu0
        %4985 = vmatpush.bf16.msra.mxu0 %v4050
        %4986 = vmatpush.bf16.msra.mxu0 %v4046
        %4987 = vmatpush.bf16.msra.mxu0 %v4042
        %4988 = vmatpush.bf16.msra.mxu0 %v4038
        %4989 = vmatpush.bf16.msra.mxu0 %v4034
        %4990 = vmatpush.bf16.msra.mxu0 %v4030
        %4991 = vmatpush.bf16.msra.mxu0 %v4026
        %4992 = vmatpush.bf16.msra.mxu0 %v4022
        %4993 = vmatmul.bf16.gmra.mxu0 %v4958
        %v4994 = vpop.f32.mrf.mxu0
        %v4995 = vadd.f32 0.0, %v4994
        %v4996 = vpop.f32.mrf.mxu0
        %4997 = vdwg.mxu0
        %4998 = vmatpush.bf16.msra.mxu0 %v4051
        %4999 = vmatpush.bf16.msra.mxu0 %v4047
        %5000 = vmatpush.bf16.msra.mxu0 %v4043
        %5001 = vmatpush.bf16.msra.mxu0 %v4039
        %5002 = vmatpush.bf16.msra.mxu0 %v4035
        %5003 = vmatpush.bf16.msra.mxu0 %v4031
        %5004 = vmatpush.bf16.msra.mxu0 %v4027
        %5005 = vmatpush.bf16.msra.mxu0 %v4023
        %5006 = vmatmul.bf16.gmra.mxu0 %v4958
        %v5007 = vpop.f32.mrf.mxu0
        %v5008 = vadd.f32 0.0, %v5007
        %v5009 = vpop.f32.mrf.mxu0
        %5010 = vdwg.mxu0
        %v5011 = vadd.f32 %v4954, %v4969
        %v5012 = vadd.f32 %v4955, %v4982
        %v5013 = vadd.f32 %v4956, %v4995
        %v5014 = vadd.f32 %v4957, %v5008
        %v5015 = vxor.u32 %v5011, 2147483648
        %v5016 = vxor.u32 %v5012, 2147483648
        %v5017 = vxor.u32 %v5013, 2147483648
        %v5018 = vmul.f32 %v5015, 1.442695
        %v5019 = vpow.pop %v5018
        %v5020 = vmul.f32 %v5016, 1.442695
        %v5021 = vpow.pop %v5020
        %v5022 = vmul.f32 %v5017, 1.442695
        %v5023 = vpow.pop %v5022
        %v5024 = vadd.f32 %v5019, 1.0
        %v5025 = vadd.f32 %v5021, 1.0
        %v5026 = vadd.f32 %v5023, 1.0
        %v5027 = vrcp.pop %v5024
        %v5028 = vmul.f32 %v5024, %v5027
        %v5029 = vsub.f32 1.0, %v5028
        %v5030 = vmul.f32 %v5027, %v5029
        %v5031 = vadd.f32 %v5027, %v5030
        %vm5032 = vweird.f32 %v5024
        %vm5033 = vweird.f32 %v5027
        %vm5034 = vmor %vm5032, %vm5033
        %v5035 = vsel %vm5034, %v5027, %v5031
        %v5036 = vand.u32 2147483647, %v5024
        %vm5037 = vcmp.eq.f32.partialorder %v5036, 8.507059e+37
        %v5038 = vand.u32 %v5024, 2147483648
        %v5039 = vor.u32 1.1754944e-38, %v5038
        %v5040 = vsel %vm5037, %v5039, %v5035
        %v5041 = vmul.f32 1.0, %v5040
        %v5042 = vrcp.pop %v5025
        %v5043 = vmul.f32 %v5025, %v5042
        %v5044 = vsub.f32 1.0, %v5043
        %v5045 = vmul.f32 %v5042, %v5044
        %v5046 = vadd.f32 %v5042, %v5045
        %vm5047 = vweird.f32 %v5025
        %vm5048 = vweird.f32 %v5042
        %vm5049 = vmor %vm5047, %vm5048
        %v5050 = vsel %vm5049, %v5042, %v5046
        %v5051 = vand.u32 2147483647, %v5025
        %vm5052 = vcmp.eq.f32.partialorder %v5051, 8.507059e+37
        %v5053 = vand.u32 %v5025, 2147483648
        %v5054 = vor.u32 1.1754944e-38, %v5053
        %v5055 = vsel %vm5052, %v5054, %v5050
        %v5056 = vmul.f32 1.0, %v5055
        %v5057 = vrcp.pop %v5026
        %v5058 = vmul.f32 %v5026, %v5057
        %v5059 = vsub.f32 1.0, %v5058
        %v5060 = vmul.f32 %v5057, %v5059
        %v5061 = vadd.f32 %v5057, %v5060
        %vm5062 = vweird.f32 %v5026
        %vm5063 = vweird.f32 %v5057
        %vm5064 = vmor %vm5062, %vm5063
        %v5065 = vsel %vm5064, %v5057, %v5061
        %v5066 = vand.u32 2147483647, %v5026
        %vm5067 = vcmp.eq.f32.partialorder %v5066, 8.507059e+37
        %v5068 = vand.u32 %v5026, 2147483648
        %v5069 = vor.u32 1.1754944e-38, %v5068
        %v5070 = vsel %vm5067, %v5069, %v5065
        %v5071 = vmul.f32 1.0, %v5070
        %v5072 = vtanh.pop %v5014
        %v5073 = vmul.f32 %v5056, %v4950
        %v5074 = vmul.f32 %v5041, %v5072
        %v5075 = vadd.f32 %v5073, %v5074
        %v5076 = vtanh.pop %v5075
        %v5077 = vmul.f32 %v5071, %v5076
        %5078 = vst [vmem:[%s1951] sm:$0xff] %v5077
        %5079 = vst [vmem:[%s3915] sm:$0xff] %v5077
        %5080 = vst [vmem:[%s3917] sm:$0xff] %v5075
        %v5081 = vld [vmem:[#allocation4] sm:$0xff]
        %v5082 = vld [vmem:[#allocation4 + $0x8] sm:$0xff]
        %v5083 = vld [vmem:[#allocation4 + $0x10] sm:$0xff]
        %v5084 = vld [vmem:[#allocation4 + $0x18] sm:$0xff]
        %v5085 = vld [vmem:[#allocation4 + $0x20] sm:$0xff]
        %v5086 = vld [vmem:[#allocation4 + $0x28] sm:$0xff]
        %v5087 = vld [vmem:[#allocation4 + $0x30] sm:$0xff]
        %v5088 = vld [vmem:[#allocation4 + $0x38] sm:$0xff]
        %v5089 = vpack.c.bf16 %v5082, %v5081
        %v5090 = vpack.c.bf16 %v5084, %v5083
        %v5091 = vpack.c.bf16 %v5086, %v5085
        %v5092 = vpack.c.bf16 %v5088, %v5087
        %s5093 = scalar_lea.vmem [#allocation9], 768
        %v5094 = vld [vmem:[%s5093] sm:$0xff]
        %v5095 = vld [vmem:[%s5093 + $0x8] sm:$0xff]
        %v5096 = vld [vmem:[%s5093 + $0x10] sm:$0xff]
        %v5097 = vld [vmem:[%s5093 + $0x18] sm:$0xff]
        %v5098 = vld [vmem:[%s5093 + $0x20] sm:$0xff]
        %v5099 = vld [vmem:[%s5093 + $0x28] sm:$0xff]
        %v5100 = vld [vmem:[%s5093 + $0x30] sm:$0xff]
        %v5101 = vld [vmem:[%s5093 + $0x38] sm:$0xff]
        %v5102 = vld [vmem:[%s5093 + $0x40] sm:$0xff]
        %v5103 = vld [vmem:[%s5093 + $0x48] sm:$0xff]
        %v5104 = vld [vmem:[%s5093 + $0x50] sm:$0xff]
        %v5105 = vld [vmem:[%s5093 + $0x58] sm:$0xff]
        %v5106 = vld [vmem:[%s5093 + $0x60] sm:$0xff]
        %v5107 = vld [vmem:[%s5093 + $0x68] sm:$0xff]
        %v5108 = vld [vmem:[%s5093 + $0x70] sm:$0xff]
        %v5109 = vld [vmem:[%s5093 + $0x78] sm:$0xff]
        %v5110 = vld [vmem:[%s5093 + $0x80] sm:$0xff]
        %v5111 = vld [vmem:[%s5093 + $0x88] sm:$0xff]
        %v5112 = vld [vmem:[%s5093 + $0x90] sm:$0xff]
        %v5113 = vld [vmem:[%s5093 + $0x98] sm:$0xff]
        %v5114 = vld [vmem:[%s5093 + $0xa0] sm:$0xff]
        %v5115 = vld [vmem:[%s5093 + $0xa8] sm:$0xff]
        %v5116 = vld [vmem:[%s5093 + $0xb0] sm:$0xff]
        %v5117 = vld [vmem:[%s5093 + $0xb8] sm:$0xff]
        %v5118 = vld [vmem:[%s5093 + $0xc0] sm:$0xff]
        %v5119 = vld [vmem:[%s5093 + $0xc8] sm:$0xff]
        %v5120 = vld [vmem:[%s5093 + $0xd0] sm:$0xff]
        %v5121 = vld [vmem:[%s5093 + $0xd8] sm:$0xff]
        %v5122 = vld [vmem:[%s5093 + $0xe0] sm:$0xff]
        %v5123 = vld [vmem:[%s5093 + $0xe8] sm:$0xff]
        %v5124 = vld [vmem:[%s5093 + $0xf0] sm:$0xff]
        %v5125 = vld [vmem:[%s5093 + $0xf8] sm:$0xff]
        %s5126 = scalar_lea.vmem [#allocation12], 12
        %v5127 = vld [vmem:[%s5126] sm:$0xf]
        %v5129 = vperm.slane %v5127, 0
        %v5130 = vperm.slane %v5127, 1
        %v5131 = vperm.slane %v5127, 2
        %v5132 = vperm.slane %v5127, 3
        %v5169 = vunpack.c.l.b16 %v5094
        %v5170 = vunpack.c.h.b16 %v5094
        %v5171 = vunpack.c.l.b16 %v5095
        %v5172 = vunpack.c.h.b16 %v5095
        %v5173 = vunpack.c.l.b16 %v5096
        %v5174 = vunpack.c.h.b16 %v5096
        %v5175 = vunpack.c.l.b16 %v5097
        %v5176 = vunpack.c.h.b16 %v5097
        %v5177 = vunpack.c.l.b16 %v5098
        %v5178 = vunpack.c.h.b16 %v5098
        %v5179 = vunpack.c.l.b16 %v5099
        %v5180 = vunpack.c.h.b16 %v5099
        %v5181 = vunpack.c.l.b16 %v5100
        %v5182 = vunpack.c.h.b16 %v5100
        %v5183 = vunpack.c.l.b16 %v5101
        %v5184 = vunpack.c.h.b16 %v5101
        %v5185 = vunpack.c.l.b16 %v5102
        %v5186 = vunpack.c.h.b16 %v5102
        %v5187 = vunpack.c.l.b16 %v5103
        %v5188 = vunpack.c.h.b16 %v5103
        %v5189 = vunpack.c.l.b16 %v5104
        %v5190 = vunpack.c.h.b16 %v5104
        %v5191 = vunpack.c.l.b16 %v5105
        %v5192 = vunpack.c.h.b16 %v5105
        %v5193 = vunpack.c.l.b16 %v5106
        %v5194 = vunpack.c.h.b16 %v5106
        %v5195 = vunpack.c.l.b16 %v5107
        %v5196 = vunpack.c.h.b16 %v5107
        %v5197 = vunpack.c.l.b16 %v5108
        %v5198 = vunpack.c.h.b16 %v5108
        %v5199 = vunpack.c.l.b16 %v5109
        %v5200 = vunpack.c.h.b16 %v5109
        %v5201 = vunpack.c.l.b16 %v5110
        %v5202 = vunpack.c.h.b16 %v5110
        %v5203 = vunpack.c.l.b16 %v5111
        %v5204 = vunpack.c.h.b16 %v5111
        %v5205 = vunpack.c.l.b16 %v5112
        %v5206 = vunpack.c.h.b16 %v5112
        %v5207 = vunpack.c.l.b16 %v5113
        %v5208 = vunpack.c.h.b16 %v5113
        %v5209 = vunpack.c.l.b16 %v5114
        %v5210 = vunpack.c.h.b16 %v5114
        %v5211 = vunpack.c.l.b16 %v5115
        %v5212 = vunpack.c.h.b16 %v5115
        %v5213 = vunpack.c.l.b16 %v5116
        %v5214 = vunpack.c.h.b16 %v5116
        %v5215 = vunpack.c.l.b16 %v5117
        %v5216 = vunpack.c.h.b16 %v5117
        %v5217 = vunpack.c.l.b16 %v5118
        %v5218 = vunpack.c.h.b16 %v5118
        %v5219 = vunpack.c.l.b16 %v5119
        %v5220 = vunpack.c.h.b16 %v5119
        %v5221 = vunpack.c.l.b16 %v5120
        %v5222 = vunpack.c.h.b16 %v5120
        %v5223 = vunpack.c.l.b16 %v5121
        %v5224 = vunpack.c.h.b16 %v5121
        %v5225 = vunpack.c.l.b16 %v5122
        %v5226 = vunpack.c.h.b16 %v5122
        %v5227 = vunpack.c.l.b16 %v5123
        %v5228 = vunpack.c.h.b16 %v5123
        %v5229 = vunpack.c.l.b16 %v5124
        %v5230 = vunpack.c.h.b16 %v5124
        %v5231 = vunpack.c.l.b16 %v5125
        %v5232 = vunpack.c.h.b16 %v5125
        %v5233 = vpack.c.b16 %v5173, %v5169
        %v5234 = vpack.c.b16 %v5174, %v5170
        %v5235 = vpack.c.b16 %v5175, %v5171
        %v5236 = vpack.c.b16 %v5176, %v5172
        %v5237 = vpack.c.b16 %v5181, %v5177
        %v5238 = vpack.c.b16 %v5182, %v5178
        %v5239 = vpack.c.b16 %v5183, %v5179
        %v5240 = vpack.c.b16 %v5184, %v5180
        %v5241 = vpack.c.b16 %v5189, %v5185
        %v5242 = vpack.c.b16 %v5190, %v5186
        %v5243 = vpack.c.b16 %v5191, %v5187
        %v5244 = vpack.c.b16 %v5192, %v5188
        %v5245 = vpack.c.b16 %v5197, %v5193
        %v5246 = vpack.c.b16 %v5198, %v5194
        %v5247 = vpack.c.b16 %v5199, %v5195
        %v5248 = vpack.c.b16 %v5200, %v5196
        %v5249 = vpack.c.b16 %v5205, %v5201
        %v5250 = vpack.c.b16 %v5206, %v5202
        %v5251 = vpack.c.b16 %v5207, %v5203
        %v5252 = vpack.c.b16 %v5208, %v5204
        %v5253 = vpack.c.b16 %v5213, %v5209
        %v5254 = vpack.c.b16 %v5214, %v5210
        %v5255 = vpack.c.b16 %v5215, %v5211
        %v5256 = vpack.c.b16 %v5216, %v5212
        %v5257 = vpack.c.b16 %v5221, %v5217
        %v5258 = vpack.c.b16 %v5222, %v5218
        %v5259 = vpack.c.b16 %v5223, %v5219
        %v5260 = vpack.c.b16 %v5224, %v5220
        %v5261 = vpack.c.b16 %v5229, %v5225
        %v5262 = vpack.c.b16 %v5230, %v5226
        %v5263 = vpack.c.b16 %v5231, %v5227
        %v5264 = vpack.c.b16 %v5232, %v5228
        %5297 = vmatpush.bf16.msra.mxu0 %v5261
        %5298 = vmatpush.bf16.msra.mxu0 %v5257
        %5299 = vmatpush.bf16.msra.mxu0 %v5253
        %5300 = vmatpush.bf16.msra.mxu0 %v5249
        %5301 = vmatpush.bf16.msra.mxu0 %v5245
        %5302 = vmatpush.bf16.msra.mxu0 %v5241
        %5303 = vmatpush.bf16.msra.mxu0 %v5237
        %5304 = vmatpush.bf16.msra.mxu0 %v5233
        %5305 = vmatmul.bf16.gmra.mxu0 %v5089
        %v5306 = vpop.f32.mrf.mxu0
        %v5307 = vadd.f32 %v5129, %v5306
        %v5308 = vpop.f32.mrf.mxu0
        %v5309 = vadd.f32 %v5129, %v5308
        %5310 = vmatmul.bf16.gmra.mxu0 %v5090
        %v5311 = vpop.f32.mrf.mxu0
        %v5312 = vadd.f32 %v5129, %v5311
        %v5313 = vpop.f32.mrf.mxu0
        %v5314 = vadd.f32 %v5129, %v5313
        %5315 = vmatmul.bf16.gmra.mxu0 %v5091
        %v5316 = vpop.f32.mrf.mxu0
        %v5317 = vadd.f32 %v5129, %v5316
        %v5318 = vpop.f32.mrf.mxu0
        %v5319 = vadd.f32 %v5129, %v5318
        %5320 = vmatmul.bf16.gmra.mxu0 %v5092
        %v5321 = vpop.f32.mrf.mxu0
        %v5322 = vadd.f32 %v5129, %v5321
        %v5323 = vpop.f32.mrf.mxu0
        %v5324 = vadd.f32 %v5129, %v5323
        %5325 = vdwg.mxu0
        %5326 = vmatpush.bf16.msra.mxu0 %v5262
        %5327 = vmatpush.bf16.msra.mxu0 %v5258
        %5328 = vmatpush.bf16.msra.mxu0 %v5254
        %5329 = vmatpush.bf16.msra.mxu0 %v5250
        %5330 = vmatpush.bf16.msra.mxu0 %v5246
        %5331 = vmatpush.bf16.msra.mxu0 %v5242
        %5332 = vmatpush.bf16.msra.mxu0 %v5238
        %5333 = vmatpush.bf16.msra.mxu0 %v5234
        %5334 = vmatmul.bf16.gmra.mxu0 %v5089
        %v5335 = vpop.f32.mrf.mxu0
        %v5336 = vadd.f32 %v5130, %v5335
        %v5337 = vpop.f32.mrf.mxu0
        %v5338 = vadd.f32 %v5130, %v5337
        %5339 = vmatmul.bf16.gmra.mxu0 %v5090
        %v5340 = vpop.f32.mrf.mxu0
        %v5341 = vadd.f32 %v5130, %v5340
        %v5342 = vpop.f32.mrf.mxu0
        %v5343 = vadd.f32 %v5130, %v5342
        %5344 = vmatmul.bf16.gmra.mxu0 %v5091
        %v5345 = vpop.f32.mrf.mxu0
        %v5346 = vadd.f32 %v5130, %v5345
        %v5347 = vpop.f32.mrf.mxu0
        %v5348 = vadd.f32 %v5130, %v5347
        %5349 = vmatmul.bf16.gmra.mxu0 %v5092
        %v5350 = vpop.f32.mrf.mxu0
        %v5351 = vadd.f32 %v5130, %v5350
        %v5352 = vpop.f32.mrf.mxu0
        %v5353 = vadd.f32 %v5130, %v5352
        %5354 = vdwg.mxu0
        %5355 = vmatpush.bf16.msra.mxu0 %v5263
        %5356 = vmatpush.bf16.msra.mxu0 %v5259
        %5357 = vmatpush.bf16.msra.mxu0 %v5255
        %5358 = vmatpush.bf16.msra.mxu0 %v5251
        %5359 = vmatpush.bf16.msra.mxu0 %v5247
        %5360 = vmatpush.bf16.msra.mxu0 %v5243
        %5361 = vmatpush.bf16.msra.mxu0 %v5239
        %5362 = vmatpush.bf16.msra.mxu0 %v5235
        %5363 = vmatmul.bf16.gmra.mxu0 %v5089
        %v5364 = vpop.f32.mrf.mxu0
        %v5365 = vadd.f32 %v5131, %v5364
        %v5366 = vpop.f32.mrf.mxu0
        %v5367 = vadd.f32 %v5131, %v5366
        %5368 = vmatmul.bf16.gmra.mxu0 %v5090
        %v5369 = vpop.f32.mrf.mxu0
        %v5370 = vadd.f32 %v5131, %v5369
        %v5371 = vpop.f32.mrf.mxu0
        %v5372 = vadd.f32 %v5131, %v5371
        %5373 = vmatmul.bf16.gmra.mxu0 %v5091
        %v5374 = vpop.f32.mrf.mxu0
        %v5375 = vadd.f32 %v5131, %v5374
        %v5376 = vpop.f32.mrf.mxu0
        %v5377 = vadd.f32 %v5131, %v5376
        %5378 = vmatmul.bf16.gmra.mxu0 %v5092
        %v5379 = vpop.f32.mrf.mxu0
        %v5380 = vadd.f32 %v5131, %v5379
        %v5381 = vpop.f32.mrf.mxu0
        %v5382 = vadd.f32 %v5131, %v5381
        %5383 = vdwg.mxu0
        %5384 = vmatpush.bf16.msra.mxu0 %v5264
        %5385 = vmatpush.bf16.msra.mxu0 %v5260
        %5386 = vmatpush.bf16.msra.mxu0 %v5256
        %5387 = vmatpush.bf16.msra.mxu0 %v5252
        %5388 = vmatpush.bf16.msra.mxu0 %v5248
        %5389 = vmatpush.bf16.msra.mxu0 %v5244
        %5390 = vmatpush.bf16.msra.mxu0 %v5240
        %5391 = vmatpush.bf16.msra.mxu0 %v5236
        %5392 = vmatmul.bf16.gmra.mxu0 %v5089
        %v5393 = vpop.f32.mrf.mxu0
        %v5394 = vadd.f32 %v5132, %v5393
        %v5395 = vpop.f32.mrf.mxu0
        %v5396 = vadd.f32 %v5132, %v5395
        %5397 = vmatmul.bf16.gmra.mxu0 %v5090
        %v5398 = vpop.f32.mrf.mxu0
        %v5399 = vadd.f32 %v5132, %v5398
        %v5400 = vpop.f32.mrf.mxu0
        %v5401 = vadd.f32 %v5132, %v5400
        %5402 = vmatmul.bf16.gmra.mxu0 %v5091
        %v5403 = vpop.f32.mrf.mxu0
        %v5404 = vadd.f32 %v5132, %v5403
        %v5405 = vpop.f32.mrf.mxu0
        %v5406 = vadd.f32 %v5132, %v5405
        %5407 = vmatmul.bf16.gmra.mxu0 %v5092
        %v5408 = vpop.f32.mrf.mxu0
        %v5409 = vadd.f32 %v5132, %v5408
        %v5410 = vpop.f32.mrf.mxu0
        %v5411 = vadd.f32 %v5132, %v5410
        %5412 = vdwg.mxu0
        %5413 = vst [vmem:[#allocation5] sm:$0xff] %v5307
        %5414 = vst [vmem:[#allocation5 + $0x8] sm:$0xff] %v5336
        %5415 = vst [vmem:[#allocation5 + $0x10] sm:$0xff] %v5365
        %5416 = vst [vmem:[#allocation5 + $0x18] sm:$0xff] %v5394
        %5417 = vst [vmem:[#allocation5 + $0x20] sm:$0xff] %v5309
        %5418 = vst [vmem:[#allocation5 + $0x28] sm:$0xff] %v5338
        %5419 = vst [vmem:[#allocation5 + $0x30] sm:$0xff] %v5367
        %5420 = vst [vmem:[#allocation5 + $0x38] sm:$0xff] %v5396
        %5421 = vst [vmem:[#allocation5 + $0x40] sm:$0xff] %v5312
        %5422 = vst [vmem:[#allocation5 + $0x48] sm:$0xff] %v5341
        %5423 = vst [vmem:[#allocation5 + $0x50] sm:$0xff] %v5370
        %5424 = vst [vmem:[#allocation5 + $0x58] sm:$0xff] %v5399
        %5425 = vst [vmem:[#allocation5 + $0x60] sm:$0xff] %v5314
        %5426 = vst [vmem:[#allocation5 + $0x68] sm:$0xff] %v5343
        %5427 = vst [vmem:[#allocation5 + $0x70] sm:$0xff] %v5372
        %5428 = vst [vmem:[#allocation5 + $0x78] sm:$0xff] %v5401
        %5429 = vst [vmem:[#allocation5 + $0x80] sm:$0xff] %v5317
        %5430 = vst [vmem:[#allocation5 + $0x88] sm:$0xff] %v5346
        %5431 = vst [vmem:[#allocation5 + $0x90] sm:$0xff] %v5375
        %5432 = vst [vmem:[#allocation5 + $0x98] sm:$0xff] %v5404
        %5433 = vst [vmem:[#allocation5 + $0xa0] sm:$0xff] %v5319
        %5434 = vst [vmem:[#allocation5 + $0xa8] sm:$0xff] %v5348
        %5435 = vst [vmem:[#allocation5 + $0xb0] sm:$0xff] %v5377
        %5436 = vst [vmem:[#allocation5 + $0xb8] sm:$0xff] %v5406
        %5437 = vst [vmem:[#allocation5 + $0xc0] sm:$0xff] %v5322
        %5438 = vst [vmem:[#allocation5 + $0xc8] sm:$0xff] %v5351
        %5439 = vst [vmem:[#allocation5 + $0xd0] sm:$0xff] %v5380
        %5440 = vst [vmem:[#allocation5 + $0xd8] sm:$0xff] %v5409
        %5441 = vst [vmem:[#allocation5 + $0xe0] sm:$0xff] %v5324
        %5442 = vst [vmem:[#allocation5 + $0xe8] sm:$0xff] %v5353
        %5443 = vst [vmem:[#allocation5 + $0xf0] sm:$0xff] %v5382
        %5444 = vst [vmem:[#allocation5 + $0xf8] sm:$0xff] %v5411
        %s5445 = scalar_lea.vmem [#allocation11], 768
        %v5446 = vld [vmem:[%s5445] sm:$0xff]
        %v5447 = vld [vmem:[%s5445 + $0x8] sm:$0xff]
        %v5448 = vld [vmem:[%s5445 + $0x10] sm:$0xff]
        %v5449 = vld [vmem:[%s5445 + $0x18] sm:$0xff]
        %v5450 = vld [vmem:[%s5445 + $0x20] sm:$0xff]
        %v5451 = vld [vmem:[%s5445 + $0x28] sm:$0xff]
        %v5452 = vld [vmem:[%s5445 + $0x30] sm:$0xff]
        %v5453 = vld [vmem:[%s5445 + $0x38] sm:$0xff]
        %v5454 = vld [vmem:[%s5445 + $0x40] sm:$0xff]
        %v5455 = vld [vmem:[%s5445 + $0x48] sm:$0xff]
        %v5456 = vld [vmem:[%s5445 + $0x50] sm:$0xff]
        %v5457 = vld [vmem:[%s5445 + $0x58] sm:$0xff]
        %v5458 = vld [vmem:[%s5445 + $0x60] sm:$0xff]
        %v5459 = vld [vmem:[%s5445 + $0x68] sm:$0xff]
        %v5460 = vld [vmem:[%s5445 + $0x70] sm:$0xff]
        %v5461 = vld [vmem:[%s5445 + $0x78] sm:$0xff]
        %v5462 = vld [vmem:[%s5445 + $0x80] sm:$0xff]
        %v5463 = vld [vmem:[%s5445 + $0x88] sm:$0xff]
        %v5464 = vld [vmem:[%s5445 + $0x90] sm:$0xff]
        %v5465 = vld [vmem:[%s5445 + $0x98] sm:$0xff]
        %v5466 = vld [vmem:[%s5445 + $0xa0] sm:$0xff]
        %v5467 = vld [vmem:[%s5445 + $0xa8] sm:$0xff]
        %v5468 = vld [vmem:[%s5445 + $0xb0] sm:$0xff]
        %v5469 = vld [vmem:[%s5445 + $0xb8] sm:$0xff]
        %v5470 = vld [vmem:[%s5445 + $0xc0] sm:$0xff]
        %v5471 = vld [vmem:[%s5445 + $0xc8] sm:$0xff]
        %v5472 = vld [vmem:[%s5445 + $0xd0] sm:$0xff]
        %v5473 = vld [vmem:[%s5445 + $0xd8] sm:$0xff]
        %v5474 = vld [vmem:[%s5445 + $0xe0] sm:$0xff]
        %v5475 = vld [vmem:[%s5445 + $0xe8] sm:$0xff]
        %v5476 = vld [vmem:[%s5445 + $0xf0] sm:$0xff]
        %v5477 = vld [vmem:[%s5445 + $0xf8] sm:$0xff]
        %s5478 = scalar_lea.vmem [#allocation2], 24
        %v5479 = vld [vmem:[%s5478] sm:$0xff]
        %s5480 = scalar_lea.vmem [#allocation3], 24
        %v5481 = vld [vmem:[%s5480] sm:$0xff]
        %v5482 = vld [vmem:[#allocation5] sm:$0xff]
        %v5483 = vld [vmem:[#allocation5 + $0x8] sm:$0xff]
        %v5484 = vld [vmem:[#allocation5 + $0x10] sm:$0xff]
        %v5485 = vld [vmem:[#allocation5 + $0x18] sm:$0xff]
        %v5486 = vpack.c.bf16 %v5479, %v5479
        %v5519 = vunpack.c.l.b16 %v5446
        %v5520 = vunpack.c.h.b16 %v5446
        %v5521 = vunpack.c.l.b16 %v5447
        %v5522 = vunpack.c.h.b16 %v5447
        %v5523 = vunpack.c.l.b16 %v5448
        %v5524 = vunpack.c.h.b16 %v5448
        %v5525 = vunpack.c.l.b16 %v5449
        %v5526 = vunpack.c.h.b16 %v5449
        %v5527 = vunpack.c.l.b16 %v5450
        %v5528 = vunpack.c.h.b16 %v5450
        %v5529 = vunpack.c.l.b16 %v5451
        %v5530 = vunpack.c.h.b16 %v5451
        %v5531 = vunpack.c.l.b16 %v5452
        %v5532 = vunpack.c.h.b16 %v5452
        %v5533 = vunpack.c.l.b16 %v5453
        %v5534 = vunpack.c.h.b16 %v5453
        %v5535 = vunpack.c.l.b16 %v5454
        %v5536 = vunpack.c.h.b16 %v5454
        %v5537 = vunpack.c.l.b16 %v5455
        %v5538 = vunpack.c.h.b16 %v5455
        %v5539 = vunpack.c.l.b16 %v5456
        %v5540 = vunpack.c.h.b16 %v5456
        %v5541 = vunpack.c.l.b16 %v5457
        %v5542 = vunpack.c.h.b16 %v5457
        %v5543 = vunpack.c.l.b16 %v5458
        %v5544 = vunpack.c.h.b16 %v5458
        %v5545 = vunpack.c.l.b16 %v5459
        %v5546 = vunpack.c.h.b16 %v5459
        %v5547 = vunpack.c.l.b16 %v5460
        %v5548 = vunpack.c.h.b16 %v5460
        %v5549 = vunpack.c.l.b16 %v5461
        %v5550 = vunpack.c.h.b16 %v5461
        %v5551 = vunpack.c.l.b16 %v5462
        %v5552 = vunpack.c.h.b16 %v5462
        %v5553 = vunpack.c.l.b16 %v5463
        %v5554 = vunpack.c.h.b16 %v5463
        %v5555 = vunpack.c.l.b16 %v5464
        %v5556 = vunpack.c.h.b16 %v5464
        %v5557 = vunpack.c.l.b16 %v5465
        %v5558 = vunpack.c.h.b16 %v5465
        %v5559 = vunpack.c.l.b16 %v5466
        %v5560 = vunpack.c.h.b16 %v5466
        %v5561 = vunpack.c.l.b16 %v5467
        %v5562 = vunpack.c.h.b16 %v5467
        %v5563 = vunpack.c.l.b16 %v5468
        %v5564 = vunpack.c.h.b16 %v5468
        %v5565 = vunpack.c.l.b16 %v5469
        %v5566 = vunpack.c.h.b16 %v5469
        %v5567 = vunpack.c.l.b16 %v5470
        %v5568 = vunpack.c.h.b16 %v5470
        %v5569 = vunpack.c.l.b16 %v5471
        %v5570 = vunpack.c.h.b16 %v5471
        %v5571 = vunpack.c.l.b16 %v5472
        %v5572 = vunpack.c.h.b16 %v5472
        %v5573 = vunpack.c.l.b16 %v5473
        %v5574 = vunpack.c.h.b16 %v5473
        %v5575 = vunpack.c.l.b16 %v5474
        %v5576 = vunpack.c.h.b16 %v5474
        %v5577 = vunpack.c.l.b16 %v5475
        %v5578 = vunpack.c.h.b16 %v5475
        %v5579 = vunpack.c.l.b16 %v5476
        %v5580 = vunpack.c.h.b16 %v5476
        %v5581 = vunpack.c.l.b16 %v5477
        %v5582 = vunpack.c.h.b16 %v5477
        %v5583 = vpack.c.b16 %v5523, %v5519
        %v5584 = vpack.c.b16 %v5524, %v5520
        %v5585 = vpack.c.b16 %v5525, %v5521
        %v5586 = vpack.c.b16 %v5526, %v5522
        %v5587 = vpack.c.b16 %v5531, %v5527
        %v5588 = vpack.c.b16 %v5532, %v5528
        %v5589 = vpack.c.b16 %v5533, %v5529
        %v5590 = vpack.c.b16 %v5534, %v5530
        %v5591 = vpack.c.b16 %v5539, %v5535
        %v5592 = vpack.c.b16 %v5540, %v5536
        %v5593 = vpack.c.b16 %v5541, %v5537
        %v5594 = vpack.c.b16 %v5542, %v5538
        %v5595 = vpack.c.b16 %v5547, %v5543
        %v5596 = vpack.c.b16 %v5548, %v5544
        %v5597 = vpack.c.b16 %v5549, %v5545
        %v5598 = vpack.c.b16 %v5550, %v5546
        %v5599 = vpack.c.b16 %v5555, %v5551
        %v5600 = vpack.c.b16 %v5556, %v5552
        %v5601 = vpack.c.b16 %v5557, %v5553
        %v5602 = vpack.c.b16 %v5558, %v5554
        %v5603 = vpack.c.b16 %v5563, %v5559
        %v5604 = vpack.c.b16 %v5564, %v5560
        %v5605 = vpack.c.b16 %v5565, %v5561
        %v5606 = vpack.c.b16 %v5566, %v5562
        %v5607 = vpack.c.b16 %v5571, %v5567
        %v5608 = vpack.c.b16 %v5572, %v5568
        %v5609 = vpack.c.b16 %v5573, %v5569
        %v5610 = vpack.c.b16 %v5574, %v5570
        %v5611 = vpack.c.b16 %v5579, %v5575
        %v5612 = vpack.c.b16 %v5580, %v5576
        %v5613 = vpack.c.b16 %v5581, %v5577
        %v5614 = vpack.c.b16 %v5582, %v5578
        %5647 = vmatpush.bf16.msra.mxu0 %v5611
        %5648 = vmatpush.bf16.msra.mxu0 %v5607
        %5649 = vmatpush.bf16.msra.mxu0 %v5603
        %5650 = vmatpush.bf16.msra.mxu0 %v5599
        %5651 = vmatpush.bf16.msra.mxu0 %v5595
        %5652 = vmatpush.bf16.msra.mxu0 %v5591
        %5653 = vmatpush.bf16.msra.mxu0 %v5587
        %5654 = vmatpush.bf16.msra.mxu0 %v5583
        %5655 = vmatmul.bf16.gmra.mxu0 %v5486
        %v5656 = vpop.f32.mrf.mxu0
        %v5657 = vadd.f32 0.0, %v5656
        %v5658 = vpop.f32.mrf.mxu0
        %5659 = vdwg.mxu0
        %5660 = vmatpush.bf16.msra.mxu0 %v5612
        %5661 = vmatpush.bf16.msra.mxu0 %v5608
        %5662 = vmatpush.bf16.msra.mxu0 %v5604
        %5663 = vmatpush.bf16.msra.mxu0 %v5600
        %5664 = vmatpush.bf16.msra.mxu0 %v5596
        %5665 = vmatpush.bf16.msra.mxu0 %v5592
        %5666 = vmatpush.bf16.msra.mxu0 %v5588
        %5667 = vmatpush.bf16.msra.mxu0 %v5584
        %5668 = vmatmul.bf16.gmra.mxu0 %v5486
        %v5669 = vpop.f32.mrf.mxu0
        %v5670 = vadd.f32 0.0, %v5669
        %v5671 = vpop.f32.mrf.mxu0
        %5672 = vdwg.mxu0
        %5673 = vmatpush.bf16.msra.mxu0 %v5613
        %5674 = vmatpush.bf16.msra.mxu0 %v5609
        %5675 = vmatpush.bf16.msra.mxu0 %v5605
        %5676 = vmatpush.bf16.msra.mxu0 %v5601
        %5677 = vmatpush.bf16.msra.mxu0 %v5597
        %5678 = vmatpush.bf16.msra.mxu0 %v5593
        %5679 = vmatpush.bf16.msra.mxu0 %v5589
        %5680 = vmatpush.bf16.msra.mxu0 %v5585
        %5681 = vmatmul.bf16.gmra.mxu0 %v5486
        %v5682 = vpop.f32.mrf.mxu0
        %v5683 = vadd.f32 0.0, %v5682
        %v5684 = vpop.f32.mrf.mxu0
        %5685 = vdwg.mxu0
        %5686 = vmatpush.bf16.msra.mxu0 %v5614
        %5687 = vmatpush.bf16.msra.mxu0 %v5610
        %5688 = vmatpush.bf16.msra.mxu0 %v5606
        %5689 = vmatpush.bf16.msra.mxu0 %v5602
        %5690 = vmatpush.bf16.msra.mxu0 %v5598
        %5691 = vmatpush.bf16.msra.mxu0 %v5594
        %5692 = vmatpush.bf16.msra.mxu0 %v5590
        %5693 = vmatpush.bf16.msra.mxu0 %v5586
        %5694 = vmatmul.bf16.gmra.mxu0 %v5486
        %v5695 = vpop.f32.mrf.mxu0
        %v5696 = vadd.f32 0.0, %v5695
        %v5697 = vpop.f32.mrf.mxu0
        %5698 = vdwg.mxu0
        %v5699 = vadd.f32 %v5482, %v5657
        %v5700 = vadd.f32 %v5483, %v5670
        %v5701 = vadd.f32 %v5484, %v5683
        %v5702 = vadd.f32 %v5485, %v5696
        %v5703 = vxor.u32 %v5699, 2147483648
        %v5704 = vxor.u32 %v5700, 2147483648
        %v5705 = vxor.u32 %v5701, 2147483648
        %v5706 = vmul.f32 %v5703, 1.442695
        %v5707 = vpow.pop %v5706
        %v5708 = vmul.f32 %v5704, 1.442695
        %v5709 = vpow.pop %v5708
        %v5710 = vmul.f32 %v5705, 1.442695
        %v5711 = vpow.pop %v5710
        %v5712 = vadd.f32 %v5707, 1.0
        %v5713 = vadd.f32 %v5709, 1.0
        %v5714 = vadd.f32 %v5711, 1.0
        %v5715 = vrcp.pop %v5712
        %v5716 = vmul.f32 %v5712, %v5715
        %v5717 = vsub.f32 1.0, %v5716
        %v5718 = vmul.f32 %v5715, %v5717
        %v5719 = vadd.f32 %v5715, %v5718
        %vm5720 = vweird.f32 %v5712
        %vm5721 = vweird.f32 %v5715
        %vm5722 = vmor %vm5720, %vm5721
        %v5723 = vsel %vm5722, %v5715, %v5719
        %v5724 = vand.u32 2147483647, %v5712
        %vm5725 = vcmp.eq.f32.partialorder %v5724, 8.507059e+37
        %v5726 = vand.u32 %v5712, 2147483648
        %v5727 = vor.u32 1.1754944e-38, %v5726
        %v5728 = vsel %vm5725, %v5727, %v5723
        %v5729 = vmul.f32 1.0, %v5728
        %v5730 = vrcp.pop %v5713
        %v5731 = vmul.f32 %v5713, %v5730
        %v5732 = vsub.f32 1.0, %v5731
        %v5733 = vmul.f32 %v5730, %v5732
        %v5734 = vadd.f32 %v5730, %v5733
        %vm5735 = vweird.f32 %v5713
        %vm5736 = vweird.f32 %v5730
        %vm5737 = vmor %vm5735, %vm5736
        %v5738 = vsel %vm5737, %v5730, %v5734
        %v5739 = vand.u32 2147483647, %v5713
        %vm5740 = vcmp.eq.f32.partialorder %v5739, 8.507059e+37
        %v5741 = vand.u32 %v5713, 2147483648
        %v5742 = vor.u32 1.1754944e-38, %v5741
        %v5743 = vsel %vm5740, %v5742, %v5738
        %v5744 = vmul.f32 1.0, %v5743
        %v5745 = vrcp.pop %v5714
        %v5746 = vmul.f32 %v5714, %v5745
        %v5747 = vsub.f32 1.0, %v5746
        %v5748 = vmul.f32 %v5745, %v5747
        %v5749 = vadd.f32 %v5745, %v5748
        %vm5750 = vweird.f32 %v5714
        %vm5751 = vweird.f32 %v5745
        %vm5752 = vmor %vm5750, %vm5751
        %v5753 = vsel %vm5752, %v5745, %v5749
        %v5754 = vand.u32 2147483647, %v5714
        %vm5755 = vcmp.eq.f32.partialorder %v5754, 8.507059e+37
        %v5756 = vand.u32 %v5714, 2147483648
        %v5757 = vor.u32 1.1754944e-38, %v5756
        %v5758 = vsel %vm5755, %v5757, %v5753
        %v5759 = vmul.f32 1.0, %v5758
        %v5760 = vtanh.pop %v5702
        %v5761 = vmul.f32 %v5744, %v5481
        %v5762 = vmul.f32 %v5729, %v5760
        %v5763 = vadd.f32 %v5761, %v5762
        %v5764 = vtanh.pop %v5763
        %v5765 = vmul.f32 %v5759, %v5764
        %v5766 = vld [vmem:[#allocation5 + $0x20] sm:$0xff]
        %v5767 = vld [vmem:[#allocation5 + $0x28] sm:$0xff]
        %v5768 = vld [vmem:[#allocation5 + $0x30] sm:$0xff]
        %v5769 = vld [vmem:[#allocation5 + $0x38] sm:$0xff]
        %v5770 = vpack.c.bf16 %v5765, %v5765
        %5771 = vmatpush.bf16.msra.mxu0 %v5611
        %5772 = vmatpush.bf16.msra.mxu0 %v5607
        %5773 = vmatpush.bf16.msra.mxu0 %v5603
        %5774 = vmatpush.bf16.msra.mxu0 %v5599
        %5775 = vmatpush.bf16.msra.mxu0 %v5595
        %5776 = vmatpush.bf16.msra.mxu0 %v5591
        %5777 = vmatpush.bf16.msra.mxu0 %v5587
        %5778 = vmatpush.bf16.msra.mxu0 %v5583
        %5779 = vmatmul.bf16.gmra.mxu0 %v5770
        %v5780 = vpop.f32.mrf.mxu0
        %v5781 = vadd.f32 0.0, %v5780
        %v5782 = vpop.f32.mrf.mxu0
        %5783 = vdwg.mxu0
        %5784 = vmatpush.bf16.msra.mxu0 %v5612
        %5785 = vmatpush.bf16.msra.mxu0 %v5608
        %5786 = vmatpush.bf16.msra.mxu0 %v5604
        %5787 = vmatpush.bf16.msra.mxu0 %v5600
        %5788 = vmatpush.bf16.msra.mxu0 %v5596
        %5789 = vmatpush.bf16.msra.mxu0 %v5592
        %5790 = vmatpush.bf16.msra.mxu0 %v5588
        %5791 = vmatpush.bf16.msra.mxu0 %v5584
        %5792 = vmatmul.bf16.gmra.mxu0 %v5770
        %v5793 = vpop.f32.mrf.mxu0
        %v5794 = vadd.f32 0.0, %v5793
        %v5795 = vpop.f32.mrf.mxu0
        %5796 = vdwg.mxu0
        %5797 = vmatpush.bf16.msra.mxu0 %v5613
        %5798 = vmatpush.bf16.msra.mxu0 %v5609
        %5799 = vmatpush.bf16.msra.mxu0 %v5605
        %5800 = vmatpush.bf16.msra.mxu0 %v5601
        %5801 = vmatpush.bf16.msra.mxu0 %v5597
        %5802 = vmatpush.bf16.msra.mxu0 %v5593
        %5803 = vmatpush.bf16.msra.mxu0 %v5589
        %5804 = vmatpush.bf16.msra.mxu0 %v5585
        %5805 = vmatmul.bf16.gmra.mxu0 %v5770
        %v5806 = vpop.f32.mrf.mxu0
        %v5807 = vadd.f32 0.0, %v5806
        %v5808 = vpop.f32.mrf.mxu0
        %5809 = vdwg.mxu0
        %5810 = vmatpush.bf16.msra.mxu0 %v5614
        %5811 = vmatpush.bf16.msra.mxu0 %v5610
        %5812 = vmatpush.bf16.msra.mxu0 %v5606
        %5813 = vmatpush.bf16.msra.mxu0 %v5602
        %5814 = vmatpush.bf16.msra.mxu0 %v5598
        %5815 = vmatpush.bf16.msra.mxu0 %v5594
        %5816 = vmatpush.bf16.msra.mxu0 %v5590
        %5817 = vmatpush.bf16.msra.mxu0 %v5586
        %5818 = vmatmul.bf16.gmra.mxu0 %v5770
        %v5819 = vpop.f32.mrf.mxu0
        %v5820 = vadd.f32 0.0, %v5819
        %v5821 = vpop.f32.mrf.mxu0
        %5822 = vdwg.mxu0
        %v5823 = vadd.f32 %v5766, %v5781
        %v5824 = vadd.f32 %v5767, %v5794
        %v5825 = vadd.f32 %v5768, %v5807
        %v5826 = vadd.f32 %v5769, %v5820
        %v5827 = vxor.u32 %v5823, 2147483648
        %v5828 = vxor.u32 %v5824, 2147483648
        %v5829 = vxor.u32 %v5825, 2147483648
        %v5830 = vmul.f32 %v5827, 1.442695
        %v5831 = vpow.pop %v5830
        %v5832 = vmul.f32 %v5828, 1.442695
        %v5833 = vpow.pop %v5832
        %v5834 = vmul.f32 %v5829, 1.442695
        %v5835 = vpow.pop %v5834
        %v5836 = vadd.f32 %v5831, 1.0
        %v5837 = vadd.f32 %v5833, 1.0
        %v5838 = vadd.f32 %v5835, 1.0
        %v5839 = vrcp.pop %v5836
        %v5840 = vmul.f32 %v5836, %v5839
        %v5841 = vsub.f32 1.0, %v5840
        %v5842 = vmul.f32 %v5839, %v5841
        %v5843 = vadd.f32 %v5839, %v5842
        %vm5844 = vweird.f32 %v5836
        %vm5845 = vweird.f32 %v5839
        %vm5846 = vmor %vm5844, %vm5845
        %v5847 = vsel %vm5846, %v5839, %v5843
        %v5848 = vand.u32 2147483647, %v5836
        %vm5849 = vcmp.eq.f32.partialorder %v5848, 8.507059e+37
        %v5850 = vand.u32 %v5836, 2147483648
        %v5851 = vor.u32 1.1754944e-38, %v5850
        %v5852 = vsel %vm5849, %v5851, %v5847
        %v5853 = vmul.f32 1.0, %v5852
        %v5854 = vrcp.pop %v5837
        %v5855 = vmul.f32 %v5837, %v5854
        %v5856 = vsub.f32 1.0, %v5855
        %v5857 = vmul.f32 %v5854, %v5856
        %v5858 = vadd.f32 %v5854, %v5857
        %vm5859 = vweird.f32 %v5837
        %vm5860 = vweird.f32 %v5854
        %vm5861 = vmor %vm5859, %vm5860
        %v5862 = vsel %vm5861, %v5854, %v5858
        %v5863 = vand.u32 2147483647, %v5837
        %vm5864 = vcmp.eq.f32.partialorder %v5863, 8.507059e+37
        %v5865 = vand.u32 %v5837, 2147483648
        %v5866 = vor.u32 1.1754944e-38, %v5865
        %v5867 = vsel %vm5864, %v5866, %v5862
        %v5868 = vmul.f32 1.0, %v5867
        %v5869 = vrcp.pop %v5838
        %v5870 = vmul.f32 %v5838, %v5869
        %v5871 = vsub.f32 1.0, %v5870
        %v5872 = vmul.f32 %v5869, %v5871
        %v5873 = vadd.f32 %v5869, %v5872
        %vm5874 = vweird.f32 %v5838
        %vm5875 = vweird.f32 %v5869
        %vm5876 = vmor %vm5874, %vm5875
        %v5877 = vsel %vm5876, %v5869, %v5873
        %v5878 = vand.u32 2147483647, %v5838
        %vm5879 = vcmp.eq.f32.partialorder %v5878, 8.507059e+37
        %v5880 = vand.u32 %v5838, 2147483648
        %v5881 = vor.u32 1.1754944e-38, %v5880
        %v5882 = vsel %vm5879, %v5881, %v5877
        %v5883 = vmul.f32 1.0, %v5882
        %v5884 = vtanh.pop %v5826
        %v5885 = vmul.f32 %v5868, %v5763
        %v5886 = vmul.f32 %v5853, %v5884
        %v5887 = vadd.f32 %v5885, %v5886
        %v5888 = vtanh.pop %v5887
        %v5889 = vmul.f32 %v5883, %v5888
        %v5890 = vld [vmem:[#allocation5 + $0x40] sm:$0xff]
        %v5891 = vld [vmem:[#allocation5 + $0x48] sm:$0xff]
        %v5892 = vld [vmem:[#allocation5 + $0x50] sm:$0xff]
        %v5893 = vld [vmem:[#allocation5 + $0x58] sm:$0xff]
        %v5894 = vpack.c.bf16 %v5889, %v5889
        %5895 = vmatpush.bf16.msra.mxu0 %v5611
        %5896 = vmatpush.bf16.msra.mxu0 %v5607
        %5897 = vmatpush.bf16.msra.mxu0 %v5603
        %5898 = vmatpush.bf16.msra.mxu0 %v5599
        %5899 = vmatpush.bf16.msra.mxu0 %v5595
        %5900 = vmatpush.bf16.msra.mxu0 %v5591
        %5901 = vmatpush.bf16.msra.mxu0 %v5587
        %5902 = vmatpush.bf16.msra.mxu0 %v5583
        %5903 = vmatmul.bf16.gmra.mxu0 %v5894
        %v5904 = vpop.f32.mrf.mxu0
        %v5905 = vadd.f32 0.0, %v5904
        %v5906 = vpop.f32.mrf.mxu0
        %5907 = vdwg.mxu0
        %5908 = vmatpush.bf16.msra.mxu0 %v5612
        %5909 = vmatpush.bf16.msra.mxu0 %v5608
        %5910 = vmatpush.bf16.msra.mxu0 %v5604
        %5911 = vmatpush.bf16.msra.mxu0 %v5600
        %5912 = vmatpush.bf16.msra.mxu0 %v5596
        %5913 = vmatpush.bf16.msra.mxu0 %v5592
        %5914 = vmatpush.bf16.msra.mxu0 %v5588
        %5915 = vmatpush.bf16.msra.mxu0 %v5584
        %5916 = vmatmul.bf16.gmra.mxu0 %v5894
        %v5917 = vpop.f32.mrf.mxu0
        %v5918 = vadd.f32 0.0, %v5917
        %v5919 = vpop.f32.mrf.mxu0
        %5920 = vdwg.mxu0
        %5921 = vmatpush.bf16.msra.mxu0 %v5613
        %5922 = vmatpush.bf16.msra.mxu0 %v5609
        %5923 = vmatpush.bf16.msra.mxu0 %v5605
        %5924 = vmatpush.bf16.msra.mxu0 %v5601
        %5925 = vmatpush.bf16.msra.mxu0 %v5597
        %5926 = vmatpush.bf16.msra.mxu0 %v5593
        %5927 = vmatpush.bf16.msra.mxu0 %v5589
        %5928 = vmatpush.bf16.msra.mxu0 %v5585
        %5929 = vmatmul.bf16.gmra.mxu0 %v5894
        %v5930 = vpop.f32.mrf.mxu0
        %v5931 = vadd.f32 0.0, %v5930
        %v5932 = vpop.f32.mrf.mxu0
        %5933 = vdwg.mxu0
        %5934 = vmatpush.bf16.msra.mxu0 %v5614
        %5935 = vmatpush.bf16.msra.mxu0 %v5610
        %5936 = vmatpush.bf16.msra.mxu0 %v5606
        %5937 = vmatpush.bf16.msra.mxu0 %v5602
        %5938 = vmatpush.bf16.msra.mxu0 %v5598
        %5939 = vmatpush.bf16.msra.mxu0 %v5594
        %5940 = vmatpush.bf16.msra.mxu0 %v5590
        %5941 = vmatpush.bf16.msra.mxu0 %v5586
        %5942 = vmatmul.bf16.gmra.mxu0 %v5894
        %v5943 = vpop.f32.mrf.mxu0
        %v5944 = vadd.f32 0.0, %v5943
        %v5945 = vpop.f32.mrf.mxu0
        %5946 = vdwg.mxu0
        %v5947 = vadd.f32 %v5890, %v5905
        %v5948 = vadd.f32 %v5891, %v5918
        %v5949 = vadd.f32 %v5892, %v5931
        %v5950 = vadd.f32 %v5893, %v5944
        %v5951 = vxor.u32 %v5947, 2147483648
        %v5952 = vxor.u32 %v5948, 2147483648
        %v5953 = vxor.u32 %v5949, 2147483648
        %v5954 = vmul.f32 %v5951, 1.442695
        %v5955 = vpow.pop %v5954
        %v5956 = vmul.f32 %v5952, 1.442695
        %v5957 = vpow.pop %v5956
        %v5958 = vmul.f32 %v5953, 1.442695
        %v5959 = vpow.pop %v5958
        %v5960 = vadd.f32 %v5955, 1.0
        %v5961 = vadd.f32 %v5957, 1.0
        %v5962 = vadd.f32 %v5959, 1.0
        %v5963 = vrcp.pop %v5960
        %v5964 = vmul.f32 %v5960, %v5963
        %v5965 = vsub.f32 1.0, %v5964
        %v5966 = vmul.f32 %v5963, %v5965
        %v5967 = vadd.f32 %v5963, %v5966
        %vm5968 = vweird.f32 %v5960
        %vm5969 = vweird.f32 %v5963
        %vm5970 = vmor %vm5968, %vm5969
        %v5971 = vsel %vm5970, %v5963, %v5967
        %v5972 = vand.u32 2147483647, %v5960
        %vm5973 = vcmp.eq.f32.partialorder %v5972, 8.507059e+37
        %v5974 = vand.u32 %v5960, 2147483648
        %v5975 = vor.u32 1.1754944e-38, %v5974
        %v5976 = vsel %vm5973, %v5975, %v5971
        %v5977 = vmul.f32 1.0, %v5976
        %v5978 = vrcp.pop %v5961
        %v5979 = vmul.f32 %v5961, %v5978
        %v5980 = vsub.f32 1.0, %v5979
        %v5981 = vmul.f32 %v5978, %v5980
        %v5982 = vadd.f32 %v5978, %v5981
        %vm5983 = vweird.f32 %v5961
        %vm5984 = vweird.f32 %v5978
        %vm5985 = vmor %vm5983, %vm5984
        %v5986 = vsel %vm5985, %v5978, %v5982
        %v5987 = vand.u32 2147483647, %v5961
        %vm5988 = vcmp.eq.f32.partialorder %v5987, 8.507059e+37
        %v5989 = vand.u32 %v5961, 2147483648
        %v5990 = vor.u32 1.1754944e-38, %v5989
        %v5991 = vsel %vm5988, %v5990, %v5986
        %v5992 = vmul.f32 1.0, %v5991
        %v5993 = vrcp.pop %v5962
        %v5994 = vmul.f32 %v5962, %v5993
        %v5995 = vsub.f32 1.0, %v5994
        %v5996 = vmul.f32 %v5993, %v5995
        %v5997 = vadd.f32 %v5993, %v5996
        %vm5998 = vweird.f32 %v5962
        %vm5999 = vweird.f32 %v5993
        %vm6000 = vmor %vm5998, %vm5999
        %v6001 = vsel %vm6000, %v5993, %v5997
        %v6002 = vand.u32 2147483647, %v5962
        %vm6003 = vcmp.eq.f32.partialorder %v6002, 8.507059e+37
        %v6004 = vand.u32 %v5962, 2147483648
        %v6005 = vor.u32 1.1754944e-38, %v6004
        %v6006 = vsel %vm6003, %v6005, %v6001
        %v6007 = vmul.f32 1.0, %v6006
        %v6008 = vtanh.pop %v5950
        %v6009 = vmul.f32 %v5992, %v5887
        %v6010 = vmul.f32 %v5977, %v6008
        %v6011 = vadd.f32 %v6009, %v6010
        %v6012 = vtanh.pop %v6011
        %v6013 = vmul.f32 %v6007, %v6012
        %v6014 = vld [vmem:[#allocation5 + $0x60] sm:$0xff]
        %v6015 = vld [vmem:[#allocation5 + $0x68] sm:$0xff]
        %v6016 = vld [vmem:[#allocation5 + $0x70] sm:$0xff]
        %v6017 = vld [vmem:[#allocation5 + $0x78] sm:$0xff]
        %v6018 = vpack.c.bf16 %v6013, %v6013
        %6019 = vmatpush.bf16.msra.mxu0 %v5611
        %6020 = vmatpush.bf16.msra.mxu0 %v5607
        %6021 = vmatpush.bf16.msra.mxu0 %v5603
        %6022 = vmatpush.bf16.msra.mxu0 %v5599
        %6023 = vmatpush.bf16.msra.mxu0 %v5595
        %6024 = vmatpush.bf16.msra.mxu0 %v5591
        %6025 = vmatpush.bf16.msra.mxu0 %v5587
        %6026 = vmatpush.bf16.msra.mxu0 %v5583
        %6027 = vmatmul.bf16.gmra.mxu0 %v6018
        %v6028 = vpop.f32.mrf.mxu0
        %v6029 = vadd.f32 0.0, %v6028
        %v6030 = vpop.f32.mrf.mxu0
        %6031 = vdwg.mxu0
        %6032 = vmatpush.bf16.msra.mxu0 %v5612
        %6033 = vmatpush.bf16.msra.mxu0 %v5608
        %6034 = vmatpush.bf16.msra.mxu0 %v5604
        %6035 = vmatpush.bf16.msra.mxu0 %v5600
        %6036 = vmatpush.bf16.msra.mxu0 %v5596
        %6037 = vmatpush.bf16.msra.mxu0 %v5592
        %6038 = vmatpush.bf16.msra.mxu0 %v5588
        %6039 = vmatpush.bf16.msra.mxu0 %v5584
        %6040 = vmatmul.bf16.gmra.mxu0 %v6018
        %v6041 = vpop.f32.mrf.mxu0
        %v6042 = vadd.f32 0.0, %v6041
        %v6043 = vpop.f32.mrf.mxu0
        %6044 = vdwg.mxu0
        %6045 = vmatpush.bf16.msra.mxu0 %v5613
        %6046 = vmatpush.bf16.msra.mxu0 %v5609
        %6047 = vmatpush.bf16.msra.mxu0 %v5605
        %6048 = vmatpush.bf16.msra.mxu0 %v5601
        %6049 = vmatpush.bf16.msra.mxu0 %v5597
        %6050 = vmatpush.bf16.msra.mxu0 %v5593
        %6051 = vmatpush.bf16.msra.mxu0 %v5589
        %6052 = vmatpush.bf16.msra.mxu0 %v5585
        %6053 = vmatmul.bf16.gmra.mxu0 %v6018
        %v6054 = vpop.f32.mrf.mxu0
        %v6055 = vadd.f32 0.0, %v6054
        %v6056 = vpop.f32.mrf.mxu0
        %6057 = vdwg.mxu0
        %6058 = vmatpush.bf16.msra.mxu0 %v5614
        %6059 = vmatpush.bf16.msra.mxu0 %v5610
        %6060 = vmatpush.bf16.msra.mxu0 %v5606
        %6061 = vmatpush.bf16.msra.mxu0 %v5602
        %6062 = vmatpush.bf16.msra.mxu0 %v5598
        %6063 = vmatpush.bf16.msra.mxu0 %v5594
        %6064 = vmatpush.bf16.msra.mxu0 %v5590
        %6065 = vmatpush.bf16.msra.mxu0 %v5586
        %6066 = vmatmul.bf16.gmra.mxu0 %v6018
        %v6067 = vpop.f32.mrf.mxu0
        %v6068 = vadd.f32 0.0, %v6067
        %v6069 = vpop.f32.mrf.mxu0
        %6070 = vdwg.mxu0
        %v6071 = vadd.f32 %v6014, %v6029
        %v6072 = vadd.f32 %v6015, %v6042
        %v6073 = vadd.f32 %v6016, %v6055
        %v6074 = vadd.f32 %v6017, %v6068
        %v6075 = vxor.u32 %v6071, 2147483648
        %v6076 = vxor.u32 %v6072, 2147483648
        %v6077 = vxor.u32 %v6073, 2147483648
        %v6078 = vmul.f32 %v6075, 1.442695
        %v6079 = vpow.pop %v6078
        %v6080 = vmul.f32 %v6076, 1.442695
        %v6081 = vpow.pop %v6080
        %v6082 = vmul.f32 %v6077, 1.442695
        %v6083 = vpow.pop %v6082
        %v6084 = vadd.f32 %v6079, 1.0
        %v6085 = vadd.f32 %v6081, 1.0
        %v6086 = vadd.f32 %v6083, 1.0
        %v6087 = vrcp.pop %v6084
        %v6088 = vmul.f32 %v6084, %v6087
        %v6089 = vsub.f32 1.0, %v6088
        %v6090 = vmul.f32 %v6087, %v6089
        %v6091 = vadd.f32 %v6087, %v6090
        %vm6092 = vweird.f32 %v6084
        %vm6093 = vweird.f32 %v6087
        %vm6094 = vmor %vm6092, %vm6093
        %v6095 = vsel %vm6094, %v6087, %v6091
        %v6096 = vand.u32 2147483647, %v6084
        %vm6097 = vcmp.eq.f32.partialorder %v6096, 8.507059e+37
        %v6098 = vand.u32 %v6084, 2147483648
        %v6099 = vor.u32 1.1754944e-38, %v6098
        %v6100 = vsel %vm6097, %v6099, %v6095
        %v6101 = vmul.f32 1.0, %v6100
        %v6102 = vrcp.pop %v6085
        %v6103 = vmul.f32 %v6085, %v6102
        %v6104 = vsub.f32 1.0, %v6103
        %v6105 = vmul.f32 %v6102, %v6104
        %v6106 = vadd.f32 %v6102, %v6105
        %vm6107 = vweird.f32 %v6085
        %vm6108 = vweird.f32 %v6102
        %vm6109 = vmor %vm6107, %vm6108
        %v6110 = vsel %vm6109, %v6102, %v6106
        %v6111 = vand.u32 2147483647, %v6085
        %vm6112 = vcmp.eq.f32.partialorder %v6111, 8.507059e+37
        %v6113 = vand.u32 %v6085, 2147483648
        %v6114 = vor.u32 1.1754944e-38, %v6113
        %v6115 = vsel %vm6112, %v6114, %v6110
        %v6116 = vmul.f32 1.0, %v6115
        %v6117 = vrcp.pop %v6086
        %v6118 = vmul.f32 %v6086, %v6117
        %v6119 = vsub.f32 1.0, %v6118
        %v6120 = vmul.f32 %v6117, %v6119
        %v6121 = vadd.f32 %v6117, %v6120
        %vm6122 = vweird.f32 %v6086
        %vm6123 = vweird.f32 %v6117
        %vm6124 = vmor %vm6122, %vm6123
        %v6125 = vsel %vm6124, %v6117, %v6121
        %v6126 = vand.u32 2147483647, %v6086
        %vm6127 = vcmp.eq.f32.partialorder %v6126, 8.507059e+37
        %v6128 = vand.u32 %v6086, 2147483648
        %v6129 = vor.u32 1.1754944e-38, %v6128
        %v6130 = vsel %vm6127, %v6129, %v6125
        %v6131 = vmul.f32 1.0, %v6130
        %v6132 = vtanh.pop %v6074
        %v6133 = vmul.f32 %v6116, %v6011
        %v6134 = vmul.f32 %v6101, %v6132
        %v6135 = vadd.f32 %v6133, %v6134
        %v6136 = vtanh.pop %v6135
        %v6137 = vmul.f32 %v6131, %v6136
        %v6138 = vld [vmem:[#allocation5 + $0x80] sm:$0xff]
        %v6139 = vld [vmem:[#allocation5 + $0x88] sm:$0xff]
        %v6140 = vld [vmem:[#allocation5 + $0x90] sm:$0xff]
        %v6141 = vld [vmem:[#allocation5 + $0x98] sm:$0xff]
        %v6142 = vpack.c.bf16 %v6137, %v6137
        %6143 = vmatpush.bf16.msra.mxu0 %v5611
        %6144 = vmatpush.bf16.msra.mxu0 %v5607
        %6145 = vmatpush.bf16.msra.mxu0 %v5603
        %6146 = vmatpush.bf16.msra.mxu0 %v5599
        %6147 = vmatpush.bf16.msra.mxu0 %v5595
        %6148 = vmatpush.bf16.msra.mxu0 %v5591
        %6149 = vmatpush.bf16.msra.mxu0 %v5587
        %6150 = vmatpush.bf16.msra.mxu0 %v5583
        %6151 = vmatmul.bf16.gmra.mxu0 %v6142
        %v6152 = vpop.f32.mrf.mxu0
        %v6153 = vadd.f32 0.0, %v6152
        %v6154 = vpop.f32.mrf.mxu0
        %6155 = vdwg.mxu0
        %6156 = vmatpush.bf16.msra.mxu0 %v5612
        %6157 = vmatpush.bf16.msra.mxu0 %v5608
        %6158 = vmatpush.bf16.msra.mxu0 %v5604
        %6159 = vmatpush.bf16.msra.mxu0 %v5600
        %6160 = vmatpush.bf16.msra.mxu0 %v5596
        %6161 = vmatpush.bf16.msra.mxu0 %v5592
        %6162 = vmatpush.bf16.msra.mxu0 %v5588
        %6163 = vmatpush.bf16.msra.mxu0 %v5584
        %6164 = vmatmul.bf16.gmra.mxu0 %v6142
        %v6165 = vpop.f32.mrf.mxu0
        %v6166 = vadd.f32 0.0, %v6165
        %v6167 = vpop.f32.mrf.mxu0
        %6168 = vdwg.mxu0
        %6169 = vmatpush.bf16.msra.mxu0 %v5613
        %6170 = vmatpush.bf16.msra.mxu0 %v5609
        %6171 = vmatpush.bf16.msra.mxu0 %v5605
        %6172 = vmatpush.bf16.msra.mxu0 %v5601
        %6173 = vmatpush.bf16.msra.mxu0 %v5597
        %6174 = vmatpush.bf16.msra.mxu0 %v5593
        %6175 = vmatpush.bf16.msra.mxu0 %v5589
        %6176 = vmatpush.bf16.msra.mxu0 %v5585
        %6177 = vmatmul.bf16.gmra.mxu0 %v6142
        %v6178 = vpop.f32.mrf.mxu0
        %v6179 = vadd.f32 0.0, %v6178
        %v6180 = vpop.f32.mrf.mxu0
        %6181 = vdwg.mxu0
        %6182 = vmatpush.bf16.msra.mxu0 %v5614
        %6183 = vmatpush.bf16.msra.mxu0 %v5610
        %6184 = vmatpush.bf16.msra.mxu0 %v5606
        %6185 = vmatpush.bf16.msra.mxu0 %v5602
        %6186 = vmatpush.bf16.msra.mxu0 %v5598
        %6187 = vmatpush.bf16.msra.mxu0 %v5594
        %6188 = vmatpush.bf16.msra.mxu0 %v5590
        %6189 = vmatpush.bf16.msra.mxu0 %v5586
        %6190 = vmatmul.bf16.gmra.mxu0 %v6142
        %v6191 = vpop.f32.mrf.mxu0
        %v6192 = vadd.f32 0.0, %v6191
        %v6193 = vpop.f32.mrf.mxu0
        %6194 = vdwg.mxu0
        %v6195 = vadd.f32 %v6138, %v6153
        %v6196 = vadd.f32 %v6139, %v6166
        %v6197 = vadd.f32 %v6140, %v6179
        %v6198 = vadd.f32 %v6141, %v6192
        %v6199 = vxor.u32 %v6195, 2147483648
        %v6200 = vxor.u32 %v6196, 2147483648
        %v6201 = vxor.u32 %v6197, 2147483648
        %v6202 = vmul.f32 %v6199, 1.442695
        %v6203 = vpow.pop %v6202
        %v6204 = vmul.f32 %v6200, 1.442695
        %v6205 = vpow.pop %v6204
        %v6206 = vmul.f32 %v6201, 1.442695
        %v6207 = vpow.pop %v6206
        %v6208 = vadd.f32 %v6203, 1.0
        %v6209 = vadd.f32 %v6205, 1.0
        %v6210 = vadd.f32 %v6207, 1.0
        %v6211 = vrcp.pop %v6208
        %v6212 = vmul.f32 %v6208, %v6211
        %v6213 = vsub.f32 1.0, %v6212
        %v6214 = vmul.f32 %v6211, %v6213
        %v6215 = vadd.f32 %v6211, %v6214
        %vm6216 = vweird.f32 %v6208
        %vm6217 = vweird.f32 %v6211
        %vm6218 = vmor %vm6216, %vm6217
        %v6219 = vsel %vm6218, %v6211, %v6215
        %v6220 = vand.u32 2147483647, %v6208
        %vm6221 = vcmp.eq.f32.partialorder %v6220, 8.507059e+37
        %v6222 = vand.u32 %v6208, 2147483648
        %v6223 = vor.u32 1.1754944e-38, %v6222
        %v6224 = vsel %vm6221, %v6223, %v6219
        %v6225 = vmul.f32 1.0, %v6224
        %v6226 = vrcp.pop %v6209
        %v6227 = vmul.f32 %v6209, %v6226
        %v6228 = vsub.f32 1.0, %v6227
        %v6229 = vmul.f32 %v6226, %v6228
        %v6230 = vadd.f32 %v6226, %v6229
        %vm6231 = vweird.f32 %v6209
        %vm6232 = vweird.f32 %v6226
        %vm6233 = vmor %vm6231, %vm6232
        %v6234 = vsel %vm6233, %v6226, %v6230
        %v6235 = vand.u32 2147483647, %v6209
        %vm6236 = vcmp.eq.f32.partialorder %v6235, 8.507059e+37
        %v6237 = vand.u32 %v6209, 2147483648
        %v6238 = vor.u32 1.1754944e-38, %v6237
        %v6239 = vsel %vm6236, %v6238, %v6234
        %v6240 = vmul.f32 1.0, %v6239
        %v6241 = vrcp.pop %v6210
        %v6242 = vmul.f32 %v6210, %v6241
        %v6243 = vsub.f32 1.0, %v6242
        %v6244 = vmul.f32 %v6241, %v6243
        %v6245 = vadd.f32 %v6241, %v6244
        %vm6246 = vweird.f32 %v6210
        %vm6247 = vweird.f32 %v6241
        %vm6248 = vmor %vm6246, %vm6247
        %v6249 = vsel %vm6248, %v6241, %v6245
        %v6250 = vand.u32 2147483647, %v6210
        %vm6251 = vcmp.eq.f32.partialorder %v6250, 8.507059e+37
        %v6252 = vand.u32 %v6210, 2147483648
        %v6253 = vor.u32 1.1754944e-38, %v6252
        %v6254 = vsel %vm6251, %v6253, %v6249
        %v6255 = vmul.f32 1.0, %v6254
        %v6256 = vtanh.pop %v6198
        %v6257 = vmul.f32 %v6240, %v6135
        %v6258 = vmul.f32 %v6225, %v6256
        %v6259 = vadd.f32 %v6257, %v6258
        %v6260 = vtanh.pop %v6259
        %v6261 = vmul.f32 %v6255, %v6260
        %v6262 = vld [vmem:[#allocation5 + $0xa0] sm:$0xff]
        %v6263 = vld [vmem:[#allocation5 + $0xa8] sm:$0xff]
        %v6264 = vld [vmem:[#allocation5 + $0xb0] sm:$0xff]
        %v6265 = vld [vmem:[#allocation5 + $0xb8] sm:$0xff]
        %v6266 = vpack.c.bf16 %v6261, %v6261
        %6267 = vmatpush.bf16.msra.mxu0 %v5611
        %6268 = vmatpush.bf16.msra.mxu0 %v5607
        %6269 = vmatpush.bf16.msra.mxu0 %v5603
        %6270 = vmatpush.bf16.msra.mxu0 %v5599
        %6271 = vmatpush.bf16.msra.mxu0 %v5595
        %6272 = vmatpush.bf16.msra.mxu0 %v5591
        %6273 = vmatpush.bf16.msra.mxu0 %v5587
        %6274 = vmatpush.bf16.msra.mxu0 %v5583
        %6275 = vmatmul.bf16.gmra.mxu0 %v6266
        %v6276 = vpop.f32.mrf.mxu0
        %v6277 = vadd.f32 0.0, %v6276
        %v6278 = vpop.f32.mrf.mxu0
        %6279 = vdwg.mxu0
        %6280 = vmatpush.bf16.msra.mxu0 %v5612
        %6281 = vmatpush.bf16.msra.mxu0 %v5608
        %6282 = vmatpush.bf16.msra.mxu0 %v5604
        %6283 = vmatpush.bf16.msra.mxu0 %v5600
        %6284 = vmatpush.bf16.msra.mxu0 %v5596
        %6285 = vmatpush.bf16.msra.mxu0 %v5592
        %6286 = vmatpush.bf16.msra.mxu0 %v5588
        %6287 = vmatpush.bf16.msra.mxu0 %v5584
        %6288 = vmatmul.bf16.gmra.mxu0 %v6266
        %v6289 = vpop.f32.mrf.mxu0
        %v6290 = vadd.f32 0.0, %v6289
        %v6291 = vpop.f32.mrf.mxu0
        %6292 = vdwg.mxu0
        %6293 = vmatpush.bf16.msra.mxu0 %v5613
        %6294 = vmatpush.bf16.msra.mxu0 %v5609
        %6295 = vmatpush.bf16.msra.mxu0 %v5605
        %6296 = vmatpush.bf16.msra.mxu0 %v5601
        %6297 = vmatpush.bf16.msra.mxu0 %v5597
        %6298 = vmatpush.bf16.msra.mxu0 %v5593
        %6299 = vmatpush.bf16.msra.mxu0 %v5589
        %6300 = vmatpush.bf16.msra.mxu0 %v5585
        %6301 = vmatmul.bf16.gmra.mxu0 %v6266
        %v6302 = vpop.f32.mrf.mxu0
        %v6303 = vadd.f32 0.0, %v6302
        %v6304 = vpop.f32.mrf.mxu0
        %6305 = vdwg.mxu0
        %6306 = vmatpush.bf16.msra.mxu0 %v5614
        %6307 = vmatpush.bf16.msra.mxu0 %v5610
        %6308 = vmatpush.bf16.msra.mxu0 %v5606
        %6309 = vmatpush.bf16.msra.mxu0 %v5602
        %6310 = vmatpush.bf16.msra.mxu0 %v5598
        %6311 = vmatpush.bf16.msra.mxu0 %v5594
        %6312 = vmatpush.bf16.msra.mxu0 %v5590
        %6313 = vmatpush.bf16.msra.mxu0 %v5586
        %6314 = vmatmul.bf16.gmra.mxu0 %v6266
        %v6315 = vpop.f32.mrf.mxu0
        %v6316 = vadd.f32 0.0, %v6315
        %v6317 = vpop.f32.mrf.mxu0
        %6318 = vdwg.mxu0
        %v6319 = vadd.f32 %v6262, %v6277
        %v6320 = vadd.f32 %v6263, %v6290
        %v6321 = vadd.f32 %v6264, %v6303
        %v6322 = vadd.f32 %v6265, %v6316
        %v6323 = vxor.u32 %v6319, 2147483648
        %v6324 = vxor.u32 %v6320, 2147483648
        %v6325 = vxor.u32 %v6321, 2147483648
        %v6326 = vmul.f32 %v6323, 1.442695
        %v6327 = vpow.pop %v6326
        %v6328 = vmul.f32 %v6324, 1.442695
        %v6329 = vpow.pop %v6328
        %v6330 = vmul.f32 %v6325, 1.442695
        %v6331 = vpow.pop %v6330
        %v6332 = vadd.f32 %v6327, 1.0
        %v6333 = vadd.f32 %v6329, 1.0
        %v6334 = vadd.f32 %v6331, 1.0
        %v6335 = vrcp.pop %v6332
        %v6336 = vmul.f32 %v6332, %v6335
        %v6337 = vsub.f32 1.0, %v6336
        %v6338 = vmul.f32 %v6335, %v6337
        %v6339 = vadd.f32 %v6335, %v6338
        %vm6340 = vweird.f32 %v6332
        %vm6341 = vweird.f32 %v6335
        %vm6342 = vmor %vm6340, %vm6341
        %v6343 = vsel %vm6342, %v6335, %v6339
        %v6344 = vand.u32 2147483647, %v6332
        %vm6345 = vcmp.eq.f32.partialorder %v6344, 8.507059e+37
        %v6346 = vand.u32 %v6332, 2147483648
        %v6347 = vor.u32 1.1754944e-38, %v6346
        %v6348 = vsel %vm6345, %v6347, %v6343
        %v6349 = vmul.f32 1.0, %v6348
        %v6350 = vrcp.pop %v6333
        %v6351 = vmul.f32 %v6333, %v6350
        %v6352 = vsub.f32 1.0, %v6351
        %v6353 = vmul.f32 %v6350, %v6352
        %v6354 = vadd.f32 %v6350, %v6353
        %vm6355 = vweird.f32 %v6333
        %vm6356 = vweird.f32 %v6350
        %vm6357 = vmor %vm6355, %vm6356
        %v6358 = vsel %vm6357, %v6350, %v6354
        %v6359 = vand.u32 2147483647, %v6333
        %vm6360 = vcmp.eq.f32.partialorder %v6359, 8.507059e+37
        %v6361 = vand.u32 %v6333, 2147483648
        %v6362 = vor.u32 1.1754944e-38, %v6361
        %v6363 = vsel %vm6360, %v6362, %v6358
        %v6364 = vmul.f32 1.0, %v6363
        %v6365 = vrcp.pop %v6334
        %v6366 = vmul.f32 %v6334, %v6365
        %v6367 = vsub.f32 1.0, %v6366
        %v6368 = vmul.f32 %v6365, %v6367
        %v6369 = vadd.f32 %v6365, %v6368
        %vm6370 = vweird.f32 %v6334
        %vm6371 = vweird.f32 %v6365
        %vm6372 = vmor %vm6370, %vm6371
        %v6373 = vsel %vm6372, %v6365, %v6369
        %v6374 = vand.u32 2147483647, %v6334
        %vm6375 = vcmp.eq.f32.partialorder %v6374, 8.507059e+37
        %v6376 = vand.u32 %v6334, 2147483648
        %v6377 = vor.u32 1.1754944e-38, %v6376
        %v6378 = vsel %vm6375, %v6377, %v6373
        %v6379 = vmul.f32 1.0, %v6378
        %v6380 = vtanh.pop %v6322
        %v6381 = vmul.f32 %v6364, %v6259
        %v6382 = vmul.f32 %v6349, %v6380
        %v6383 = vadd.f32 %v6381, %v6382
        %v6384 = vtanh.pop %v6383
        %v6385 = vmul.f32 %v6379, %v6384
        %v6386 = vld [vmem:[#allocation5 + $0xc0] sm:$0xff]
        %v6387 = vld [vmem:[#allocation5 + $0xc8] sm:$0xff]
        %v6388 = vld [vmem:[#allocation5 + $0xd0] sm:$0xff]
        %v6389 = vld [vmem:[#allocation5 + $0xd8] sm:$0xff]
        %v6390 = vpack.c.bf16 %v6385, %v6385
        %6391 = vmatpush.bf16.msra.mxu0 %v5611
        %6392 = vmatpush.bf16.msra.mxu0 %v5607
        %6393 = vmatpush.bf16.msra.mxu0 %v5603
        %6394 = vmatpush.bf16.msra.mxu0 %v5599
        %6395 = vmatpush.bf16.msra.mxu0 %v5595
        %6396 = vmatpush.bf16.msra.mxu0 %v5591
        %6397 = vmatpush.bf16.msra.mxu0 %v5587
        %6398 = vmatpush.bf16.msra.mxu0 %v5583
        %6399 = vmatmul.bf16.gmra.mxu0 %v6390
        %v6400 = vpop.f32.mrf.mxu0
        %v6401 = vadd.f32 0.0, %v6400
        %v6402 = vpop.f32.mrf.mxu0
        %6403 = vdwg.mxu0
        %6404 = vmatpush.bf16.msra.mxu0 %v5612
        %6405 = vmatpush.bf16.msra.mxu0 %v5608
        %6406 = vmatpush.bf16.msra.mxu0 %v5604
        %6407 = vmatpush.bf16.msra.mxu0 %v5600
        %6408 = vmatpush.bf16.msra.mxu0 %v5596
        %6409 = vmatpush.bf16.msra.mxu0 %v5592
        %6410 = vmatpush.bf16.msra.mxu0 %v5588
        %6411 = vmatpush.bf16.msra.mxu0 %v5584
        %6412 = vmatmul.bf16.gmra.mxu0 %v6390
        %v6413 = vpop.f32.mrf.mxu0
        %v6414 = vadd.f32 0.0, %v6413
        %v6415 = vpop.f32.mrf.mxu0
        %6416 = vdwg.mxu0
        %6417 = vmatpush.bf16.msra.mxu0 %v5613
        %6418 = vmatpush.bf16.msra.mxu0 %v5609
        %6419 = vmatpush.bf16.msra.mxu0 %v5605
        %6420 = vmatpush.bf16.msra.mxu0 %v5601
        %6421 = vmatpush.bf16.msra.mxu0 %v5597
        %6422 = vmatpush.bf16.msra.mxu0 %v5593
        %6423 = vmatpush.bf16.msra.mxu0 %v5589
        %6424 = vmatpush.bf16.msra.mxu0 %v5585
        %6425 = vmatmul.bf16.gmra.mxu0 %v6390
        %v6426 = vpop.f32.mrf.mxu0
        %v6427 = vadd.f32 0.0, %v6426
        %v6428 = vpop.f32.mrf.mxu0
        %6429 = vdwg.mxu0
        %6430 = vmatpush.bf16.msra.mxu0 %v5614
        %6431 = vmatpush.bf16.msra.mxu0 %v5610
        %6432 = vmatpush.bf16.msra.mxu0 %v5606
        %6433 = vmatpush.bf16.msra.mxu0 %v5602
        %6434 = vmatpush.bf16.msra.mxu0 %v5598
        %6435 = vmatpush.bf16.msra.mxu0 %v5594
        %6436 = vmatpush.bf16.msra.mxu0 %v5590
        %6437 = vmatpush.bf16.msra.mxu0 %v5586
        %6438 = vmatmul.bf16.gmra.mxu0 %v6390
        %v6439 = vpop.f32.mrf.mxu0
        %v6440 = vadd.f32 0.0, %v6439
        %v6441 = vpop.f32.mrf.mxu0
        %6442 = vdwg.mxu0
        %v6443 = vadd.f32 %v6386, %v6401
        %v6444 = vadd.f32 %v6387, %v6414
        %v6445 = vadd.f32 %v6388, %v6427
        %v6446 = vadd.f32 %v6389, %v6440
        %v6447 = vxor.u32 %v6443, 2147483648
        %v6448 = vxor.u32 %v6444, 2147483648
        %v6449 = vxor.u32 %v6445, 2147483648
        %v6450 = vmul.f32 %v6447, 1.442695
        %v6451 = vpow.pop %v6450
        %v6452 = vmul.f32 %v6448, 1.442695
        %v6453 = vpow.pop %v6452
        %v6454 = vmul.f32 %v6449, 1.442695
        %v6455 = vpow.pop %v6454
        %v6456 = vadd.f32 %v6451, 1.0
        %v6457 = vadd.f32 %v6453, 1.0
        %v6458 = vadd.f32 %v6455, 1.0
        %v6459 = vrcp.pop %v6456
        %v6460 = vmul.f32 %v6456, %v6459
        %v6461 = vsub.f32 1.0, %v6460
        %v6462 = vmul.f32 %v6459, %v6461
        %v6463 = vadd.f32 %v6459, %v6462
        %vm6464 = vweird.f32 %v6456
        %vm6465 = vweird.f32 %v6459
        %vm6466 = vmor %vm6464, %vm6465
        %v6467 = vsel %vm6466, %v6459, %v6463
        %v6468 = vand.u32 2147483647, %v6456
        %vm6469 = vcmp.eq.f32.partialorder %v6468, 8.507059e+37
        %v6470 = vand.u32 %v6456, 2147483648
        %v6471 = vor.u32 1.1754944e-38, %v6470
        %v6472 = vsel %vm6469, %v6471, %v6467
        %v6473 = vmul.f32 1.0, %v6472
        %v6474 = vrcp.pop %v6457
        %v6475 = vmul.f32 %v6457, %v6474
        %v6476 = vsub.f32 1.0, %v6475
        %v6477 = vmul.f32 %v6474, %v6476
        %v6478 = vadd.f32 %v6474, %v6477
        %vm6479 = vweird.f32 %v6457
        %vm6480 = vweird.f32 %v6474
        %vm6481 = vmor %vm6479, %vm6480
        %v6482 = vsel %vm6481, %v6474, %v6478
        %v6483 = vand.u32 2147483647, %v6457
        %vm6484 = vcmp.eq.f32.partialorder %v6483, 8.507059e+37
        %v6485 = vand.u32 %v6457, 2147483648
        %v6486 = vor.u32 1.1754944e-38, %v6485
        %v6487 = vsel %vm6484, %v6486, %v6482
        %v6488 = vmul.f32 1.0, %v6487
        %v6489 = vrcp.pop %v6458
        %v6490 = vmul.f32 %v6458, %v6489
        %v6491 = vsub.f32 1.0, %v6490
        %v6492 = vmul.f32 %v6489, %v6491
        %v6493 = vadd.f32 %v6489, %v6492
        %vm6494 = vweird.f32 %v6458
        %vm6495 = vweird.f32 %v6489
        %vm6496 = vmor %vm6494, %vm6495
        %v6497 = vsel %vm6496, %v6489, %v6493
        %v6498 = vand.u32 2147483647, %v6458
        %vm6499 = vcmp.eq.f32.partialorder %v6498, 8.507059e+37
        %v6500 = vand.u32 %v6458, 2147483648
        %v6501 = vor.u32 1.1754944e-38, %v6500
        %v6502 = vsel %vm6499, %v6501, %v6497
        %v6503 = vmul.f32 1.0, %v6502
        %v6504 = vtanh.pop %v6446
        %v6505 = vmul.f32 %v6488, %v6383
        %v6506 = vmul.f32 %v6473, %v6504
        %v6507 = vadd.f32 %v6505, %v6506
        %v6508 = vtanh.pop %v6507
        %v6509 = vmul.f32 %v6503, %v6508
        %v6510 = vld [vmem:[#allocation5 + $0xe0] sm:$0xff]
        %v6511 = vld [vmem:[#allocation5 + $0xe8] sm:$0xff]
        %v6512 = vld [vmem:[#allocation5 + $0xf0] sm:$0xff]
        %v6513 = vld [vmem:[#allocation5 + $0xf8] sm:$0xff]
        %v6514 = vpack.c.bf16 %v6509, %v6509
        %6515 = vmatpush.bf16.msra.mxu0 %v5611
        %6516 = vmatpush.bf16.msra.mxu0 %v5607
        %6517 = vmatpush.bf16.msra.mxu0 %v5603
        %6518 = vmatpush.bf16.msra.mxu0 %v5599
        %6519 = vmatpush.bf16.msra.mxu0 %v5595
        %6520 = vmatpush.bf16.msra.mxu0 %v5591
        %6521 = vmatpush.bf16.msra.mxu0 %v5587
        %6522 = vmatpush.bf16.msra.mxu0 %v5583
        %6523 = vmatmul.bf16.gmra.mxu0 %v6514
        %v6524 = vpop.f32.mrf.mxu0
        %v6525 = vadd.f32 0.0, %v6524
        %v6526 = vpop.f32.mrf.mxu0
        %6527 = vdwg.mxu0
        %6528 = vmatpush.bf16.msra.mxu0 %v5612
        %6529 = vmatpush.bf16.msra.mxu0 %v5608
        %6530 = vmatpush.bf16.msra.mxu0 %v5604
        %6531 = vmatpush.bf16.msra.mxu0 %v5600
        %6532 = vmatpush.bf16.msra.mxu0 %v5596
        %6533 = vmatpush.bf16.msra.mxu0 %v5592
        %6534 = vmatpush.bf16.msra.mxu0 %v5588
        %6535 = vmatpush.bf16.msra.mxu0 %v5584
        %6536 = vmatmul.bf16.gmra.mxu0 %v6514
        %v6537 = vpop.f32.mrf.mxu0
        %v6538 = vadd.f32 0.0, %v6537
        %v6539 = vpop.f32.mrf.mxu0
        %6540 = vdwg.mxu0
        %6541 = vmatpush.bf16.msra.mxu0 %v5613
        %6542 = vmatpush.bf16.msra.mxu0 %v5609
        %6543 = vmatpush.bf16.msra.mxu0 %v5605
        %6544 = vmatpush.bf16.msra.mxu0 %v5601
        %6545 = vmatpush.bf16.msra.mxu0 %v5597
        %6546 = vmatpush.bf16.msra.mxu0 %v5593
        %6547 = vmatpush.bf16.msra.mxu0 %v5589
        %6548 = vmatpush.bf16.msra.mxu0 %v5585
        %6549 = vmatmul.bf16.gmra.mxu0 %v6514
        %v6550 = vpop.f32.mrf.mxu0
        %v6551 = vadd.f32 0.0, %v6550
        %v6552 = vpop.f32.mrf.mxu0
        %6553 = vdwg.mxu0
        %6554 = vmatpush.bf16.msra.mxu0 %v5614
        %6555 = vmatpush.bf16.msra.mxu0 %v5610
        %6556 = vmatpush.bf16.msra.mxu0 %v5606
        %6557 = vmatpush.bf16.msra.mxu0 %v5602
        %6558 = vmatpush.bf16.msra.mxu0 %v5598
        %6559 = vmatpush.bf16.msra.mxu0 %v5594
        %6560 = vmatpush.bf16.msra.mxu0 %v5590
        %6561 = vmatpush.bf16.msra.mxu0 %v5586
        %6562 = vmatmul.bf16.gmra.mxu0 %v6514
        %v6563 = vpop.f32.mrf.mxu0
        %v6564 = vadd.f32 0.0, %v6563
        %v6565 = vpop.f32.mrf.mxu0
        %6566 = vdwg.mxu0
        %v6567 = vadd.f32 %v6510, %v6525
        %v6568 = vadd.f32 %v6511, %v6538
        %v6569 = vadd.f32 %v6512, %v6551
        %v6570 = vadd.f32 %v6513, %v6564
        %v6571 = vxor.u32 %v6567, 2147483648
        %v6572 = vxor.u32 %v6568, 2147483648
        %v6573 = vxor.u32 %v6569, 2147483648
        %v6574 = vmul.f32 %v6571, 1.442695
        %v6575 = vpow.pop %v6574
        %v6576 = vmul.f32 %v6572, 1.442695
        %v6577 = vpow.pop %v6576
        %v6578 = vmul.f32 %v6573, 1.442695
        %v6579 = vpow.pop %v6578
        %v6580 = vadd.f32 %v6575, 1.0
        %v6581 = vadd.f32 %v6577, 1.0
        %v6582 = vadd.f32 %v6579, 1.0
        %v6583 = vrcp.pop %v6580
        %v6584 = vmul.f32 %v6580, %v6583
        %v6585 = vsub.f32 1.0, %v6584
        %v6586 = vmul.f32 %v6583, %v6585
        %v6587 = vadd.f32 %v6583, %v6586
        %vm6588 = vweird.f32 %v6580
        %vm6589 = vweird.f32 %v6583
        %vm6590 = vmor %vm6588, %vm6589
        %v6591 = vsel %vm6590, %v6583, %v6587
        %v6592 = vand.u32 2147483647, %v6580
        %vm6593 = vcmp.eq.f32.partialorder %v6592, 8.507059e+37
        %v6594 = vand.u32 %v6580, 2147483648
        %v6595 = vor.u32 1.1754944e-38, %v6594
        %v6596 = vsel %vm6593, %v6595, %v6591
        %v6597 = vmul.f32 1.0, %v6596
        %v6598 = vrcp.pop %v6581
        %v6599 = vmul.f32 %v6581, %v6598
        %v6600 = vsub.f32 1.0, %v6599
        %v6601 = vmul.f32 %v6598, %v6600
        %v6602 = vadd.f32 %v6598, %v6601
        %vm6603 = vweird.f32 %v6581
        %vm6604 = vweird.f32 %v6598
        %vm6605 = vmor %vm6603, %vm6604
        %v6606 = vsel %vm6605, %v6598, %v6602
        %v6607 = vand.u32 2147483647, %v6581
        %vm6608 = vcmp.eq.f32.partialorder %v6607, 8.507059e+37
        %v6609 = vand.u32 %v6581, 2147483648
        %v6610 = vor.u32 1.1754944e-38, %v6609
        %v6611 = vsel %vm6608, %v6610, %v6606
        %v6612 = vmul.f32 1.0, %v6611
        %v6613 = vrcp.pop %v6582
        %v6614 = vmul.f32 %v6582, %v6613
        %v6615 = vsub.f32 1.0, %v6614
        %v6616 = vmul.f32 %v6613, %v6615
        %v6617 = vadd.f32 %v6613, %v6616
        %vm6618 = vweird.f32 %v6582
        %vm6619 = vweird.f32 %v6613
        %vm6620 = vmor %vm6618, %vm6619
        %v6621 = vsel %vm6620, %v6613, %v6617
        %v6622 = vand.u32 2147483647, %v6582
        %vm6623 = vcmp.eq.f32.partialorder %v6622, 8.507059e+37
        %v6624 = vand.u32 %v6582, 2147483648
        %v6625 = vor.u32 1.1754944e-38, %v6624
        %v6626 = vsel %vm6623, %v6625, %v6621
        %v6627 = vmul.f32 1.0, %v6626
        %v6628 = vtanh.pop %v6570
        %v6629 = vmul.f32 %v6612, %v6507
        %v6630 = vmul.f32 %v6597, %v6628
        %v6631 = vadd.f32 %v6629, %v6630
        %v6632 = vtanh.pop %v6631
        %v6633 = vmul.f32 %v6627, %v6632
        %6634 = vst [vmem:[%s5478] sm:$0xff] %v6633
        %6635 = vst [vmem:[%s5480] sm:$0xff] %v6631
        %p6636 = scmp.eq.s32.totalorder %s27, 1
        // Predicated region
        $region73: #{tpu_custom_call.1} parent=43 // pred_check
          %p6637 = pneg %p6636
        $region74: #{tpu_custom_call.1} parent=43 // pred_check_branch
          %6639 = sbr.rel (%p6637) target = $region76
        $region75: #{tpu_custom_call.1} parent=43 // pred_region
          %v6640 = vld [vmem:[#allocation2] sm:$0xff]
          %v6641 = vld [vmem:[#allocation2 + $0x8] sm:$0xff]
          %v6642 = vld [vmem:[#allocation2 + $0x10] sm:$0xff]
          %v6643 = vld [vmem:[#allocation2 + $0x18] sm:$0xff]
          %6644 = vst [vmem:[#allocation17] sm:$0xff] %v6640
          %6645 = vst [vmem:[#allocation17 + $0x8] sm:$0xff] %v6641
          %6646 = vst [vmem:[#allocation17 + $0x10] sm:$0xff] %v6642
          %6647 = vst [vmem:[#allocation17 + $0x18] sm:$0xff] %v6643
          %v6648 = vld [vmem:[#allocation3] sm:$0xff]
          %v6649 = vld [vmem:[#allocation3 + $0x8] sm:$0xff]
          %v6650 = vld [vmem:[#allocation3 + $0x10] sm:$0xff]
          %v6651 = vld [vmem:[#allocation3 + $0x18] sm:$0xff]
          %6652 = vst [vmem:[#allocation18] sm:$0xff] %v6648
          %6653 = vst [vmem:[#allocation18 + $0x8] sm:$0xff] %v6649
          %6654 = vst [vmem:[#allocation18 + $0x10] sm:$0xff] %v6650
          %6655 = vst [vmem:[#allocation18 + $0x18] sm:$0xff] %v6651
        $region76: #{tpu_custom_call.1} parent=43 // pred_fallthru
          _
        // Predicated region
        $region77: #{tpu_custom_call.1} parent=43 // pred_check
          %p6656 = pneg %p171
        $region78: #{tpu_custom_call.1} parent=43 // pred_check_branch
          %6658 = sbr.rel (%p6656) target = $region80
        $region79: #{tpu_custom_call.1} parent=43 // pred_region
          %6660 = vsyncadd [#allocation8], 0
          %s6661 = sshll.u32 [#allocation17], 4
          %s6662 = int_to_ptr.vmem [resolvable:$true] %s6661
          %s6663 = sshll.u32 %s6, 4
          %s6664 = int_to_ptr.hbm [resolvable:$true] %s6663
          %6669 = dma.vmem_to_hbm [thread:$0]  %s6662, 512, %s6664, [#allocation8], 128, 128, 8
        $region80: #{tpu_custom_call.1} parent=43 // pred_fallthru
          _
        // Predicated region
        $region81: #{tpu_custom_call.1} parent=43 // pred_check
          %p6670 = pneg %p192
        $region82: #{tpu_custom_call.1} parent=43 // pred_check_branch
          %6672 = sbr.rel (%p6670) target = $region84
        $region83: #{tpu_custom_call.1} parent=43 // pred_region
          %6674 = vsyncadd [#allocation19], 0
          %s6675 = sshll.u32 [#allocation18], 4
          %s6676 = int_to_ptr.vmem [resolvable:$true] %s6675
          %s6677 = sshll.u32 %s7, 4
          %s6678 = int_to_ptr.hbm [resolvable:$true] %s6677
          %6683 = dma.vmem_to_hbm [thread:$0]  %s6676, 512, %s6678, [#allocation19], 128, 128, 8
        $region84: #{tpu_custom_call.1} parent=43 // pred_fallthru
          _
        // Predicated region
        $region85: #{tpu_custom_call.1} parent=43 // pred_check
          %p6684 = pneg %p171
        $region86: #{tpu_custom_call.1} parent=43 // pred_check_branch
          %6686 = sbr.rel (%p6684) target = $region88
        $region87: #{tpu_custom_call.1} parent=43 // pred_region
          %6688 = dma.done [#allocation8], 512
        $region88: #{tpu_custom_call.1} parent=43 // pred_fallthru
          _
        // Predicated region
        $region89: #{tpu_custom_call.1} parent=43 // pred_check
          %p6689 = pneg %p192
        $region90: #{tpu_custom_call.1} parent=43 // pred_check_branch
          %6691 = sbr.rel (%p6689) target = $region92
        $region91: #{tpu_custom_call.1} parent=43 // pred_region
          %6693 = dma.done [#allocation19], 512
        $region92: #{tpu_custom_call.1} parent=43 // pred_fallthru
          _
      $region44: #{tpu_custom_call.1} parent=5 // pred_fallthru
        _
      %p6694 = scmp.le.s32.totalorder 2, %s22
      // Predicated region
      $region93: #{tpu_custom_call.1} parent=5 // pred_check
        %p6695 = pneg %p6694
      $region94: #{tpu_custom_call.1} parent=5 // pred_check_branch
        %6697 = sbr.rel (%p6695) target = $region96
      $region95: #{tpu_custom_call.1} parent=5 // pred_region
        %s6698 = ssub.s32 %s22, 2
      $region96: #{tpu_custom_call.1} parent=5 // pred_fallthru
        _
    $region6: #{tpu_custom_call.1} parent=1 // loop_footer
      %s26 = sadd.s32 1, %s22
    $region7: #{tpu_custom_call.1} parent=1 // loop_footer_branch
      %21 = sbr.rel target = $region3
    $region8: #{tpu_custom_call.1} parent=1 // loop_exit
      _
    %6699 = vsyncpa [#allocation7], 1
    %s6700 = scalar_lea.sflag [#allocation7], 1
    %6701 = vsyncpa %s6700, 1
    %6702 = vsyncpa [#allocation10], 1
    %6703 = vsyncpa [#allocation13], 1
    %6704 = vsyncpa [#allocation16], 1
    %6705 = vsyncpa [#allocation8], 1
    %s6706 = scalar_lea.sflag [#allocation8], 1
    %6707 = vsyncpa %s6706, 1
    %6708 = vsyncpa [#allocation19], 1

</llo_original>
